<compile_context>
chip_gen: v6e
topology: v6e:2x2x1
jax: 0.10.0
libtpu: 0.0.40
codegen_flags: <defaults>
</compile_context>

<pallas_src>
import functools

import numpy as np
import jax
import jax.numpy as jnp
from jax.experimental import pallas as pl
from jax.experimental.pallas import tpu as pltpu

NUM_CLASSES = 10
SLOPE = 0.1          # nn.LeakyReLU(0.1)
C1, C2, KSIZE = 16, 32, 5
LANE = 128
BT = 8               # images per grid step (per-step VMEM ~15 MB incl. weights)


# ----------------------------------------------------------------------------
# The fused kernel: one grid step processes BT images end to end.
# ----------------------------------------------------------------------------
def _lenet5_kernel(x_ref, sel1_ref, t1_ref, b1_ref,
                   sel2_ref, t2_ref, b2_ref,
                   rsel_ref, w1_ref, fb1_ref, w2_ref, fb2_ref,
                   w3_ref, fb3_ref, o_ref, *, slope):
    def mm(a, b):
        return jnp.dot(a, b, preferred_element_type=jnp.float32)

    def leaky(z):
        return jnp.maximum(z, slope * z)

    x = x_ref[...]                                      # [BT*32, 128]  (h-rows, w*3+ci lanes)

    # ---- conv1 + pool1 -----------------------------------------------------
    # g1[s][(b,ph), :] = input row 2*ph + s of image b   (s = pi + dh, 0..5)
    g1 = [mm(sel1_ref[s], x) for s in range(6)]         # 6 x [BT*14, 128]
    planes1 = []
    for pi in range(2):                                 # pool-row parity
        acc = mm(g1[pi], t1_ref[0])
        for dh in range(1, KSIZE):                      # kernel row
            acc = acc + mm(g1[pi + dh], t1_ref[dh])
        planes1.append(acc)                             # [BT*14, 512] (pj blocks of 256)
    z1 = jnp.maximum(planes1[0], planes1[1]) + b1_ref[...]
    z1 = jnp.maximum(z1[:, 0:256], z1[:, 256:512])      # pool over column parity pj
    a1 = leaky(z1)                                      # [BT*14, 256] lanes = pw*16+co (224 used)

    # ---- conv2 + pool2 -----------------------------------------------------
    g2 = [mm(sel2_ref[s], a1) for s in range(6)]        # 6 x [BT*5, 256]
    planes2 = []
    for pi in range(2):
        acc = mm(g2[pi], t2_ref[0])
        for dh in range(1, KSIZE):
            acc = acc + mm(g2[pi + dh], t2_ref[dh])
        planes2.append(acc)                             # [BT*5, 512]
    z2 = jnp.maximum(planes2[0], planes2[1]) + b2_ref[...]
    z2 = jnp.maximum(z2[:, 0:256], z2[:, 256:512])
    a2 = leaky(z2)                                      # [BT*5, 256] lanes = pw*32+co (160 used)

    # ---- flatten (per pooled row h) + fc1 + fc2 + fc3 ----------------------
    acc = mm(mm(rsel_ref[0], a2), w1_ref[0])            # rows of image b at pooled row h
    for h in range(1, 5):
        acc = acc + mm(mm(rsel_ref[h], a2), w1_ref[h])
    h1 = leaky(acc + fb1_ref[...])                      # [BT, 128] (120 valid)
    h2 = leaky(mm(h1, w2_ref[...]) + fb2_ref[...])      # [BT, 128] (84 valid)
    out = mm(h2, w3_ref[...]) + fb3_ref[...]            # [BT, 128] (10 valid)
    o_ref[...] = out.astype(o_ref.dtype)


# ----------------------------------------------------------------------------
# Parameter init (mirrors the PyTorch module) and one-time layout preparation.
# ----------------------------------------------------------------------------
def _kaiming_uniform(key, shape, fan_in):
    # kaiming_uniform_(a=0, nonlinearity='leaky_relu'): bound = sqrt(6/fan_in)
    bound = (6.0 / fan_in) ** 0.5
    return jax.random.uniform(key, shape, jnp.float32, -bound, bound)


def init_params(key, num_classes=NUM_CLASSES):
    ks = jax.random.split(key, 5)
    return {
        "conv1_w": _kaiming_uniform(ks[0], (C1, 3, KSIZE, KSIZE), 3 * KSIZE * KSIZE),
        "conv1_b": jnp.zeros((C1,), jnp.float32),
        "conv2_w": _kaiming_uniform(ks[1], (C2, C1, KSIZE, KSIZE), C1 * KSIZE * KSIZE),
        "conv2_b": jnp.zeros((C2,), jnp.float32),
        "fc1_w": _kaiming_uniform(ks[2], (120, C2 * 5 * 5), C2 * 5 * 5),
        "fc1_b": jnp.zeros((120,), jnp.float32),
        "fc2_w": _kaiming_uniform(ks[3], (84, 120), 120),
        "fc2_b": jnp.zeros((84,), jnp.float32),
        "fc3_w": _kaiming_uniform(ks[4], (num_classes, 84), 84),
        "fc3_b": jnp.zeros((num_classes,), jnp.float32),
    }


def prepare_constants(raw, bt=BT):
    """Build the selection / stride-2-Toeplitz / padded-weight operands."""

    def conv_toeplitz(w, out_w, kpad, npad):
        # w: torch layout [cout, cin, 5, 5].
        # T[dh, iw*cin+ci, pj*npad + pw*cout + co] = w[co, ci, dh, iw-(2pw+pj)]
        w = np.asarray(w, np.float32)
        cout, cin, k, _ = w.shape
        t = np.zeros((k, kpad, 2 * npad), np.float32)
        for dh in range(k):
            for pj in range(2):
                for pw in range(out_w):
                    ow = 2 * pw + pj
                    for dw in range(k):
                        iw = ow + dw
                        col = pj * npad + pw * cout
                        t[dh, iw * cin:(iw + 1) * cin, col:col + cout] = w[:, :, dh, dw].T
        return t

    def sel_matrix(out_rows, in_rows):
        # sel[s, b*out_rows + r, b*in_rows + 2*r + s] = 1   (s = pi + dh, 0..5)
        m = np.zeros((6, bt * out_rows, bt * in_rows), np.float32)
        for s in range(6):
            for b in range(bt):
                for r in range(out_rows):
                    m[s, b * out_rows + r, b * in_rows + 2 * r + s] = 1.0
        return m

    def bias_tile(b, reps, npad):
        b = np.asarray(b, np.float32)
        cout = b.shape[0]
        t = np.zeros((1, 2 * npad), np.float32)
        for pj in range(2):
            for r in range(reps):
                t[0, pj * npad + r * cout: pj * npad + r * cout + cout] = b
        return t

    c = {
        "sel1": sel_matrix(14, 32),
        "t1": conv_toeplitz(raw["conv1_w"], 14, LANE, 256),
        "b1": bias_tile(raw["conv1_b"], 14, 256),
        "sel2": sel_matrix(5, 14),
        "t2": conv_toeplitz(raw["conv2_w"], 5, 256, 256),
        "b2": bias_tile(raw["conv2_b"], 5, 256),
    }

    # flatten row-selector: rs[h, b, b*5 + h] = 1
    rsel = np.zeros((5, bt, bt * 5), np.float32)
    for h in range(5):
        for b in range(bt):
            rsel[h, b, b * 5 + h] = 1.0
    c["rsel"] = rsel

    # fc1 weights split per pooled row h; our lane order is (w, c), torch flat
    # order is c*25 + h*5 + w.
    w1 = np.asarray(raw["fc1_w"], np.float32)            # [120, 800]
    w1s = np.zeros((5, 256, LANE), np.float32)
    for h in range(5):
        for w_ in range(5):
            for cc in range(C2):
                w1s[h, w_ * C2 + cc, :120] = w1[:, cc * 25 + h * 5 + w_]
    c["w1"] = w1s
    fb1 = np.zeros((1, LANE), np.float32); fb1[0, :120] = np.asarray(raw["fc1_b"])
    c["fb1"] = fb1

    def fc_pad(w):
        w = np.asarray(w, np.float32)                     # [out, in]
        m = np.zeros((LANE, LANE), np.float32)
        m[:w.shape[1], :w.shape[0]] = w.T
        return m

    c["w2"] = fc_pad(raw["fc2_w"])
    fb2 = np.zeros((1, LANE), np.float32); fb2[0, :84] = np.asarray(raw["fc2_b"])
    c["fb2"] = fb2
    c["w3"] = fc_pad(raw["fc3_w"])
    fb3 = np.zeros((1, LANE), np.float32); fb3[0, :NUM_CLASSES] = np.asarray(raw["fc3_b"])
    c["fb3"] = fb3

    return {k: jnp.asarray(v) for k, v in c.items()}


# ----------------------------------------------------------------------------
# Forward (semantics identical to LeNet5_LeakyReLU.forward).
# ----------------------------------------------------------------------------
def _const_spec(a):
    nd = a.ndim
    return pl.BlockSpec(a.shape, lambda i, _nd=nd: (0,) * _nd)


def lenet5_forward(consts, x):
    # x: [B, 3, 32, 32] NCHW -> [B, NUM_CLASSES]
    B = x.shape[0]
    Bp = ((B + BT - 1) // BT) * BT
    xh = jnp.transpose(x.astype(jnp.float32), (0, 2, 3, 1)).reshape(B, 32, 32 * 3)
    xh = jnp.pad(xh, ((0, Bp - B), (0, 0), (0, LANE - 32 * 3)))
    x_in = xh.reshape(Bp * 32, LANE)                      # rows = (image, h), lanes = w*3+ci

    operands = (x_in, consts["sel1"], consts["t1"], consts["b1"],
                consts["sel2"], consts["t2"], consts["b2"],
                consts["rsel"], consts["w1"], consts["fb1"],
                consts["w2"], consts["fb2"], consts["w3"], consts["fb3"])

    in_specs = [pl.BlockSpec((BT * 32, LANE), lambda i: (i, 0))]
    in_specs += [_const_spec(a) for a in operands[1:]]

    out = pl.pallas_call(
        functools.partial(_lenet5_kernel, slope=SLOPE),
        out_shape=jax.ShapeDtypeStruct((Bp, LANE), jnp.float32),
        grid_spec=pl.GridSpec(
            grid=(Bp // BT,),
            in_specs=in_specs,
            out_specs=pl.BlockSpec((BT, LANE), lambda i: (i, 0)),
        ),
        compiler_params=pltpu.CompilerParams(
            dimension_semantics=("parallel",),
            vmem_limit_bytes=40 * 1024 * 1024),
    )(*operands)
    return out[:B, :NUM_CLASSES]


# ----------------------------------------------------------------------------
# Pure-JAX reference (XLA ops) for a correctness check of the fused kernel.
# ----------------------------------------------------------------------------
def reference_forward(raw, x):
    x = x.astype(jnp.float32)
    prec = jax.lax.Precision.HIGHEST

    def leaky(z):
        return jnp.maximum(z, SLOPE * z)

    def conv(h, w, b):
        y = jax.lax.conv_general_dilated(
            h, w, (1, 1), "VALID",
            dimension_numbers=("NCHW", "OIHW", "NCHW"), precision=prec)
        return y + b.reshape(1, -1, 1, 1)

    def pool(h):
        return jax.lax.reduce_window(h, -jnp.inf, jax.lax.max,
                                     (1, 1, 2, 2), (1, 1, 2, 2), "VALID")

    h = pool(leaky(conv(x, raw["conv1_w"], raw["conv1_b"])))
    h = pool(leaky(conv(h, raw["conv2_w"], raw["conv2_b"])))
    h = h.reshape(h.shape[0], -1)
    h = leaky(jnp.dot(h, raw["fc1_w"].T, precision=prec) + raw["fc1_b"])
    h = leaky(jnp.dot(h, raw["fc2_w"].T, precision=prec) + raw["fc2_b"])
    return jnp.dot(h, raw["fc3_w"].T, precision=prec) + raw["fc3_b"]


if __name__ == "__main__":
    key = jax.random.PRNGKey(0)
    pkey, xkey = jax.random.split(key)
    raw = init_params(pkey)
    consts = prepare_constants(raw)
    # Spatial size 32 is required by the module (32*5*5 = 800 flatten dim).
    x = jax.random.normal(xkey, (2, 3, 32, 32), jnp.float32)

    fwd = jax.jit(lenet5_forward)
    out = jax.block_until_ready(fwd(consts, x))
    assert out.shape == (2, NUM_CLASSES) and out.dtype == jnp.float32
    assert bool(jnp.all(jnp.isfinite(out)))

    ref = jax.block_until_ready(jax.jit(reference_forward)(raw, x))
    np.testing.assert_allclose(np.asarray(out), np.asarray(ref), rtol=5e-2, atol=5e-2)

    print("KERNEL_OK")
</pallas_src>

<mosaic_0001>
module attributes {stable_mosaic.version = 11 : i64} {
  func.func @_lenet5_kernel(%arg0: i32, %arg1: memref<256x128xf32, #tpu.memory_space<vmem>>, %arg2: memref<6x112x256xf32, #tpu.memory_space<vmem>>, %arg3: memref<5x128x512xf32, #tpu.memory_space<vmem>>, %arg4: memref<1x512xf32, #tpu.memory_space<vmem>>, %arg5: memref<6x40x112xf32, #tpu.memory_space<vmem>>, %arg6: memref<5x256x512xf32, #tpu.memory_space<vmem>>, %arg7: memref<1x512xf32, #tpu.memory_space<vmem>>, %arg8: memref<5x8x40xf32, #tpu.memory_space<vmem>>, %arg9: memref<5x256x128xf32, #tpu.memory_space<vmem>>, %arg10: memref<1x128xf32, #tpu.memory_space<vmem>>, %arg11: memref<128x128xf32, #tpu.memory_space<vmem>>, %arg12: memref<1x128xf32, #tpu.memory_space<vmem>>, %arg13: memref<128x128xf32, #tpu.memory_space<vmem>>, %arg14: memref<1x128xf32, #tpu.memory_space<vmem>>, %arg15: memref<8x128xf32, #tpu.memory_space<vmem>>) attributes {dimension_semantics = [#tpu.dimension_semantics<parallel>], iteration_bounds = array<i64: 1>, scalar_prefetch = 0 : i64, scratch_operands = 0 : i64, tpu.core_type = #tpu.core_type<tc>, window_params = [{transform_indices = @transform_0, window_bounds = array<i64: 256, 128>}, {pipeline_mode = #tpu.pipeline_mode<synchronous>, transform_indices = @transform_1, window_bounds = array<i64: 6, 112, 256>}, {pipeline_mode = #tpu.pipeline_mode<synchronous>, transform_indices = @transform_2, window_bounds = array<i64: 5, 128, 512>}, {pipeline_mode = #tpu.pipeline_mode<synchronous>, transform_indices = @transform_3, window_bounds = array<i64: 1, 512>}, {pipeline_mode = #tpu.pipeline_mode<synchronous>, transform_indices = @transform_4, window_bounds = array<i64: 6, 40, 112>}, {pipeline_mode = #tpu.pipeline_mode<synchronous>, transform_indices = @transform_5, window_bounds = array<i64: 5, 256, 512>}, {pipeline_mode = #tpu.pipeline_mode<synchronous>, transform_indices = @transform_6, window_bounds = array<i64: 1, 512>}, {pipeline_mode = #tpu.pipeline_mode<synchronous>, transform_indices = @transform_7, window_bounds = array<i64: 5, 8, 40>}, {pipeline_mode = #tpu.pipeline_mode<synchronous>, transform_indices = @transform_8, window_bounds = array<i64: 5, 256, 128>}, {pipeline_mode = #tpu.pipeline_mode<synchronous>, transform_indices = @transform_9, window_bounds = array<i64: 1, 128>}, {pipeline_mode = #tpu.pipeline_mode<synchronous>, transform_indices = @transform_10, window_bounds = array<i64: 128, 128>}, {pipeline_mode = #tpu.pipeline_mode<synchronous>, transform_indices = @transform_11, window_bounds = array<i64: 1, 128>}, {pipeline_mode = #tpu.pipeline_mode<synchronous>, transform_indices = @transform_12, window_bounds = array<i64: 128, 128>}, {pipeline_mode = #tpu.pipeline_mode<synchronous>, transform_indices = @transform_13, window_bounds = array<i64: 1, 128>}, {transform_indices = @transform_14, window_bounds = array<i64: 8, 128>}]} {
    %c0 = arith.constant 0 : index
    %c0_0 = arith.constant 0 : index
    %0 = vector.load %arg1[%c0, %c0_0] : memref<256x128xf32, #tpu.memory_space<vmem>>, vector<256x128xf32>
    %c0_1 = arith.constant 0 : index
    %c0_2 = arith.constant 0 : index
    %c0_3 = arith.constant 0 : index
    %1 = vector.load %arg2[%c0_1, %c0_2, %c0_3] : memref<6x112x256xf32, #tpu.memory_space<vmem>>, vector<1x112x256xf32>
    %2 = vector.shape_cast %1 : vector<1x112x256xf32> to vector<112x256xf32>
    %cst = arith.constant dense<0.000000e+00> : vector<112x128xf32>
    %3 = tpu.matmul %2, %0, %cst {dimension_numbers = #tpu.dot_dimension_numbers<[1], [0], [0], [1], [0, 0, 1, 1], [], []>} : vector<112x256xf32>, vector<256x128xf32>, vector<112x128xf32> -> vector<112x128xf32>
    %c1 = arith.constant 1 : index
    %c0_4 = arith.constant 0 : index
    %c0_5 = arith.constant 0 : index
    %4 = vector.load %arg2[%c1, %c0_4, %c0_5] : memref<6x112x256xf32, #tpu.memory_space<vmem>>, vector<1x112x256xf32>
    %5 = vector.shape_cast %4 : vector<1x112x256xf32> to vector<112x256xf32>
    %cst_6 = arith.constant dense<0.000000e+00> : vector<112x128xf32>
    %6 = tpu.matmul %5, %0, %cst_6 {dimension_numbers = #tpu.dot_dimension_numbers<[1], [0], [0], [1], [0, 0, 1, 1], [], []>} : vector<112x256xf32>, vector<256x128xf32>, vector<112x128xf32> -> vector<112x128xf32>
    %c2 = arith.constant 2 : index
    %c0_7 = arith.constant 0 : index
    %c0_8 = arith.constant 0 : index
    %7 = vector.load %arg2[%c2, %c0_7, %c0_8] : memref<6x112x256xf32, #tpu.memory_space<vmem>>, vector<1x112x256xf32>
    %8 = vector.shape_cast %7 : vector<1x112x256xf32> to vector<112x256xf32>
    %cst_9 = arith.constant dense<0.000000e+00> : vector<112x128xf32>
    %9 = tpu.matmul %8, %0, %cst_9 {dimension_numbers = #tpu.dot_dimension_numbers<[1], [0], [0], [1], [0, 0, 1, 1], [], []>} : vector<112x256xf32>, vector<256x128xf32>, vector<112x128xf32> -> vector<112x128xf32>
    %c3 = arith.constant 3 : index
    %c0_10 = arith.constant 0 : index
    %c0_11 = arith.constant 0 : index
    %10 = vector.load %arg2[%c3, %c0_10, %c0_11] : memref<6x112x256xf32, #tpu.memory_space<vmem>>, vector<1x112x256xf32>
    %11 = vector.shape_cast %10 : vector<1x112x256xf32> to vector<112x256xf32>
    %cst_12 = arith.constant dense<0.000000e+00> : vector<112x128xf32>
    %12 = tpu.matmul %11, %0, %cst_12 {dimension_numbers = #tpu.dot_dimension_numbers<[1], [0], [0], [1], [0, 0, 1, 1], [], []>} : vector<112x256xf32>, vector<256x128xf32>, vector<112x128xf32> -> vector<112x128xf32>
    %c4 = arith.constant 4 : index
    %c0_13 = arith.constant 0 : index
    %c0_14 = arith.constant 0 : index
    %13 = vector.load %arg2[%c4, %c0_13, %c0_14] : memref<6x112x256xf32, #tpu.memory_space<vmem>>, vector<1x112x256xf32>
    %14 = vector.shape_cast %13 : vector<1x112x256xf32> to vector<112x256xf32>
    %cst_15 = arith.constant dense<0.000000e+00> : vector<112x128xf32>
    %15 = tpu.matmul %14, %0, %cst_15 {dimension_numbers = #tpu.dot_dimension_numbers<[1], [0], [0], [1], [0, 0, 1, 1], [], []>} : vector<112x256xf32>, vector<256x128xf32>, vector<112x128xf32> -> vector<112x128xf32>
    %c5 = arith.constant 5 : index
    %c0_16 = arith.constant 0 : index
    %c0_17 = arith.constant 0 : index
    %16 = vector.load %arg2[%c5, %c0_16, %c0_17] : memref<6x112x256xf32, #tpu.memory_space<vmem>>, vector<1x112x256xf32>
    %17 = vector.shape_cast %16 : vector<1x112x256xf32> to vector<112x256xf32>
    %cst_18 = arith.constant dense<0.000000e+00> : vector<112x128xf32>
    %18 = tpu.matmul %17, %0, %cst_18 {dimension_numbers = #tpu.dot_dimension_numbers<[1], [0], [0], [1], [0, 0, 1, 1], [], []>} : vector<112x256xf32>, vector<256x128xf32>, vector<112x128xf32> -> vector<112x128xf32>
    %c0_19 = arith.constant 0 : index
    %c0_20 = arith.constant 0 : index
    %c0_21 = arith.constant 0 : index
    %19 = vector.load %arg3[%c0_19, %c0_20, %c0_21] : memref<5x128x512xf32, #tpu.memory_space<vmem>>, vector<1x128x512xf32>
    %20 = vector.shape_cast %19 : vector<1x128x512xf32> to vector<128x512xf32>
    %cst_22 = arith.constant dense<0.000000e+00> : vector<112x512xf32>
    %21 = tpu.matmul %3, %20, %cst_22 {dimension_numbers = #tpu.dot_dimension_numbers<[1], [0], [0], [1], [0, 0, 1, 1], [], []>} : vector<112x128xf32>, vector<128x512xf32>, vector<112x512xf32> -> vector<112x512xf32>
    %c1_23 = arith.constant 1 : index
    %c0_24 = arith.constant 0 : index
    %c0_25 = arith.constant 0 : index
    %22 = vector.load %arg3[%c1_23, %c0_24, %c0_25] : memref<5x128x512xf32, #tpu.memory_space<vmem>>, vector<1x128x512xf32>
    %23 = vector.shape_cast %22 : vector<1x128x512xf32> to vector<128x512xf32>
    %cst_26 = arith.constant dense<0.000000e+00> : vector<112x512xf32>
    %24 = tpu.matmul %6, %23, %cst_26 {dimension_numbers = #tpu.dot_dimension_numbers<[1], [0], [0], [1], [0, 0, 1, 1], [], []>} : vector<112x128xf32>, vector<128x512xf32>, vector<112x512xf32> -> vector<112x512xf32>
    %25 = arith.addf %21, %24 : vector<112x512xf32>
    %c2_27 = arith.constant 2 : index
    %c0_28 = arith.constant 0 : index
    %c0_29 = arith.constant 0 : index
    %26 = vector.load %arg3[%c2_27, %c0_28, %c0_29] : memref<5x128x512xf32, #tpu.memory_space<vmem>>, vector<1x128x512xf32>
    %27 = vector.shape_cast %26 : vector<1x128x512xf32> to vector<128x512xf32>
    %cst_30 = arith.constant dense<0.000000e+00> : vector<112x512xf32>
    %28 = tpu.matmul %9, %27, %cst_30 {dimension_numbers = #tpu.dot_dimension_numbers<[1], [0], [0], [1], [0, 0, 1, 1], [], []>} : vector<112x128xf32>, vector<128x512xf32>, vector<112x512xf32> -> vector<112x512xf32>
    %29 = arith.addf %25, %28 : vector<112x512xf32>
    %c3_31 = arith.constant 3 : index
    %c0_32 = arith.constant 0 : index
    %c0_33 = arith.constant 0 : index
    %30 = vector.load %arg3[%c3_31, %c0_32, %c0_33] : memref<5x128x512xf32, #tpu.memory_space<vmem>>, vector<1x128x512xf32>
    %31 = vector.shape_cast %30 : vector<1x128x512xf32> to vector<128x512xf32>
    %cst_34 = arith.constant dense<0.000000e+00> : vector<112x512xf32>
    %32 = tpu.matmul %12, %31, %cst_34 {dimension_numbers = #tpu.dot_dimension_numbers<[1], [0], [0], [1], [0, 0, 1, 1], [], []>} : vector<112x128xf32>, vector<128x512xf32>, vector<112x512xf32> -> vector<112x512xf32>
    %33 = arith.addf %29, %32 : vector<112x512xf32>
    %c4_35 = arith.constant 4 : index
    %c0_36 = arith.constant 0 : index
    %c0_37 = arith.constant 0 : index
    %34 = vector.load %arg3[%c4_35, %c0_36, %c0_37] : memref<5x128x512xf32, #tpu.memory_space<vmem>>, vector<1x128x512xf32>
    %35 = vector.shape_cast %34 : vector<1x128x512xf32> to vector<128x512xf32>
    %cst_38 = arith.constant dense<0.000000e+00> : vector<112x512xf32>
    %36 = tpu.matmul %15, %35, %cst_38 {dimension_numbers = #tpu.dot_dimension_numbers<[1], [0], [0], [1], [0, 0, 1, 1], [], []>} : vector<112x128xf32>, vector<128x512xf32>, vector<112x512xf32> -> vector<112x512xf32>
    %37 = arith.addf %33, %36 : vector<112x512xf32>
    %c0_39 = arith.constant 0 : index
    %c0_40 = arith.constant 0 : index
    %c0_41 = arith.constant 0 : index
    %38 = vector.load %arg3[%c0_39, %c0_40, %c0_41] : memref<5x128x512xf32, #tpu.memory_space<vmem>>, vector<1x128x512xf32>
    %39 = vector.shape_cast %38 : vector<1x128x512xf32> to vector<128x512xf32>
    %cst_42 = arith.constant dense<0.000000e+00> : vector<112x512xf32>
    %40 = tpu.matmul %6, %39, %cst_42 {dimension_numbers = #tpu.dot_dimension_numbers<[1], [0], [0], [1], [0, 0, 1, 1], [], []>} : vector<112x128xf32>, vector<128x512xf32>, vector<112x512xf32> -> vector<112x512xf32>
    %c1_43 = arith.constant 1 : index
    %c0_44 = arith.constant 0 : index
    %c0_45 = arith.constant 0 : index
    %41 = vector.load %arg3[%c1_43, %c0_44, %c0_45] : memref<5x128x512xf32, #tpu.memory_space<vmem>>, vector<1x128x512xf32>
    %42 = vector.shape_cast %41 : vector<1x128x512xf32> to vector<128x512xf32>
    %cst_46 = arith.constant dense<0.000000e+00> : vector<112x512xf32>
    %43 = tpu.matmul %9, %42, %cst_46 {dimension_numbers = #tpu.dot_dimension_numbers<[1], [0], [0], [1], [0, 0, 1, 1], [], []>} : vector<112x128xf32>, vector<128x512xf32>, vector<112x512xf32> -> vector<112x512xf32>
    %44 = arith.addf %40, %43 : vector<112x512xf32>
    %c2_47 = arith.constant 2 : index
    %c0_48 = arith.constant 0 : index
    %c0_49 = arith.constant 0 : index
    %45 = vector.load %arg3[%c2_47, %c0_48, %c0_49] : memref<5x128x512xf32, #tpu.memory_space<vmem>>, vector<1x128x512xf32>
    %46 = vector.shape_cast %45 : vector<1x128x512xf32> to vector<128x512xf32>
    %cst_50 = arith.constant dense<0.000000e+00> : vector<112x512xf32>
    %47 = tpu.matmul %12, %46, %cst_50 {dimension_numbers = #tpu.dot_dimension_numbers<[1], [0], [0], [1], [0, 0, 1, 1], [], []>} : vector<112x128xf32>, vector<128x512xf32>, vector<112x512xf32> -> vector<112x512xf32>
    %48 = arith.addf %44, %47 : vector<112x512xf32>
    %c3_51 = arith.constant 3 : index
    %c0_52 = arith.constant 0 : index
    %c0_53 = arith.constant 0 : index
    %49 = vector.load %arg3[%c3_51, %c0_52, %c0_53] : memref<5x128x512xf32, #tpu.memory_space<vmem>>, vector<1x128x512xf32>
    %50 = vector.shape_cast %49 : vector<1x128x512xf32> to vector<128x512xf32>
    %cst_54 = arith.constant dense<0.000000e+00> : vector<112x512xf32>
    %51 = tpu.matmul %15, %50, %cst_54 {dimension_numbers = #tpu.dot_dimension_numbers<[1], [0], [0], [1], [0, 0, 1, 1], [], []>} : vector<112x128xf32>, vector<128x512xf32>, vector<112x512xf32> -> vector<112x512xf32>
    %52 = arith.addf %48, %51 : vector<112x512xf32>
    %c4_55 = arith.constant 4 : index
    %c0_56 = arith.constant 0 : index
    %c0_57 = arith.constant 0 : index
    %53 = vector.load %arg3[%c4_55, %c0_56, %c0_57] : memref<5x128x512xf32, #tpu.memory_space<vmem>>, vector<1x128x512xf32>
    %54 = vector.shape_cast %53 : vector<1x128x512xf32> to vector<128x512xf32>
    %cst_58 = arith.constant dense<0.000000e+00> : vector<112x512xf32>
    %55 = tpu.matmul %18, %54, %cst_58 {dimension_numbers = #tpu.dot_dimension_numbers<[1], [0], [0], [1], [0, 0, 1, 1], [], []>} : vector<112x128xf32>, vector<128x512xf32>, vector<112x512xf32> -> vector<112x512xf32>
    %56 = arith.addf %52, %55 : vector<112x512xf32>
    %57 = arith.maximumf %37, %56 : vector<112x512xf32>
    %c0_59 = arith.constant 0 : index
    %c0_60 = arith.constant 0 : index
    %58 = vector.load %arg4[%c0_59, %c0_60] : memref<1x512xf32, #tpu.memory_space<vmem>>, vector<1x512xf32>
    %59 = vector.broadcast %58 : vector<1x512xf32> to vector<112x512xf32>
    %60 = arith.addf %57, %59 : vector<112x512xf32>
    %61 = vector.extract_strided_slice %60 {offsets = [0, 0], sizes = [112, 256], strides = [1, 1]} : vector<112x512xf32> to vector<112x256xf32>
    %62 = vector.extract_strided_slice %60 {offsets = [0, 256], sizes = [112, 256], strides = [1, 1]} : vector<112x512xf32> to vector<112x256xf32>
    %63 = arith.maximumf %61, %62 : vector<112x256xf32>
    %cst_61 = arith.constant 1.000000e-01 : f32
    %64 = vector.broadcast %cst_61 : f32 to vector<112x256xf32>
    %65 = arith.mulf %64, %63 : vector<112x256xf32>
    %66 = arith.maximumf %63, %65 : vector<112x256xf32>
    %c0_62 = arith.constant 0 : index
    %c0_63 = arith.constant 0 : index
    %c0_64 = arith.constant 0 : index
    %67 = vector.load %arg5[%c0_62, %c0_63, %c0_64] : memref<6x40x112xf32, #tpu.memory_space<vmem>>, vector<1x40x112xf32>
    %68 = vector.shape_cast %67 : vector<1x40x112xf32> to vector<40x112xf32>
    %cst_65 = arith.constant dense<0.000000e+00> : vector<40x256xf32>
    %69 = tpu.matmul %68, %66, %cst_65 {dimension_numbers = #tpu.dot_dimension_numbers<[1], [0], [0], [1], [0, 0, 1, 1], [], []>} : vector<40x112xf32>, vector<112x256xf32>, vector<40x256xf32> -> vector<40x256xf32>
    %c1_66 = arith.constant 1 : index
    %c0_67 = arith.constant 0 : index
    %c0_68 = arith.constant 0 : index
    %70 = vector.load %arg5[%c1_66, %c0_67, %c0_68] : memref<6x40x112xf32, #tpu.memory_space<vmem>>, vector<1x40x112xf32>
    %71 = vector.shape_cast %70 : vector<1x40x112xf32> to vector<40x112xf32>
    %cst_69 = arith.constant dense<0.000000e+00> : vector<40x256xf32>
    %72 = tpu.matmul %71, %66, %cst_69 {dimension_numbers = #tpu.dot_dimension_numbers<[1], [0], [0], [1], [0, 0, 1, 1], [], []>} : vector<40x112xf32>, vector<112x256xf32>, vector<40x256xf32> -> vector<40x256xf32>
    %c2_70 = arith.constant 2 : index
    %c0_71 = arith.constant 0 : index
    %c0_72 = arith.constant 0 : index
    %73 = vector.load %arg5[%c2_70, %c0_71, %c0_72] : memref<6x40x112xf32, #tpu.memory_space<vmem>>, vector<1x40x112xf32>
    %74 = vector.shape_cast %73 : vector<1x40x112xf32> to vector<40x112xf32>
    %cst_73 = arith.constant dense<0.000000e+00> : vector<40x256xf32>
    %75 = tpu.matmul %74, %66, %cst_73 {dimension_numbers = #tpu.dot_dimension_numbers<[1], [0], [0], [1], [0, 0, 1, 1], [], []>} : vector<40x112xf32>, vector<112x256xf32>, vector<40x256xf32> -> vector<40x256xf32>
    %c3_74 = arith.constant 3 : index
    %c0_75 = arith.constant 0 : index
    %c0_76 = arith.constant 0 : index
    %76 = vector.load %arg5[%c3_74, %c0_75, %c0_76] : memref<6x40x112xf32, #tpu.memory_space<vmem>>, vector<1x40x112xf32>
    %77 = vector.shape_cast %76 : vector<1x40x112xf32> to vector<40x112xf32>
    %cst_77 = arith.constant dense<0.000000e+00> : vector<40x256xf32>
    %78 = tpu.matmul %77, %66, %cst_77 {dimension_numbers = #tpu.dot_dimension_numbers<[1], [0], [0], [1], [0, 0, 1, 1], [], []>} : vector<40x112xf32>, vector<112x256xf32>, vector<40x256xf32> -> vector<40x256xf32>
    %c4_78 = arith.constant 4 : index
    %c0_79 = arith.constant 0 : index
    %c0_80 = arith.constant 0 : index
    %79 = vector.load %arg5[%c4_78, %c0_79, %c0_80] : memref<6x40x112xf32, #tpu.memory_space<vmem>>, vector<1x40x112xf32>
    %80 = vector.shape_cast %79 : vector<1x40x112xf32> to vector<40x112xf32>
    %cst_81 = arith.constant dense<0.000000e+00> : vector<40x256xf32>
    %81 = tpu.matmul %80, %66, %cst_81 {dimension_numbers = #tpu.dot_dimension_numbers<[1], [0], [0], [1], [0, 0, 1, 1], [], []>} : vector<40x112xf32>, vector<112x256xf32>, vector<40x256xf32> -> vector<40x256xf32>
    %c5_82 = arith.constant 5 : index
    %c0_83 = arith.constant 0 : index
    %c0_84 = arith.constant 0 : index
    %82 = vector.load %arg5[%c5_82, %c0_83, %c0_84] : memref<6x40x112xf32, #tpu.memory_space<vmem>>, vector<1x40x112xf32>
    %83 = vector.shape_cast %82 : vector<1x40x112xf32> to vector<40x112xf32>
    %cst_85 = arith.constant dense<0.000000e+00> : vector<40x256xf32>
    %84 = tpu.matmul %83, %66, %cst_85 {dimension_numbers = #tpu.dot_dimension_numbers<[1], [0], [0], [1], [0, 0, 1, 1], [], []>} : vector<40x112xf32>, vector<112x256xf32>, vector<40x256xf32> -> vector<40x256xf32>
    %c0_86 = arith.constant 0 : index
    %c0_87 = arith.constant 0 : index
    %c0_88 = arith.constant 0 : index
    %85 = vector.load %arg6[%c0_86, %c0_87, %c0_88] : memref<5x256x512xf32, #tpu.memory_space<vmem>>, vector<1x256x512xf32>
    %86 = vector.shape_cast %85 : vector<1x256x512xf32> to vector<256x512xf32>
    %cst_89 = arith.constant dense<0.000000e+00> : vector<40x512xf32>
    %87 = tpu.matmul %69, %86, %cst_89 {dimension_numbers = #tpu.dot_dimension_numbers<[1], [0], [0], [1], [0, 0, 1, 1], [], []>} : vector<40x256xf32>, vector<256x512xf32>, vector<40x512xf32> -> vector<40x512xf32>
    %c1_90 = arith.constant 1 : index
    %c0_91 = arith.constant 0 : index
    %c0_92 = arith.constant 0 : index
    %88 = vector.load %arg6[%c1_90, %c0_91, %c0_92] : memref<5x256x512xf32, #tpu.memory_space<vmem>>, vector<1x256x512xf32>
    %89 = vector.shape_cast %88 : vector<1x256x512xf32> to vector<256x512xf32>
    %cst_93 = arith.constant dense<0.000000e+00> : vector<40x512xf32>
    %90 = tpu.matmul %72, %89, %cst_93 {dimension_numbers = #tpu.dot_dimension_numbers<[1], [0], [0], [1], [0, 0, 1, 1], [], []>} : vector<40x256xf32>, vector<256x512xf32>, vector<40x512xf32> -> vector<40x512xf32>
    %91 = arith.addf %87, %90 : vector<40x512xf32>
    %c2_94 = arith.constant 2 : index
    %c0_95 = arith.constant 0 : index
    %c0_96 = arith.constant 0 : index
    %92 = vector.load %arg6[%c2_94, %c0_95, %c0_96] : memref<5x256x512xf32, #tpu.memory_space<vmem>>, vector<1x256x512xf32>
    %93 = vector.shape_cast %92 : vector<1x256x512xf32> to vector<256x512xf32>
    %cst_97 = arith.constant dense<0.000000e+00> : vector<40x512xf32>
    %94 = tpu.matmul %75, %93, %cst_97 {dimension_numbers = #tpu.dot_dimension_numbers<[1], [0], [0], [1], [0, 0, 1, 1], [], []>} : vector<40x256xf32>, vector<256x512xf32>, vector<40x512xf32> -> vector<40x512xf32>
    %95 = arith.addf %91, %94 : vector<40x512xf32>
    %c3_98 = arith.constant 3 : index
    %c0_99 = arith.constant 0 : index
    %c0_100 = arith.constant 0 : index
    %96 = vector.load %arg6[%c3_98, %c0_99, %c0_100] : memref<5x256x512xf32, #tpu.memory_space<vmem>>, vector<1x256x512xf32>
    %97 = vector.shape_cast %96 : vector<1x256x512xf32> to vector<256x512xf32>
    %cst_101 = arith.constant dense<0.000000e+00> : vector<40x512xf32>
    %98 = tpu.matmul %78, %97, %cst_101 {dimension_numbers = #tpu.dot_dimension_numbers<[1], [0], [0], [1], [0, 0, 1, 1], [], []>} : vector<40x256xf32>, vector<256x512xf32>, vector<40x512xf32> -> vector<40x512xf32>
    %99 = arith.addf %95, %98 : vector<40x512xf32>
    %c4_102 = arith.constant 4 : index
    %c0_103 = arith.constant 0 : index
    %c0_104 = arith.constant 0 : index
    %100 = vector.load %arg6[%c4_102, %c0_103, %c0_104] : memref<5x256x512xf32, #tpu.memory_space<vmem>>, vector<1x256x512xf32>
    %101 = vector.shape_cast %100 : vector<1x256x512xf32> to vector<256x512xf32>
    %cst_105 = arith.constant dense<0.000000e+00> : vector<40x512xf32>
    %102 = tpu.matmul %81, %101, %cst_105 {dimension_numbers = #tpu.dot_dimension_numbers<[1], [0], [0], [1], [0, 0, 1, 1], [], []>} : vector<40x256xf32>, vector<256x512xf32>, vector<40x512xf32> -> vector<40x512xf32>
    %103 = arith.addf %99, %102 : vector<40x512xf32>
    %c0_106 = arith.constant 0 : index
    %c0_107 = arith.constant 0 : index
    %c0_108 = arith.constant 0 : index
    %104 = vector.load %arg6[%c0_106, %c0_107, %c0_108] : memref<5x256x512xf32, #tpu.memory_space<vmem>>, vector<1x256x512xf32>
    %105 = vector.shape_cast %104 : vector<1x256x512xf32> to vector<256x512xf32>
    %cst_109 = arith.constant dense<0.000000e+00> : vector<40x512xf32>
    %106 = tpu.matmul %72, %105, %cst_109 {dimension_numbers = #tpu.dot_dimension_numbers<[1], [0], [0], [1], [0, 0, 1, 1], [], []>} : vector<40x256xf32>, vector<256x512xf32>, vector<40x512xf32> -> vector<40x512xf32>
    %c1_110 = arith.constant 1 : index
    %c0_111 = arith.constant 0 : index
    %c0_112 = arith.constant 0 : index
    %107 = vector.load %arg6[%c1_110, %c0_111, %c0_112] : memref<5x256x512xf32, #tpu.memory_space<vmem>>, vector<1x256x512xf32>
    %108 = vector.shape_cast %107 : vector<1x256x512xf32> to vector<256x512xf32>
    %cst_113 = arith.constant dense<0.000000e+00> : vector<40x512xf32>
    %109 = tpu.matmul %75, %108, %cst_113 {dimension_numbers = #tpu.dot_dimension_numbers<[1], [0], [0], [1], [0, 0, 1, 1], [], []>} : vector<40x256xf32>, vector<256x512xf32>, vector<40x512xf32> -> vector<40x512xf32>
    %110 = arith.addf %106, %109 : vector<40x512xf32>
    %c2_114 = arith.constant 2 : index
    %c0_115 = arith.constant 0 : index
    %c0_116 = arith.constant 0 : index
    %111 = vector.load %arg6[%c2_114, %c0_115, %c0_116] : memref<5x256x512xf32, #tpu.memory_space<vmem>>, vector<1x256x512xf32>
    %112 = vector.shape_cast %111 : vector<1x256x512xf32> to vector<256x512xf32>
    %cst_117 = arith.constant dense<0.000000e+00> : vector<40x512xf32>
    %113 = tpu.matmul %78, %112, %cst_117 {dimension_numbers = #tpu.dot_dimension_numbers<[1], [0], [0], [1], [0, 0, 1, 1], [], []>} : vector<40x256xf32>, vector<256x512xf32>, vector<40x512xf32> -> vector<40x512xf32>
    %114 = arith.addf %110, %113 : vector<40x512xf32>
    %c3_118 = arith.constant 3 : index
    %c0_119 = arith.constant 0 : index
    %c0_120 = arith.constant 0 : index
    %115 = vector.load %arg6[%c3_118, %c0_119, %c0_120] : memref<5x256x512xf32, #tpu.memory_space<vmem>>, vector<1x256x512xf32>
    %116 = vector.shape_cast %115 : vector<1x256x512xf32> to vector<256x512xf32>
    %cst_121 = arith.constant dense<0.000000e+00> : vector<40x512xf32>
    %117 = tpu.matmul %81, %116, %cst_121 {dimension_numbers = #tpu.dot_dimension_numbers<[1], [0], [0], [1], [0, 0, 1, 1], [], []>} : vector<40x256xf32>, vector<256x512xf32>, vector<40x512xf32> -> vector<40x512xf32>
    %118 = arith.addf %114, %117 : vector<40x512xf32>
    %c4_122 = arith.constant 4 : index
    %c0_123 = arith.constant 0 : index
    %c0_124 = arith.constant 0 : index
    %119 = vector.load %arg6[%c4_122, %c0_123, %c0_124] : memref<5x256x512xf32, #tpu.memory_space<vmem>>, vector<1x256x512xf32>
    %120 = vector.shape_cast %119 : vector<1x256x512xf32> to vector<256x512xf32>
    %cst_125 = arith.constant dense<0.000000e+00> : vector<40x512xf32>
    %121 = tpu.matmul %84, %120, %cst_125 {dimension_numbers = #tpu.dot_dimension_numbers<[1], [0], [0], [1], [0, 0, 1, 1], [], []>} : vector<40x256xf32>, vector<256x512xf32>, vector<40x512xf32> -> vector<40x512xf32>
    %122 = arith.addf %118, %121 : vector<40x512xf32>
    %123 = arith.maximumf %103, %122 : vector<40x512xf32>
    %c0_126 = arith.constant 0 : index
    %c0_127 = arith.constant 0 : index
    %124 = vector.load %arg7[%c0_126, %c0_127] : memref<1x512xf32, #tpu.memory_space<vmem>>, vector<1x512xf32>
    %125 = vector.broadcast %124 : vector<1x512xf32> to vector<40x512xf32>
    %126 = arith.addf %123, %125 : vector<40x512xf32>
    %127 = vector.extract_strided_slice %126 {offsets = [0, 0], sizes = [40, 256], strides = [1, 1]} : vector<40x512xf32> to vector<40x256xf32>
    %128 = vector.extract_strided_slice %126 {offsets = [0, 256], sizes = [40, 256], strides = [1, 1]} : vector<40x512xf32> to vector<40x256xf32>
    %129 = arith.maximumf %127, %128 : vector<40x256xf32>
    %cst_128 = arith.constant 1.000000e-01 : f32
    %130 = vector.broadcast %cst_128 : f32 to vector<40x256xf32>
    %131 = arith.mulf %130, %129 : vector<40x256xf32>
    %132 = arith.maximumf %129, %131 : vector<40x256xf32>
    %c0_129 = arith.constant 0 : index
    %c0_130 = arith.constant 0 : index
    %c0_131 = arith.constant 0 : index
    %133 = vector.load %arg8[%c0_129, %c0_130, %c0_131] : memref<5x8x40xf32, #tpu.memory_space<vmem>>, vector<1x8x40xf32>
    %134 = vector.shape_cast %133 : vector<1x8x40xf32> to vector<8x40xf32>
    %cst_132 = arith.constant dense<0.000000e+00> : vector<8x256xf32>
    %135 = tpu.matmul %134, %132, %cst_132 {dimension_numbers = #tpu.dot_dimension_numbers<[1], [0], [0], [1], [0, 0, 1, 1], [], []>} : vector<8x40xf32>, vector<40x256xf32>, vector<8x256xf32> -> vector<8x256xf32>
    %c0_133 = arith.constant 0 : index
    %c0_134 = arith.constant 0 : index
    %c0_135 = arith.constant 0 : index
    %136 = vector.load %arg9[%c0_133, %c0_134, %c0_135] : memref<5x256x128xf32, #tpu.memory_space<vmem>>, vector<1x256x128xf32>
    %137 = vector.shape_cast %136 : vector<1x256x128xf32> to vector<256x128xf32>
    %cst_136 = arith.constant dense<0.000000e+00> : vector<8x128xf32>
    %138 = tpu.matmul %135, %137, %cst_136 {dimension_numbers = #tpu.dot_dimension_numbers<[1], [0], [0], [1], [0, 0, 1, 1], [], []>} : vector<8x256xf32>, vector<256x128xf32>, vector<8x128xf32> -> vector<8x128xf32>
    %c1_137 = arith.constant 1 : index
    %c0_138 = arith.constant 0 : index
    %c0_139 = arith.constant 0 : index
    %139 = vector.load %arg8[%c1_137, %c0_138, %c0_139] : memref<5x8x40xf32, #tpu.memory_space<vmem>>, vector<1x8x40xf32>
    %140 = vector.shape_cast %139 : vector<1x8x40xf32> to vector<8x40xf32>
    %cst_140 = arith.constant dense<0.000000e+00> : vector<8x256xf32>
    %141 = tpu.matmul %140, %132, %cst_140 {dimension_numbers = #tpu.dot_dimension_numbers<[1], [0], [0], [1], [0, 0, 1, 1], [], []>} : vector<8x40xf32>, vector<40x256xf32>, vector<8x256xf32> -> vector<8x256xf32>
    %c1_141 = arith.constant 1 : index
    %c0_142 = arith.constant 0 : index
    %c0_143 = arith.constant 0 : index
    %142 = vector.load %arg9[%c1_141, %c0_142, %c0_143] : memref<5x256x128xf32, #tpu.memory_space<vmem>>, vector<1x256x128xf32>
    %143 = vector.shape_cast %142 : vector<1x256x128xf32> to vector<256x128xf32>
    %cst_144 = arith.constant dense<0.000000e+00> : vector<8x128xf32>
    %144 = tpu.matmul %141, %143, %cst_144 {dimension_numbers = #tpu.dot_dimension_numbers<[1], [0], [0], [1], [0, 0, 1, 1], [], []>} : vector<8x256xf32>, vector<256x128xf32>, vector<8x128xf32> -> vector<8x128xf32>
    %145 = arith.addf %138, %144 : vector<8x128xf32>
    %c2_145 = arith.constant 2 : index
    %c0_146 = arith.constant 0 : index
    %c0_147 = arith.constant 0 : index
    %146 = vector.load %arg8[%c2_145, %c0_146, %c0_147] : memref<5x8x40xf32, #tpu.memory_space<vmem>>, vector<1x8x40xf32>
    %147 = vector.shape_cast %146 : vector<1x8x40xf32> to vector<8x40xf32>
    %cst_148 = arith.constant dense<0.000000e+00> : vector<8x256xf32>
    %148 = tpu.matmul %147, %132, %cst_148 {dimension_numbers = #tpu.dot_dimension_numbers<[1], [0], [0], [1], [0, 0, 1, 1], [], []>} : vector<8x40xf32>, vector<40x256xf32>, vector<8x256xf32> -> vector<8x256xf32>
    %c2_149 = arith.constant 2 : index
    %c0_150 = arith.constant 0 : index
    %c0_151 = arith.constant 0 : index
    %149 = vector.load %arg9[%c2_149, %c0_150, %c0_151] : memref<5x256x128xf32, #tpu.memory_space<vmem>>, vector<1x256x128xf32>
    %150 = vector.shape_cast %149 : vector<1x256x128xf32> to vector<256x128xf32>
    %cst_152 = arith.constant dense<0.000000e+00> : vector<8x128xf32>
    %151 = tpu.matmul %148, %150, %cst_152 {dimension_numbers = #tpu.dot_dimension_numbers<[1], [0], [0], [1], [0, 0, 1, 1], [], []>} : vector<8x256xf32>, vector<256x128xf32>, vector<8x128xf32> -> vector<8x128xf32>
    %152 = arith.addf %145, %151 : vector<8x128xf32>
    %c3_153 = arith.constant 3 : index
    %c0_154 = arith.constant 0 : index
    %c0_155 = arith.constant 0 : index
    %153 = vector.load %arg8[%c3_153, %c0_154, %c0_155] : memref<5x8x40xf32, #tpu.memory_space<vmem>>, vector<1x8x40xf32>
    %154 = vector.shape_cast %153 : vector<1x8x40xf32> to vector<8x40xf32>
    %cst_156 = arith.constant dense<0.000000e+00> : vector<8x256xf32>
    %155 = tpu.matmul %154, %132, %cst_156 {dimension_numbers = #tpu.dot_dimension_numbers<[1], [0], [0], [1], [0, 0, 1, 1], [], []>} : vector<8x40xf32>, vector<40x256xf32>, vector<8x256xf32> -> vector<8x256xf32>
    %c3_157 = arith.constant 3 : index
    %c0_158 = arith.constant 0 : index
    %c0_159 = arith.constant 0 : index
    %156 = vector.load %arg9[%c3_157, %c0_158, %c0_159] : memref<5x256x128xf32, #tpu.memory_space<vmem>>, vector<1x256x128xf32>
    %157 = vector.shape_cast %156 : vector<1x256x128xf32> to vector<256x128xf32>
    %cst_160 = arith.constant dense<0.000000e+00> : vector<8x128xf32>
    %158 = tpu.matmul %155, %157, %cst_160 {dimension_numbers = #tpu.dot_dimension_numbers<[1], [0], [0], [1], [0, 0, 1, 1], [], []>} : vector<8x256xf32>, vector<256x128xf32>, vector<8x128xf32> -> vector<8x128xf32>
    %159 = arith.addf %152, %158 : vector<8x128xf32>
    %c4_161 = arith.constant 4 : index
    %c0_162 = arith.constant 0 : index
    %c0_163 = arith.constant 0 : index
    %160 = vector.load %arg8[%c4_161, %c0_162, %c0_163] : memref<5x8x40xf32, #tpu.memory_space<vmem>>, vector<1x8x40xf32>
    %161 = vector.shape_cast %160 : vector<1x8x40xf32> to vector<8x40xf32>
    %cst_164 = arith.constant dense<0.000000e+00> : vector<8x256xf32>
    %162 = tpu.matmul %161, %132, %cst_164 {dimension_numbers = #tpu.dot_dimension_numbers<[1], [0], [0], [1], [0, 0, 1, 1], [], []>} : vector<8x40xf32>, vector<40x256xf32>, vector<8x256xf32> -> vector<8x256xf32>
    %c4_165 = arith.constant 4 : index
    %c0_166 = arith.constant 0 : index
    %c0_167 = arith.constant 0 : index
    %163 = vector.load %arg9[%c4_165, %c0_166, %c0_167] : memref<5x256x128xf32, #tpu.memory_space<vmem>>, vector<1x256x128xf32>
    %164 = vector.shape_cast %163 : vector<1x256x128xf32> to vector<256x128xf32>
    %cst_168 = arith.constant dense<0.000000e+00> : vector<8x128xf32>
    %165 = tpu.matmul %162, %164, %cst_168 {dimension_numbers = #tpu.dot_dimension_numbers<[1], [0], [0], [1], [0, 0, 1, 1], [], []>} : vector<8x256xf32>, vector<256x128xf32>, vector<8x128xf32> -> vector<8x128xf32>
    %166 = arith.addf %159, %165 : vector<8x128xf32>
    %c0_169 = arith.constant 0 : index
    %c0_170 = arith.constant 0 : index
    %167 = vector.load %arg10[%c0_169, %c0_170] : memref<1x128xf32, #tpu.memory_space<vmem>>, vector<1x128xf32>
    %168 = vector.broadcast %167 : vector<1x128xf32> to vector<8x128xf32>
    %169 = arith.addf %166, %168 : vector<8x128xf32>
    %cst_171 = arith.constant 1.000000e-01 : f32
    %170 = vector.broadcast %cst_171 : f32 to vector<8x128xf32>
    %171 = arith.mulf %170, %169 : vector<8x128xf32>
    %172 = arith.maximumf %169, %171 : vector<8x128xf32>
    %c0_172 = arith.constant 0 : index
    %c0_173 = arith.constant 0 : index
    %173 = vector.load %arg11[%c0_172, %c0_173] : memref<128x128xf32, #tpu.memory_space<vmem>>, vector<128x128xf32>
    %cst_174 = arith.constant dense<0.000000e+00> : vector<8x128xf32>
    %174 = tpu.matmul %172, %173, %cst_174 {dimension_numbers = #tpu.dot_dimension_numbers<[1], [0], [0], [1], [0, 0, 1, 1], [], []>} : vector<8x128xf32>, vector<128x128xf32>, vector<8x128xf32> -> vector<8x128xf32>
    %c0_175 = arith.constant 0 : index
    %c0_176 = arith.constant 0 : index
    %175 = vector.load %arg12[%c0_175, %c0_176] : memref<1x128xf32, #tpu.memory_space<vmem>>, vector<1x128xf32>
    %176 = vector.broadcast %175 : vector<1x128xf32> to vector<8x128xf32>
    %177 = arith.addf %174, %176 : vector<8x128xf32>
    %cst_177 = arith.constant 1.000000e-01 : f32
    %178 = vector.broadcast %cst_177 : f32 to vector<8x128xf32>
    %179 = arith.mulf %178, %177 : vector<8x128xf32>
    %180 = arith.maximumf %177, %179 : vector<8x128xf32>
    %c0_178 = arith.constant 0 : index
    %c0_179 = arith.constant 0 : index
    %181 = vector.load %arg13[%c0_178, %c0_179] : memref<128x128xf32, #tpu.memory_space<vmem>>, vector<128x128xf32>
    %cst_180 = arith.constant dense<0.000000e+00> : vector<8x128xf32>
    %182 = tpu.matmul %180, %181, %cst_180 {dimension_numbers = #tpu.dot_dimension_numbers<[1], [0], [0], [1], [0, 0, 1, 1], [], []>} : vector<8x128xf32>, vector<128x128xf32>, vector<8x128xf32> -> vector<8x128xf32>
    %c0_181 = arith.constant 0 : index
    %c0_182 = arith.constant 0 : index
    %183 = vector.load %arg14[%c0_181, %c0_182] : memref<1x128xf32, #tpu.memory_space<vmem>>, vector<1x128xf32>
    %184 = vector.broadcast %183 : vector<1x128xf32> to vector<8x128xf32>
    %185 = arith.addf %182, %184 : vector<8x128xf32>
    %c0_183 = arith.constant 0 : index
    %c0_184 = arith.constant 0 : index
    %186 = vector.load %arg15[%c0_183, %c0_184] : memref<8x128xf32, #tpu.memory_space<vmem>>, vector<8x128xf32>
    tpu.vector_store %arg15[%c0_183, %c0_184], %185 {strides = array<i32>} : memref<8x128xf32, #tpu.memory_space<vmem>>, vector<8x128xf32>,
    return
  }
  func.func @transform_0(%arg0: i32) -> (i32, i32) {
    %c0_i32 = arith.constant 0 : i32
    %c0_i32_0 = arith.constant 0 : i32
    return %arg0, %c0_i32 : i32, i32
  }
  func.func @transform_1(%arg0: i32) -> (i32, i32, i32) {
    %c0_i32 = arith.constant 0 : i32
    %c0_i32_0 = arith.constant 0 : i32
    %c0_i32_1 = arith.constant 0 : i32
    %c0_i32_2 = arith.constant 0 : i32
    return %c0_i32, %c0_i32_0, %c0_i32_1 : i32, i32, i32
  }
  func.func @transform_2(%arg0: i32) -> (i32, i32, i32) {
    %c0_i32 = arith.constant 0 : i32
    %c0_i32_0 = arith.constant 0 : i32
    %c0_i32_1 = arith.constant 0 : i32
    %c0_i32_2 = arith.constant 0 : i32
    return %c0_i32, %c0_i32_0, %c0_i32_1 : i32, i32, i32
  }
  func.func @transform_3(%arg0: i32) -> (i32, i32) {
    %c0_i32 = arith.constant 0 : i32
    %c0_i32_0 = arith.constant 0 : i32
    %c0_i32_1 = arith.constant 0 : i32
    return %c0_i32, %c0_i32_0 : i32, i32
  }
  func.func @transform_4(%arg0: i32) -> (i32, i32, i32) {
    %c0_i32 = arith.constant 0 : i32
    %c0_i32_0 = arith.constant 0 : i32
    %c0_i32_1 = arith.constant 0 : i32
    %c0_i32_2 = arith.constant 0 : i32
    return %c0_i32, %c0_i32_0, %c0_i32_1 : i32, i32, i32
  }
  func.func @transform_5(%arg0: i32) -> (i32, i32, i32) {
    %c0_i32 = arith.constant 0 : i32
    %c0_i32_0 = arith.constant 0 : i32
    %c0_i32_1 = arith.constant 0 : i32
    %c0_i32_2 = arith.constant 0 : i32
    return %c0_i32, %c0_i32_0, %c0_i32_1 : i32, i32, i32
  }
  func.func @transform_6(%arg0: i32) -> (i32, i32) {
    %c0_i32 = arith.constant 0 : i32
    %c0_i32_0 = arith.constant 0 : i32
    %c0_i32_1 = arith.constant 0 : i32
    return %c0_i32, %c0_i32_0 : i32, i32
  }
  func.func @transform_7(%arg0: i32) -> (i32, i32, i32) {
    %c0_i32 = arith.constant 0 : i32
    %c0_i32_0 = arith.constant 0 : i32
    %c0_i32_1 = arith.constant 0 : i32
    %c0_i32_2 = arith.constant 0 : i32
    return %c0_i32, %c0_i32_0, %c0_i32_1 : i32, i32, i32
  }
  func.func @transform_8(%arg0: i32) -> (i32, i32, i32) {
    %c0_i32 = arith.constant 0 : i32
    %c0_i32_0 = arith.constant 0 : i32
    %c0_i32_1 = arith.constant 0 : i32
    %c0_i32_2 = arith.constant 0 : i32
    return %c0_i32, %c0_i32_0, %c0_i32_1 : i32, i32, i32
  }
  func.func @transform_9(%arg0: i32) -> (i32, i32) {
    %c0_i32 = arith.constant 0 : i32
    %c0_i32_0 = arith.constant 0 : i32
    %c0_i32_1 = arith.constant 0 : i32
    return %c0_i32, %c0_i32_0 : i32, i32
  }
  func.func @transform_10(%arg0: i32) -> (i32, i32) {
    %c0_i32 = arith.constant 0 : i32
    %c0_i32_0 = arith.constant 0 : i32
    %c0_i32_1 = arith.constant 0 : i32
    return %c0_i32, %c0_i32_0 : i32, i32
  }
  func.func @transform_11(%arg0: i32) -> (i32, i32) {
    %c0_i32 = arith.constant 0 : i32
    %c0_i32_0 = arith.constant 0 : i32
    %c0_i32_1 = arith.constant 0 : i32
    return %c0_i32, %c0_i32_0 : i32, i32
  }
  func.func @transform_12(%arg0: i32) -> (i32, i32) {
    %c0_i32 = arith.constant 0 : i32
    %c0_i32_0 = arith.constant 0 : i32
    %c0_i32_1 = arith.constant 0 : i32
    return %c0_i32, %c0_i32_0 : i32, i32
  }
  func.func @transform_13(%arg0: i32) -> (i32, i32) {
    %c0_i32 = arith.constant 0 : i32
    %c0_i32_0 = arith.constant 0 : i32
    %c0_i32_1 = arith.constant 0 : i32
    return %c0_i32, %c0_i32_0 : i32, i32
  }
  func.func @transform_14(%arg0: i32) -> (i32, i32) {
    %c0_i32 = arith.constant 0 : i32
    %c0_i32_0 = arith.constant 0 : i32
    return %arg0, %c0_i32 : i32, i32
  }
}

</mosaic_0001>

<llo_original>
// kernel: lenet5_forward.1
$region0: #{lenet5_forward.1}
  #allocation0 [shape = 'u32[]', space=smem, size = 0x4, offset = 0x4, fixed_abs, tag = 'smem constant byte address 0x4 - core index']
  #allocation1 [shape = 'u32[144,128]{1,0:T(1,128)}', space=vmem, size = 0x12000, scoped, tag = 'internal scratch']
  %s0 = inlined_call_operand.vmem [shape: f32[256,128], index: 0, kind: input, shape index: {}]
  %s1 = inlined_call_operand.hbm [shape: f32[6,112,256], index: 1, kind: input, shape index: {}]
  %s2 = inlined_call_operand.hbm [shape: f32[5,128,512], index: 2, kind: input, shape index: {}]
  %s3 = inlined_call_operand.hbm [shape: f32[1,512], index: 3, kind: input, shape index: {}]
  %s4 = inlined_call_operand.hbm [shape: f32[6,40,112], index: 4, kind: input, shape index: {}]
  %s5 = inlined_call_operand.hbm [shape: f32[5,256,512], index: 5, kind: input, shape index: {}]
  %s6 = inlined_call_operand.hbm [shape: f32[1,512], index: 6, kind: input, shape index: {}]
  %s7 = inlined_call_operand.hbm [shape: f32[5,8,40], index: 7, kind: input, shape index: {}]
  %s8 = inlined_call_operand.hbm [shape: f32[5,256,128], index: 8, kind: input, shape index: {}]
  %s9 = inlined_call_operand.hbm [shape: f32[1,128], index: 9, kind: input, shape index: {}]
  %s10 = inlined_call_operand.hbm [shape: f32[128,128], index: 10, kind: input, shape index: {}]
  %s11 = inlined_call_operand.hbm [shape: f32[1,128], index: 11, kind: input, shape index: {}]
  %s12 = inlined_call_operand.hbm [shape: f32[128,128], index: 12, kind: input, shape index: {}]
  %s13 = inlined_call_operand.hbm [shape: f32[1,128], index: 13, kind: input, shape index: {}]
  %s14 = inlined_call_operand.vmem [shape: f32[8,128], index: 14, kind: output, shape index: {}]
  %s15 = sld [smem:[#allocation0]]
  $region118: #{lenet5_forward.1} parent=0
    _
  %s17 = ssub.s32 1, %s15
  %s18 = scalar_select 0, %s17, %s15
  $region1: #{lenet5_forward.1} parent=0
    #allocation2 [shape = 'u8[688128]{0}', space=vmem, size = 0xa8000, scoped, tag = 'input window, operand 1, single buffered']
    #allocation3 [shape = 's32[1]{0}', space=sflag, size = 0x4, scoped, tag = 'scoped memory for lenet5_forward.1']
    #allocation4 [shape = 'u8[1310720]{0}', space=vmem, size = 0x140000, scoped, tag = 'input window, operand 2, single buffered']
    #allocation5 [shape = 's32[1]{0}', space=sflag, size = 0x4, scoped, tag = 'scoped memory for lenet5_forward.1']
    #allocation6 [shape = 'u8[2048]{0}', space=vmem, size = 0x800, scoped, tag = 'input window, operand 3, single buffered']
    #allocation7 [shape = 'u8[122880]{0}', space=vmem, size = 0x1e000, scoped, tag = 'input window, operand 4, single buffered']
    #allocation8 [shape = 's32[1]{0}', space=sflag, size = 0x4, scoped, tag = 'scoped memory for lenet5_forward.1']
    #allocation9 [shape = 'u8[2621440]{0}', space=vmem, size = 0x280000, scoped, tag = 'input window, operand 5, single buffered']
    #allocation10 [shape = 'u8[2048]{0}', space=vmem, size = 0x800, scoped, tag = 'input window, operand 6, single buffered']
    #allocation11 [shape = 's32[1]{0}', space=sflag, size = 0x4, scoped, tag = 'scoped memory for lenet5_forward.1']
    #allocation12 [shape = 'u8[20480]{0}', space=vmem, size = 0x5000, scoped, tag = 'input window, operand 7, single buffered']
    #allocation13 [shape = 'u8[655360]{0}', space=vmem, size = 0xa0000, scoped, tag = 'input window, operand 8, single buffered']
    #allocation14 [shape = 's32[1]{0}', space=sflag, size = 0x4, scoped, tag = 'scoped memory for lenet5_forward.1']
    #allocation15 [shape = 'u8[512]{0}', space=vmem, size = 0x400, scoped, tag = 'input window, operand 9, single buffered']
    #allocation16 [shape = 'u8[65536]{0}', space=vmem, size = 0x10000, scoped, tag = 'input window, operand 10, single buffered']
    #allocation17 [shape = 's32[1]{0}', space=sflag, size = 0x4, scoped, tag = 'scoped memory for lenet5_forward.1']
    #allocation18 [shape = 'u8[512]{0}', space=vmem, size = 0x400, scoped, tag = 'input window, operand 11, single buffered']
    #allocation19 [shape = 'u8[65536]{0}', space=vmem, size = 0x10000, scoped, tag = 'input window, operand 12, single buffered']
    #allocation20 [shape = 's32[1]{0}', space=sflag, size = 0x4, scoped, tag = 'scoped memory for lenet5_forward.1']
    #allocation21 [shape = 'u8[512]{0}', space=vmem, size = 0x400, scoped, tag = 'input window, operand 13, single buffered']
    %19 = vsyncpa [#allocation3], 0
    %20 = vsyncpa [#allocation5], 0
    %21 = vsyncpa [#allocation8], 0
    %22 = vsyncpa [#allocation11], 0
    %23 = vsyncpa [#allocation14], 0
    %24 = vsyncpa [#allocation17], 0
    %25 = vsyncpa [#allocation20], 0
    // Predicated region
    $region2: #{lenet5_forward.1} parent=1 // pred_check
      _
    $region3: #{lenet5_forward.1} parent=1 // pred_check_branch
      %27 = sbr.rel (0) target = $region5
    $region4: #{lenet5_forward.1} parent=1 // pred_region
      _
    $region5: #{lenet5_forward.1} parent=1 // pred_fallthru
      _
    // Predicated region
    $region6: #{lenet5_forward.1} parent=1 // pred_check
      _
    $region7: #{lenet5_forward.1} parent=1 // pred_check_branch
      %29 = sbr.rel (0) target = $region9
    $region8: #{lenet5_forward.1} parent=1 // pred_region
      %s31 = ssub.s32 21504, 21504
      %32 = vsyncadd [#allocation3], %s31
      %s33 = sshll.u32 [#allocation2], 4
      %s34 = int_to_ptr.vmem [resolvable:$true] %s33
      %39 = dma.hbm_to_vmem [thread:$0]  %s1, 21504, %s34, [#allocation3], 256, 256, 16
    $region9: #{lenet5_forward.1} parent=1 // pred_fallthru
      _
    // Predicated region
    $region10: #{lenet5_forward.1} parent=1 // pred_check
      _
    $region11: #{lenet5_forward.1} parent=1 // pred_check_branch
      %41 = sbr.rel (0) target = $region13
    $region12: #{lenet5_forward.1} parent=1 // pred_region
      %s43 = ssub.s32 40960, 40960
      %44 = vsyncadd [#allocation5], %s43
      %s45 = sshll.u32 [#allocation4], 4
      %s46 = int_to_ptr.vmem [resolvable:$true] %s45
      %51 = dma.hbm_to_vmem [thread:$0]  %s2, 40960, %s46, [#allocation5], 512, 512, 32
    $region13: #{lenet5_forward.1} parent=1 // pred_fallthru
      _
    // Predicated region
    $region14: #{lenet5_forward.1} parent=1 // pred_check
      _
    $region15: #{lenet5_forward.1} parent=1 // pred_check_branch
      %53 = sbr.rel (0) target = $region17
    $region16: #{lenet5_forward.1} parent=1 // pred_region
      %s55 = ssub.s32 64, 64
      %56 = vsyncadd [#allocation5], %s55
      %s58 = sshll.u32 [#allocation6], 4
      %s59 = int_to_ptr.vmem [resolvable:$true] %s58
      %61 = dma.hbm_to_vmem [thread:$0]  %s3, 64, %s59, [#allocation5]
    $region17: #{lenet5_forward.1} parent=1 // pred_fallthru
      _
    // Predicated region
    $region18: #{lenet5_forward.1} parent=1 // pred_check
      _
    $region19: #{lenet5_forward.1} parent=1 // pred_check_branch
      %63 = sbr.rel (0) target = $region21
    $region20: #{lenet5_forward.1} parent=1 // pred_region
      %s65 = ssub.s32 3840, 3840
      %66 = vsyncadd [#allocation8], %s65
      %s67 = sshll.u32 [#allocation7], 4
      %s68 = int_to_ptr.vmem [resolvable:$true] %s67
      %73 = dma.hbm_to_vmem [thread:$0]  %s4, 3840, %s68, [#allocation8], 128, 128, 8
    $region21: #{lenet5_forward.1} parent=1 // pred_fallthru
      _
    // Predicated region
    $region22: #{lenet5_forward.1} parent=1 // pred_check
      _
    $region23: #{lenet5_forward.1} parent=1 // pred_check_branch
      %75 = sbr.rel (0) target = $region25
    $region24: #{lenet5_forward.1} parent=1 // pred_region
      %s77 = ssub.s32 81920, 81920
      %78 = vsyncadd [#allocation8], %s77
      %s79 = sshll.u32 [#allocation9], 4
      %s80 = int_to_ptr.vmem [resolvable:$true] %s79
      %85 = dma.hbm_to_vmem [thread:$0]  %s5, 81920, %s80, [#allocation8], 512, 512, 32
    $region25: #{lenet5_forward.1} parent=1 // pred_fallthru
      _
    // Predicated region
    $region26: #{lenet5_forward.1} parent=1 // pred_check
      _
    $region27: #{lenet5_forward.1} parent=1 // pred_check_branch
      %87 = sbr.rel (0) target = $region29
    $region28: #{lenet5_forward.1} parent=1 // pred_region
      %s89 = ssub.s32 64, 64
      %90 = vsyncadd [#allocation11], %s89
      %s92 = sshll.u32 [#allocation10], 4
      %s93 = int_to_ptr.vmem [resolvable:$true] %s92
      %95 = dma.hbm_to_vmem [thread:$0]  %s6, 64, %s93, [#allocation11]
    $region29: #{lenet5_forward.1} parent=1 // pred_fallthru
      _
    // Predicated region
    $region30: #{lenet5_forward.1} parent=1 // pred_check
      _
    $region31: #{lenet5_forward.1} parent=1 // pred_check_branch
      %97 = sbr.rel (0) target = $region33
    $region32: #{lenet5_forward.1} parent=1 // pred_region
      %s99 = ssub.s32 640, 640
      %100 = vsyncadd [#allocation11], %s99
      %s101 = sshll.u32 [#allocation12], 4
      %s102 = int_to_ptr.vmem [resolvable:$true] %s101
      %107 = dma.hbm_to_vmem [thread:$0]  %s7, 640, %s102, [#allocation11], 128, 128, 8
    $region33: #{lenet5_forward.1} parent=1 // pred_fallthru
      _
    // Predicated region
    $region34: #{lenet5_forward.1} parent=1 // pred_check
      _
    $region35: #{lenet5_forward.1} parent=1 // pred_check_branch
      %109 = sbr.rel (0) target = $region37
    $region36: #{lenet5_forward.1} parent=1 // pred_region
      %s111 = ssub.s32 20480, 20480
      %112 = vsyncadd [#allocation14], %s111
      %s113 = sshll.u32 [#allocation13], 4
      %s114 = int_to_ptr.vmem [resolvable:$true] %s113
      %119 = dma.hbm_to_vmem [thread:$0]  %s8, 20480, %s114, [#allocation14], 128, 128, 8
    $region37: #{lenet5_forward.1} parent=1 // pred_fallthru
      _
    // Predicated region
    $region38: #{lenet5_forward.1} parent=1 // pred_check
      _
    $region39: #{lenet5_forward.1} parent=1 // pred_check_branch
      %121 = sbr.rel (0) target = $region41
    $region40: #{lenet5_forward.1} parent=1 // pred_region
      %s123 = ssub.s32 16, 16
      %124 = vsyncadd [#allocation14], %s123
      %s126 = sshll.u32 [#allocation15], 4
      %s127 = int_to_ptr.vmem [resolvable:$true] %s126
      %129 = dma.hbm_to_vmem [thread:$0]  %s9, 16, %s127, [#allocation14]
    $region41: #{lenet5_forward.1} parent=1 // pred_fallthru
      _
    // Predicated region
    $region42: #{lenet5_forward.1} parent=1 // pred_check
      _
    $region43: #{lenet5_forward.1} parent=1 // pred_check_branch
      %131 = sbr.rel (0) target = $region45
    $region44: #{lenet5_forward.1} parent=1 // pred_region
      %s133 = ssub.s32 2048, 2048
      %134 = vsyncadd [#allocation17], %s133
      %s135 = sshll.u32 [#allocation16], 4
      %s136 = int_to_ptr.vmem [resolvable:$true] %s135
      %141 = dma.hbm_to_vmem [thread:$0]  %s10, 2048, %s136, [#allocation17], 128, 128, 8
    $region45: #{lenet5_forward.1} parent=1 // pred_fallthru
      _
    // Predicated region
    $region46: #{lenet5_forward.1} parent=1 // pred_check
      _
    $region47: #{lenet5_forward.1} parent=1 // pred_check_branch
      %143 = sbr.rel (0) target = $region49
    $region48: #{lenet5_forward.1} parent=1 // pred_region
      %s145 = ssub.s32 16, 16
      %146 = vsyncadd [#allocation17], %s145
      %s148 = sshll.u32 [#allocation18], 4
      %s149 = int_to_ptr.vmem [resolvable:$true] %s148
      %151 = dma.hbm_to_vmem [thread:$0]  %s11, 16, %s149, [#allocation17]
    $region49: #{lenet5_forward.1} parent=1 // pred_fallthru
      _
    // Predicated region
    $region50: #{lenet5_forward.1} parent=1 // pred_check
      _
    $region51: #{lenet5_forward.1} parent=1 // pred_check_branch
      %153 = sbr.rel (0) target = $region53
    $region52: #{lenet5_forward.1} parent=1 // pred_region
      %s155 = ssub.s32 2048, 2048
      %156 = vsyncadd [#allocation20], %s155
      %s157 = sshll.u32 [#allocation19], 4
      %s158 = int_to_ptr.vmem [resolvable:$true] %s157
      %163 = dma.hbm_to_vmem [thread:$0]  %s12, 2048, %s158, [#allocation20], 128, 128, 8
    $region53: #{lenet5_forward.1} parent=1 // pred_fallthru
      _
    // Predicated region
    $region54: #{lenet5_forward.1} parent=1 // pred_check
      _
    $region55: #{lenet5_forward.1} parent=1 // pred_check_branch
      %165 = sbr.rel (0) target = $region57
    $region56: #{lenet5_forward.1} parent=1 // pred_region
      %s167 = ssub.s32 16, 16
      %168 = vsyncadd [#allocation20], %s167
      %s170 = sshll.u32 [#allocation21], 4
      %s171 = int_to_ptr.vmem [resolvable:$true] %s170
      %173 = dma.hbm_to_vmem [thread:$0]  %s13, 16, %s171, [#allocation20]
    $region57: #{lenet5_forward.1} parent=1 // pred_fallthru
      _
    // Predicated region
    $region58: #{lenet5_forward.1} parent=1 // pred_check
      _
    $region59: #{lenet5_forward.1} parent=1 // pred_check_branch
      %175 = sbr.rel (0) target = $region61
    $region60: #{lenet5_forward.1} parent=1 // pred_region
      %176 = dma.done [#allocation3], 21504
    $region61: #{lenet5_forward.1} parent=1 // pred_fallthru
      _
    // Predicated region
    $region62: #{lenet5_forward.1} parent=1 // pred_check
      _
    $region63: #{lenet5_forward.1} parent=1 // pred_check_branch
      %178 = sbr.rel (0) target = $region65
    $region64: #{lenet5_forward.1} parent=1 // pred_region
      %179 = dma.done [#allocation5], 40960
    $region65: #{lenet5_forward.1} parent=1 // pred_fallthru
      _
    // Predicated region
    $region66: #{lenet5_forward.1} parent=1 // pred_check
      _
    $region67: #{lenet5_forward.1} parent=1 // pred_check_branch
      %181 = sbr.rel (0) target = $region69
    $region68: #{lenet5_forward.1} parent=1 // pred_region
      %182 = dma.done [#allocation5], 64
    $region69: #{lenet5_forward.1} parent=1 // pred_fallthru
      _
    // Predicated region
    $region70: #{lenet5_forward.1} parent=1 // pred_check
      _
    $region71: #{lenet5_forward.1} parent=1 // pred_check_branch
      %184 = sbr.rel (0) target = $region73
    $region72: #{lenet5_forward.1} parent=1 // pred_region
      %185 = dma.done [#allocation8], 3840
    $region73: #{lenet5_forward.1} parent=1 // pred_fallthru
      _
    // Predicated region
    $region74: #{lenet5_forward.1} parent=1 // pred_check
      _
    $region75: #{lenet5_forward.1} parent=1 // pred_check_branch
      %187 = sbr.rel (0) target = $region77
    $region76: #{lenet5_forward.1} parent=1 // pred_region
      %188 = dma.done [#allocation8], 81920
    $region77: #{lenet5_forward.1} parent=1 // pred_fallthru
      _
    // Predicated region
    $region78: #{lenet5_forward.1} parent=1 // pred_check
      _
    $region79: #{lenet5_forward.1} parent=1 // pred_check_branch
      %190 = sbr.rel (0) target = $region81
    $region80: #{lenet5_forward.1} parent=1 // pred_region
      %191 = dma.done [#allocation11], 64
    $region81: #{lenet5_forward.1} parent=1 // pred_fallthru
      _
    // Predicated region
    $region82: #{lenet5_forward.1} parent=1 // pred_check
      _
    $region83: #{lenet5_forward.1} parent=1 // pred_check_branch
      %193 = sbr.rel (0) target = $region85
    $region84: #{lenet5_forward.1} parent=1 // pred_region
      %194 = dma.done [#allocation11], 640
    $region85: #{lenet5_forward.1} parent=1 // pred_fallthru
      _
    // Predicated region
    $region86: #{lenet5_forward.1} parent=1 // pred_check
      _
    $region87: #{lenet5_forward.1} parent=1 // pred_check_branch
      %196 = sbr.rel (0) target = $region89
    $region88: #{lenet5_forward.1} parent=1 // pred_region
      %197 = dma.done [#allocation14], 20480
    $region89: #{lenet5_forward.1} parent=1 // pred_fallthru
      _
    // Predicated region
    $region90: #{lenet5_forward.1} parent=1 // pred_check
      _
    $region91: #{lenet5_forward.1} parent=1 // pred_check_branch
      %199 = sbr.rel (0) target = $region93
    $region92: #{lenet5_forward.1} parent=1 // pred_region
      %200 = dma.done [#allocation14], 16
    $region93: #{lenet5_forward.1} parent=1 // pred_fallthru
      _
    // Predicated region
    $region94: #{lenet5_forward.1} parent=1 // pred_check
      _
    $region95: #{lenet5_forward.1} parent=1 // pred_check_branch
      %202 = sbr.rel (0) target = $region97
    $region96: #{lenet5_forward.1} parent=1 // pred_region
      %203 = dma.done [#allocation17], 2048
    $region97: #{lenet5_forward.1} parent=1 // pred_fallthru
      _
    // Predicated region
    $region98: #{lenet5_forward.1} parent=1 // pred_check
      _
    $region99: #{lenet5_forward.1} parent=1 // pred_check_branch
      %205 = sbr.rel (0) target = $region101
    $region100: #{lenet5_forward.1} parent=1 // pred_region
      %206 = dma.done [#allocation17], 16
    $region101: #{lenet5_forward.1} parent=1 // pred_fallthru
      _
    // Predicated region
    $region102: #{lenet5_forward.1} parent=1 // pred_check
      _
    $region103: #{lenet5_forward.1} parent=1 // pred_check_branch
      %208 = sbr.rel (0) target = $region105
    $region104: #{lenet5_forward.1} parent=1 // pred_region
      %209 = dma.done [#allocation20], 2048
    $region105: #{lenet5_forward.1} parent=1 // pred_fallthru
      _
    // Predicated region
    $region106: #{lenet5_forward.1} parent=1 // pred_check
      _
    $region107: #{lenet5_forward.1} parent=1 // pred_check_branch
      %211 = sbr.rel (0) target = $region109
    $region108: #{lenet5_forward.1} parent=1 // pred_region
      %212 = dma.done [#allocation20], 16
    $region109: #{lenet5_forward.1} parent=1 // pred_fallthru
      _
    %v213 = vld [vmem:[%s0] sm:$0xff]
    %v214 = vld [vmem:[%s0 + $0x8] sm:$0xff]
    %v215 = vld [vmem:[%s0 + $0x10] sm:$0xff]
    %v216 = vld [vmem:[%s0 + $0x18] sm:$0xff]
    %v217 = vld [vmem:[%s0 + $0x20] sm:$0xff]
    %v218 = vld [vmem:[%s0 + $0x28] sm:$0xff]
    %v219 = vld [vmem:[%s0 + $0x30] sm:$0xff]
    %v220 = vld [vmem:[%s0 + $0x38] sm:$0xff]
    %v221 = vld [vmem:[%s0 + $0x40] sm:$0xff]
    %v222 = vld [vmem:[%s0 + $0x48] sm:$0xff]
    %v223 = vld [vmem:[%s0 + $0x50] sm:$0xff]
    %v224 = vld [vmem:[%s0 + $0x58] sm:$0xff]
    %v225 = vld [vmem:[%s0 + $0x60] sm:$0xff]
    %v226 = vld [vmem:[%s0 + $0x68] sm:$0xff]
    %v227 = vld [vmem:[%s0 + $0x70] sm:$0xff]
    %v228 = vld [vmem:[%s0 + $0x78] sm:$0xff]
    %v229 = vld [vmem:[%s0 + $0x80] sm:$0xff]
    %v230 = vld [vmem:[%s0 + $0x88] sm:$0xff]
    %v231 = vld [vmem:[%s0 + $0x90] sm:$0xff]
    %v232 = vld [vmem:[%s0 + $0x98] sm:$0xff]
    %v233 = vld [vmem:[%s0 + $0xa0] sm:$0xff]
    %v234 = vld [vmem:[%s0 + $0xa8] sm:$0xff]
    %v235 = vld [vmem:[%s0 + $0xb0] sm:$0xff]
    %v236 = vld [vmem:[%s0 + $0xb8] sm:$0xff]
    %v237 = vld [vmem:[%s0 + $0xc0] sm:$0xff]
    %v238 = vld [vmem:[%s0 + $0xc8] sm:$0xff]
    %v239 = vld [vmem:[%s0 + $0xd0] sm:$0xff]
    %v240 = vld [vmem:[%s0 + $0xd8] sm:$0xff]
    %v241 = vld [vmem:[%s0 + $0xe0] sm:$0xff]
    %v242 = vld [vmem:[%s0 + $0xe8] sm:$0xff]
    %v243 = vld [vmem:[%s0 + $0xf0] sm:$0xff]
    %v244 = vld [vmem:[%s0 + $0xf8] sm:$0xff]
    %v245 = vld [vmem:[#allocation2] sm:$0xff]
    %v246 = vld [vmem:[#allocation2 + $0x8] sm:$0xff]
    %v247 = vld [vmem:[#allocation2 + $0x10] sm:$0xff]
    %v248 = vld [vmem:[#allocation2 + $0x18] sm:$0xff]
    %v249 = vld [vmem:[#allocation2 + $0x20] sm:$0xff]
    %v250 = vld [vmem:[#allocation2 + $0x28] sm:$0xff]
    %v251 = vld [vmem:[#allocation2 + $0x30] sm:$0xff]
    %v252 = vld [vmem:[#allocation2 + $0x38] sm:$0xff]
    %v253 = vld [vmem:[#allocation2 + $0x40] sm:$0xff]
    %v254 = vld [vmem:[#allocation2 + $0x48] sm:$0xff]
    %v255 = vld [vmem:[#allocation2 + $0x50] sm:$0xff]
    %v256 = vld [vmem:[#allocation2 + $0x58] sm:$0xff]
    %v257 = vld [vmem:[#allocation2 + $0x60] sm:$0xff]
    %v258 = vld [vmem:[#allocation2 + $0x68] sm:$0xff]
    %v259 = vld [vmem:[#allocation2 + $0x70] sm:$0xff]
    %v260 = vld [vmem:[#allocation2 + $0x78] sm:$0xff]
    %v261 = vld [vmem:[#allocation2 + $0x80] sm:$0xff]
    %v262 = vld [vmem:[#allocation2 + $0x88] sm:$0xff]
    %v263 = vld [vmem:[#allocation2 + $0x90] sm:$0xff]
    %v264 = vld [vmem:[#allocation2 + $0x98] sm:$0xff]
    %v265 = vld [vmem:[#allocation2 + $0xa0] sm:$0xff]
    %v266 = vld [vmem:[#allocation2 + $0xa8] sm:$0xff]
    %v267 = vld [vmem:[#allocation2 + $0xb0] sm:$0xff]
    %v268 = vld [vmem:[#allocation2 + $0xb8] sm:$0xff]
    %v269 = vld [vmem:[#allocation2 + $0xc0] sm:$0xff]
    %v270 = vld [vmem:[#allocation2 + $0xc8] sm:$0xff]
    %v271 = vld [vmem:[#allocation2 + $0xd0] sm:$0xff]
    %v272 = vld [vmem:[#allocation2 + $0xd8] sm:$0xff]
    %273 = vmatprep.subr.mxu0 0.0
    %274 = vmatpush1.msra.mxu0 %v228
    %275 = vmatprep.subr.mxu0 0.0
    %276 = vmatpush1.msra.mxu0 %v227
    %277 = vmatprep.subr.mxu0 0.0
    %278 = vmatpush1.msra.mxu0 %v226
    %279 = vmatprep.subr.mxu0 0.0
    %280 = vmatpush1.msra.mxu0 %v225
    %281 = vmatprep.subr.mxu0 0.0
    %282 = vmatpush1.msra.mxu0 %v224
    %283 = vmatprep.subr.mxu0 0.0
    %284 = vmatpush1.msra.mxu0 %v223
    %285 = vmatprep.subr.mxu0 0.0
    %286 = vmatpush1.msra.mxu0 %v222
    %287 = vmatprep.subr.mxu0 0.0
    %288 = vmatpush1.msra.mxu0 %v221
    %289 = vmatprep.subr.mxu0 0.0
    %290 = vmatpush1.msra.mxu0 %v220
    %291 = vmatprep.subr.mxu0 0.0
    %292 = vmatpush1.msra.mxu0 %v219
    %293 = vmatprep.subr.mxu0 0.0
    %294 = vmatpush1.msra.mxu0 %v218
    %295 = vmatprep.subr.mxu0 0.0
    %296 = vmatpush1.msra.mxu0 %v217
    %297 = vmatprep.subr.mxu0 0.0
    %298 = vmatpush1.msra.mxu0 %v216
    %299 = vmatprep.subr.mxu0 0.0
    %300 = vmatpush1.msra.mxu0 %v215
    %301 = vmatprep.subr.mxu0 0.0
    %302 = vmatpush1.msra.mxu0 %v214
    %303 = vmatprep.subr.mxu0 0.0
    %304 = vmatpush1.msra.mxu0 %v213
    %305 = vmatprep.subr.mxu0 0.0
    %306 = vmatpush2.msra.mxu0 %v244
    %307 = vmatprep.subr.mxu0 0.0
    %308 = vmatpush2.msra.mxu0 %v243
    %309 = vmatprep.subr.mxu0 0.0
    %310 = vmatpush2.msra.mxu0 %v242
    %311 = vmatprep.subr.mxu0 0.0
    %312 = vmatpush2.msra.mxu0 %v241
    %313 = vmatprep.subr.mxu0 0.0
    %314 = vmatpush2.msra.mxu0 %v240
    %315 = vmatprep.subr.mxu0 0.0
    %316 = vmatpush2.msra.mxu0 %v239
    %317 = vmatprep.subr.mxu0 0.0
    %318 = vmatpush2.msra.mxu0 %v238
    %319 = vmatprep.subr.mxu0 0.0
    %320 = vmatpush2.msra.mxu0 %v237
    %321 = vmatprep.subr.mxu0 0.0
    %322 = vmatpush2.msra.mxu0 %v236
    %323 = vmatprep.subr.mxu0 0.0
    %324 = vmatpush2.msra.mxu0 %v235
    %325 = vmatprep.subr.mxu0 0.0
    %326 = vmatpush2.msra.mxu0 %v234
    %327 = vmatprep.subr.mxu0 0.0
    %328 = vmatpush2.msra.mxu0 %v233
    %329 = vmatprep.subr.mxu0 0.0
    %330 = vmatpush2.msra.mxu0 %v232
    %331 = vmatprep.subr.mxu0 0.0
    %332 = vmatpush2.msra.mxu0 %v231
    %333 = vmatprep.subr.mxu0 0.0
    %334 = vmatpush2.msra.mxu0 %v230
    %335 = vmatprep.subr.mxu0 0.0
    %336 = vmatpush2.msra.mxu0 %v229
    %337 = vmatprep.mubr.f32.mxu0 %v246
    %338 = vmatmul.mubr.f32.gmra.mxu0 %v245
    %v339 = vpop.f32.mrf.mxu0
    %v340 = vadd.f32 0.0, %v339
    %v341 = vpop.f32.mrf.mxu0
    %342 = vmatprep.mubr.f32.mxu0 %v248
    %343 = vmatmul.mubr.f32.gmra.mxu0 %v247
    %v344 = vpop.f32.mrf.mxu0
    %v345 = vadd.f32 0.0, %v344
    %v346 = vpop.f32.mrf.mxu0
    %347 = vmatprep.mubr.f32.mxu0 %v250
    %348 = vmatmul.mubr.f32.gmra.mxu0 %v249
    %v349 = vpop.f32.mrf.mxu0
    %v350 = vadd.f32 0.0, %v349
    %v351 = vpop.f32.mrf.mxu0
    %352 = vmatprep.mubr.f32.mxu0 %v252
    %353 = vmatmul.mubr.f32.gmra.mxu0 %v251
    %v354 = vpop.f32.mrf.mxu0
    %v355 = vadd.f32 0.0, %v354
    %v356 = vpop.f32.mrf.mxu0
    %357 = vmatprep.mubr.f32.mxu0 %v254
    %358 = vmatmul.mubr.f32.gmra.mxu0 %v253
    %v359 = vpop.f32.mrf.mxu0
    %v360 = vadd.f32 0.0, %v359
    %v361 = vpop.f32.mrf.mxu0
    %362 = vmatprep.mubr.f32.mxu0 %v256
    %363 = vmatmul.mubr.f32.gmra.mxu0 %v255
    %v364 = vpop.f32.mrf.mxu0
    %v365 = vadd.f32 0.0, %v364
    %v366 = vpop.f32.mrf.mxu0
    %367 = vmatprep.mubr.f32.mxu0 %v258
    %368 = vmatmul.mubr.f32.gmra.mxu0 %v257
    %v369 = vpop.f32.mrf.mxu0
    %v370 = vadd.f32 0.0, %v369
    %v371 = vpop.f32.mrf.mxu0
    %372 = vmatprep.mubr.f32.mxu0 %v260
    %373 = vmatmul.mubr.f32.gmra.mxu0 %v259
    %v374 = vpop.f32.mrf.mxu0
    %v375 = vadd.f32 0.0, %v374
    %v376 = vpop.f32.mrf.mxu0
    %377 = vmatprep.mubr.f32.mxu0 %v262
    %378 = vmatmul.mubr.f32.gmra.mxu0 %v261
    %v379 = vpop.f32.mrf.mxu0
    %v380 = vadd.f32 0.0, %v379
    %v381 = vpop.f32.mrf.mxu0
    %382 = vmatprep.mubr.f32.mxu0 %v264
    %383 = vmatmul.mubr.f32.gmra.mxu0 %v263
    %v384 = vpop.f32.mrf.mxu0
    %v385 = vadd.f32 0.0, %v384
    %v386 = vpop.f32.mrf.mxu0
    %387 = vmatprep.mubr.f32.mxu0 %v266
    %388 = vmatmul.mubr.f32.gmra.mxu0 %v265
    %v389 = vpop.f32.mrf.mxu0
    %v390 = vadd.f32 0.0, %v389
    %v391 = vpop.f32.mrf.mxu0
    %392 = vmatprep.mubr.f32.mxu0 %v268
    %393 = vmatmul.mubr.f32.gmra.mxu0 %v267
    %v394 = vpop.f32.mrf.mxu0
    %v395 = vadd.f32 0.0, %v394
    %v396 = vpop.f32.mrf.mxu0
    %397 = vmatprep.mubr.f32.mxu0 %v270
    %398 = vmatmul.mubr.f32.gmra.mxu0 %v269
    %v399 = vpop.f32.mrf.mxu0
    %v400 = vadd.f32 0.0, %v399
    %v401 = vpop.f32.mrf.mxu0
    %402 = vmatprep.mubr.f32.mxu0 %v272
    %403 = vmatmul.mubr.f32.gmra.mxu0 %v271
    %v404 = vpop.f32.mrf.mxu0
    %v405 = vadd.f32 0.0, %v404
    %v406 = vpop.f32.mrf.mxu0
    %407 = vdwg.mxu0
    %s408 = scalar_lea.vmem [#allocation2], 224
    %v409 = vld [vmem:[%s408] sm:$0xff]
    %v410 = vld [vmem:[%s408 + $0x8] sm:$0xff]
    %v411 = vld [vmem:[%s408 + $0x10] sm:$0xff]
    %v412 = vld [vmem:[%s408 + $0x18] sm:$0xff]
    %v413 = vld [vmem:[%s408 + $0x20] sm:$0xff]
    %v414 = vld [vmem:[%s408 + $0x28] sm:$0xff]
    %v415 = vld [vmem:[%s408 + $0x30] sm:$0xff]
    %v416 = vld [vmem:[%s408 + $0x38] sm:$0xff]
    %v417 = vld [vmem:[%s408 + $0x40] sm:$0xff]
    %v418 = vld [vmem:[%s408 + $0x48] sm:$0xff]
    %v419 = vld [vmem:[%s408 + $0x50] sm:$0xff]
    %v420 = vld [vmem:[%s408 + $0x58] sm:$0xff]
    %v421 = vld [vmem:[%s408 + $0x60] sm:$0xff]
    %v422 = vld [vmem:[%s408 + $0x68] sm:$0xff]
    %v423 = vld [vmem:[%s408 + $0x70] sm:$0xff]
    %v424 = vld [vmem:[%s408 + $0x78] sm:$0xff]
    %v425 = vld [vmem:[%s408 + $0x80] sm:$0xff]
    %v426 = vld [vmem:[%s408 + $0x88] sm:$0xff]
    %v427 = vld [vmem:[%s408 + $0x90] sm:$0xff]
    %v428 = vld [vmem:[%s408 + $0x98] sm:$0xff]
    %v429 = vld [vmem:[%s408 + $0xa0] sm:$0xff]
    %v430 = vld [vmem:[%s408 + $0xa8] sm:$0xff]
    %v431 = vld [vmem:[%s408 + $0xb0] sm:$0xff]
    %v432 = vld [vmem:[%s408 + $0xb8] sm:$0xff]
    %v433 = vld [vmem:[%s408 + $0xc0] sm:$0xff]
    %v434 = vld [vmem:[%s408 + $0xc8] sm:$0xff]
    %v435 = vld [vmem:[%s408 + $0xd0] sm:$0xff]
    %v436 = vld [vmem:[%s408 + $0xd8] sm:$0xff]
    %437 = vmatprep.subr.mxu0 0.0
    %438 = vmatpush1.msra.mxu0 %v228
    %439 = vmatprep.subr.mxu0 0.0
    %440 = vmatpush1.msra.mxu0 %v227
    %441 = vmatprep.subr.mxu0 0.0
    %442 = vmatpush1.msra.mxu0 %v226
    %443 = vmatprep.subr.mxu0 0.0
    %444 = vmatpush1.msra.mxu0 %v225
    %445 = vmatprep.subr.mxu0 0.0
    %446 = vmatpush1.msra.mxu0 %v224
    %447 = vmatprep.subr.mxu0 0.0
    %448 = vmatpush1.msra.mxu0 %v223
    %449 = vmatprep.subr.mxu0 0.0
    %450 = vmatpush1.msra.mxu0 %v222
    %451 = vmatprep.subr.mxu0 0.0
    %452 = vmatpush1.msra.mxu0 %v221
    %453 = vmatprep.subr.mxu0 0.0
    %454 = vmatpush1.msra.mxu0 %v220
    %455 = vmatprep.subr.mxu0 0.0
    %456 = vmatpush1.msra.mxu0 %v219
    %457 = vmatprep.subr.mxu0 0.0
    %458 = vmatpush1.msra.mxu0 %v218
    %459 = vmatprep.subr.mxu0 0.0
    %460 = vmatpush1.msra.mxu0 %v217
    %461 = vmatprep.subr.mxu0 0.0
    %462 = vmatpush1.msra.mxu0 %v216
    %463 = vmatprep.subr.mxu0 0.0
    %464 = vmatpush1.msra.mxu0 %v215
    %465 = vmatprep.subr.mxu0 0.0
    %466 = vmatpush1.msra.mxu0 %v214
    %467 = vmatprep.subr.mxu0 0.0
    %468 = vmatpush1.msra.mxu0 %v213
    %469 = vmatprep.subr.mxu0 0.0
    %470 = vmatpush2.msra.mxu0 %v244
    %471 = vmatprep.subr.mxu0 0.0
    %472 = vmatpush2.msra.mxu0 %v243
    %473 = vmatprep.subr.mxu0 0.0
    %474 = vmatpush2.msra.mxu0 %v242
    %475 = vmatprep.subr.mxu0 0.0
    %476 = vmatpush2.msra.mxu0 %v241
    %477 = vmatprep.subr.mxu0 0.0
    %478 = vmatpush2.msra.mxu0 %v240
    %479 = vmatprep.subr.mxu0 0.0
    %480 = vmatpush2.msra.mxu0 %v239
    %481 = vmatprep.subr.mxu0 0.0
    %482 = vmatpush2.msra.mxu0 %v238
    %483 = vmatprep.subr.mxu0 0.0
    %484 = vmatpush2.msra.mxu0 %v237
    %485 = vmatprep.subr.mxu0 0.0
    %486 = vmatpush2.msra.mxu0 %v236
    %487 = vmatprep.subr.mxu0 0.0
    %488 = vmatpush2.msra.mxu0 %v235
    %489 = vmatprep.subr.mxu0 0.0
    %490 = vmatpush2.msra.mxu0 %v234
    %491 = vmatprep.subr.mxu0 0.0
    %492 = vmatpush2.msra.mxu0 %v233
    %493 = vmatprep.subr.mxu0 0.0
    %494 = vmatpush2.msra.mxu0 %v232
    %495 = vmatprep.subr.mxu0 0.0
    %496 = vmatpush2.msra.mxu0 %v231
    %497 = vmatprep.subr.mxu0 0.0
    %498 = vmatpush2.msra.mxu0 %v230
    %499 = vmatprep.subr.mxu0 0.0
    %500 = vmatpush2.msra.mxu0 %v229
    %501 = vmatprep.mubr.f32.mxu0 %v410
    %502 = vmatmul.mubr.f32.gmra.mxu0 %v409
    %v503 = vpop.f32.mrf.mxu0
    %v504 = vadd.f32 0.0, %v503
    %v505 = vpop.f32.mrf.mxu0
    %506 = vmatprep.mubr.f32.mxu0 %v412
    %507 = vmatmul.mubr.f32.gmra.mxu0 %v411
    %v508 = vpop.f32.mrf.mxu0
    %v509 = vadd.f32 0.0, %v508
    %v510 = vpop.f32.mrf.mxu0
    %511 = vmatprep.mubr.f32.mxu0 %v414
    %512 = vmatmul.mubr.f32.gmra.mxu0 %v413
    %v513 = vpop.f32.mrf.mxu0
    %v514 = vadd.f32 0.0, %v513
    %v515 = vpop.f32.mrf.mxu0
    %516 = vmatprep.mubr.f32.mxu0 %v416
    %517 = vmatmul.mubr.f32.gmra.mxu0 %v415
    %v518 = vpop.f32.mrf.mxu0
    %v519 = vadd.f32 0.0, %v518
    %v520 = vpop.f32.mrf.mxu0
    %521 = vmatprep.mubr.f32.mxu0 %v418
    %522 = vmatmul.mubr.f32.gmra.mxu0 %v417
    %v523 = vpop.f32.mrf.mxu0
    %v524 = vadd.f32 0.0, %v523
    %v525 = vpop.f32.mrf.mxu0
    %526 = vmatprep.mubr.f32.mxu0 %v420
    %527 = vmatmul.mubr.f32.gmra.mxu0 %v419
    %v528 = vpop.f32.mrf.mxu0
    %v529 = vadd.f32 0.0, %v528
    %v530 = vpop.f32.mrf.mxu0
    %531 = vmatprep.mubr.f32.mxu0 %v422
    %532 = vmatmul.mubr.f32.gmra.mxu0 %v421
    %v533 = vpop.f32.mrf.mxu0
    %v534 = vadd.f32 0.0, %v533
    %v535 = vpop.f32.mrf.mxu0
    %536 = vmatprep.mubr.f32.mxu0 %v424
    %537 = vmatmul.mubr.f32.gmra.mxu0 %v423
    %v538 = vpop.f32.mrf.mxu0
    %v539 = vadd.f32 0.0, %v538
    %v540 = vpop.f32.mrf.mxu0
    %541 = vmatprep.mubr.f32.mxu0 %v426
    %542 = vmatmul.mubr.f32.gmra.mxu0 %v425
    %v543 = vpop.f32.mrf.mxu0
    %v544 = vadd.f32 0.0, %v543
    %v545 = vpop.f32.mrf.mxu0
    %546 = vmatprep.mubr.f32.mxu0 %v428
    %547 = vmatmul.mubr.f32.gmra.mxu0 %v427
    %v548 = vpop.f32.mrf.mxu0
    %v549 = vadd.f32 0.0, %v548
    %v550 = vpop.f32.mrf.mxu0
    %551 = vmatprep.mubr.f32.mxu0 %v430
    %552 = vmatmul.mubr.f32.gmra.mxu0 %v429
    %v553 = vpop.f32.mrf.mxu0
    %v554 = vadd.f32 0.0, %v553
    %v555 = vpop.f32.mrf.mxu0
    %556 = vmatprep.mubr.f32.mxu0 %v432
    %557 = vmatmul.mubr.f32.gmra.mxu0 %v431
    %v558 = vpop.f32.mrf.mxu0
    %v559 = vadd.f32 0.0, %v558
    %v560 = vpop.f32.mrf.mxu0
    %561 = vmatprep.mubr.f32.mxu0 %v434
    %562 = vmatmul.mubr.f32.gmra.mxu0 %v433
    %v563 = vpop.f32.mrf.mxu0
    %v564 = vadd.f32 0.0, %v563
    %v565 = vpop.f32.mrf.mxu0
    %566 = vmatprep.mubr.f32.mxu0 %v436
    %567 = vmatmul.mubr.f32.gmra.mxu0 %v435
    %v568 = vpop.f32.mrf.mxu0
    %v569 = vadd.f32 0.0, %v568
    %v570 = vpop.f32.mrf.mxu0
    %571 = vdwg.mxu0
    %s572 = scalar_lea.vmem [#allocation2], 448
    %v573 = vld [vmem:[%s572] sm:$0xff]
    %v574 = vld [vmem:[%s572 + $0x8] sm:$0xff]
    %v575 = vld [vmem:[%s572 + $0x10] sm:$0xff]
    %v576 = vld [vmem:[%s572 + $0x18] sm:$0xff]
    %v577 = vld [vmem:[%s572 + $0x20] sm:$0xff]
    %v578 = vld [vmem:[%s572 + $0x28] sm:$0xff]
    %v579 = vld [vmem:[%s572 + $0x30] sm:$0xff]
    %v580 = vld [vmem:[%s572 + $0x38] sm:$0xff]
    %v581 = vld [vmem:[%s572 + $0x40] sm:$0xff]
    %v582 = vld [vmem:[%s572 + $0x48] sm:$0xff]
    %v583 = vld [vmem:[%s572 + $0x50] sm:$0xff]
    %v584 = vld [vmem:[%s572 + $0x58] sm:$0xff]
    %v585 = vld [vmem:[%s572 + $0x60] sm:$0xff]
    %v586 = vld [vmem:[%s572 + $0x68] sm:$0xff]
    %v587 = vld [vmem:[%s572 + $0x70] sm:$0xff]
    %v588 = vld [vmem:[%s572 + $0x78] sm:$0xff]
    %v589 = vld [vmem:[%s572 + $0x80] sm:$0xff]
    %v590 = vld [vmem:[%s572 + $0x88] sm:$0xff]
    %v591 = vld [vmem:[%s572 + $0x90] sm:$0xff]
    %v592 = vld [vmem:[%s572 + $0x98] sm:$0xff]
    %v593 = vld [vmem:[%s572 + $0xa0] sm:$0xff]
    %v594 = vld [vmem:[%s572 + $0xa8] sm:$0xff]
    %v595 = vld [vmem:[%s572 + $0xb0] sm:$0xff]
    %v596 = vld [vmem:[%s572 + $0xb8] sm:$0xff]
    %v597 = vld [vmem:[%s572 + $0xc0] sm:$0xff]
    %v598 = vld [vmem:[%s572 + $0xc8] sm:$0xff]
    %v599 = vld [vmem:[%s572 + $0xd0] sm:$0xff]
    %v600 = vld [vmem:[%s572 + $0xd8] sm:$0xff]
    %601 = vmatprep.subr.mxu0 0.0
    %602 = vmatpush1.msra.mxu0 %v228
    %603 = vmatprep.subr.mxu0 0.0
    %604 = vmatpush1.msra.mxu0 %v227
    %605 = vmatprep.subr.mxu0 0.0
    %606 = vmatpush1.msra.mxu0 %v226
    %607 = vmatprep.subr.mxu0 0.0
    %608 = vmatpush1.msra.mxu0 %v225
    %609 = vmatprep.subr.mxu0 0.0
    %610 = vmatpush1.msra.mxu0 %v224
    %611 = vmatprep.subr.mxu0 0.0
    %612 = vmatpush1.msra.mxu0 %v223
    %613 = vmatprep.subr.mxu0 0.0
    %614 = vmatpush1.msra.mxu0 %v222
    %615 = vmatprep.subr.mxu0 0.0
    %616 = vmatpush1.msra.mxu0 %v221
    %617 = vmatprep.subr.mxu0 0.0
    %618 = vmatpush1.msra.mxu0 %v220
    %619 = vmatprep.subr.mxu0 0.0
    %620 = vmatpush1.msra.mxu0 %v219
    %621 = vmatprep.subr.mxu0 0.0
    %622 = vmatpush1.msra.mxu0 %v218
    %623 = vmatprep.subr.mxu0 0.0
    %624 = vmatpush1.msra.mxu0 %v217
    %625 = vmatprep.subr.mxu0 0.0
    %626 = vmatpush1.msra.mxu0 %v216
    %627 = vmatprep.subr.mxu0 0.0
    %628 = vmatpush1.msra.mxu0 %v215
    %629 = vmatprep.subr.mxu0 0.0
    %630 = vmatpush1.msra.mxu0 %v214
    %631 = vmatprep.subr.mxu0 0.0
    %632 = vmatpush1.msra.mxu0 %v213
    %633 = vmatprep.subr.mxu0 0.0
    %634 = vmatpush2.msra.mxu0 %v244
    %635 = vmatprep.subr.mxu0 0.0
    %636 = vmatpush2.msra.mxu0 %v243
    %637 = vmatprep.subr.mxu0 0.0
    %638 = vmatpush2.msra.mxu0 %v242
    %639 = vmatprep.subr.mxu0 0.0
    %640 = vmatpush2.msra.mxu0 %v241
    %641 = vmatprep.subr.mxu0 0.0
    %642 = vmatpush2.msra.mxu0 %v240
    %643 = vmatprep.subr.mxu0 0.0
    %644 = vmatpush2.msra.mxu0 %v239
    %645 = vmatprep.subr.mxu0 0.0
    %646 = vmatpush2.msra.mxu0 %v238
    %647 = vmatprep.subr.mxu0 0.0
    %648 = vmatpush2.msra.mxu0 %v237
    %649 = vmatprep.subr.mxu0 0.0
    %650 = vmatpush2.msra.mxu0 %v236
    %651 = vmatprep.subr.mxu0 0.0
    %652 = vmatpush2.msra.mxu0 %v235
    %653 = vmatprep.subr.mxu0 0.0
    %654 = vmatpush2.msra.mxu0 %v234
    %655 = vmatprep.subr.mxu0 0.0
    %656 = vmatpush2.msra.mxu0 %v233
    %657 = vmatprep.subr.mxu0 0.0
    %658 = vmatpush2.msra.mxu0 %v232
    %659 = vmatprep.subr.mxu0 0.0
    %660 = vmatpush2.msra.mxu0 %v231
    %661 = vmatprep.subr.mxu0 0.0
    %662 = vmatpush2.msra.mxu0 %v230
    %663 = vmatprep.subr.mxu0 0.0
    %664 = vmatpush2.msra.mxu0 %v229
    %665 = vmatprep.mubr.f32.mxu0 %v574
    %666 = vmatmul.mubr.f32.gmra.mxu0 %v573
    %v667 = vpop.f32.mrf.mxu0
    %v668 = vadd.f32 0.0, %v667
    %v669 = vpop.f32.mrf.mxu0
    %670 = vmatprep.mubr.f32.mxu0 %v576
    %671 = vmatmul.mubr.f32.gmra.mxu0 %v575
    %v672 = vpop.f32.mrf.mxu0
    %v673 = vadd.f32 0.0, %v672
    %v674 = vpop.f32.mrf.mxu0
    %675 = vmatprep.mubr.f32.mxu0 %v578
    %676 = vmatmul.mubr.f32.gmra.mxu0 %v577
    %v677 = vpop.f32.mrf.mxu0
    %v678 = vadd.f32 0.0, %v677
    %v679 = vpop.f32.mrf.mxu0
    %680 = vmatprep.mubr.f32.mxu0 %v580
    %681 = vmatmul.mubr.f32.gmra.mxu0 %v579
    %v682 = vpop.f32.mrf.mxu0
    %v683 = vadd.f32 0.0, %v682
    %v684 = vpop.f32.mrf.mxu0
    %685 = vmatprep.mubr.f32.mxu0 %v582
    %686 = vmatmul.mubr.f32.gmra.mxu0 %v581
    %v687 = vpop.f32.mrf.mxu0
    %v688 = vadd.f32 0.0, %v687
    %v689 = vpop.f32.mrf.mxu0
    %690 = vmatprep.mubr.f32.mxu0 %v584
    %691 = vmatmul.mubr.f32.gmra.mxu0 %v583
    %v692 = vpop.f32.mrf.mxu0
    %v693 = vadd.f32 0.0, %v692
    %v694 = vpop.f32.mrf.mxu0
    %695 = vmatprep.mubr.f32.mxu0 %v586
    %696 = vmatmul.mubr.f32.gmra.mxu0 %v585
    %v697 = vpop.f32.mrf.mxu0
    %v698 = vadd.f32 0.0, %v697
    %v699 = vpop.f32.mrf.mxu0
    %700 = vmatprep.mubr.f32.mxu0 %v588
    %701 = vmatmul.mubr.f32.gmra.mxu0 %v587
    %v702 = vpop.f32.mrf.mxu0
    %v703 = vadd.f32 0.0, %v702
    %v704 = vpop.f32.mrf.mxu0
    %705 = vmatprep.mubr.f32.mxu0 %v590
    %706 = vmatmul.mubr.f32.gmra.mxu0 %v589
    %v707 = vpop.f32.mrf.mxu0
    %v708 = vadd.f32 0.0, %v707
    %v709 = vpop.f32.mrf.mxu0
    %710 = vmatprep.mubr.f32.mxu0 %v592
    %711 = vmatmul.mubr.f32.gmra.mxu0 %v591
    %v712 = vpop.f32.mrf.mxu0
    %v713 = vadd.f32 0.0, %v712
    %v714 = vpop.f32.mrf.mxu0
    %715 = vmatprep.mubr.f32.mxu0 %v594
    %716 = vmatmul.mubr.f32.gmra.mxu0 %v593
    %v717 = vpop.f32.mrf.mxu0
    %v718 = vadd.f32 0.0, %v717
    %v719 = vpop.f32.mrf.mxu0
    %720 = vmatprep.mubr.f32.mxu0 %v596
    %721 = vmatmul.mubr.f32.gmra.mxu0 %v595
    %v722 = vpop.f32.mrf.mxu0
    %v723 = vadd.f32 0.0, %v722
    %v724 = vpop.f32.mrf.mxu0
    %725 = vmatprep.mubr.f32.mxu0 %v598
    %726 = vmatmul.mubr.f32.gmra.mxu0 %v597
    %v727 = vpop.f32.mrf.mxu0
    %v728 = vadd.f32 0.0, %v727
    %v729 = vpop.f32.mrf.mxu0
    %730 = vmatprep.mubr.f32.mxu0 %v600
    %731 = vmatmul.mubr.f32.gmra.mxu0 %v599
    %v732 = vpop.f32.mrf.mxu0
    %v733 = vadd.f32 0.0, %v732
    %v734 = vpop.f32.mrf.mxu0
    %735 = vdwg.mxu0
    %s736 = scalar_lea.vmem [#allocation2], 672
    %v737 = vld [vmem:[%s736] sm:$0xff]
    %v738 = vld [vmem:[%s736 + $0x8] sm:$0xff]
    %v739 = vld [vmem:[%s736 + $0x10] sm:$0xff]
    %v740 = vld [vmem:[%s736 + $0x18] sm:$0xff]
    %v741 = vld [vmem:[%s736 + $0x20] sm:$0xff]
    %v742 = vld [vmem:[%s736 + $0x28] sm:$0xff]
    %v743 = vld [vmem:[%s736 + $0x30] sm:$0xff]
    %v744 = vld [vmem:[%s736 + $0x38] sm:$0xff]
    %v745 = vld [vmem:[%s736 + $0x40] sm:$0xff]
    %v746 = vld [vmem:[%s736 + $0x48] sm:$0xff]
    %v747 = vld [vmem:[%s736 + $0x50] sm:$0xff]
    %v748 = vld [vmem:[%s736 + $0x58] sm:$0xff]
    %v749 = vld [vmem:[%s736 + $0x60] sm:$0xff]
    %v750 = vld [vmem:[%s736 + $0x68] sm:$0xff]
    %v751 = vld [vmem:[%s736 + $0x70] sm:$0xff]
    %v752 = vld [vmem:[%s736 + $0x78] sm:$0xff]
    %v753 = vld [vmem:[%s736 + $0x80] sm:$0xff]
    %v754 = vld [vmem:[%s736 + $0x88] sm:$0xff]
    %v755 = vld [vmem:[%s736 + $0x90] sm:$0xff]
    %v756 = vld [vmem:[%s736 + $0x98] sm:$0xff]
    %v757 = vld [vmem:[%s736 + $0xa0] sm:$0xff]
    %v758 = vld [vmem:[%s736 + $0xa8] sm:$0xff]
    %v759 = vld [vmem:[%s736 + $0xb0] sm:$0xff]
    %v760 = vld [vmem:[%s736 + $0xb8] sm:$0xff]
    %v761 = vld [vmem:[%s736 + $0xc0] sm:$0xff]
    %v762 = vld [vmem:[%s736 + $0xc8] sm:$0xff]
    %v763 = vld [vmem:[%s736 + $0xd0] sm:$0xff]
    %v764 = vld [vmem:[%s736 + $0xd8] sm:$0xff]
    %765 = vmatprep.subr.mxu0 0.0
    %766 = vmatpush1.msra.mxu0 %v228
    %767 = vmatprep.subr.mxu0 0.0
    %768 = vmatpush1.msra.mxu0 %v227
    %769 = vmatprep.subr.mxu0 0.0
    %770 = vmatpush1.msra.mxu0 %v226
    %771 = vmatprep.subr.mxu0 0.0
    %772 = vmatpush1.msra.mxu0 %v225
    %773 = vmatprep.subr.mxu0 0.0
    %774 = vmatpush1.msra.mxu0 %v224
    %775 = vmatprep.subr.mxu0 0.0
    %776 = vmatpush1.msra.mxu0 %v223
    %777 = vmatprep.subr.mxu0 0.0
    %778 = vmatpush1.msra.mxu0 %v222
    %779 = vmatprep.subr.mxu0 0.0
    %780 = vmatpush1.msra.mxu0 %v221
    %781 = vmatprep.subr.mxu0 0.0
    %782 = vmatpush1.msra.mxu0 %v220
    %783 = vmatprep.subr.mxu0 0.0
    %784 = vmatpush1.msra.mxu0 %v219
    %785 = vmatprep.subr.mxu0 0.0
    %786 = vmatpush1.msra.mxu0 %v218
    %787 = vmatprep.subr.mxu0 0.0
    %788 = vmatpush1.msra.mxu0 %v217
    %789 = vmatprep.subr.mxu0 0.0
    %790 = vmatpush1.msra.mxu0 %v216
    %791 = vmatprep.subr.mxu0 0.0
    %792 = vmatpush1.msra.mxu0 %v215
    %793 = vmatprep.subr.mxu0 0.0
    %794 = vmatpush1.msra.mxu0 %v214
    %795 = vmatprep.subr.mxu0 0.0
    %796 = vmatpush1.msra.mxu0 %v213
    %797 = vmatprep.subr.mxu0 0.0
    %798 = vmatpush2.msra.mxu0 %v244
    %799 = vmatprep.subr.mxu0 0.0
    %800 = vmatpush2.msra.mxu0 %v243
    %801 = vmatprep.subr.mxu0 0.0
    %802 = vmatpush2.msra.mxu0 %v242
    %803 = vmatprep.subr.mxu0 0.0
    %804 = vmatpush2.msra.mxu0 %v241
    %805 = vmatprep.subr.mxu0 0.0
    %806 = vmatpush2.msra.mxu0 %v240
    %807 = vmatprep.subr.mxu0 0.0
    %808 = vmatpush2.msra.mxu0 %v239
    %809 = vmatprep.subr.mxu0 0.0
    %810 = vmatpush2.msra.mxu0 %v238
    %811 = vmatprep.subr.mxu0 0.0
    %812 = vmatpush2.msra.mxu0 %v237
    %813 = vmatprep.subr.mxu0 0.0
    %814 = vmatpush2.msra.mxu0 %v236
    %815 = vmatprep.subr.mxu0 0.0
    %816 = vmatpush2.msra.mxu0 %v235
    %817 = vmatprep.subr.mxu0 0.0
    %818 = vmatpush2.msra.mxu0 %v234
    %819 = vmatprep.subr.mxu0 0.0
    %820 = vmatpush2.msra.mxu0 %v233
    %821 = vmatprep.subr.mxu0 0.0
    %822 = vmatpush2.msra.mxu0 %v232
    %823 = vmatprep.subr.mxu0 0.0
    %824 = vmatpush2.msra.mxu0 %v231
    %825 = vmatprep.subr.mxu0 0.0
    %826 = vmatpush2.msra.mxu0 %v230
    %827 = vmatprep.subr.mxu0 0.0
    %828 = vmatpush2.msra.mxu0 %v229
    %829 = vmatprep.mubr.f32.mxu0 %v738
    %830 = vmatmul.mubr.f32.gmra.mxu0 %v737
    %v831 = vpop.f32.mrf.mxu0
    %v832 = vadd.f32 0.0, %v831
    %v833 = vpop.f32.mrf.mxu0
    %834 = vmatprep.mubr.f32.mxu0 %v740
    %835 = vmatmul.mubr.f32.gmra.mxu0 %v739
    %v836 = vpop.f32.mrf.mxu0
    %v837 = vadd.f32 0.0, %v836
    %v838 = vpop.f32.mrf.mxu0
    %839 = vmatprep.mubr.f32.mxu0 %v742
    %840 = vmatmul.mubr.f32.gmra.mxu0 %v741
    %v841 = vpop.f32.mrf.mxu0
    %v842 = vadd.f32 0.0, %v841
    %v843 = vpop.f32.mrf.mxu0
    %844 = vmatprep.mubr.f32.mxu0 %v744
    %845 = vmatmul.mubr.f32.gmra.mxu0 %v743
    %v846 = vpop.f32.mrf.mxu0
    %v847 = vadd.f32 0.0, %v846
    %v848 = vpop.f32.mrf.mxu0
    %849 = vmatprep.mubr.f32.mxu0 %v746
    %850 = vmatmul.mubr.f32.gmra.mxu0 %v745
    %v851 = vpop.f32.mrf.mxu0
    %v852 = vadd.f32 0.0, %v851
    %v853 = vpop.f32.mrf.mxu0
    %854 = vmatprep.mubr.f32.mxu0 %v748
    %855 = vmatmul.mubr.f32.gmra.mxu0 %v747
    %v856 = vpop.f32.mrf.mxu0
    %v857 = vadd.f32 0.0, %v856
    %v858 = vpop.f32.mrf.mxu0
    %859 = vmatprep.mubr.f32.mxu0 %v750
    %860 = vmatmul.mubr.f32.gmra.mxu0 %v749
    %v861 = vpop.f32.mrf.mxu0
    %v862 = vadd.f32 0.0, %v861
    %v863 = vpop.f32.mrf.mxu0
    %864 = vmatprep.mubr.f32.mxu0 %v752
    %865 = vmatmul.mubr.f32.gmra.mxu0 %v751
    %v866 = vpop.f32.mrf.mxu0
    %v867 = vadd.f32 0.0, %v866
    %v868 = vpop.f32.mrf.mxu0
    %869 = vmatprep.mubr.f32.mxu0 %v754
    %870 = vmatmul.mubr.f32.gmra.mxu0 %v753
    %v871 = vpop.f32.mrf.mxu0
    %v872 = vadd.f32 0.0, %v871
    %v873 = vpop.f32.mrf.mxu0
    %874 = vmatprep.mubr.f32.mxu0 %v756
    %875 = vmatmul.mubr.f32.gmra.mxu0 %v755
    %v876 = vpop.f32.mrf.mxu0
    %v877 = vadd.f32 0.0, %v876
    %v878 = vpop.f32.mrf.mxu0
    %879 = vmatprep.mubr.f32.mxu0 %v758
    %880 = vmatmul.mubr.f32.gmra.mxu0 %v757
    %v881 = vpop.f32.mrf.mxu0
    %v882 = vadd.f32 0.0, %v881
    %v883 = vpop.f32.mrf.mxu0
    %884 = vmatprep.mubr.f32.mxu0 %v760
    %885 = vmatmul.mubr.f32.gmra.mxu0 %v759
    %v886 = vpop.f32.mrf.mxu0
    %v887 = vadd.f32 0.0, %v886
    %v888 = vpop.f32.mrf.mxu0
    %889 = vmatprep.mubr.f32.mxu0 %v762
    %890 = vmatmul.mubr.f32.gmra.mxu0 %v761
    %v891 = vpop.f32.mrf.mxu0
    %v892 = vadd.f32 0.0, %v891
    %v893 = vpop.f32.mrf.mxu0
    %894 = vmatprep.mubr.f32.mxu0 %v764
    %895 = vmatmul.mubr.f32.gmra.mxu0 %v763
    %v896 = vpop.f32.mrf.mxu0
    %v897 = vadd.f32 0.0, %v896
    %v898 = vpop.f32.mrf.mxu0
    %899 = vdwg.mxu0
    %s900 = scalar_lea.vmem [#allocation2], 896
    %v901 = vld [vmem:[%s900] sm:$0xff]
    %v902 = vld [vmem:[%s900 + $0x8] sm:$0xff]
    %v903 = vld [vmem:[%s900 + $0x10] sm:$0xff]
    %v904 = vld [vmem:[%s900 + $0x18] sm:$0xff]
    %v905 = vld [vmem:[%s900 + $0x20] sm:$0xff]
    %v906 = vld [vmem:[%s900 + $0x28] sm:$0xff]
    %v907 = vld [vmem:[%s900 + $0x30] sm:$0xff]
    %v908 = vld [vmem:[%s900 + $0x38] sm:$0xff]
    %v909 = vld [vmem:[%s900 + $0x40] sm:$0xff]
    %v910 = vld [vmem:[%s900 + $0x48] sm:$0xff]
    %v911 = vld [vmem:[%s900 + $0x50] sm:$0xff]
    %v912 = vld [vmem:[%s900 + $0x58] sm:$0xff]
    %v913 = vld [vmem:[%s900 + $0x60] sm:$0xff]
    %v914 = vld [vmem:[%s900 + $0x68] sm:$0xff]
    %v915 = vld [vmem:[%s900 + $0x70] sm:$0xff]
    %v916 = vld [vmem:[%s900 + $0x78] sm:$0xff]
    %v917 = vld [vmem:[%s900 + $0x80] sm:$0xff]
    %v918 = vld [vmem:[%s900 + $0x88] sm:$0xff]
    %v919 = vld [vmem:[%s900 + $0x90] sm:$0xff]
    %v920 = vld [vmem:[%s900 + $0x98] sm:$0xff]
    %v921 = vld [vmem:[%s900 + $0xa0] sm:$0xff]
    %v922 = vld [vmem:[%s900 + $0xa8] sm:$0xff]
    %v923 = vld [vmem:[%s900 + $0xb0] sm:$0xff]
    %v924 = vld [vmem:[%s900 + $0xb8] sm:$0xff]
    %v925 = vld [vmem:[%s900 + $0xc0] sm:$0xff]
    %v926 = vld [vmem:[%s900 + $0xc8] sm:$0xff]
    %v927 = vld [vmem:[%s900 + $0xd0] sm:$0xff]
    %v928 = vld [vmem:[%s900 + $0xd8] sm:$0xff]
    %929 = vmatprep.subr.mxu0 0.0
    %930 = vmatpush1.msra.mxu0 %v228
    %931 = vmatprep.subr.mxu0 0.0
    %932 = vmatpush1.msra.mxu0 %v227
    %933 = vmatprep.subr.mxu0 0.0
    %934 = vmatpush1.msra.mxu0 %v226
    %935 = vmatprep.subr.mxu0 0.0
    %936 = vmatpush1.msra.mxu0 %v225
    %937 = vmatprep.subr.mxu0 0.0
    %938 = vmatpush1.msra.mxu0 %v224
    %939 = vmatprep.subr.mxu0 0.0
    %940 = vmatpush1.msra.mxu0 %v223
    %941 = vmatprep.subr.mxu0 0.0
    %942 = vmatpush1.msra.mxu0 %v222
    %943 = vmatprep.subr.mxu0 0.0
    %944 = vmatpush1.msra.mxu0 %v221
    %945 = vmatprep.subr.mxu0 0.0
    %946 = vmatpush1.msra.mxu0 %v220
    %947 = vmatprep.subr.mxu0 0.0
    %948 = vmatpush1.msra.mxu0 %v219
    %949 = vmatprep.subr.mxu0 0.0
    %950 = vmatpush1.msra.mxu0 %v218
    %951 = vmatprep.subr.mxu0 0.0
    %952 = vmatpush1.msra.mxu0 %v217
    %953 = vmatprep.subr.mxu0 0.0
    %954 = vmatpush1.msra.mxu0 %v216
    %955 = vmatprep.subr.mxu0 0.0
    %956 = vmatpush1.msra.mxu0 %v215
    %957 = vmatprep.subr.mxu0 0.0
    %958 = vmatpush1.msra.mxu0 %v214
    %959 = vmatprep.subr.mxu0 0.0
    %960 = vmatpush1.msra.mxu0 %v213
    %961 = vmatprep.subr.mxu0 0.0
    %962 = vmatpush2.msra.mxu0 %v244
    %963 = vmatprep.subr.mxu0 0.0
    %964 = vmatpush2.msra.mxu0 %v243
    %965 = vmatprep.subr.mxu0 0.0
    %966 = vmatpush2.msra.mxu0 %v242
    %967 = vmatprep.subr.mxu0 0.0
    %968 = vmatpush2.msra.mxu0 %v241
    %969 = vmatprep.subr.mxu0 0.0
    %970 = vmatpush2.msra.mxu0 %v240
    %971 = vmatprep.subr.mxu0 0.0
    %972 = vmatpush2.msra.mxu0 %v239
    %973 = vmatprep.subr.mxu0 0.0
    %974 = vmatpush2.msra.mxu0 %v238
    %975 = vmatprep.subr.mxu0 0.0
    %976 = vmatpush2.msra.mxu0 %v237
    %977 = vmatprep.subr.mxu0 0.0
    %978 = vmatpush2.msra.mxu0 %v236
    %979 = vmatprep.subr.mxu0 0.0
    %980 = vmatpush2.msra.mxu0 %v235
    %981 = vmatprep.subr.mxu0 0.0
    %982 = vmatpush2.msra.mxu0 %v234
    %983 = vmatprep.subr.mxu0 0.0
    %984 = vmatpush2.msra.mxu0 %v233
    %985 = vmatprep.subr.mxu0 0.0
    %986 = vmatpush2.msra.mxu0 %v232
    %987 = vmatprep.subr.mxu0 0.0
    %988 = vmatpush2.msra.mxu0 %v231
    %989 = vmatprep.subr.mxu0 0.0
    %990 = vmatpush2.msra.mxu0 %v230
    %991 = vmatprep.subr.mxu0 0.0
    %992 = vmatpush2.msra.mxu0 %v229
    %993 = vmatprep.mubr.f32.mxu0 %v902
    %994 = vmatmul.mubr.f32.gmra.mxu0 %v901
    %v995 = vpop.f32.mrf.mxu0
    %v996 = vadd.f32 0.0, %v995
    %v997 = vpop.f32.mrf.mxu0
    %998 = vmatprep.mubr.f32.mxu0 %v904
    %999 = vmatmul.mubr.f32.gmra.mxu0 %v903
    %v1000 = vpop.f32.mrf.mxu0
    %v1001 = vadd.f32 0.0, %v1000
    %v1002 = vpop.f32.mrf.mxu0
    %1003 = vmatprep.mubr.f32.mxu0 %v906
    %1004 = vmatmul.mubr.f32.gmra.mxu0 %v905
    %v1005 = vpop.f32.mrf.mxu0
    %v1006 = vadd.f32 0.0, %v1005
    %v1007 = vpop.f32.mrf.mxu0
    %1008 = vmatprep.mubr.f32.mxu0 %v908
    %1009 = vmatmul.mubr.f32.gmra.mxu0 %v907
    %v1010 = vpop.f32.mrf.mxu0
    %v1011 = vadd.f32 0.0, %v1010
    %v1012 = vpop.f32.mrf.mxu0
    %1013 = vmatprep.mubr.f32.mxu0 %v910
    %1014 = vmatmul.mubr.f32.gmra.mxu0 %v909
    %v1015 = vpop.f32.mrf.mxu0
    %v1016 = vadd.f32 0.0, %v1015
    %v1017 = vpop.f32.mrf.mxu0
    %1018 = vmatprep.mubr.f32.mxu0 %v912
    %1019 = vmatmul.mubr.f32.gmra.mxu0 %v911
    %v1020 = vpop.f32.mrf.mxu0
    %v1021 = vadd.f32 0.0, %v1020
    %v1022 = vpop.f32.mrf.mxu0
    %1023 = vmatprep.mubr.f32.mxu0 %v914
    %1024 = vmatmul.mubr.f32.gmra.mxu0 %v913
    %v1025 = vpop.f32.mrf.mxu0
    %v1026 = vadd.f32 0.0, %v1025
    %v1027 = vpop.f32.mrf.mxu0
    %1028 = vmatprep.mubr.f32.mxu0 %v916
    %1029 = vmatmul.mubr.f32.gmra.mxu0 %v915
    %v1030 = vpop.f32.mrf.mxu0
    %v1031 = vadd.f32 0.0, %v1030
    %v1032 = vpop.f32.mrf.mxu0
    %1033 = vmatprep.mubr.f32.mxu0 %v918
    %1034 = vmatmul.mubr.f32.gmra.mxu0 %v917
    %v1035 = vpop.f32.mrf.mxu0
    %v1036 = vadd.f32 0.0, %v1035
    %v1037 = vpop.f32.mrf.mxu0
    %1038 = vmatprep.mubr.f32.mxu0 %v920
    %1039 = vmatmul.mubr.f32.gmra.mxu0 %v919
    %v1040 = vpop.f32.mrf.mxu0
    %v1041 = vadd.f32 0.0, %v1040
    %v1042 = vpop.f32.mrf.mxu0
    %1043 = vmatprep.mubr.f32.mxu0 %v922
    %1044 = vmatmul.mubr.f32.gmra.mxu0 %v921
    %v1045 = vpop.f32.mrf.mxu0
    %v1046 = vadd.f32 0.0, %v1045
    %v1047 = vpop.f32.mrf.mxu0
    %1048 = vmatprep.mubr.f32.mxu0 %v924
    %1049 = vmatmul.mubr.f32.gmra.mxu0 %v923
    %v1050 = vpop.f32.mrf.mxu0
    %v1051 = vadd.f32 0.0, %v1050
    %v1052 = vpop.f32.mrf.mxu0
    %1053 = vmatprep.mubr.f32.mxu0 %v926
    %1054 = vmatmul.mubr.f32.gmra.mxu0 %v925
    %v1055 = vpop.f32.mrf.mxu0
    %v1056 = vadd.f32 0.0, %v1055
    %v1057 = vpop.f32.mrf.mxu0
    %1058 = vmatprep.mubr.f32.mxu0 %v928
    %1059 = vmatmul.mubr.f32.gmra.mxu0 %v927
    %v1060 = vpop.f32.mrf.mxu0
    %v1061 = vadd.f32 0.0, %v1060
    %v1062 = vpop.f32.mrf.mxu0
    %1063 = vdwg.mxu0
    %s1064 = scalar_lea.vmem [#allocation2], 1120
    %v1065 = vld [vmem:[%s1064] sm:$0xff]
    %v1066 = vld [vmem:[%s1064 + $0x8] sm:$0xff]
    %v1067 = vld [vmem:[%s1064 + $0x10] sm:$0xff]
    %v1068 = vld [vmem:[%s1064 + $0x18] sm:$0xff]
    %v1069 = vld [vmem:[%s1064 + $0x20] sm:$0xff]
    %v1070 = vld [vmem:[%s1064 + $0x28] sm:$0xff]
    %v1071 = vld [vmem:[%s1064 + $0x30] sm:$0xff]
    %v1072 = vld [vmem:[%s1064 + $0x38] sm:$0xff]
    %v1073 = vld [vmem:[%s1064 + $0x40] sm:$0xff]
    %v1074 = vld [vmem:[%s1064 + $0x48] sm:$0xff]
    %v1075 = vld [vmem:[%s1064 + $0x50] sm:$0xff]
    %v1076 = vld [vmem:[%s1064 + $0x58] sm:$0xff]
    %v1077 = vld [vmem:[%s1064 + $0x60] sm:$0xff]
    %v1078 = vld [vmem:[%s1064 + $0x68] sm:$0xff]
    %v1079 = vld [vmem:[%s1064 + $0x70] sm:$0xff]
    %v1080 = vld [vmem:[%s1064 + $0x78] sm:$0xff]
    %v1081 = vld [vmem:[%s1064 + $0x80] sm:$0xff]
    %v1082 = vld [vmem:[%s1064 + $0x88] sm:$0xff]
    %v1083 = vld [vmem:[%s1064 + $0x90] sm:$0xff]
    %v1084 = vld [vmem:[%s1064 + $0x98] sm:$0xff]
    %v1085 = vld [vmem:[%s1064 + $0xa0] sm:$0xff]
    %v1086 = vld [vmem:[%s1064 + $0xa8] sm:$0xff]
    %v1087 = vld [vmem:[%s1064 + $0xb0] sm:$0xff]
    %v1088 = vld [vmem:[%s1064 + $0xb8] sm:$0xff]
    %v1089 = vld [vmem:[%s1064 + $0xc0] sm:$0xff]
    %v1090 = vld [vmem:[%s1064 + $0xc8] sm:$0xff]
    %v1091 = vld [vmem:[%s1064 + $0xd0] sm:$0xff]
    %v1092 = vld [vmem:[%s1064 + $0xd8] sm:$0xff]
    %1093 = vmatprep.subr.mxu0 0.0
    %1094 = vmatpush1.msra.mxu0 %v228
    %1095 = vmatprep.subr.mxu0 0.0
    %1096 = vmatpush1.msra.mxu0 %v227
    %1097 = vmatprep.subr.mxu0 0.0
    %1098 = vmatpush1.msra.mxu0 %v226
    %1099 = vmatprep.subr.mxu0 0.0
    %1100 = vmatpush1.msra.mxu0 %v225
    %1101 = vmatprep.subr.mxu0 0.0
    %1102 = vmatpush1.msra.mxu0 %v224
    %1103 = vmatprep.subr.mxu0 0.0
    %1104 = vmatpush1.msra.mxu0 %v223
    %1105 = vmatprep.subr.mxu0 0.0
    %1106 = vmatpush1.msra.mxu0 %v222
    %1107 = vmatprep.subr.mxu0 0.0
    %1108 = vmatpush1.msra.mxu0 %v221
    %1109 = vmatprep.subr.mxu0 0.0
    %1110 = vmatpush1.msra.mxu0 %v220
    %1111 = vmatprep.subr.mxu0 0.0
    %1112 = vmatpush1.msra.mxu0 %v219
    %1113 = vmatprep.subr.mxu0 0.0
    %1114 = vmatpush1.msra.mxu0 %v218
    %1115 = vmatprep.subr.mxu0 0.0
    %1116 = vmatpush1.msra.mxu0 %v217
    %1117 = vmatprep.subr.mxu0 0.0
    %1118 = vmatpush1.msra.mxu0 %v216
    %1119 = vmatprep.subr.mxu0 0.0
    %1120 = vmatpush1.msra.mxu0 %v215
    %1121 = vmatprep.subr.mxu0 0.0
    %1122 = vmatpush1.msra.mxu0 %v214
    %1123 = vmatprep.subr.mxu0 0.0
    %1124 = vmatpush1.msra.mxu0 %v213
    %1125 = vmatprep.subr.mxu0 0.0
    %1126 = vmatpush2.msra.mxu0 %v244
    %1127 = vmatprep.subr.mxu0 0.0
    %1128 = vmatpush2.msra.mxu0 %v243
    %1129 = vmatprep.subr.mxu0 0.0
    %1130 = vmatpush2.msra.mxu0 %v242
    %1131 = vmatprep.subr.mxu0 0.0
    %1132 = vmatpush2.msra.mxu0 %v241
    %1133 = vmatprep.subr.mxu0 0.0
    %1134 = vmatpush2.msra.mxu0 %v240
    %1135 = vmatprep.subr.mxu0 0.0
    %1136 = vmatpush2.msra.mxu0 %v239
    %1137 = vmatprep.subr.mxu0 0.0
    %1138 = vmatpush2.msra.mxu0 %v238
    %1139 = vmatprep.subr.mxu0 0.0
    %1140 = vmatpush2.msra.mxu0 %v237
    %1141 = vmatprep.subr.mxu0 0.0
    %1142 = vmatpush2.msra.mxu0 %v236
    %1143 = vmatprep.subr.mxu0 0.0
    %1144 = vmatpush2.msra.mxu0 %v235
    %1145 = vmatprep.subr.mxu0 0.0
    %1146 = vmatpush2.msra.mxu0 %v234
    %1147 = vmatprep.subr.mxu0 0.0
    %1148 = vmatpush2.msra.mxu0 %v233
    %1149 = vmatprep.subr.mxu0 0.0
    %1150 = vmatpush2.msra.mxu0 %v232
    %1151 = vmatprep.subr.mxu0 0.0
    %1152 = vmatpush2.msra.mxu0 %v231
    %1153 = vmatprep.subr.mxu0 0.0
    %1154 = vmatpush2.msra.mxu0 %v230
    %1155 = vmatprep.subr.mxu0 0.0
    %1156 = vmatpush2.msra.mxu0 %v229
    %1157 = vmatprep.mubr.f32.mxu0 %v1066
    %1158 = vmatmul.mubr.f32.gmra.mxu0 %v1065
    %v1159 = vpop.f32.mrf.mxu0
    %v1160 = vadd.f32 0.0, %v1159
    %v1161 = vpop.f32.mrf.mxu0
    %1162 = vmatprep.mubr.f32.mxu0 %v1068
    %1163 = vmatmul.mubr.f32.gmra.mxu0 %v1067
    %v1164 = vpop.f32.mrf.mxu0
    %v1165 = vadd.f32 0.0, %v1164
    %v1166 = vpop.f32.mrf.mxu0
    %1167 = vmatprep.mubr.f32.mxu0 %v1070
    %1168 = vmatmul.mubr.f32.gmra.mxu0 %v1069
    %v1169 = vpop.f32.mrf.mxu0
    %v1170 = vadd.f32 0.0, %v1169
    %v1171 = vpop.f32.mrf.mxu0
    %1172 = vmatprep.mubr.f32.mxu0 %v1072
    %1173 = vmatmul.mubr.f32.gmra.mxu0 %v1071
    %v1174 = vpop.f32.mrf.mxu0
    %v1175 = vadd.f32 0.0, %v1174
    %v1176 = vpop.f32.mrf.mxu0
    %1177 = vmatprep.mubr.f32.mxu0 %v1074
    %1178 = vmatmul.mubr.f32.gmra.mxu0 %v1073
    %v1179 = vpop.f32.mrf.mxu0
    %v1180 = vadd.f32 0.0, %v1179
    %v1181 = vpop.f32.mrf.mxu0
    %1182 = vmatprep.mubr.f32.mxu0 %v1076
    %1183 = vmatmul.mubr.f32.gmra.mxu0 %v1075
    %v1184 = vpop.f32.mrf.mxu0
    %v1185 = vadd.f32 0.0, %v1184
    %v1186 = vpop.f32.mrf.mxu0
    %1187 = vmatprep.mubr.f32.mxu0 %v1078
    %1188 = vmatmul.mubr.f32.gmra.mxu0 %v1077
    %v1189 = vpop.f32.mrf.mxu0
    %v1190 = vadd.f32 0.0, %v1189
    %v1191 = vpop.f32.mrf.mxu0
    %1192 = vmatprep.mubr.f32.mxu0 %v1080
    %1193 = vmatmul.mubr.f32.gmra.mxu0 %v1079
    %v1194 = vpop.f32.mrf.mxu0
    %v1195 = vadd.f32 0.0, %v1194
    %v1196 = vpop.f32.mrf.mxu0
    %1197 = vmatprep.mubr.f32.mxu0 %v1082
    %1198 = vmatmul.mubr.f32.gmra.mxu0 %v1081
    %v1199 = vpop.f32.mrf.mxu0
    %v1200 = vadd.f32 0.0, %v1199
    %v1201 = vpop.f32.mrf.mxu0
    %1202 = vmatprep.mubr.f32.mxu0 %v1084
    %1203 = vmatmul.mubr.f32.gmra.mxu0 %v1083
    %v1204 = vpop.f32.mrf.mxu0
    %v1205 = vadd.f32 0.0, %v1204
    %v1206 = vpop.f32.mrf.mxu0
    %1207 = vmatprep.mubr.f32.mxu0 %v1086
    %1208 = vmatmul.mubr.f32.gmra.mxu0 %v1085
    %v1209 = vpop.f32.mrf.mxu0
    %v1210 = vadd.f32 0.0, %v1209
    %v1211 = vpop.f32.mrf.mxu0
    %1212 = vmatprep.mubr.f32.mxu0 %v1088
    %1213 = vmatmul.mubr.f32.gmra.mxu0 %v1087
    %v1214 = vpop.f32.mrf.mxu0
    %v1215 = vadd.f32 0.0, %v1214
    %v1216 = vpop.f32.mrf.mxu0
    %1217 = vmatprep.mubr.f32.mxu0 %v1090
    %1218 = vmatmul.mubr.f32.gmra.mxu0 %v1089
    %v1219 = vpop.f32.mrf.mxu0
    %v1220 = vadd.f32 0.0, %v1219
    %v1221 = vpop.f32.mrf.mxu0
    %1222 = vmatprep.mubr.f32.mxu0 %v1092
    %1223 = vmatmul.mubr.f32.gmra.mxu0 %v1091
    %v1224 = vpop.f32.mrf.mxu0
    %v1225 = vadd.f32 0.0, %v1224
    %v1226 = vpop.f32.mrf.mxu0
    %1227 = vdwg.mxu0
    %v1228 = vld [vmem:[#allocation4] sm:$0xff]
    %v1229 = vld [vmem:[#allocation4 + $0x8] sm:$0xff]
    %v1230 = vld [vmem:[#allocation4 + $0x10] sm:$0xff]
    %v1231 = vld [vmem:[#allocation4 + $0x18] sm:$0xff]
    %v1232 = vld [vmem:[#allocation4 + $0x20] sm:$0xff]
    %v1233 = vld [vmem:[#allocation4 + $0x28] sm:$0xff]
    %v1234 = vld [vmem:[#allocation4 + $0x30] sm:$0xff]
    %v1235 = vld [vmem:[#allocation4 + $0x38] sm:$0xff]
    %v1236 = vld [vmem:[#allocation4 + $0x40] sm:$0xff]
    %v1237 = vld [vmem:[#allocation4 + $0x48] sm:$0xff]
    %v1238 = vld [vmem:[#allocation4 + $0x50] sm:$0xff]
    %v1239 = vld [vmem:[#allocation4 + $0x58] sm:$0xff]
    %v1240 = vld [vmem:[#allocation4 + $0x60] sm:$0xff]
    %v1241 = vld [vmem:[#allocation4 + $0x68] sm:$0xff]
    %v1242 = vld [vmem:[#allocation4 + $0x70] sm:$0xff]
    %v1243 = vld [vmem:[#allocation4 + $0x78] sm:$0xff]
    %v1244 = vld [vmem:[#allocation4 + $0x80] sm:$0xff]
    %v1245 = vld [vmem:[#allocation4 + $0x88] sm:$0xff]
    %v1246 = vld [vmem:[#allocation4 + $0x90] sm:$0xff]
    %v1247 = vld [vmem:[#allocation4 + $0x98] sm:$0xff]
    %v1248 = vld [vmem:[#allocation4 + $0xa0] sm:$0xff]
    %v1249 = vld [vmem:[#allocation4 + $0xa8] sm:$0xff]
    %v1250 = vld [vmem:[#allocation4 + $0xb0] sm:$0xff]
    %v1251 = vld [vmem:[#allocation4 + $0xb8] sm:$0xff]
    %v1252 = vld [vmem:[#allocation4 + $0xc0] sm:$0xff]
    %v1253 = vld [vmem:[#allocation4 + $0xc8] sm:$0xff]
    %v1254 = vld [vmem:[#allocation4 + $0xd0] sm:$0xff]
    %v1255 = vld [vmem:[#allocation4 + $0xd8] sm:$0xff]
    %v1256 = vld [vmem:[#allocation4 + $0xe0] sm:$0xff]
    %v1257 = vld [vmem:[#allocation4 + $0xe8] sm:$0xff]
    %v1258 = vld [vmem:[#allocation4 + $0xf0] sm:$0xff]
    %v1259 = vld [vmem:[#allocation4 + $0xf8] sm:$0xff]
    %v1260 = vld [vmem:[#allocation4 + $0x100] sm:$0xff]
    %v1261 = vld [vmem:[#allocation4 + $0x108] sm:$0xff]
    %v1262 = vld [vmem:[#allocation4 + $0x110] sm:$0xff]
    %v1263 = vld [vmem:[#allocation4 + $0x118] sm:$0xff]
    %v1264 = vld [vmem:[#allocation4 + $0x120] sm:$0xff]
    %v1265 = vld [vmem:[#allocation4 + $0x128] sm:$0xff]
    %v1266 = vld [vmem:[#allocation4 + $0x130] sm:$0xff]
    %v1267 = vld [vmem:[#allocation4 + $0x138] sm:$0xff]
    %v1268 = vld [vmem:[#allocation4 + $0x140] sm:$0xff]
    %v1269 = vld [vmem:[#allocation4 + $0x148] sm:$0xff]
    %v1270 = vld [vmem:[#allocation4 + $0x150] sm:$0xff]
    %v1271 = vld [vmem:[#allocation4 + $0x158] sm:$0xff]
    %v1272 = vld [vmem:[#allocation4 + $0x160] sm:$0xff]
    %v1273 = vld [vmem:[#allocation4 + $0x168] sm:$0xff]
    %v1274 = vld [vmem:[#allocation4 + $0x170] sm:$0xff]
    %v1275 = vld [vmem:[#allocation4 + $0x178] sm:$0xff]
    %v1276 = vld [vmem:[#allocation4 + $0x180] sm:$0xff]
    %v1277 = vld [vmem:[#allocation4 + $0x188] sm:$0xff]
    %v1278 = vld [vmem:[#allocation4 + $0x190] sm:$0xff]
    %v1279 = vld [vmem:[#allocation4 + $0x198] sm:$0xff]
    %v1280 = vld [vmem:[#allocation4 + $0x1a0] sm:$0xff]
    %v1281 = vld [vmem:[#allocation4 + $0x1a8] sm:$0xff]
    %v1282 = vld [vmem:[#allocation4 + $0x1b0] sm:$0xff]
    %v1283 = vld [vmem:[#allocation4 + $0x1b8] sm:$0xff]
    %v1284 = vld [vmem:[#allocation4 + $0x1c0] sm:$0xff]
    %v1285 = vld [vmem:[#allocation4 + $0x1c8] sm:$0xff]
    %v1286 = vld [vmem:[#allocation4 + $0x1d0] sm:$0xff]
    %v1287 = vld [vmem:[#allocation4 + $0x1d8] sm:$0xff]
    %v1288 = vld [vmem:[#allocation4 + $0x1e0] sm:$0xff]
    %v1289 = vld [vmem:[#allocation4 + $0x1e8] sm:$0xff]
    %v1290 = vld [vmem:[#allocation4 + $0x1f0] sm:$0xff]
    %v1291 = vld [vmem:[#allocation4 + $0x1f8] sm:$0xff]
    %s1292 = scalar_lea.vmem [#allocation4], 512
    %v1293 = vld [vmem:[%s1292] sm:$0xff]
    %v1294 = vld [vmem:[%s1292 + $0x8] sm:$0xff]
    %v1295 = vld [vmem:[%s1292 + $0x10] sm:$0xff]
    %v1296 = vld [vmem:[%s1292 + $0x18] sm:$0xff]
    %v1297 = vld [vmem:[%s1292 + $0x20] sm:$0xff]
    %v1298 = vld [vmem:[%s1292 + $0x28] sm:$0xff]
    %v1299 = vld [vmem:[%s1292 + $0x30] sm:$0xff]
    %v1300 = vld [vmem:[%s1292 + $0x38] sm:$0xff]
    %v1301 = vld [vmem:[%s1292 + $0x40] sm:$0xff]
    %v1302 = vld [vmem:[%s1292 + $0x48] sm:$0xff]
    %v1303 = vld [vmem:[%s1292 + $0x50] sm:$0xff]
    %v1304 = vld [vmem:[%s1292 + $0x58] sm:$0xff]
    %v1305 = vld [vmem:[%s1292 + $0x60] sm:$0xff]
    %v1306 = vld [vmem:[%s1292 + $0x68] sm:$0xff]
    %v1307 = vld [vmem:[%s1292 + $0x70] sm:$0xff]
    %v1308 = vld [vmem:[%s1292 + $0x78] sm:$0xff]
    %v1309 = vld [vmem:[%s1292 + $0x80] sm:$0xff]
    %v1310 = vld [vmem:[%s1292 + $0x88] sm:$0xff]
    %v1311 = vld [vmem:[%s1292 + $0x90] sm:$0xff]
    %v1312 = vld [vmem:[%s1292 + $0x98] sm:$0xff]
    %v1313 = vld [vmem:[%s1292 + $0xa0] sm:$0xff]
    %v1314 = vld [vmem:[%s1292 + $0xa8] sm:$0xff]
    %v1315 = vld [vmem:[%s1292 + $0xb0] sm:$0xff]
    %v1316 = vld [vmem:[%s1292 + $0xb8] sm:$0xff]
    %v1317 = vld [vmem:[%s1292 + $0xc0] sm:$0xff]
    %v1318 = vld [vmem:[%s1292 + $0xc8] sm:$0xff]
    %v1319 = vld [vmem:[%s1292 + $0xd0] sm:$0xff]
    %v1320 = vld [vmem:[%s1292 + $0xd8] sm:$0xff]
    %v1321 = vld [vmem:[%s1292 + $0xe0] sm:$0xff]
    %v1322 = vld [vmem:[%s1292 + $0xe8] sm:$0xff]
    %v1323 = vld [vmem:[%s1292 + $0xf0] sm:$0xff]
    %v1324 = vld [vmem:[%s1292 + $0xf8] sm:$0xff]
    %v1325 = vld [vmem:[%s1292 + $0x100] sm:$0xff]
    %v1326 = vld [vmem:[%s1292 + $0x108] sm:$0xff]
    %v1327 = vld [vmem:[%s1292 + $0x110] sm:$0xff]
    %v1328 = vld [vmem:[%s1292 + $0x118] sm:$0xff]
    %v1329 = vld [vmem:[%s1292 + $0x120] sm:$0xff]
    %v1330 = vld [vmem:[%s1292 + $0x128] sm:$0xff]
    %v1331 = vld [vmem:[%s1292 + $0x130] sm:$0xff]
    %v1332 = vld [vmem:[%s1292 + $0x138] sm:$0xff]
    %v1333 = vld [vmem:[%s1292 + $0x140] sm:$0xff]
    %v1334 = vld [vmem:[%s1292 + $0x148] sm:$0xff]
    %v1335 = vld [vmem:[%s1292 + $0x150] sm:$0xff]
    %v1336 = vld [vmem:[%s1292 + $0x158] sm:$0xff]
    %v1337 = vld [vmem:[%s1292 + $0x160] sm:$0xff]
    %v1338 = vld [vmem:[%s1292 + $0x168] sm:$0xff]
    %v1339 = vld [vmem:[%s1292 + $0x170] sm:$0xff]
    %v1340 = vld [vmem:[%s1292 + $0x178] sm:$0xff]
    %v1341 = vld [vmem:[%s1292 + $0x180] sm:$0xff]
    %v1342 = vld [vmem:[%s1292 + $0x188] sm:$0xff]
    %v1343 = vld [vmem:[%s1292 + $0x190] sm:$0xff]
    %v1344 = vld [vmem:[%s1292 + $0x198] sm:$0xff]
    %v1345 = vld [vmem:[%s1292 + $0x1a0] sm:$0xff]
    %v1346 = vld [vmem:[%s1292 + $0x1a8] sm:$0xff]
    %v1347 = vld [vmem:[%s1292 + $0x1b0] sm:$0xff]
    %v1348 = vld [vmem:[%s1292 + $0x1b8] sm:$0xff]
    %v1349 = vld [vmem:[%s1292 + $0x1c0] sm:$0xff]
    %v1350 = vld [vmem:[%s1292 + $0x1c8] sm:$0xff]
    %v1351 = vld [vmem:[%s1292 + $0x1d0] sm:$0xff]
    %v1352 = vld [vmem:[%s1292 + $0x1d8] sm:$0xff]
    %v1353 = vld [vmem:[%s1292 + $0x1e0] sm:$0xff]
    %v1354 = vld [vmem:[%s1292 + $0x1e8] sm:$0xff]
    %v1355 = vld [vmem:[%s1292 + $0x1f0] sm:$0xff]
    %v1356 = vld [vmem:[%s1292 + $0x1f8] sm:$0xff]
    %1357 = vmatprep.subr.mxu0 %v1354
    %1358 = vmatpush1.msra.mxu0 %v1353
    %1359 = vmatprep.subr.mxu0 %v1350
    %1360 = vmatpush1.msra.mxu0 %v1349
    %1361 = vmatprep.subr.mxu0 %v1346
    %1362 = vmatpush1.msra.mxu0 %v1345
    %1363 = vmatprep.subr.mxu0 %v1342
    %1364 = vmatpush1.msra.mxu0 %v1341
    %1365 = vmatprep.subr.mxu0 %v1338
    %1366 = vmatpush1.msra.mxu0 %v1337
    %1367 = vmatprep.subr.mxu0 %v1334
    %1368 = vmatpush1.msra.mxu0 %v1333
    %1369 = vmatprep.subr.mxu0 %v1330
    %1370 = vmatpush1.msra.mxu0 %v1329
    %1371 = vmatprep.subr.mxu0 %v1326
    %1372 = vmatpush1.msra.mxu0 %v1325
    %1373 = vmatprep.subr.mxu0 %v1322
    %1374 = vmatpush1.msra.mxu0 %v1321
    %1375 = vmatprep.subr.mxu0 %v1318
    %1376 = vmatpush1.msra.mxu0 %v1317
    %1377 = vmatprep.subr.mxu0 %v1314
    %1378 = vmatpush1.msra.mxu0 %v1313
    %1379 = vmatprep.subr.mxu0 %v1310
    %1380 = vmatpush1.msra.mxu0 %v1309
    %1381 = vmatprep.subr.mxu0 %v1306
    %1382 = vmatpush1.msra.mxu0 %v1305
    %1383 = vmatprep.subr.mxu0 %v1302
    %1384 = vmatpush1.msra.mxu0 %v1301
    %1385 = vmatprep.subr.mxu0 %v1298
    %1386 = vmatpush1.msra.mxu0 %v1297
    %1387 = vmatprep.subr.mxu0 %v1294
    %1388 = vmatpush1.msra.mxu0 %v1293
    %1389 = vmatprep.subr.mxu0 0.0
    %1390 = vmatpush2.msra.mxu0 0.0
    %1391 = vmatprep.subr.mxu0 0.0
    %1392 = vmatpush2.msra.mxu0 0.0
    %1393 = vmatprep.subr.mxu0 0.0
    %1394 = vmatpush2.msra.mxu0 0.0
    %1395 = vmatprep.subr.mxu0 0.0
    %1396 = vmatpush2.msra.mxu0 0.0
    %1397 = vmatprep.subr.mxu0 0.0
    %1398 = vmatpush2.msra.mxu0 0.0
    %1399 = vmatprep.subr.mxu0 0.0
    %1400 = vmatpush2.msra.mxu0 0.0
    %1401 = vmatprep.subr.mxu0 0.0
    %1402 = vmatpush2.msra.mxu0 0.0
    %1403 = vmatprep.subr.mxu0 0.0
    %1404 = vmatpush2.msra.mxu0 0.0
    %1405 = vmatprep.subr.mxu0 0.0
    %1406 = vmatpush2.msra.mxu0 0.0
    %1407 = vmatprep.subr.mxu0 0.0
    %1408 = vmatpush2.msra.mxu0 0.0
    %1409 = vmatprep.subr.mxu0 0.0
    %1410 = vmatpush2.msra.mxu0 0.0
    %1411 = vmatprep.subr.mxu0 0.0
    %1412 = vmatpush2.msra.mxu0 0.0
    %1413 = vmatprep.subr.mxu0 0.0
    %1414 = vmatpush2.msra.mxu0 0.0
    %1415 = vmatprep.subr.mxu0 0.0
    %1416 = vmatpush2.msra.mxu0 0.0
    %1417 = vmatprep.subr.mxu0 0.0
    %1418 = vmatpush2.msra.mxu0 0.0
    %1419 = vmatprep.subr.mxu0 0.0
    %1420 = vmatpush2.msra.mxu0 0.0
    %1421 = vmatprep.mubr.f32.mxu0 0.0
    %1422 = vmatmul.mubr.f32.gmra.mxu0 %v504
    %v1423 = vpop.f32.mrf.mxu0
    %v1424 = vadd.f32 0.0, %v1423
    %v1425 = vpop.f32.mrf.mxu0
    %v1426 = vadd.f32 0.0, %v1425
    %1427 = vmatprep.mubr.f32.mxu0 0.0
    %1428 = vmatmul.mubr.f32.gmra.mxu0 %v509
    %v1429 = vpop.f32.mrf.mxu0
    %v1430 = vadd.f32 0.0, %v1429
    %v1431 = vpop.f32.mrf.mxu0
    %v1432 = vadd.f32 0.0, %v1431
    %1433 = vmatprep.mubr.f32.mxu0 0.0
    %1434 = vmatmul.mubr.f32.gmra.mxu0 %v514
    %v1435 = vpop.f32.mrf.mxu0
    %v1436 = vadd.f32 0.0, %v1435
    %v1437 = vpop.f32.mrf.mxu0
    %v1438 = vadd.f32 0.0, %v1437
    %1439 = vmatprep.mubr.f32.mxu0 0.0
    %1440 = vmatmul.mubr.f32.gmra.mxu0 %v519
    %v1441 = vpop.f32.mrf.mxu0
    %v1442 = vadd.f32 0.0, %v1441
    %v1443 = vpop.f32.mrf.mxu0
    %v1444 = vadd.f32 0.0, %v1443
    %1445 = vmatprep.mubr.f32.mxu0 0.0
    %1446 = vmatmul.mubr.f32.gmra.mxu0 %v524
    %v1447 = vpop.f32.mrf.mxu0
    %v1448 = vadd.f32 0.0, %v1447
    %v1449 = vpop.f32.mrf.mxu0
    %v1450 = vadd.f32 0.0, %v1449
    %1451 = vmatprep.mubr.f32.mxu0 0.0
    %1452 = vmatmul.mubr.f32.gmra.mxu0 %v529
    %v1453 = vpop.f32.mrf.mxu0
    %v1454 = vadd.f32 0.0, %v1453
    %v1455 = vpop.f32.mrf.mxu0
    %v1456 = vadd.f32 0.0, %v1455
    %1457 = vmatprep.mubr.f32.mxu0 0.0
    %1458 = vmatmul.mubr.f32.gmra.mxu0 %v534
    %v1459 = vpop.f32.mrf.mxu0
    %v1460 = vadd.f32 0.0, %v1459
    %v1461 = vpop.f32.mrf.mxu0
    %v1462 = vadd.f32 0.0, %v1461
    %1463 = vmatprep.mubr.f32.mxu0 0.0
    %1464 = vmatmul.mubr.f32.gmra.mxu0 %v539
    %v1465 = vpop.f32.mrf.mxu0
    %v1466 = vadd.f32 0.0, %v1465
    %v1467 = vpop.f32.mrf.mxu0
    %v1468 = vadd.f32 0.0, %v1467
    %1469 = vmatprep.mubr.f32.mxu0 0.0
    %1470 = vmatmul.mubr.f32.gmra.mxu0 %v544
    %v1471 = vpop.f32.mrf.mxu0
    %v1472 = vadd.f32 0.0, %v1471
    %v1473 = vpop.f32.mrf.mxu0
    %v1474 = vadd.f32 0.0, %v1473
    %1475 = vmatprep.mubr.f32.mxu0 0.0
    %1476 = vmatmul.mubr.f32.gmra.mxu0 %v549
    %v1477 = vpop.f32.mrf.mxu0
    %v1478 = vadd.f32 0.0, %v1477
    %v1479 = vpop.f32.mrf.mxu0
    %v1480 = vadd.f32 0.0, %v1479
    %1481 = vmatprep.mubr.f32.mxu0 0.0
    %1482 = vmatmul.mubr.f32.gmra.mxu0 %v554
    %v1483 = vpop.f32.mrf.mxu0
    %v1484 = vadd.f32 0.0, %v1483
    %v1485 = vpop.f32.mrf.mxu0
    %v1486 = vadd.f32 0.0, %v1485
    %1487 = vmatprep.mubr.f32.mxu0 0.0
    %1488 = vmatmul.mubr.f32.gmra.mxu0 %v559
    %v1489 = vpop.f32.mrf.mxu0
    %v1490 = vadd.f32 0.0, %v1489
    %v1491 = vpop.f32.mrf.mxu0
    %v1492 = vadd.f32 0.0, %v1491
    %1493 = vmatprep.mubr.f32.mxu0 0.0
    %1494 = vmatmul.mubr.f32.gmra.mxu0 %v564
    %v1495 = vpop.f32.mrf.mxu0
    %v1496 = vadd.f32 0.0, %v1495
    %v1497 = vpop.f32.mrf.mxu0
    %v1498 = vadd.f32 0.0, %v1497
    %1499 = vmatprep.mubr.f32.mxu0 0.0
    %1500 = vmatmul.mubr.f32.gmra.mxu0 %v569
    %v1501 = vpop.f32.mrf.mxu0
    %v1502 = vadd.f32 0.0, %v1501
    %v1503 = vpop.f32.mrf.mxu0
    %v1504 = vadd.f32 0.0, %v1503
    %1505 = vdwg.mxu0
    %1506 = vmatprep.subr.mxu0 %v1356
    %1507 = vmatpush1.msra.mxu0 %v1355
    %1508 = vmatprep.subr.mxu0 %v1352
    %1509 = vmatpush1.msra.mxu0 %v1351
    %1510 = vmatprep.subr.mxu0 %v1348
    %1511 = vmatpush1.msra.mxu0 %v1347
    %1512 = vmatprep.subr.mxu0 %v1344
    %1513 = vmatpush1.msra.mxu0 %v1343
    %1514 = vmatprep.subr.mxu0 %v1340
    %1515 = vmatpush1.msra.mxu0 %v1339
    %1516 = vmatprep.subr.mxu0 %v1336
    %1517 = vmatpush1.msra.mxu0 %v1335
    %1518 = vmatprep.subr.mxu0 %v1332
    %1519 = vmatpush1.msra.mxu0 %v1331
    %1520 = vmatprep.subr.mxu0 %v1328
    %1521 = vmatpush1.msra.mxu0 %v1327
    %1522 = vmatprep.subr.mxu0 %v1324
    %1523 = vmatpush1.msra.mxu0 %v1323
    %1524 = vmatprep.subr.mxu0 %v1320
    %1525 = vmatpush1.msra.mxu0 %v1319
    %1526 = vmatprep.subr.mxu0 %v1316
    %1527 = vmatpush1.msra.mxu0 %v1315
    %1528 = vmatprep.subr.mxu0 %v1312
    %1529 = vmatpush1.msra.mxu0 %v1311
    %1530 = vmatprep.subr.mxu0 %v1308
    %1531 = vmatpush1.msra.mxu0 %v1307
    %1532 = vmatprep.subr.mxu0 %v1304
    %1533 = vmatpush1.msra.mxu0 %v1303
    %1534 = vmatprep.subr.mxu0 %v1300
    %1535 = vmatpush1.msra.mxu0 %v1299
    %1536 = vmatprep.subr.mxu0 %v1296
    %1537 = vmatpush1.msra.mxu0 %v1295
    %1538 = vmatprep.subr.mxu0 0.0
    %1539 = vmatpush2.msra.mxu0 0.0
    %1540 = vmatprep.subr.mxu0 0.0
    %1541 = vmatpush2.msra.mxu0 0.0
    %1542 = vmatprep.subr.mxu0 0.0
    %1543 = vmatpush2.msra.mxu0 0.0
    %1544 = vmatprep.subr.mxu0 0.0
    %1545 = vmatpush2.msra.mxu0 0.0
    %1546 = vmatprep.subr.mxu0 0.0
    %1547 = vmatpush2.msra.mxu0 0.0
    %1548 = vmatprep.subr.mxu0 0.0
    %1549 = vmatpush2.msra.mxu0 0.0
    %1550 = vmatprep.subr.mxu0 0.0
    %1551 = vmatpush2.msra.mxu0 0.0
    %1552 = vmatprep.subr.mxu0 0.0
    %1553 = vmatpush2.msra.mxu0 0.0
    %1554 = vmatprep.subr.mxu0 0.0
    %1555 = vmatpush2.msra.mxu0 0.0
    %1556 = vmatprep.subr.mxu0 0.0
    %1557 = vmatpush2.msra.mxu0 0.0
    %1558 = vmatprep.subr.mxu0 0.0
    %1559 = vmatpush2.msra.mxu0 0.0
    %1560 = vmatprep.subr.mxu0 0.0
    %1561 = vmatpush2.msra.mxu0 0.0
    %1562 = vmatprep.subr.mxu0 0.0
    %1563 = vmatpush2.msra.mxu0 0.0
    %1564 = vmatprep.subr.mxu0 0.0
    %1565 = vmatpush2.msra.mxu0 0.0
    %1566 = vmatprep.subr.mxu0 0.0
    %1567 = vmatpush2.msra.mxu0 0.0
    %1568 = vmatprep.subr.mxu0 0.0
    %1569 = vmatpush2.msra.mxu0 0.0
    %1570 = vmatprep.mubr.f32.mxu0 0.0
    %1571 = vmatmul.mubr.f32.gmra.mxu0 %v504
    %v1572 = vpop.f32.mrf.mxu0
    %v1573 = vadd.f32 0.0, %v1572
    %v1574 = vpop.f32.mrf.mxu0
    %v1575 = vadd.f32 0.0, %v1574
    %1576 = vmatprep.mubr.f32.mxu0 0.0
    %1577 = vmatmul.mubr.f32.gmra.mxu0 %v509
    %v1578 = vpop.f32.mrf.mxu0
    %v1579 = vadd.f32 0.0, %v1578
    %v1580 = vpop.f32.mrf.mxu0
    %v1581 = vadd.f32 0.0, %v1580
    %1582 = vmatprep.mubr.f32.mxu0 0.0
    %1583 = vmatmul.mubr.f32.gmra.mxu0 %v514
    %v1584 = vpop.f32.mrf.mxu0
    %v1585 = vadd.f32 0.0, %v1584
    %v1586 = vpop.f32.mrf.mxu0
    %v1587 = vadd.f32 0.0, %v1586
    %1588 = vmatprep.mubr.f32.mxu0 0.0
    %1589 = vmatmul.mubr.f32.gmra.mxu0 %v519
    %v1590 = vpop.f32.mrf.mxu0
    %v1591 = vadd.f32 0.0, %v1590
    %v1592 = vpop.f32.mrf.mxu0
    %v1593 = vadd.f32 0.0, %v1592
    %1594 = vmatprep.mubr.f32.mxu0 0.0
    %1595 = vmatmul.mubr.f32.gmra.mxu0 %v524
    %v1596 = vpop.f32.mrf.mxu0
    %v1597 = vadd.f32 0.0, %v1596
    %v1598 = vpop.f32.mrf.mxu0
    %v1599 = vadd.f32 0.0, %v1598
    %1600 = vmatprep.mubr.f32.mxu0 0.0
    %1601 = vmatmul.mubr.f32.gmra.mxu0 %v529
    %v1602 = vpop.f32.mrf.mxu0
    %v1603 = vadd.f32 0.0, %v1602
    %v1604 = vpop.f32.mrf.mxu0
    %v1605 = vadd.f32 0.0, %v1604
    %1606 = vmatprep.mubr.f32.mxu0 0.0
    %1607 = vmatmul.mubr.f32.gmra.mxu0 %v534
    %v1608 = vpop.f32.mrf.mxu0
    %v1609 = vadd.f32 0.0, %v1608
    %v1610 = vpop.f32.mrf.mxu0
    %v1611 = vadd.f32 0.0, %v1610
    %1612 = vmatprep.mubr.f32.mxu0 0.0
    %1613 = vmatmul.mubr.f32.gmra.mxu0 %v539
    %v1614 = vpop.f32.mrf.mxu0
    %v1615 = vadd.f32 0.0, %v1614
    %v1616 = vpop.f32.mrf.mxu0
    %v1617 = vadd.f32 0.0, %v1616
    %1618 = vmatprep.mubr.f32.mxu0 0.0
    %1619 = vmatmul.mubr.f32.gmra.mxu0 %v544
    %v1620 = vpop.f32.mrf.mxu0
    %v1621 = vadd.f32 0.0, %v1620
    %v1622 = vpop.f32.mrf.mxu0
    %v1623 = vadd.f32 0.0, %v1622
    %1624 = vmatprep.mubr.f32.mxu0 0.0
    %1625 = vmatmul.mubr.f32.gmra.mxu0 %v549
    %v1626 = vpop.f32.mrf.mxu0
    %v1627 = vadd.f32 0.0, %v1626
    %v1628 = vpop.f32.mrf.mxu0
    %v1629 = vadd.f32 0.0, %v1628
    %1630 = vmatprep.mubr.f32.mxu0 0.0
    %1631 = vmatmul.mubr.f32.gmra.mxu0 %v554
    %v1632 = vpop.f32.mrf.mxu0
    %v1633 = vadd.f32 0.0, %v1632
    %v1634 = vpop.f32.mrf.mxu0
    %v1635 = vadd.f32 0.0, %v1634
    %1636 = vmatprep.mubr.f32.mxu0 0.0
    %1637 = vmatmul.mubr.f32.gmra.mxu0 %v559
    %v1638 = vpop.f32.mrf.mxu0
    %v1639 = vadd.f32 0.0, %v1638
    %v1640 = vpop.f32.mrf.mxu0
    %v1641 = vadd.f32 0.0, %v1640
    %1642 = vmatprep.mubr.f32.mxu0 0.0
    %1643 = vmatmul.mubr.f32.gmra.mxu0 %v564
    %v1644 = vpop.f32.mrf.mxu0
    %v1645 = vadd.f32 0.0, %v1644
    %v1646 = vpop.f32.mrf.mxu0
    %v1647 = vadd.f32 0.0, %v1646
    %1648 = vmatprep.mubr.f32.mxu0 0.0
    %1649 = vmatmul.mubr.f32.gmra.mxu0 %v569
    %v1650 = vpop.f32.mrf.mxu0
    %v1651 = vadd.f32 0.0, %v1650
    %v1652 = vpop.f32.mrf.mxu0
    %v1653 = vadd.f32 0.0, %v1652
    %1654 = vdwg.mxu0
    %1655 = vmatprep.subr.mxu0 %v1289
    %1656 = vmatpush1.msra.mxu0 %v1288
    %1657 = vmatprep.subr.mxu0 %v1285
    %1658 = vmatpush1.msra.mxu0 %v1284
    %1659 = vmatprep.subr.mxu0 %v1281
    %1660 = vmatpush1.msra.mxu0 %v1280
    %1661 = vmatprep.subr.mxu0 %v1277
    %1662 = vmatpush1.msra.mxu0 %v1276
    %1663 = vmatprep.subr.mxu0 %v1273
    %1664 = vmatpush1.msra.mxu0 %v1272
    %1665 = vmatprep.subr.mxu0 %v1269
    %1666 = vmatpush1.msra.mxu0 %v1268
    %1667 = vmatprep.subr.mxu0 %v1265
    %1668 = vmatpush1.msra.mxu0 %v1264
    %1669 = vmatprep.subr.mxu0 %v1261
    %1670 = vmatpush1.msra.mxu0 %v1260
    %1671 = vmatprep.subr.mxu0 %v1257
    %1672 = vmatpush1.msra.mxu0 %v1256
    %1673 = vmatprep.subr.mxu0 %v1253
    %1674 = vmatpush1.msra.mxu0 %v1252
    %1675 = vmatprep.subr.mxu0 %v1249
    %1676 = vmatpush1.msra.mxu0 %v1248
    %1677 = vmatprep.subr.mxu0 %v1245
    %1678 = vmatpush1.msra.mxu0 %v1244
    %1679 = vmatprep.subr.mxu0 %v1241
    %1680 = vmatpush1.msra.mxu0 %v1240
    %1681 = vmatprep.subr.mxu0 %v1237
    %1682 = vmatpush1.msra.mxu0 %v1236
    %1683 = vmatprep.subr.mxu0 %v1233
    %1684 = vmatpush1.msra.mxu0 %v1232
    %1685 = vmatprep.subr.mxu0 %v1229
    %1686 = vmatpush1.msra.mxu0 %v1228
    %1687 = vmatprep.subr.mxu0 0.0
    %1688 = vmatpush2.msra.mxu0 0.0
    %1689 = vmatprep.subr.mxu0 0.0
    %1690 = vmatpush2.msra.mxu0 0.0
    %1691 = vmatprep.subr.mxu0 0.0
    %1692 = vmatpush2.msra.mxu0 0.0
    %1693 = vmatprep.subr.mxu0 0.0
    %1694 = vmatpush2.msra.mxu0 0.0
    %1695 = vmatprep.subr.mxu0 0.0
    %1696 = vmatpush2.msra.mxu0 0.0
    %1697 = vmatprep.subr.mxu0 0.0
    %1698 = vmatpush2.msra.mxu0 0.0
    %1699 = vmatprep.subr.mxu0 0.0
    %1700 = vmatpush2.msra.mxu0 0.0
    %1701 = vmatprep.subr.mxu0 0.0
    %1702 = vmatpush2.msra.mxu0 0.0
    %1703 = vmatprep.subr.mxu0 0.0
    %1704 = vmatpush2.msra.mxu0 0.0
    %1705 = vmatprep.subr.mxu0 0.0
    %1706 = vmatpush2.msra.mxu0 0.0
    %1707 = vmatprep.subr.mxu0 0.0
    %1708 = vmatpush2.msra.mxu0 0.0
    %1709 = vmatprep.subr.mxu0 0.0
    %1710 = vmatpush2.msra.mxu0 0.0
    %1711 = vmatprep.subr.mxu0 0.0
    %1712 = vmatpush2.msra.mxu0 0.0
    %1713 = vmatprep.subr.mxu0 0.0
    %1714 = vmatpush2.msra.mxu0 0.0
    %1715 = vmatprep.subr.mxu0 0.0
    %1716 = vmatpush2.msra.mxu0 0.0
    %1717 = vmatprep.subr.mxu0 0.0
    %1718 = vmatpush2.msra.mxu0 0.0
    %1719 = vmatprep.mubr.f32.mxu0 0.0
    %1720 = vmatmul.mubr.f32.gmra.mxu0 %v340
    %v1721 = vpop.f32.mrf.mxu0
    %v1722 = vadd.f32 %v1424, %v1721
    %v1723 = vpop.f32.mrf.mxu0
    %v1724 = vadd.f32 %v1426, %v1723
    %1725 = vmatprep.mubr.f32.mxu0 0.0
    %1726 = vmatmul.mubr.f32.gmra.mxu0 %v345
    %v1727 = vpop.f32.mrf.mxu0
    %v1728 = vadd.f32 %v1430, %v1727
    %v1729 = vpop.f32.mrf.mxu0
    %v1730 = vadd.f32 %v1432, %v1729
    %1731 = vmatprep.mubr.f32.mxu0 0.0
    %1732 = vmatmul.mubr.f32.gmra.mxu0 %v350
    %v1733 = vpop.f32.mrf.mxu0
    %v1734 = vadd.f32 %v1436, %v1733
    %v1735 = vpop.f32.mrf.mxu0
    %v1736 = vadd.f32 %v1438, %v1735
    %1737 = vmatprep.mubr.f32.mxu0 0.0
    %1738 = vmatmul.mubr.f32.gmra.mxu0 %v355
    %v1739 = vpop.f32.mrf.mxu0
    %v1740 = vadd.f32 %v1442, %v1739
    %v1741 = vpop.f32.mrf.mxu0
    %v1742 = vadd.f32 %v1444, %v1741
    %1743 = vmatprep.mubr.f32.mxu0 0.0
    %1744 = vmatmul.mubr.f32.gmra.mxu0 %v360
    %v1745 = vpop.f32.mrf.mxu0
    %v1746 = vadd.f32 %v1448, %v1745
    %v1747 = vpop.f32.mrf.mxu0
    %v1748 = vadd.f32 %v1450, %v1747
    %1749 = vmatprep.mubr.f32.mxu0 0.0
    %1750 = vmatmul.mubr.f32.gmra.mxu0 %v365
    %v1751 = vpop.f32.mrf.mxu0
    %v1752 = vadd.f32 %v1454, %v1751
    %v1753 = vpop.f32.mrf.mxu0
    %v1754 = vadd.f32 %v1456, %v1753
    %1755 = vmatprep.mubr.f32.mxu0 0.0
    %1756 = vmatmul.mubr.f32.gmra.mxu0 %v370
    %v1757 = vpop.f32.mrf.mxu0
    %v1758 = vadd.f32 %v1460, %v1757
    %v1759 = vpop.f32.mrf.mxu0
    %v1760 = vadd.f32 %v1462, %v1759
    %1761 = vmatprep.mubr.f32.mxu0 0.0
    %1762 = vmatmul.mubr.f32.gmra.mxu0 %v375
    %v1763 = vpop.f32.mrf.mxu0
    %v1764 = vadd.f32 %v1466, %v1763
    %v1765 = vpop.f32.mrf.mxu0
    %v1766 = vadd.f32 %v1468, %v1765
    %1767 = vmatprep.mubr.f32.mxu0 0.0
    %1768 = vmatmul.mubr.f32.gmra.mxu0 %v380
    %v1769 = vpop.f32.mrf.mxu0
    %v1770 = vadd.f32 %v1472, %v1769
    %v1771 = vpop.f32.mrf.mxu0
    %v1772 = vadd.f32 %v1474, %v1771
    %1773 = vmatprep.mubr.f32.mxu0 0.0
    %1774 = vmatmul.mubr.f32.gmra.mxu0 %v385
    %v1775 = vpop.f32.mrf.mxu0
    %v1776 = vadd.f32 %v1478, %v1775
    %v1777 = vpop.f32.mrf.mxu0
    %v1778 = vadd.f32 %v1480, %v1777
    %1779 = vmatprep.mubr.f32.mxu0 0.0
    %1780 = vmatmul.mubr.f32.gmra.mxu0 %v390
    %v1781 = vpop.f32.mrf.mxu0
    %v1782 = vadd.f32 %v1484, %v1781
    %v1783 = vpop.f32.mrf.mxu0
    %v1784 = vadd.f32 %v1486, %v1783
    %1785 = vmatprep.mubr.f32.mxu0 0.0
    %1786 = vmatmul.mubr.f32.gmra.mxu0 %v395
    %v1787 = vpop.f32.mrf.mxu0
    %v1788 = vadd.f32 %v1490, %v1787
    %v1789 = vpop.f32.mrf.mxu0
    %v1790 = vadd.f32 %v1492, %v1789
    %1791 = vmatprep.mubr.f32.mxu0 0.0
    %1792 = vmatmul.mubr.f32.gmra.mxu0 %v400
    %v1793 = vpop.f32.mrf.mxu0
    %v1794 = vadd.f32 %v1496, %v1793
    %v1795 = vpop.f32.mrf.mxu0
    %v1796 = vadd.f32 %v1498, %v1795
    %1797 = vmatprep.mubr.f32.mxu0 0.0
    %1798 = vmatmul.mubr.f32.gmra.mxu0 %v405
    %v1799 = vpop.f32.mrf.mxu0
    %v1800 = vadd.f32 %v1502, %v1799
    %v1801 = vpop.f32.mrf.mxu0
    %v1802 = vadd.f32 %v1504, %v1801
    %1803 = vdwg.mxu0
    %1804 = vmatprep.subr.mxu0 %v1291
    %1805 = vmatpush1.msra.mxu0 %v1290
    %1806 = vmatprep.subr.mxu0 %v1287
    %1807 = vmatpush1.msra.mxu0 %v1286
    %1808 = vmatprep.subr.mxu0 %v1283
    %1809 = vmatpush1.msra.mxu0 %v1282
    %1810 = vmatprep.subr.mxu0 %v1279
    %1811 = vmatpush1.msra.mxu0 %v1278
    %1812 = vmatprep.subr.mxu0 %v1275
    %1813 = vmatpush1.msra.mxu0 %v1274
    %1814 = vmatprep.subr.mxu0 %v1271
    %1815 = vmatpush1.msra.mxu0 %v1270
    %1816 = vmatprep.subr.mxu0 %v1267
    %1817 = vmatpush1.msra.mxu0 %v1266
    %1818 = vmatprep.subr.mxu0 %v1263
    %1819 = vmatpush1.msra.mxu0 %v1262
    %1820 = vmatprep.subr.mxu0 %v1259
    %1821 = vmatpush1.msra.mxu0 %v1258
    %1822 = vmatprep.subr.mxu0 %v1255
    %1823 = vmatpush1.msra.mxu0 %v1254
    %1824 = vmatprep.subr.mxu0 %v1251
    %1825 = vmatpush1.msra.mxu0 %v1250
    %1826 = vmatprep.subr.mxu0 %v1247
    %1827 = vmatpush1.msra.mxu0 %v1246
    %1828 = vmatprep.subr.mxu0 %v1243
    %1829 = vmatpush1.msra.mxu0 %v1242
    %1830 = vmatprep.subr.mxu0 %v1239
    %1831 = vmatpush1.msra.mxu0 %v1238
    %1832 = vmatprep.subr.mxu0 %v1235
    %1833 = vmatpush1.msra.mxu0 %v1234
    %1834 = vmatprep.subr.mxu0 %v1231
    %1835 = vmatpush1.msra.mxu0 %v1230
    %1836 = vmatprep.subr.mxu0 0.0
    %1837 = vmatpush2.msra.mxu0 0.0
    %1838 = vmatprep.subr.mxu0 0.0
    %1839 = vmatpush2.msra.mxu0 0.0
    %1840 = vmatprep.subr.mxu0 0.0
    %1841 = vmatpush2.msra.mxu0 0.0
    %1842 = vmatprep.subr.mxu0 0.0
    %1843 = vmatpush2.msra.mxu0 0.0
    %1844 = vmatprep.subr.mxu0 0.0
    %1845 = vmatpush2.msra.mxu0 0.0
    %1846 = vmatprep.subr.mxu0 0.0
    %1847 = vmatpush2.msra.mxu0 0.0
    %1848 = vmatprep.subr.mxu0 0.0
    %1849 = vmatpush2.msra.mxu0 0.0
    %1850 = vmatprep.subr.mxu0 0.0
    %1851 = vmatpush2.msra.mxu0 0.0
    %1852 = vmatprep.subr.mxu0 0.0
    %1853 = vmatpush2.msra.mxu0 0.0
    %1854 = vmatprep.subr.mxu0 0.0
    %1855 = vmatpush2.msra.mxu0 0.0
    %1856 = vmatprep.subr.mxu0 0.0
    %1857 = vmatpush2.msra.mxu0 0.0
    %1858 = vmatprep.subr.mxu0 0.0
    %1859 = vmatpush2.msra.mxu0 0.0
    %1860 = vmatprep.subr.mxu0 0.0
    %1861 = vmatpush2.msra.mxu0 0.0
    %1862 = vmatprep.subr.mxu0 0.0
    %1863 = vmatpush2.msra.mxu0 0.0
    %1864 = vmatprep.subr.mxu0 0.0
    %1865 = vmatpush2.msra.mxu0 0.0
    %1866 = vmatprep.subr.mxu0 0.0
    %1867 = vmatpush2.msra.mxu0 0.0
    %1868 = vmatprep.mubr.f32.mxu0 0.0
    %1869 = vmatmul.mubr.f32.gmra.mxu0 %v340
    %v1870 = vpop.f32.mrf.mxu0
    %v1871 = vadd.f32 %v1573, %v1870
    %v1872 = vpop.f32.mrf.mxu0
    %v1873 = vadd.f32 %v1575, %v1872
    %1874 = vmatprep.mubr.f32.mxu0 0.0
    %1875 = vmatmul.mubr.f32.gmra.mxu0 %v345
    %v1876 = vpop.f32.mrf.mxu0
    %v1877 = vadd.f32 %v1579, %v1876
    %v1878 = vpop.f32.mrf.mxu0
    %v1879 = vadd.f32 %v1581, %v1878
    %1880 = vmatprep.mubr.f32.mxu0 0.0
    %1881 = vmatmul.mubr.f32.gmra.mxu0 %v350
    %v1882 = vpop.f32.mrf.mxu0
    %v1883 = vadd.f32 %v1585, %v1882
    %v1884 = vpop.f32.mrf.mxu0
    %v1885 = vadd.f32 %v1587, %v1884
    %1886 = vmatprep.mubr.f32.mxu0 0.0
    %1887 = vmatmul.mubr.f32.gmra.mxu0 %v355
    %v1888 = vpop.f32.mrf.mxu0
    %v1889 = vadd.f32 %v1591, %v1888
    %v1890 = vpop.f32.mrf.mxu0
    %v1891 = vadd.f32 %v1593, %v1890
    %1892 = vmatprep.mubr.f32.mxu0 0.0
    %1893 = vmatmul.mubr.f32.gmra.mxu0 %v360
    %v1894 = vpop.f32.mrf.mxu0
    %v1895 = vadd.f32 %v1597, %v1894
    %v1896 = vpop.f32.mrf.mxu0
    %v1897 = vadd.f32 %v1599, %v1896
    %1898 = vmatprep.mubr.f32.mxu0 0.0
    %1899 = vmatmul.mubr.f32.gmra.mxu0 %v365
    %v1900 = vpop.f32.mrf.mxu0
    %v1901 = vadd.f32 %v1603, %v1900
    %v1902 = vpop.f32.mrf.mxu0
    %v1903 = vadd.f32 %v1605, %v1902
    %1904 = vmatprep.mubr.f32.mxu0 0.0
    %1905 = vmatmul.mubr.f32.gmra.mxu0 %v370
    %v1906 = vpop.f32.mrf.mxu0
    %v1907 = vadd.f32 %v1609, %v1906
    %v1908 = vpop.f32.mrf.mxu0
    %v1909 = vadd.f32 %v1611, %v1908
    %1910 = vmatprep.mubr.f32.mxu0 0.0
    %1911 = vmatmul.mubr.f32.gmra.mxu0 %v375
    %v1912 = vpop.f32.mrf.mxu0
    %v1913 = vadd.f32 %v1615, %v1912
    %v1914 = vpop.f32.mrf.mxu0
    %v1915 = vadd.f32 %v1617, %v1914
    %1916 = vmatprep.mubr.f32.mxu0 0.0
    %1917 = vmatmul.mubr.f32.gmra.mxu0 %v380
    %v1918 = vpop.f32.mrf.mxu0
    %v1919 = vadd.f32 %v1621, %v1918
    %v1920 = vpop.f32.mrf.mxu0
    %v1921 = vadd.f32 %v1623, %v1920
    %1922 = vmatprep.mubr.f32.mxu0 0.0
    %1923 = vmatmul.mubr.f32.gmra.mxu0 %v385
    %v1924 = vpop.f32.mrf.mxu0
    %v1925 = vadd.f32 %v1627, %v1924
    %v1926 = vpop.f32.mrf.mxu0
    %v1927 = vadd.f32 %v1629, %v1926
    %1928 = vmatprep.mubr.f32.mxu0 0.0
    %1929 = vmatmul.mubr.f32.gmra.mxu0 %v390
    %v1930 = vpop.f32.mrf.mxu0
    %v1931 = vadd.f32 %v1633, %v1930
    %v1932 = vpop.f32.mrf.mxu0
    %v1933 = vadd.f32 %v1635, %v1932
    %1934 = vmatprep.mubr.f32.mxu0 0.0
    %1935 = vmatmul.mubr.f32.gmra.mxu0 %v395
    %v1936 = vpop.f32.mrf.mxu0
    %v1937 = vadd.f32 %v1639, %v1936
    %v1938 = vpop.f32.mrf.mxu0
    %v1939 = vadd.f32 %v1641, %v1938
    %1940 = vmatprep.mubr.f32.mxu0 0.0
    %1941 = vmatmul.mubr.f32.gmra.mxu0 %v400
    %v1942 = vpop.f32.mrf.mxu0
    %v1943 = vadd.f32 %v1645, %v1942
    %v1944 = vpop.f32.mrf.mxu0
    %v1945 = vadd.f32 %v1647, %v1944
    %1946 = vmatprep.mubr.f32.mxu0 0.0
    %1947 = vmatmul.mubr.f32.gmra.mxu0 %v405
    %v1948 = vpop.f32.mrf.mxu0
    %v1949 = vadd.f32 %v1651, %v1948
    %v1950 = vpop.f32.mrf.mxu0
    %v1951 = vadd.f32 %v1653, %v1950
    %1952 = vdwg.mxu0
    %s1953 = scalar_lea.vmem [#allocation4], 1024
    %v1954 = vld [vmem:[%s1953] sm:$0xff]
    %v1955 = vld [vmem:[%s1953 + $0x8] sm:$0xff]
    %v1956 = vld [vmem:[%s1953 + $0x10] sm:$0xff]
    %v1957 = vld [vmem:[%s1953 + $0x18] sm:$0xff]
    %v1958 = vld [vmem:[%s1953 + $0x20] sm:$0xff]
    %v1959 = vld [vmem:[%s1953 + $0x28] sm:$0xff]
    %v1960 = vld [vmem:[%s1953 + $0x30] sm:$0xff]
    %v1961 = vld [vmem:[%s1953 + $0x38] sm:$0xff]
    %v1962 = vld [vmem:[%s1953 + $0x40] sm:$0xff]
    %v1963 = vld [vmem:[%s1953 + $0x48] sm:$0xff]
    %v1964 = vld [vmem:[%s1953 + $0x50] sm:$0xff]
    %v1965 = vld [vmem:[%s1953 + $0x58] sm:$0xff]
    %v1966 = vld [vmem:[%s1953 + $0x60] sm:$0xff]
    %v1967 = vld [vmem:[%s1953 + $0x68] sm:$0xff]
    %v1968 = vld [vmem:[%s1953 + $0x70] sm:$0xff]
    %v1969 = vld [vmem:[%s1953 + $0x78] sm:$0xff]
    %v1970 = vld [vmem:[%s1953 + $0x80] sm:$0xff]
    %v1971 = vld [vmem:[%s1953 + $0x88] sm:$0xff]
    %v1972 = vld [vmem:[%s1953 + $0x90] sm:$0xff]
    %v1973 = vld [vmem:[%s1953 + $0x98] sm:$0xff]
    %v1974 = vld [vmem:[%s1953 + $0xa0] sm:$0xff]
    %v1975 = vld [vmem:[%s1953 + $0xa8] sm:$0xff]
    %v1976 = vld [vmem:[%s1953 + $0xb0] sm:$0xff]
    %v1977 = vld [vmem:[%s1953 + $0xb8] sm:$0xff]
    %v1978 = vld [vmem:[%s1953 + $0xc0] sm:$0xff]
    %v1979 = vld [vmem:[%s1953 + $0xc8] sm:$0xff]
    %v1980 = vld [vmem:[%s1953 + $0xd0] sm:$0xff]
    %v1981 = vld [vmem:[%s1953 + $0xd8] sm:$0xff]
    %v1982 = vld [vmem:[%s1953 + $0xe0] sm:$0xff]
    %v1983 = vld [vmem:[%s1953 + $0xe8] sm:$0xff]
    %v1984 = vld [vmem:[%s1953 + $0xf0] sm:$0xff]
    %v1985 = vld [vmem:[%s1953 + $0xf8] sm:$0xff]
    %v1986 = vld [vmem:[%s1953 + $0x100] sm:$0xff]
    %v1987 = vld [vmem:[%s1953 + $0x108] sm:$0xff]
    %v1988 = vld [vmem:[%s1953 + $0x110] sm:$0xff]
    %v1989 = vld [vmem:[%s1953 + $0x118] sm:$0xff]
    %v1990 = vld [vmem:[%s1953 + $0x120] sm:$0xff]
    %v1991 = vld [vmem:[%s1953 + $0x128] sm:$0xff]
    %v1992 = vld [vmem:[%s1953 + $0x130] sm:$0xff]
    %v1993 = vld [vmem:[%s1953 + $0x138] sm:$0xff]
    %v1994 = vld [vmem:[%s1953 + $0x140] sm:$0xff]
    %v1995 = vld [vmem:[%s1953 + $0x148] sm:$0xff]
    %v1996 = vld [vmem:[%s1953 + $0x150] sm:$0xff]
    %v1997 = vld [vmem:[%s1953 + $0x158] sm:$0xff]
    %v1998 = vld [vmem:[%s1953 + $0x160] sm:$0xff]
    %v1999 = vld [vmem:[%s1953 + $0x168] sm:$0xff]
    %v2000 = vld [vmem:[%s1953 + $0x170] sm:$0xff]
    %v2001 = vld [vmem:[%s1953 + $0x178] sm:$0xff]
    %v2002 = vld [vmem:[%s1953 + $0x180] sm:$0xff]
    %v2003 = vld [vmem:[%s1953 + $0x188] sm:$0xff]
    %v2004 = vld [vmem:[%s1953 + $0x190] sm:$0xff]
    %v2005 = vld [vmem:[%s1953 + $0x198] sm:$0xff]
    %v2006 = vld [vmem:[%s1953 + $0x1a0] sm:$0xff]
    %v2007 = vld [vmem:[%s1953 + $0x1a8] sm:$0xff]
    %v2008 = vld [vmem:[%s1953 + $0x1b0] sm:$0xff]
    %v2009 = vld [vmem:[%s1953 + $0x1b8] sm:$0xff]
    %v2010 = vld [vmem:[%s1953 + $0x1c0] sm:$0xff]
    %v2011 = vld [vmem:[%s1953 + $0x1c8] sm:$0xff]
    %v2012 = vld [vmem:[%s1953 + $0x1d0] sm:$0xff]
    %v2013 = vld [vmem:[%s1953 + $0x1d8] sm:$0xff]
    %v2014 = vld [vmem:[%s1953 + $0x1e0] sm:$0xff]
    %v2015 = vld [vmem:[%s1953 + $0x1e8] sm:$0xff]
    %v2016 = vld [vmem:[%s1953 + $0x1f0] sm:$0xff]
    %v2017 = vld [vmem:[%s1953 + $0x1f8] sm:$0xff]
    %2018 = vmatprep.subr.mxu0 %v2015
    %2019 = vmatpush1.msra.mxu0 %v2014
    %2020 = vmatprep.subr.mxu0 %v2011
    %2021 = vmatpush1.msra.mxu0 %v2010
    %2022 = vmatprep.subr.mxu0 %v2007
    %2023 = vmatpush1.msra.mxu0 %v2006
    %2024 = vmatprep.subr.mxu0 %v2003
    %2025 = vmatpush1.msra.mxu0 %v2002
    %2026 = vmatprep.subr.mxu0 %v1999
    %2027 = vmatpush1.msra.mxu0 %v1998
    %2028 = vmatprep.subr.mxu0 %v1995
    %2029 = vmatpush1.msra.mxu0 %v1994
    %2030 = vmatprep.subr.mxu0 %v1991
    %2031 = vmatpush1.msra.mxu0 %v1990
    %2032 = vmatprep.subr.mxu0 %v1987
    %2033 = vmatpush1.msra.mxu0 %v1986
    %2034 = vmatprep.subr.mxu0 %v1983
    %2035 = vmatpush1.msra.mxu0 %v1982
    %2036 = vmatprep.subr.mxu0 %v1979
    %2037 = vmatpush1.msra.mxu0 %v1978
    %2038 = vmatprep.subr.mxu0 %v1975
    %2039 = vmatpush1.msra.mxu0 %v1974
    %2040 = vmatprep.subr.mxu0 %v1971
    %2041 = vmatpush1.msra.mxu0 %v1970
    %2042 = vmatprep.subr.mxu0 %v1967
    %2043 = vmatpush1.msra.mxu0 %v1966
    %2044 = vmatprep.subr.mxu0 %v1963
    %2045 = vmatpush1.msra.mxu0 %v1962
    %2046 = vmatprep.subr.mxu0 %v1959
    %2047 = vmatpush1.msra.mxu0 %v1958
    %2048 = vmatprep.subr.mxu0 %v1955
    %2049 = vmatpush1.msra.mxu0 %v1954
    %2050 = vmatprep.subr.mxu0 0.0
    %2051 = vmatpush2.msra.mxu0 0.0
    %2052 = vmatprep.subr.mxu0 0.0
    %2053 = vmatpush2.msra.mxu0 0.0
    %2054 = vmatprep.subr.mxu0 0.0
    %2055 = vmatpush2.msra.mxu0 0.0
    %2056 = vmatprep.subr.mxu0 0.0
    %2057 = vmatpush2.msra.mxu0 0.0
    %2058 = vmatprep.subr.mxu0 0.0
    %2059 = vmatpush2.msra.mxu0 0.0
    %2060 = vmatprep.subr.mxu0 0.0
    %2061 = vmatpush2.msra.mxu0 0.0
    %2062 = vmatprep.subr.mxu0 0.0
    %2063 = vmatpush2.msra.mxu0 0.0
    %2064 = vmatprep.subr.mxu0 0.0
    %2065 = vmatpush2.msra.mxu0 0.0
    %2066 = vmatprep.subr.mxu0 0.0
    %2067 = vmatpush2.msra.mxu0 0.0
    %2068 = vmatprep.subr.mxu0 0.0
    %2069 = vmatpush2.msra.mxu0 0.0
    %2070 = vmatprep.subr.mxu0 0.0
    %2071 = vmatpush2.msra.mxu0 0.0
    %2072 = vmatprep.subr.mxu0 0.0
    %2073 = vmatpush2.msra.mxu0 0.0
    %2074 = vmatprep.subr.mxu0 0.0
    %2075 = vmatpush2.msra.mxu0 0.0
    %2076 = vmatprep.subr.mxu0 0.0
    %2077 = vmatpush2.msra.mxu0 0.0
    %2078 = vmatprep.subr.mxu0 0.0
    %2079 = vmatpush2.msra.mxu0 0.0
    %2080 = vmatprep.subr.mxu0 0.0
    %2081 = vmatpush2.msra.mxu0 0.0
    %2082 = vmatprep.mubr.f32.mxu0 0.0
    %2083 = vmatmul.mubr.f32.gmra.mxu0 %v668
    %v2084 = vpop.f32.mrf.mxu0
    %v2085 = vadd.f32 0.0, %v2084
    %v2086 = vpop.f32.mrf.mxu0
    %v2087 = vadd.f32 0.0, %v2086
    %2088 = vmatprep.mubr.f32.mxu0 0.0
    %2089 = vmatmul.mubr.f32.gmra.mxu0 %v673
    %v2090 = vpop.f32.mrf.mxu0
    %v2091 = vadd.f32 0.0, %v2090
    %v2092 = vpop.f32.mrf.mxu0
    %v2093 = vadd.f32 0.0, %v2092
    %2094 = vmatprep.mubr.f32.mxu0 0.0
    %2095 = vmatmul.mubr.f32.gmra.mxu0 %v678
    %v2096 = vpop.f32.mrf.mxu0
    %v2097 = vadd.f32 0.0, %v2096
    %v2098 = vpop.f32.mrf.mxu0
    %v2099 = vadd.f32 0.0, %v2098
    %2100 = vmatprep.mubr.f32.mxu0 0.0
    %2101 = vmatmul.mubr.f32.gmra.mxu0 %v683
    %v2102 = vpop.f32.mrf.mxu0
    %v2103 = vadd.f32 0.0, %v2102
    %v2104 = vpop.f32.mrf.mxu0
    %v2105 = vadd.f32 0.0, %v2104
    %2106 = vmatprep.mubr.f32.mxu0 0.0
    %2107 = vmatmul.mubr.f32.gmra.mxu0 %v688
    %v2108 = vpop.f32.mrf.mxu0
    %v2109 = vadd.f32 0.0, %v2108
    %v2110 = vpop.f32.mrf.mxu0
    %v2111 = vadd.f32 0.0, %v2110
    %2112 = vmatprep.mubr.f32.mxu0 0.0
    %2113 = vmatmul.mubr.f32.gmra.mxu0 %v693
    %v2114 = vpop.f32.mrf.mxu0
    %v2115 = vadd.f32 0.0, %v2114
    %v2116 = vpop.f32.mrf.mxu0
    %v2117 = vadd.f32 0.0, %v2116
    %2118 = vmatprep.mubr.f32.mxu0 0.0
    %2119 = vmatmul.mubr.f32.gmra.mxu0 %v698
    %v2120 = vpop.f32.mrf.mxu0
    %v2121 = vadd.f32 0.0, %v2120
    %v2122 = vpop.f32.mrf.mxu0
    %v2123 = vadd.f32 0.0, %v2122
    %2124 = vmatprep.mubr.f32.mxu0 0.0
    %2125 = vmatmul.mubr.f32.gmra.mxu0 %v703
    %v2126 = vpop.f32.mrf.mxu0
    %v2127 = vadd.f32 0.0, %v2126
    %v2128 = vpop.f32.mrf.mxu0
    %v2129 = vadd.f32 0.0, %v2128
    %2130 = vmatprep.mubr.f32.mxu0 0.0
    %2131 = vmatmul.mubr.f32.gmra.mxu0 %v708
    %v2132 = vpop.f32.mrf.mxu0
    %v2133 = vadd.f32 0.0, %v2132
    %v2134 = vpop.f32.mrf.mxu0
    %v2135 = vadd.f32 0.0, %v2134
    %2136 = vmatprep.mubr.f32.mxu0 0.0
    %2137 = vmatmul.mubr.f32.gmra.mxu0 %v713
    %v2138 = vpop.f32.mrf.mxu0
    %v2139 = vadd.f32 0.0, %v2138
    %v2140 = vpop.f32.mrf.mxu0
    %v2141 = vadd.f32 0.0, %v2140
    %2142 = vmatprep.mubr.f32.mxu0 0.0
    %2143 = vmatmul.mubr.f32.gmra.mxu0 %v718
    %v2144 = vpop.f32.mrf.mxu0
    %v2145 = vadd.f32 0.0, %v2144
    %v2146 = vpop.f32.mrf.mxu0
    %v2147 = vadd.f32 0.0, %v2146
    %2148 = vmatprep.mubr.f32.mxu0 0.0
    %2149 = vmatmul.mubr.f32.gmra.mxu0 %v723
    %v2150 = vpop.f32.mrf.mxu0
    %v2151 = vadd.f32 0.0, %v2150
    %v2152 = vpop.f32.mrf.mxu0
    %v2153 = vadd.f32 0.0, %v2152
    %2154 = vmatprep.mubr.f32.mxu0 0.0
    %2155 = vmatmul.mubr.f32.gmra.mxu0 %v728
    %v2156 = vpop.f32.mrf.mxu0
    %v2157 = vadd.f32 0.0, %v2156
    %v2158 = vpop.f32.mrf.mxu0
    %v2159 = vadd.f32 0.0, %v2158
    %2160 = vmatprep.mubr.f32.mxu0 0.0
    %2161 = vmatmul.mubr.f32.gmra.mxu0 %v733
    %v2162 = vpop.f32.mrf.mxu0
    %v2163 = vadd.f32 0.0, %v2162
    %v2164 = vpop.f32.mrf.mxu0
    %v2165 = vadd.f32 0.0, %v2164
    %2166 = vdwg.mxu0
    %2167 = vmatprep.subr.mxu0 %v2017
    %2168 = vmatpush1.msra.mxu0 %v2016
    %2169 = vmatprep.subr.mxu0 %v2013
    %2170 = vmatpush1.msra.mxu0 %v2012
    %2171 = vmatprep.subr.mxu0 %v2009
    %2172 = vmatpush1.msra.mxu0 %v2008
    %2173 = vmatprep.subr.mxu0 %v2005
    %2174 = vmatpush1.msra.mxu0 %v2004
    %2175 = vmatprep.subr.mxu0 %v2001
    %2176 = vmatpush1.msra.mxu0 %v2000
    %2177 = vmatprep.subr.mxu0 %v1997
    %2178 = vmatpush1.msra.mxu0 %v1996
    %2179 = vmatprep.subr.mxu0 %v1993
    %2180 = vmatpush1.msra.mxu0 %v1992
    %2181 = vmatprep.subr.mxu0 %v1989
    %2182 = vmatpush1.msra.mxu0 %v1988
    %2183 = vmatprep.subr.mxu0 %v1985
    %2184 = vmatpush1.msra.mxu0 %v1984
    %2185 = vmatprep.subr.mxu0 %v1981
    %2186 = vmatpush1.msra.mxu0 %v1980
    %2187 = vmatprep.subr.mxu0 %v1977
    %2188 = vmatpush1.msra.mxu0 %v1976
    %2189 = vmatprep.subr.mxu0 %v1973
    %2190 = vmatpush1.msra.mxu0 %v1972
    %2191 = vmatprep.subr.mxu0 %v1969
    %2192 = vmatpush1.msra.mxu0 %v1968
    %2193 = vmatprep.subr.mxu0 %v1965
    %2194 = vmatpush1.msra.mxu0 %v1964
    %2195 = vmatprep.subr.mxu0 %v1961
    %2196 = vmatpush1.msra.mxu0 %v1960
    %2197 = vmatprep.subr.mxu0 %v1957
    %2198 = vmatpush1.msra.mxu0 %v1956
    %2199 = vmatprep.subr.mxu0 0.0
    %2200 = vmatpush2.msra.mxu0 0.0
    %2201 = vmatprep.subr.mxu0 0.0
    %2202 = vmatpush2.msra.mxu0 0.0
    %2203 = vmatprep.subr.mxu0 0.0
    %2204 = vmatpush2.msra.mxu0 0.0
    %2205 = vmatprep.subr.mxu0 0.0
    %2206 = vmatpush2.msra.mxu0 0.0
    %2207 = vmatprep.subr.mxu0 0.0
    %2208 = vmatpush2.msra.mxu0 0.0
    %2209 = vmatprep.subr.mxu0 0.0
    %2210 = vmatpush2.msra.mxu0 0.0
    %2211 = vmatprep.subr.mxu0 0.0
    %2212 = vmatpush2.msra.mxu0 0.0
    %2213 = vmatprep.subr.mxu0 0.0
    %2214 = vmatpush2.msra.mxu0 0.0
    %2215 = vmatprep.subr.mxu0 0.0
    %2216 = vmatpush2.msra.mxu0 0.0
    %2217 = vmatprep.subr.mxu0 0.0
    %2218 = vmatpush2.msra.mxu0 0.0
    %2219 = vmatprep.subr.mxu0 0.0
    %2220 = vmatpush2.msra.mxu0 0.0
    %2221 = vmatprep.subr.mxu0 0.0
    %2222 = vmatpush2.msra.mxu0 0.0
    %2223 = vmatprep.subr.mxu0 0.0
    %2224 = vmatpush2.msra.mxu0 0.0
    %2225 = vmatprep.subr.mxu0 0.0
    %2226 = vmatpush2.msra.mxu0 0.0
    %2227 = vmatprep.subr.mxu0 0.0
    %2228 = vmatpush2.msra.mxu0 0.0
    %2229 = vmatprep.subr.mxu0 0.0
    %2230 = vmatpush2.msra.mxu0 0.0
    %2231 = vmatprep.mubr.f32.mxu0 0.0
    %2232 = vmatmul.mubr.f32.gmra.mxu0 %v668
    %v2233 = vpop.f32.mrf.mxu0
    %v2234 = vadd.f32 0.0, %v2233
    %v2235 = vpop.f32.mrf.mxu0
    %v2236 = vadd.f32 0.0, %v2235
    %2237 = vmatprep.mubr.f32.mxu0 0.0
    %2238 = vmatmul.mubr.f32.gmra.mxu0 %v673
    %v2239 = vpop.f32.mrf.mxu0
    %v2240 = vadd.f32 0.0, %v2239
    %v2241 = vpop.f32.mrf.mxu0
    %v2242 = vadd.f32 0.0, %v2241
    %2243 = vmatprep.mubr.f32.mxu0 0.0
    %2244 = vmatmul.mubr.f32.gmra.mxu0 %v678
    %v2245 = vpop.f32.mrf.mxu0
    %v2246 = vadd.f32 0.0, %v2245
    %v2247 = vpop.f32.mrf.mxu0
    %v2248 = vadd.f32 0.0, %v2247
    %2249 = vmatprep.mubr.f32.mxu0 0.0
    %2250 = vmatmul.mubr.f32.gmra.mxu0 %v683
    %v2251 = vpop.f32.mrf.mxu0
    %v2252 = vadd.f32 0.0, %v2251
    %v2253 = vpop.f32.mrf.mxu0
    %v2254 = vadd.f32 0.0, %v2253
    %2255 = vmatprep.mubr.f32.mxu0 0.0
    %2256 = vmatmul.mubr.f32.gmra.mxu0 %v688
    %v2257 = vpop.f32.mrf.mxu0
    %v2258 = vadd.f32 0.0, %v2257
    %v2259 = vpop.f32.mrf.mxu0
    %v2260 = vadd.f32 0.0, %v2259
    %2261 = vmatprep.mubr.f32.mxu0 0.0
    %2262 = vmatmul.mubr.f32.gmra.mxu0 %v693
    %v2263 = vpop.f32.mrf.mxu0
    %v2264 = vadd.f32 0.0, %v2263
    %v2265 = vpop.f32.mrf.mxu0
    %v2266 = vadd.f32 0.0, %v2265
    %2267 = vmatprep.mubr.f32.mxu0 0.0
    %2268 = vmatmul.mubr.f32.gmra.mxu0 %v698
    %v2269 = vpop.f32.mrf.mxu0
    %v2270 = vadd.f32 0.0, %v2269
    %v2271 = vpop.f32.mrf.mxu0
    %v2272 = vadd.f32 0.0, %v2271
    %2273 = vmatprep.mubr.f32.mxu0 0.0
    %2274 = vmatmul.mubr.f32.gmra.mxu0 %v703
    %v2275 = vpop.f32.mrf.mxu0
    %v2276 = vadd.f32 0.0, %v2275
    %v2277 = vpop.f32.mrf.mxu0
    %v2278 = vadd.f32 0.0, %v2277
    %2279 = vmatprep.mubr.f32.mxu0 0.0
    %2280 = vmatmul.mubr.f32.gmra.mxu0 %v708
    %v2281 = vpop.f32.mrf.mxu0
    %v2282 = vadd.f32 0.0, %v2281
    %v2283 = vpop.f32.mrf.mxu0
    %v2284 = vadd.f32 0.0, %v2283
    %2285 = vmatprep.mubr.f32.mxu0 0.0
    %2286 = vmatmul.mubr.f32.gmra.mxu0 %v713
    %v2287 = vpop.f32.mrf.mxu0
    %v2288 = vadd.f32 0.0, %v2287
    %v2289 = vpop.f32.mrf.mxu0
    %v2290 = vadd.f32 0.0, %v2289
    %2291 = vmatprep.mubr.f32.mxu0 0.0
    %2292 = vmatmul.mubr.f32.gmra.mxu0 %v718
    %v2293 = vpop.f32.mrf.mxu0
    %v2294 = vadd.f32 0.0, %v2293
    %v2295 = vpop.f32.mrf.mxu0
    %v2296 = vadd.f32 0.0, %v2295
    %2297 = vmatprep.mubr.f32.mxu0 0.0
    %2298 = vmatmul.mubr.f32.gmra.mxu0 %v723
    %v2299 = vpop.f32.mrf.mxu0
    %v2300 = vadd.f32 0.0, %v2299
    %v2301 = vpop.f32.mrf.mxu0
    %v2302 = vadd.f32 0.0, %v2301
    %2303 = vmatprep.mubr.f32.mxu0 0.0
    %2304 = vmatmul.mubr.f32.gmra.mxu0 %v728
    %v2305 = vpop.f32.mrf.mxu0
    %v2306 = vadd.f32 0.0, %v2305
    %v2307 = vpop.f32.mrf.mxu0
    %v2308 = vadd.f32 0.0, %v2307
    %2309 = vmatprep.mubr.f32.mxu0 0.0
    %2310 = vmatmul.mubr.f32.gmra.mxu0 %v733
    %v2311 = vpop.f32.mrf.mxu0
    %v2312 = vadd.f32 0.0, %v2311
    %v2313 = vpop.f32.mrf.mxu0
    %v2314 = vadd.f32 0.0, %v2313
    %2315 = vdwg.mxu0
    %v2316 = vadd.f32 %v1722, %v2085
    %v2317 = vadd.f32 %v1724, %v2087
    %v2318 = vadd.f32 %v1871, %v2234
    %v2319 = vadd.f32 %v1873, %v2236
    %v2320 = vadd.f32 %v1728, %v2091
    %v2321 = vadd.f32 %v1730, %v2093
    %v2322 = vadd.f32 %v1877, %v2240
    %v2323 = vadd.f32 %v1879, %v2242
    %v2324 = vadd.f32 %v1734, %v2097
    %v2325 = vadd.f32 %v1736, %v2099
    %v2326 = vadd.f32 %v1883, %v2246
    %v2327 = vadd.f32 %v1885, %v2248
    %v2328 = vadd.f32 %v1740, %v2103
    %v2329 = vadd.f32 %v1742, %v2105
    %v2330 = vadd.f32 %v1889, %v2252
    %v2331 = vadd.f32 %v1891, %v2254
    %v2332 = vadd.f32 %v1746, %v2109
    %v2333 = vadd.f32 %v1748, %v2111
    %v2334 = vadd.f32 %v1895, %v2258
    %v2335 = vadd.f32 %v1897, %v2260
    %v2336 = vadd.f32 %v1752, %v2115
    %v2337 = vadd.f32 %v1754, %v2117
    %v2338 = vadd.f32 %v1901, %v2264
    %v2339 = vadd.f32 %v1903, %v2266
    %v2340 = vadd.f32 %v1758, %v2121
    %v2341 = vadd.f32 %v1760, %v2123
    %v2342 = vadd.f32 %v1907, %v2270
    %v2343 = vadd.f32 %v1909, %v2272
    %v2344 = vadd.f32 %v1764, %v2127
    %v2345 = vadd.f32 %v1766, %v2129
    %v2346 = vadd.f32 %v1913, %v2276
    %v2347 = vadd.f32 %v1915, %v2278
    %v2348 = vadd.f32 %v1770, %v2133
    %v2349 = vadd.f32 %v1772, %v2135
    %v2350 = vadd.f32 %v1919, %v2282
    %v2351 = vadd.f32 %v1921, %v2284
    %v2352 = vadd.f32 %v1776, %v2139
    %v2353 = vadd.f32 %v1778, %v2141
    %v2354 = vadd.f32 %v1925, %v2288
    %v2355 = vadd.f32 %v1927, %v2290
    %v2356 = vadd.f32 %v1782, %v2145
    %v2357 = vadd.f32 %v1784, %v2147
    %v2358 = vadd.f32 %v1931, %v2294
    %v2359 = vadd.f32 %v1933, %v2296
    %v2360 = vadd.f32 %v1788, %v2151
    %v2361 = vadd.f32 %v1790, %v2153
    %v2362 = vadd.f32 %v1937, %v2300
    %v2363 = vadd.f32 %v1939, %v2302
    %v2364 = vadd.f32 %v1794, %v2157
    %v2365 = vadd.f32 %v1796, %v2159
    %v2366 = vadd.f32 %v1943, %v2306
    %v2367 = vadd.f32 %v1945, %v2308
    %v2368 = vadd.f32 %v1800, %v2163
    %v2369 = vadd.f32 %v1802, %v2165
    %v2370 = vadd.f32 %v1949, %v2312
    %v2371 = vadd.f32 %v1951, %v2314
    %s2372 = scalar_lea.vmem [#allocation4], 1536
    %v2373 = vld [vmem:[%s2372] sm:$0xff]
    %v2374 = vld [vmem:[%s2372 + $0x8] sm:$0xff]
    %v2375 = vld [vmem:[%s2372 + $0x10] sm:$0xff]
    %v2376 = vld [vmem:[%s2372 + $0x18] sm:$0xff]
    %v2377 = vld [vmem:[%s2372 + $0x20] sm:$0xff]
    %v2378 = vld [vmem:[%s2372 + $0x28] sm:$0xff]
    %v2379 = vld [vmem:[%s2372 + $0x30] sm:$0xff]
    %v2380 = vld [vmem:[%s2372 + $0x38] sm:$0xff]
    %v2381 = vld [vmem:[%s2372 + $0x40] sm:$0xff]
    %v2382 = vld [vmem:[%s2372 + $0x48] sm:$0xff]
    %v2383 = vld [vmem:[%s2372 + $0x50] sm:$0xff]
    %v2384 = vld [vmem:[%s2372 + $0x58] sm:$0xff]
    %v2385 = vld [vmem:[%s2372 + $0x60] sm:$0xff]
    %v2386 = vld [vmem:[%s2372 + $0x68] sm:$0xff]
    %v2387 = vld [vmem:[%s2372 + $0x70] sm:$0xff]
    %v2388 = vld [vmem:[%s2372 + $0x78] sm:$0xff]
    %v2389 = vld [vmem:[%s2372 + $0x80] sm:$0xff]
    %v2390 = vld [vmem:[%s2372 + $0x88] sm:$0xff]
    %v2391 = vld [vmem:[%s2372 + $0x90] sm:$0xff]
    %v2392 = vld [vmem:[%s2372 + $0x98] sm:$0xff]
    %v2393 = vld [vmem:[%s2372 + $0xa0] sm:$0xff]
    %v2394 = vld [vmem:[%s2372 + $0xa8] sm:$0xff]
    %v2395 = vld [vmem:[%s2372 + $0xb0] sm:$0xff]
    %v2396 = vld [vmem:[%s2372 + $0xb8] sm:$0xff]
    %v2397 = vld [vmem:[%s2372 + $0xc0] sm:$0xff]
    %v2398 = vld [vmem:[%s2372 + $0xc8] sm:$0xff]
    %v2399 = vld [vmem:[%s2372 + $0xd0] sm:$0xff]
    %v2400 = vld [vmem:[%s2372 + $0xd8] sm:$0xff]
    %v2401 = vld [vmem:[%s2372 + $0xe0] sm:$0xff]
    %v2402 = vld [vmem:[%s2372 + $0xe8] sm:$0xff]
    %v2403 = vld [vmem:[%s2372 + $0xf0] sm:$0xff]
    %v2404 = vld [vmem:[%s2372 + $0xf8] sm:$0xff]
    %v2405 = vld [vmem:[%s2372 + $0x100] sm:$0xff]
    %v2406 = vld [vmem:[%s2372 + $0x108] sm:$0xff]
    %v2407 = vld [vmem:[%s2372 + $0x110] sm:$0xff]
    %v2408 = vld [vmem:[%s2372 + $0x118] sm:$0xff]
    %v2409 = vld [vmem:[%s2372 + $0x120] sm:$0xff]
    %v2410 = vld [vmem:[%s2372 + $0x128] sm:$0xff]
    %v2411 = vld [vmem:[%s2372 + $0x130] sm:$0xff]
    %v2412 = vld [vmem:[%s2372 + $0x138] sm:$0xff]
    %v2413 = vld [vmem:[%s2372 + $0x140] sm:$0xff]
    %v2414 = vld [vmem:[%s2372 + $0x148] sm:$0xff]
    %v2415 = vld [vmem:[%s2372 + $0x150] sm:$0xff]
    %v2416 = vld [vmem:[%s2372 + $0x158] sm:$0xff]
    %v2417 = vld [vmem:[%s2372 + $0x160] sm:$0xff]
    %v2418 = vld [vmem:[%s2372 + $0x168] sm:$0xff]
    %v2419 = vld [vmem:[%s2372 + $0x170] sm:$0xff]
    %v2420 = vld [vmem:[%s2372 + $0x178] sm:$0xff]
    %v2421 = vld [vmem:[%s2372 + $0x180] sm:$0xff]
    %v2422 = vld [vmem:[%s2372 + $0x188] sm:$0xff]
    %v2423 = vld [vmem:[%s2372 + $0x190] sm:$0xff]
    %v2424 = vld [vmem:[%s2372 + $0x198] sm:$0xff]
    %v2425 = vld [vmem:[%s2372 + $0x1a0] sm:$0xff]
    %v2426 = vld [vmem:[%s2372 + $0x1a8] sm:$0xff]
    %v2427 = vld [vmem:[%s2372 + $0x1b0] sm:$0xff]
    %v2428 = vld [vmem:[%s2372 + $0x1b8] sm:$0xff]
    %v2429 = vld [vmem:[%s2372 + $0x1c0] sm:$0xff]
    %v2430 = vld [vmem:[%s2372 + $0x1c8] sm:$0xff]
    %v2431 = vld [vmem:[%s2372 + $0x1d0] sm:$0xff]
    %v2432 = vld [vmem:[%s2372 + $0x1d8] sm:$0xff]
    %v2433 = vld [vmem:[%s2372 + $0x1e0] sm:$0xff]
    %v2434 = vld [vmem:[%s2372 + $0x1e8] sm:$0xff]
    %v2435 = vld [vmem:[%s2372 + $0x1f0] sm:$0xff]
    %v2436 = vld [vmem:[%s2372 + $0x1f8] sm:$0xff]
    %2437 = vmatprep.subr.mxu0 %v2434
    %2438 = vmatpush1.msra.mxu0 %v2433
    %2439 = vmatprep.subr.mxu0 %v2430
    %2440 = vmatpush1.msra.mxu0 %v2429
    %2441 = vmatprep.subr.mxu0 %v2426
    %2442 = vmatpush1.msra.mxu0 %v2425
    %2443 = vmatprep.subr.mxu0 %v2422
    %2444 = vmatpush1.msra.mxu0 %v2421
    %2445 = vmatprep.subr.mxu0 %v2418
    %2446 = vmatpush1.msra.mxu0 %v2417
    %2447 = vmatprep.subr.mxu0 %v2414
    %2448 = vmatpush1.msra.mxu0 %v2413
    %2449 = vmatprep.subr.mxu0 %v2410
    %2450 = vmatpush1.msra.mxu0 %v2409
    %2451 = vmatprep.subr.mxu0 %v2406
    %2452 = vmatpush1.msra.mxu0 %v2405
    %2453 = vmatprep.subr.mxu0 %v2402
    %2454 = vmatpush1.msra.mxu0 %v2401
    %2455 = vmatprep.subr.mxu0 %v2398
    %2456 = vmatpush1.msra.mxu0 %v2397
    %2457 = vmatprep.subr.mxu0 %v2394
    %2458 = vmatpush1.msra.mxu0 %v2393
    %2459 = vmatprep.subr.mxu0 %v2390
    %2460 = vmatpush1.msra.mxu0 %v2389
    %2461 = vmatprep.subr.mxu0 %v2386
    %2462 = vmatpush1.msra.mxu0 %v2385
    %2463 = vmatprep.subr.mxu0 %v2382
    %2464 = vmatpush1.msra.mxu0 %v2381
    %2465 = vmatprep.subr.mxu0 %v2378
    %2466 = vmatpush1.msra.mxu0 %v2377
    %2467 = vmatprep.subr.mxu0 %v2374
    %2468 = vmatpush1.msra.mxu0 %v2373
    %2469 = vmatprep.subr.mxu0 0.0
    %2470 = vmatpush2.msra.mxu0 0.0
    %2471 = vmatprep.subr.mxu0 0.0
    %2472 = vmatpush2.msra.mxu0 0.0
    %2473 = vmatprep.subr.mxu0 0.0
    %2474 = vmatpush2.msra.mxu0 0.0
    %2475 = vmatprep.subr.mxu0 0.0
    %2476 = vmatpush2.msra.mxu0 0.0
    %2477 = vmatprep.subr.mxu0 0.0
    %2478 = vmatpush2.msra.mxu0 0.0
    %2479 = vmatprep.subr.mxu0 0.0
    %2480 = vmatpush2.msra.mxu0 0.0
    %2481 = vmatprep.subr.mxu0 0.0
    %2482 = vmatpush2.msra.mxu0 0.0
    %2483 = vmatprep.subr.mxu0 0.0
    %2484 = vmatpush2.msra.mxu0 0.0
    %2485 = vmatprep.subr.mxu0 0.0
    %2486 = vmatpush2.msra.mxu0 0.0
    %2487 = vmatprep.subr.mxu0 0.0
    %2488 = vmatpush2.msra.mxu0 0.0
    %2489 = vmatprep.subr.mxu0 0.0
    %2490 = vmatpush2.msra.mxu0 0.0
    %2491 = vmatprep.subr.mxu0 0.0
    %2492 = vmatpush2.msra.mxu0 0.0
    %2493 = vmatprep.subr.mxu0 0.0
    %2494 = vmatpush2.msra.mxu0 0.0
    %2495 = vmatprep.subr.mxu0 0.0
    %2496 = vmatpush2.msra.mxu0 0.0
    %2497 = vmatprep.subr.mxu0 0.0
    %2498 = vmatpush2.msra.mxu0 0.0
    %2499 = vmatprep.subr.mxu0 0.0
    %2500 = vmatpush2.msra.mxu0 0.0
    %2501 = vmatprep.mubr.f32.mxu0 0.0
    %2502 = vmatmul.mubr.f32.gmra.mxu0 %v832
    %v2503 = vpop.f32.mrf.mxu0
    %v2504 = vadd.f32 0.0, %v2503
    %v2505 = vpop.f32.mrf.mxu0
    %v2506 = vadd.f32 0.0, %v2505
    %2507 = vmatprep.mubr.f32.mxu0 0.0
    %2508 = vmatmul.mubr.f32.gmra.mxu0 %v837
    %v2509 = vpop.f32.mrf.mxu0
    %v2510 = vadd.f32 0.0, %v2509
    %v2511 = vpop.f32.mrf.mxu0
    %v2512 = vadd.f32 0.0, %v2511
    %2513 = vmatprep.mubr.f32.mxu0 0.0
    %2514 = vmatmul.mubr.f32.gmra.mxu0 %v842
    %v2515 = vpop.f32.mrf.mxu0
    %v2516 = vadd.f32 0.0, %v2515
    %v2517 = vpop.f32.mrf.mxu0
    %v2518 = vadd.f32 0.0, %v2517
    %2519 = vmatprep.mubr.f32.mxu0 0.0
    %2520 = vmatmul.mubr.f32.gmra.mxu0 %v847
    %v2521 = vpop.f32.mrf.mxu0
    %v2522 = vadd.f32 0.0, %v2521
    %v2523 = vpop.f32.mrf.mxu0
    %v2524 = vadd.f32 0.0, %v2523
    %2525 = vmatprep.mubr.f32.mxu0 0.0
    %2526 = vmatmul.mubr.f32.gmra.mxu0 %v852
    %v2527 = vpop.f32.mrf.mxu0
    %v2528 = vadd.f32 0.0, %v2527
    %v2529 = vpop.f32.mrf.mxu0
    %v2530 = vadd.f32 0.0, %v2529
    %2531 = vmatprep.mubr.f32.mxu0 0.0
    %2532 = vmatmul.mubr.f32.gmra.mxu0 %v857
    %v2533 = vpop.f32.mrf.mxu0
    %v2534 = vadd.f32 0.0, %v2533
    %v2535 = vpop.f32.mrf.mxu0
    %v2536 = vadd.f32 0.0, %v2535
    %2537 = vmatprep.mubr.f32.mxu0 0.0
    %2538 = vmatmul.mubr.f32.gmra.mxu0 %v862
    %v2539 = vpop.f32.mrf.mxu0
    %v2540 = vadd.f32 0.0, %v2539
    %v2541 = vpop.f32.mrf.mxu0
    %v2542 = vadd.f32 0.0, %v2541
    %2543 = vmatprep.mubr.f32.mxu0 0.0
    %2544 = vmatmul.mubr.f32.gmra.mxu0 %v867
    %v2545 = vpop.f32.mrf.mxu0
    %v2546 = vadd.f32 0.0, %v2545
    %v2547 = vpop.f32.mrf.mxu0
    %v2548 = vadd.f32 0.0, %v2547
    %2549 = vmatprep.mubr.f32.mxu0 0.0
    %2550 = vmatmul.mubr.f32.gmra.mxu0 %v872
    %v2551 = vpop.f32.mrf.mxu0
    %v2552 = vadd.f32 0.0, %v2551
    %v2553 = vpop.f32.mrf.mxu0
    %v2554 = vadd.f32 0.0, %v2553
    %2555 = vmatprep.mubr.f32.mxu0 0.0
    %2556 = vmatmul.mubr.f32.gmra.mxu0 %v877
    %v2557 = vpop.f32.mrf.mxu0
    %v2558 = vadd.f32 0.0, %v2557
    %v2559 = vpop.f32.mrf.mxu0
    %v2560 = vadd.f32 0.0, %v2559
    %2561 = vmatprep.mubr.f32.mxu0 0.0
    %2562 = vmatmul.mubr.f32.gmra.mxu0 %v882
    %v2563 = vpop.f32.mrf.mxu0
    %v2564 = vadd.f32 0.0, %v2563
    %v2565 = vpop.f32.mrf.mxu0
    %v2566 = vadd.f32 0.0, %v2565
    %2567 = vmatprep.mubr.f32.mxu0 0.0
    %2568 = vmatmul.mubr.f32.gmra.mxu0 %v887
    %v2569 = vpop.f32.mrf.mxu0
    %v2570 = vadd.f32 0.0, %v2569
    %v2571 = vpop.f32.mrf.mxu0
    %v2572 = vadd.f32 0.0, %v2571
    %2573 = vmatprep.mubr.f32.mxu0 0.0
    %2574 = vmatmul.mubr.f32.gmra.mxu0 %v892
    %v2575 = vpop.f32.mrf.mxu0
    %v2576 = vadd.f32 0.0, %v2575
    %v2577 = vpop.f32.mrf.mxu0
    %v2578 = vadd.f32 0.0, %v2577
    %2579 = vmatprep.mubr.f32.mxu0 0.0
    %2580 = vmatmul.mubr.f32.gmra.mxu0 %v897
    %v2581 = vpop.f32.mrf.mxu0
    %v2582 = vadd.f32 0.0, %v2581
    %v2583 = vpop.f32.mrf.mxu0
    %v2584 = vadd.f32 0.0, %v2583
    %2585 = vdwg.mxu0
    %2586 = vmatprep.subr.mxu0 %v2436
    %2587 = vmatpush1.msra.mxu0 %v2435
    %2588 = vmatprep.subr.mxu0 %v2432
    %2589 = vmatpush1.msra.mxu0 %v2431
    %2590 = vmatprep.subr.mxu0 %v2428
    %2591 = vmatpush1.msra.mxu0 %v2427
    %2592 = vmatprep.subr.mxu0 %v2424
    %2593 = vmatpush1.msra.mxu0 %v2423
    %2594 = vmatprep.subr.mxu0 %v2420
    %2595 = vmatpush1.msra.mxu0 %v2419
    %2596 = vmatprep.subr.mxu0 %v2416
    %2597 = vmatpush1.msra.mxu0 %v2415
    %2598 = vmatprep.subr.mxu0 %v2412
    %2599 = vmatpush1.msra.mxu0 %v2411
    %2600 = vmatprep.subr.mxu0 %v2408
    %2601 = vmatpush1.msra.mxu0 %v2407
    %2602 = vmatprep.subr.mxu0 %v2404
    %2603 = vmatpush1.msra.mxu0 %v2403
    %2604 = vmatprep.subr.mxu0 %v2400
    %2605 = vmatpush1.msra.mxu0 %v2399
    %2606 = vmatprep.subr.mxu0 %v2396
    %2607 = vmatpush1.msra.mxu0 %v2395
    %2608 = vmatprep.subr.mxu0 %v2392
    %2609 = vmatpush1.msra.mxu0 %v2391
    %2610 = vmatprep.subr.mxu0 %v2388
    %2611 = vmatpush1.msra.mxu0 %v2387
    %2612 = vmatprep.subr.mxu0 %v2384
    %2613 = vmatpush1.msra.mxu0 %v2383
    %2614 = vmatprep.subr.mxu0 %v2380
    %2615 = vmatpush1.msra.mxu0 %v2379
    %2616 = vmatprep.subr.mxu0 %v2376
    %2617 = vmatpush1.msra.mxu0 %v2375
    %2618 = vmatprep.subr.mxu0 0.0
    %2619 = vmatpush2.msra.mxu0 0.0
    %2620 = vmatprep.subr.mxu0 0.0
    %2621 = vmatpush2.msra.mxu0 0.0
    %2622 = vmatprep.subr.mxu0 0.0
    %2623 = vmatpush2.msra.mxu0 0.0
    %2624 = vmatprep.subr.mxu0 0.0
    %2625 = vmatpush2.msra.mxu0 0.0
    %2626 = vmatprep.subr.mxu0 0.0
    %2627 = vmatpush2.msra.mxu0 0.0
    %2628 = vmatprep.subr.mxu0 0.0
    %2629 = vmatpush2.msra.mxu0 0.0
    %2630 = vmatprep.subr.mxu0 0.0
    %2631 = vmatpush2.msra.mxu0 0.0
    %2632 = vmatprep.subr.mxu0 0.0
    %2633 = vmatpush2.msra.mxu0 0.0
    %2634 = vmatprep.subr.mxu0 0.0
    %2635 = vmatpush2.msra.mxu0 0.0
    %2636 = vmatprep.subr.mxu0 0.0
    %2637 = vmatpush2.msra.mxu0 0.0
    %2638 = vmatprep.subr.mxu0 0.0
    %2639 = vmatpush2.msra.mxu0 0.0
    %2640 = vmatprep.subr.mxu0 0.0
    %2641 = vmatpush2.msra.mxu0 0.0
    %2642 = vmatprep.subr.mxu0 0.0
    %2643 = vmatpush2.msra.mxu0 0.0
    %2644 = vmatprep.subr.mxu0 0.0
    %2645 = vmatpush2.msra.mxu0 0.0
    %2646 = vmatprep.subr.mxu0 0.0
    %2647 = vmatpush2.msra.mxu0 0.0
    %2648 = vmatprep.subr.mxu0 0.0
    %2649 = vmatpush2.msra.mxu0 0.0
    %2650 = vmatprep.mubr.f32.mxu0 0.0
    %2651 = vmatmul.mubr.f32.gmra.mxu0 %v832
    %v2652 = vpop.f32.mrf.mxu0
    %v2653 = vadd.f32 0.0, %v2652
    %v2654 = vpop.f32.mrf.mxu0
    %v2655 = vadd.f32 0.0, %v2654
    %2656 = vmatprep.mubr.f32.mxu0 0.0
    %2657 = vmatmul.mubr.f32.gmra.mxu0 %v837
    %v2658 = vpop.f32.mrf.mxu0
    %v2659 = vadd.f32 0.0, %v2658
    %v2660 = vpop.f32.mrf.mxu0
    %v2661 = vadd.f32 0.0, %v2660
    %2662 = vmatprep.mubr.f32.mxu0 0.0
    %2663 = vmatmul.mubr.f32.gmra.mxu0 %v842
    %v2664 = vpop.f32.mrf.mxu0
    %v2665 = vadd.f32 0.0, %v2664
    %v2666 = vpop.f32.mrf.mxu0
    %v2667 = vadd.f32 0.0, %v2666
    %2668 = vmatprep.mubr.f32.mxu0 0.0
    %2669 = vmatmul.mubr.f32.gmra.mxu0 %v847
    %v2670 = vpop.f32.mrf.mxu0
    %v2671 = vadd.f32 0.0, %v2670
    %v2672 = vpop.f32.mrf.mxu0
    %v2673 = vadd.f32 0.0, %v2672
    %2674 = vmatprep.mubr.f32.mxu0 0.0
    %2675 = vmatmul.mubr.f32.gmra.mxu0 %v852
    %v2676 = vpop.f32.mrf.mxu0
    %v2677 = vadd.f32 0.0, %v2676
    %v2678 = vpop.f32.mrf.mxu0
    %v2679 = vadd.f32 0.0, %v2678
    %2680 = vmatprep.mubr.f32.mxu0 0.0
    %2681 = vmatmul.mubr.f32.gmra.mxu0 %v857
    %v2682 = vpop.f32.mrf.mxu0
    %v2683 = vadd.f32 0.0, %v2682
    %v2684 = vpop.f32.mrf.mxu0
    %v2685 = vadd.f32 0.0, %v2684
    %2686 = vmatprep.mubr.f32.mxu0 0.0
    %2687 = vmatmul.mubr.f32.gmra.mxu0 %v862
    %v2688 = vpop.f32.mrf.mxu0
    %v2689 = vadd.f32 0.0, %v2688
    %v2690 = vpop.f32.mrf.mxu0
    %v2691 = vadd.f32 0.0, %v2690
    %2692 = vmatprep.mubr.f32.mxu0 0.0
    %2693 = vmatmul.mubr.f32.gmra.mxu0 %v867
    %v2694 = vpop.f32.mrf.mxu0
    %v2695 = vadd.f32 0.0, %v2694
    %v2696 = vpop.f32.mrf.mxu0
    %v2697 = vadd.f32 0.0, %v2696
    %2698 = vmatprep.mubr.f32.mxu0 0.0
    %2699 = vmatmul.mubr.f32.gmra.mxu0 %v872
    %v2700 = vpop.f32.mrf.mxu0
    %v2701 = vadd.f32 0.0, %v2700
    %v2702 = vpop.f32.mrf.mxu0
    %v2703 = vadd.f32 0.0, %v2702
    %2704 = vmatprep.mubr.f32.mxu0 0.0
    %2705 = vmatmul.mubr.f32.gmra.mxu0 %v877
    %v2706 = vpop.f32.mrf.mxu0
    %v2707 = vadd.f32 0.0, %v2706
    %v2708 = vpop.f32.mrf.mxu0
    %v2709 = vadd.f32 0.0, %v2708
    %2710 = vmatprep.mubr.f32.mxu0 0.0
    %2711 = vmatmul.mubr.f32.gmra.mxu0 %v882
    %v2712 = vpop.f32.mrf.mxu0
    %v2713 = vadd.f32 0.0, %v2712
    %v2714 = vpop.f32.mrf.mxu0
    %v2715 = vadd.f32 0.0, %v2714
    %2716 = vmatprep.mubr.f32.mxu0 0.0
    %2717 = vmatmul.mubr.f32.gmra.mxu0 %v887
    %v2718 = vpop.f32.mrf.mxu0
    %v2719 = vadd.f32 0.0, %v2718
    %v2720 = vpop.f32.mrf.mxu0
    %v2721 = vadd.f32 0.0, %v2720
    %2722 = vmatprep.mubr.f32.mxu0 0.0
    %2723 = vmatmul.mubr.f32.gmra.mxu0 %v892
    %v2724 = vpop.f32.mrf.mxu0
    %v2725 = vadd.f32 0.0, %v2724
    %v2726 = vpop.f32.mrf.mxu0
    %v2727 = vadd.f32 0.0, %v2726
    %2728 = vmatprep.mubr.f32.mxu0 0.0
    %2729 = vmatmul.mubr.f32.gmra.mxu0 %v897
    %v2730 = vpop.f32.mrf.mxu0
    %v2731 = vadd.f32 0.0, %v2730
    %v2732 = vpop.f32.mrf.mxu0
    %v2733 = vadd.f32 0.0, %v2732
    %2734 = vdwg.mxu0
    %v2735 = vadd.f32 %v2316, %v2504
    %v2736 = vadd.f32 %v2317, %v2506
    %v2737 = vadd.f32 %v2318, %v2653
    %v2738 = vadd.f32 %v2319, %v2655
    %v2739 = vadd.f32 %v2320, %v2510
    %v2740 = vadd.f32 %v2321, %v2512
    %v2741 = vadd.f32 %v2322, %v2659
    %v2742 = vadd.f32 %v2323, %v2661
    %v2743 = vadd.f32 %v2324, %v2516
    %v2744 = vadd.f32 %v2325, %v2518
    %v2745 = vadd.f32 %v2326, %v2665
    %v2746 = vadd.f32 %v2327, %v2667
    %v2747 = vadd.f32 %v2328, %v2522
    %v2748 = vadd.f32 %v2329, %v2524
    %v2749 = vadd.f32 %v2330, %v2671
    %v2750 = vadd.f32 %v2331, %v2673
    %v2751 = vadd.f32 %v2332, %v2528
    %v2752 = vadd.f32 %v2333, %v2530
    %v2753 = vadd.f32 %v2334, %v2677
    %v2754 = vadd.f32 %v2335, %v2679
    %v2755 = vadd.f32 %v2336, %v2534
    %v2756 = vadd.f32 %v2337, %v2536
    %v2757 = vadd.f32 %v2338, %v2683
    %v2758 = vadd.f32 %v2339, %v2685
    %v2759 = vadd.f32 %v2340, %v2540
    %v2760 = vadd.f32 %v2341, %v2542
    %v2761 = vadd.f32 %v2342, %v2689
    %v2762 = vadd.f32 %v2343, %v2691
    %v2763 = vadd.f32 %v2344, %v2546
    %v2764 = vadd.f32 %v2345, %v2548
    %v2765 = vadd.f32 %v2346, %v2695
    %v2766 = vadd.f32 %v2347, %v2697
    %v2767 = vadd.f32 %v2348, %v2552
    %v2768 = vadd.f32 %v2349, %v2554
    %v2769 = vadd.f32 %v2350, %v2701
    %v2770 = vadd.f32 %v2351, %v2703
    %v2771 = vadd.f32 %v2352, %v2558
    %v2772 = vadd.f32 %v2353, %v2560
    %v2773 = vadd.f32 %v2354, %v2707
    %v2774 = vadd.f32 %v2355, %v2709
    %v2775 = vadd.f32 %v2356, %v2564
    %v2776 = vadd.f32 %v2357, %v2566
    %v2777 = vadd.f32 %v2358, %v2713
    %v2778 = vadd.f32 %v2359, %v2715
    %v2779 = vadd.f32 %v2360, %v2570
    %v2780 = vadd.f32 %v2361, %v2572
    %v2781 = vadd.f32 %v2362, %v2719
    %v2782 = vadd.f32 %v2363, %v2721
    %v2783 = vadd.f32 %v2364, %v2576
    %v2784 = vadd.f32 %v2365, %v2578
    %v2785 = vadd.f32 %v2366, %v2725
    %v2786 = vadd.f32 %v2367, %v2727
    %v2787 = vadd.f32 %v2368, %v2582
    %v2788 = vadd.f32 %v2369, %v2584
    %v2789 = vadd.f32 %v2370, %v2731
    %v2790 = vadd.f32 %v2371, %v2733
    %s2791 = scalar_lea.vmem [#allocation4], 2048
    %v2792 = vld [vmem:[%s2791] sm:$0xff]
    %v2793 = vld [vmem:[%s2791 + $0x8] sm:$0xff]
    %v2794 = vld [vmem:[%s2791 + $0x10] sm:$0xff]
    %v2795 = vld [vmem:[%s2791 + $0x18] sm:$0xff]
    %v2796 = vld [vmem:[%s2791 + $0x20] sm:$0xff]
    %v2797 = vld [vmem:[%s2791 + $0x28] sm:$0xff]
    %v2798 = vld [vmem:[%s2791 + $0x30] sm:$0xff]
    %v2799 = vld [vmem:[%s2791 + $0x38] sm:$0xff]
    %v2800 = vld [vmem:[%s2791 + $0x40] sm:$0xff]
    %v2801 = vld [vmem:[%s2791 + $0x48] sm:$0xff]
    %v2802 = vld [vmem:[%s2791 + $0x50] sm:$0xff]
    %v2803 = vld [vmem:[%s2791 + $0x58] sm:$0xff]
    %v2804 = vld [vmem:[%s2791 + $0x60] sm:$0xff]
    %v2805 = vld [vmem:[%s2791 + $0x68] sm:$0xff]
    %v2806 = vld [vmem:[%s2791 + $0x70] sm:$0xff]
    %v2807 = vld [vmem:[%s2791 + $0x78] sm:$0xff]
    %v2808 = vld [vmem:[%s2791 + $0x80] sm:$0xff]
    %v2809 = vld [vmem:[%s2791 + $0x88] sm:$0xff]
    %v2810 = vld [vmem:[%s2791 + $0x90] sm:$0xff]
    %v2811 = vld [vmem:[%s2791 + $0x98] sm:$0xff]
    %v2812 = vld [vmem:[%s2791 + $0xa0] sm:$0xff]
    %v2813 = vld [vmem:[%s2791 + $0xa8] sm:$0xff]
    %v2814 = vld [vmem:[%s2791 + $0xb0] sm:$0xff]
    %v2815 = vld [vmem:[%s2791 + $0xb8] sm:$0xff]
    %v2816 = vld [vmem:[%s2791 + $0xc0] sm:$0xff]
    %v2817 = vld [vmem:[%s2791 + $0xc8] sm:$0xff]
    %v2818 = vld [vmem:[%s2791 + $0xd0] sm:$0xff]
    %v2819 = vld [vmem:[%s2791 + $0xd8] sm:$0xff]
    %v2820 = vld [vmem:[%s2791 + $0xe0] sm:$0xff]
    %v2821 = vld [vmem:[%s2791 + $0xe8] sm:$0xff]
    %v2822 = vld [vmem:[%s2791 + $0xf0] sm:$0xff]
    %v2823 = vld [vmem:[%s2791 + $0xf8] sm:$0xff]
    %v2824 = vld [vmem:[%s2791 + $0x100] sm:$0xff]
    %v2825 = vld [vmem:[%s2791 + $0x108] sm:$0xff]
    %v2826 = vld [vmem:[%s2791 + $0x110] sm:$0xff]
    %v2827 = vld [vmem:[%s2791 + $0x118] sm:$0xff]
    %v2828 = vld [vmem:[%s2791 + $0x120] sm:$0xff]
    %v2829 = vld [vmem:[%s2791 + $0x128] sm:$0xff]
    %v2830 = vld [vmem:[%s2791 + $0x130] sm:$0xff]
    %v2831 = vld [vmem:[%s2791 + $0x138] sm:$0xff]
    %v2832 = vld [vmem:[%s2791 + $0x140] sm:$0xff]
    %v2833 = vld [vmem:[%s2791 + $0x148] sm:$0xff]
    %v2834 = vld [vmem:[%s2791 + $0x150] sm:$0xff]
    %v2835 = vld [vmem:[%s2791 + $0x158] sm:$0xff]
    %v2836 = vld [vmem:[%s2791 + $0x160] sm:$0xff]
    %v2837 = vld [vmem:[%s2791 + $0x168] sm:$0xff]
    %v2838 = vld [vmem:[%s2791 + $0x170] sm:$0xff]
    %v2839 = vld [vmem:[%s2791 + $0x178] sm:$0xff]
    %v2840 = vld [vmem:[%s2791 + $0x180] sm:$0xff]
    %v2841 = vld [vmem:[%s2791 + $0x188] sm:$0xff]
    %v2842 = vld [vmem:[%s2791 + $0x190] sm:$0xff]
    %v2843 = vld [vmem:[%s2791 + $0x198] sm:$0xff]
    %v2844 = vld [vmem:[%s2791 + $0x1a0] sm:$0xff]
    %v2845 = vld [vmem:[%s2791 + $0x1a8] sm:$0xff]
    %v2846 = vld [vmem:[%s2791 + $0x1b0] sm:$0xff]
    %v2847 = vld [vmem:[%s2791 + $0x1b8] sm:$0xff]
    %v2848 = vld [vmem:[%s2791 + $0x1c0] sm:$0xff]
    %v2849 = vld [vmem:[%s2791 + $0x1c8] sm:$0xff]
    %v2850 = vld [vmem:[%s2791 + $0x1d0] sm:$0xff]
    %v2851 = vld [vmem:[%s2791 + $0x1d8] sm:$0xff]
    %v2852 = vld [vmem:[%s2791 + $0x1e0] sm:$0xff]
    %v2853 = vld [vmem:[%s2791 + $0x1e8] sm:$0xff]
    %v2854 = vld [vmem:[%s2791 + $0x1f0] sm:$0xff]
    %v2855 = vld [vmem:[%s2791 + $0x1f8] sm:$0xff]
    %2856 = vmatprep.subr.mxu0 %v2853
    %2857 = vmatpush1.msra.mxu0 %v2852
    %2858 = vmatprep.subr.mxu0 %v2849
    %2859 = vmatpush1.msra.mxu0 %v2848
    %2860 = vmatprep.subr.mxu0 %v2845
    %2861 = vmatpush1.msra.mxu0 %v2844
    %2862 = vmatprep.subr.mxu0 %v2841
    %2863 = vmatpush1.msra.mxu0 %v2840
    %2864 = vmatprep.subr.mxu0 %v2837
    %2865 = vmatpush1.msra.mxu0 %v2836
    %2866 = vmatprep.subr.mxu0 %v2833
    %2867 = vmatpush1.msra.mxu0 %v2832
    %2868 = vmatprep.subr.mxu0 %v2829
    %2869 = vmatpush1.msra.mxu0 %v2828
    %2870 = vmatprep.subr.mxu0 %v2825
    %2871 = vmatpush1.msra.mxu0 %v2824
    %2872 = vmatprep.subr.mxu0 %v2821
    %2873 = vmatpush1.msra.mxu0 %v2820
    %2874 = vmatprep.subr.mxu0 %v2817
    %2875 = vmatpush1.msra.mxu0 %v2816
    %2876 = vmatprep.subr.mxu0 %v2813
    %2877 = vmatpush1.msra.mxu0 %v2812
    %2878 = vmatprep.subr.mxu0 %v2809
    %2879 = vmatpush1.msra.mxu0 %v2808
    %2880 = vmatprep.subr.mxu0 %v2805
    %2881 = vmatpush1.msra.mxu0 %v2804
    %2882 = vmatprep.subr.mxu0 %v2801
    %2883 = vmatpush1.msra.mxu0 %v2800
    %2884 = vmatprep.subr.mxu0 %v2797
    %2885 = vmatpush1.msra.mxu0 %v2796
    %2886 = vmatprep.subr.mxu0 %v2793
    %2887 = vmatpush1.msra.mxu0 %v2792
    %2888 = vmatprep.subr.mxu0 0.0
    %2889 = vmatpush2.msra.mxu0 0.0
    %2890 = vmatprep.subr.mxu0 0.0
    %2891 = vmatpush2.msra.mxu0 0.0
    %2892 = vmatprep.subr.mxu0 0.0
    %2893 = vmatpush2.msra.mxu0 0.0
    %2894 = vmatprep.subr.mxu0 0.0
    %2895 = vmatpush2.msra.mxu0 0.0
    %2896 = vmatprep.subr.mxu0 0.0
    %2897 = vmatpush2.msra.mxu0 0.0
    %2898 = vmatprep.subr.mxu0 0.0
    %2899 = vmatpush2.msra.mxu0 0.0
    %2900 = vmatprep.subr.mxu0 0.0
    %2901 = vmatpush2.msra.mxu0 0.0
    %2902 = vmatprep.subr.mxu0 0.0
    %2903 = vmatpush2.msra.mxu0 0.0
    %2904 = vmatprep.subr.mxu0 0.0
    %2905 = vmatpush2.msra.mxu0 0.0
    %2906 = vmatprep.subr.mxu0 0.0
    %2907 = vmatpush2.msra.mxu0 0.0
    %2908 = vmatprep.subr.mxu0 0.0
    %2909 = vmatpush2.msra.mxu0 0.0
    %2910 = vmatprep.subr.mxu0 0.0
    %2911 = vmatpush2.msra.mxu0 0.0
    %2912 = vmatprep.subr.mxu0 0.0
    %2913 = vmatpush2.msra.mxu0 0.0
    %2914 = vmatprep.subr.mxu0 0.0
    %2915 = vmatpush2.msra.mxu0 0.0
    %2916 = vmatprep.subr.mxu0 0.0
    %2917 = vmatpush2.msra.mxu0 0.0
    %2918 = vmatprep.subr.mxu0 0.0
    %2919 = vmatpush2.msra.mxu0 0.0
    %2920 = vmatprep.mubr.f32.mxu0 0.0
    %2921 = vmatmul.mubr.f32.gmra.mxu0 %v996
    %v2922 = vpop.f32.mrf.mxu0
    %v2923 = vadd.f32 0.0, %v2922
    %v2924 = vpop.f32.mrf.mxu0
    %v2925 = vadd.f32 0.0, %v2924
    %2926 = vmatprep.mubr.f32.mxu0 0.0
    %2927 = vmatmul.mubr.f32.gmra.mxu0 %v1001
    %v2928 = vpop.f32.mrf.mxu0
    %v2929 = vadd.f32 0.0, %v2928
    %v2930 = vpop.f32.mrf.mxu0
    %v2931 = vadd.f32 0.0, %v2930
    %2932 = vmatprep.mubr.f32.mxu0 0.0
    %2933 = vmatmul.mubr.f32.gmra.mxu0 %v1006
    %v2934 = vpop.f32.mrf.mxu0
    %v2935 = vadd.f32 0.0, %v2934
    %v2936 = vpop.f32.mrf.mxu0
    %v2937 = vadd.f32 0.0, %v2936
    %2938 = vmatprep.mubr.f32.mxu0 0.0
    %2939 = vmatmul.mubr.f32.gmra.mxu0 %v1011
    %v2940 = vpop.f32.mrf.mxu0
    %v2941 = vadd.f32 0.0, %v2940
    %v2942 = vpop.f32.mrf.mxu0
    %v2943 = vadd.f32 0.0, %v2942
    %2944 = vmatprep.mubr.f32.mxu0 0.0
    %2945 = vmatmul.mubr.f32.gmra.mxu0 %v1016
    %v2946 = vpop.f32.mrf.mxu0
    %v2947 = vadd.f32 0.0, %v2946
    %v2948 = vpop.f32.mrf.mxu0
    %v2949 = vadd.f32 0.0, %v2948
    %2950 = vmatprep.mubr.f32.mxu0 0.0
    %2951 = vmatmul.mubr.f32.gmra.mxu0 %v1021
    %v2952 = vpop.f32.mrf.mxu0
    %v2953 = vadd.f32 0.0, %v2952
    %v2954 = vpop.f32.mrf.mxu0
    %v2955 = vadd.f32 0.0, %v2954
    %2956 = vmatprep.mubr.f32.mxu0 0.0
    %2957 = vmatmul.mubr.f32.gmra.mxu0 %v1026
    %v2958 = vpop.f32.mrf.mxu0
    %v2959 = vadd.f32 0.0, %v2958
    %v2960 = vpop.f32.mrf.mxu0
    %v2961 = vadd.f32 0.0, %v2960
    %2962 = vmatprep.mubr.f32.mxu0 0.0
    %2963 = vmatmul.mubr.f32.gmra.mxu0 %v1031
    %v2964 = vpop.f32.mrf.mxu0
    %v2965 = vadd.f32 0.0, %v2964
    %v2966 = vpop.f32.mrf.mxu0
    %v2967 = vadd.f32 0.0, %v2966
    %2968 = vmatprep.mubr.f32.mxu0 0.0
    %2969 = vmatmul.mubr.f32.gmra.mxu0 %v1036
    %v2970 = vpop.f32.mrf.mxu0
    %v2971 = vadd.f32 0.0, %v2970
    %v2972 = vpop.f32.mrf.mxu0
    %v2973 = vadd.f32 0.0, %v2972
    %2974 = vmatprep.mubr.f32.mxu0 0.0
    %2975 = vmatmul.mubr.f32.gmra.mxu0 %v1041
    %v2976 = vpop.f32.mrf.mxu0
    %v2977 = vadd.f32 0.0, %v2976
    %v2978 = vpop.f32.mrf.mxu0
    %v2979 = vadd.f32 0.0, %v2978
    %2980 = vmatprep.mubr.f32.mxu0 0.0
    %2981 = vmatmul.mubr.f32.gmra.mxu0 %v1046
    %v2982 = vpop.f32.mrf.mxu0
    %v2983 = vadd.f32 0.0, %v2982
    %v2984 = vpop.f32.mrf.mxu0
    %v2985 = vadd.f32 0.0, %v2984
    %2986 = vmatprep.mubr.f32.mxu0 0.0
    %2987 = vmatmul.mubr.f32.gmra.mxu0 %v1051
    %v2988 = vpop.f32.mrf.mxu0
    %v2989 = vadd.f32 0.0, %v2988
    %v2990 = vpop.f32.mrf.mxu0
    %v2991 = vadd.f32 0.0, %v2990
    %2992 = vmatprep.mubr.f32.mxu0 0.0
    %2993 = vmatmul.mubr.f32.gmra.mxu0 %v1056
    %v2994 = vpop.f32.mrf.mxu0
    %v2995 = vadd.f32 0.0, %v2994
    %v2996 = vpop.f32.mrf.mxu0
    %v2997 = vadd.f32 0.0, %v2996
    %2998 = vmatprep.mubr.f32.mxu0 0.0
    %2999 = vmatmul.mubr.f32.gmra.mxu0 %v1061
    %v3000 = vpop.f32.mrf.mxu0
    %v3001 = vadd.f32 0.0, %v3000
    %v3002 = vpop.f32.mrf.mxu0
    %v3003 = vadd.f32 0.0, %v3002
    %3004 = vdwg.mxu0
    %3005 = vmatprep.subr.mxu0 %v2855
    %3006 = vmatpush1.msra.mxu0 %v2854
    %3007 = vmatprep.subr.mxu0 %v2851
    %3008 = vmatpush1.msra.mxu0 %v2850
    %3009 = vmatprep.subr.mxu0 %v2847
    %3010 = vmatpush1.msra.mxu0 %v2846
    %3011 = vmatprep.subr.mxu0 %v2843
    %3012 = vmatpush1.msra.mxu0 %v2842
    %3013 = vmatprep.subr.mxu0 %v2839
    %3014 = vmatpush1.msra.mxu0 %v2838
    %3015 = vmatprep.subr.mxu0 %v2835
    %3016 = vmatpush1.msra.mxu0 %v2834
    %3017 = vmatprep.subr.mxu0 %v2831
    %3018 = vmatpush1.msra.mxu0 %v2830
    %3019 = vmatprep.subr.mxu0 %v2827
    %3020 = vmatpush1.msra.mxu0 %v2826
    %3021 = vmatprep.subr.mxu0 %v2823
    %3022 = vmatpush1.msra.mxu0 %v2822
    %3023 = vmatprep.subr.mxu0 %v2819
    %3024 = vmatpush1.msra.mxu0 %v2818
    %3025 = vmatprep.subr.mxu0 %v2815
    %3026 = vmatpush1.msra.mxu0 %v2814
    %3027 = vmatprep.subr.mxu0 %v2811
    %3028 = vmatpush1.msra.mxu0 %v2810
    %3029 = vmatprep.subr.mxu0 %v2807
    %3030 = vmatpush1.msra.mxu0 %v2806
    %3031 = vmatprep.subr.mxu0 %v2803
    %3032 = vmatpush1.msra.mxu0 %v2802
    %3033 = vmatprep.subr.mxu0 %v2799
    %3034 = vmatpush1.msra.mxu0 %v2798
    %3035 = vmatprep.subr.mxu0 %v2795
    %3036 = vmatpush1.msra.mxu0 %v2794
    %3037 = vmatprep.subr.mxu0 0.0
    %3038 = vmatpush2.msra.mxu0 0.0
    %3039 = vmatprep.subr.mxu0 0.0
    %3040 = vmatpush2.msra.mxu0 0.0
    %3041 = vmatprep.subr.mxu0 0.0
    %3042 = vmatpush2.msra.mxu0 0.0
    %3043 = vmatprep.subr.mxu0 0.0
    %3044 = vmatpush2.msra.mxu0 0.0
    %3045 = vmatprep.subr.mxu0 0.0
    %3046 = vmatpush2.msra.mxu0 0.0
    %3047 = vmatprep.subr.mxu0 0.0
    %3048 = vmatpush2.msra.mxu0 0.0
    %3049 = vmatprep.subr.mxu0 0.0
    %3050 = vmatpush2.msra.mxu0 0.0
    %3051 = vmatprep.subr.mxu0 0.0
    %3052 = vmatpush2.msra.mxu0 0.0
    %3053 = vmatprep.subr.mxu0 0.0
    %3054 = vmatpush2.msra.mxu0 0.0
    %3055 = vmatprep.subr.mxu0 0.0
    %3056 = vmatpush2.msra.mxu0 0.0
    %3057 = vmatprep.subr.mxu0 0.0
    %3058 = vmatpush2.msra.mxu0 0.0
    %3059 = vmatprep.subr.mxu0 0.0
    %3060 = vmatpush2.msra.mxu0 0.0
    %3061 = vmatprep.subr.mxu0 0.0
    %3062 = vmatpush2.msra.mxu0 0.0
    %3063 = vmatprep.subr.mxu0 0.0
    %3064 = vmatpush2.msra.mxu0 0.0
    %3065 = vmatprep.subr.mxu0 0.0
    %3066 = vmatpush2.msra.mxu0 0.0
    %3067 = vmatprep.subr.mxu0 0.0
    %3068 = vmatpush2.msra.mxu0 0.0
    %3069 = vmatprep.mubr.f32.mxu0 0.0
    %3070 = vmatmul.mubr.f32.gmra.mxu0 %v996
    %v3071 = vpop.f32.mrf.mxu0
    %v3072 = vadd.f32 0.0, %v3071
    %v3073 = vpop.f32.mrf.mxu0
    %v3074 = vadd.f32 0.0, %v3073
    %3075 = vmatprep.mubr.f32.mxu0 0.0
    %3076 = vmatmul.mubr.f32.gmra.mxu0 %v1001
    %v3077 = vpop.f32.mrf.mxu0
    %v3078 = vadd.f32 0.0, %v3077
    %v3079 = vpop.f32.mrf.mxu0
    %v3080 = vadd.f32 0.0, %v3079
    %3081 = vmatprep.mubr.f32.mxu0 0.0
    %3082 = vmatmul.mubr.f32.gmra.mxu0 %v1006
    %v3083 = vpop.f32.mrf.mxu0
    %v3084 = vadd.f32 0.0, %v3083
    %v3085 = vpop.f32.mrf.mxu0
    %v3086 = vadd.f32 0.0, %v3085
    %3087 = vmatprep.mubr.f32.mxu0 0.0
    %3088 = vmatmul.mubr.f32.gmra.mxu0 %v1011
    %v3089 = vpop.f32.mrf.mxu0
    %v3090 = vadd.f32 0.0, %v3089
    %v3091 = vpop.f32.mrf.mxu0
    %v3092 = vadd.f32 0.0, %v3091
    %3093 = vmatprep.mubr.f32.mxu0 0.0
    %3094 = vmatmul.mubr.f32.gmra.mxu0 %v1016
    %v3095 = vpop.f32.mrf.mxu0
    %v3096 = vadd.f32 0.0, %v3095
    %v3097 = vpop.f32.mrf.mxu0
    %v3098 = vadd.f32 0.0, %v3097
    %3099 = vmatprep.mubr.f32.mxu0 0.0
    %3100 = vmatmul.mubr.f32.gmra.mxu0 %v1021
    %v3101 = vpop.f32.mrf.mxu0
    %v3102 = vadd.f32 0.0, %v3101
    %v3103 = vpop.f32.mrf.mxu0
    %v3104 = vadd.f32 0.0, %v3103
    %3105 = vmatprep.mubr.f32.mxu0 0.0
    %3106 = vmatmul.mubr.f32.gmra.mxu0 %v1026
    %v3107 = vpop.f32.mrf.mxu0
    %v3108 = vadd.f32 0.0, %v3107
    %v3109 = vpop.f32.mrf.mxu0
    %v3110 = vadd.f32 0.0, %v3109
    %3111 = vmatprep.mubr.f32.mxu0 0.0
    %3112 = vmatmul.mubr.f32.gmra.mxu0 %v1031
    %v3113 = vpop.f32.mrf.mxu0
    %v3114 = vadd.f32 0.0, %v3113
    %v3115 = vpop.f32.mrf.mxu0
    %v3116 = vadd.f32 0.0, %v3115
    %3117 = vmatprep.mubr.f32.mxu0 0.0
    %3118 = vmatmul.mubr.f32.gmra.mxu0 %v1036
    %v3119 = vpop.f32.mrf.mxu0
    %v3120 = vadd.f32 0.0, %v3119
    %v3121 = vpop.f32.mrf.mxu0
    %v3122 = vadd.f32 0.0, %v3121
    %3123 = vmatprep.mubr.f32.mxu0 0.0
    %3124 = vmatmul.mubr.f32.gmra.mxu0 %v1041
    %v3125 = vpop.f32.mrf.mxu0
    %v3126 = vadd.f32 0.0, %v3125
    %v3127 = vpop.f32.mrf.mxu0
    %v3128 = vadd.f32 0.0, %v3127
    %3129 = vmatprep.mubr.f32.mxu0 0.0
    %3130 = vmatmul.mubr.f32.gmra.mxu0 %v1046
    %v3131 = vpop.f32.mrf.mxu0
    %v3132 = vadd.f32 0.0, %v3131
    %v3133 = vpop.f32.mrf.mxu0
    %v3134 = vadd.f32 0.0, %v3133
    %3135 = vmatprep.mubr.f32.mxu0 0.0
    %3136 = vmatmul.mubr.f32.gmra.mxu0 %v1051
    %v3137 = vpop.f32.mrf.mxu0
    %v3138 = vadd.f32 0.0, %v3137
    %v3139 = vpop.f32.mrf.mxu0
    %v3140 = vadd.f32 0.0, %v3139
    %3141 = vmatprep.mubr.f32.mxu0 0.0
    %3142 = vmatmul.mubr.f32.gmra.mxu0 %v1056
    %v3143 = vpop.f32.mrf.mxu0
    %v3144 = vadd.f32 0.0, %v3143
    %v3145 = vpop.f32.mrf.mxu0
    %v3146 = vadd.f32 0.0, %v3145
    %3147 = vmatprep.mubr.f32.mxu0 0.0
    %3148 = vmatmul.mubr.f32.gmra.mxu0 %v1061
    %v3149 = vpop.f32.mrf.mxu0
    %v3150 = vadd.f32 0.0, %v3149
    %v3151 = vpop.f32.mrf.mxu0
    %v3152 = vadd.f32 0.0, %v3151
    %3153 = vdwg.mxu0
    %v3154 = vadd.f32 %v2735, %v2923
    %v3155 = vadd.f32 %v2736, %v2925
    %v3156 = vadd.f32 %v2737, %v3072
    %v3157 = vadd.f32 %v2738, %v3074
    %v3158 = vadd.f32 %v2739, %v2929
    %v3159 = vadd.f32 %v2740, %v2931
    %v3160 = vadd.f32 %v2741, %v3078
    %v3161 = vadd.f32 %v2742, %v3080
    %v3162 = vadd.f32 %v2743, %v2935
    %v3163 = vadd.f32 %v2744, %v2937
    %v3164 = vadd.f32 %v2745, %v3084
    %v3165 = vadd.f32 %v2746, %v3086
    %v3166 = vadd.f32 %v2747, %v2941
    %v3167 = vadd.f32 %v2748, %v2943
    %v3168 = vadd.f32 %v2749, %v3090
    %v3169 = vadd.f32 %v2750, %v3092
    %v3170 = vadd.f32 %v2751, %v2947
    %v3171 = vadd.f32 %v2752, %v2949
    %v3172 = vadd.f32 %v2753, %v3096
    %v3173 = vadd.f32 %v2754, %v3098
    %v3174 = vadd.f32 %v2755, %v2953
    %v3175 = vadd.f32 %v2756, %v2955
    %v3176 = vadd.f32 %v2757, %v3102
    %v3177 = vadd.f32 %v2758, %v3104
    %v3178 = vadd.f32 %v2759, %v2959
    %v3179 = vadd.f32 %v2760, %v2961
    %v3180 = vadd.f32 %v2761, %v3108
    %v3181 = vadd.f32 %v2762, %v3110
    %v3182 = vadd.f32 %v2763, %v2965
    %v3183 = vadd.f32 %v2764, %v2967
    %v3184 = vadd.f32 %v2765, %v3114
    %v3185 = vadd.f32 %v2766, %v3116
    %v3186 = vadd.f32 %v2767, %v2971
    %v3187 = vadd.f32 %v2768, %v2973
    %v3188 = vadd.f32 %v2769, %v3120
    %v3189 = vadd.f32 %v2770, %v3122
    %v3190 = vadd.f32 %v2771, %v2977
    %v3191 = vadd.f32 %v2772, %v2979
    %v3192 = vadd.f32 %v2773, %v3126
    %v3193 = vadd.f32 %v2774, %v3128
    %v3194 = vadd.f32 %v2775, %v2983
    %v3195 = vadd.f32 %v2776, %v2985
    %v3196 = vadd.f32 %v2777, %v3132
    %v3197 = vadd.f32 %v2778, %v3134
    %v3198 = vadd.f32 %v2779, %v2989
    %v3199 = vadd.f32 %v2780, %v2991
    %v3200 = vadd.f32 %v2781, %v3138
    %v3201 = vadd.f32 %v2782, %v3140
    %v3202 = vadd.f32 %v2783, %v2995
    %v3203 = vadd.f32 %v2784, %v2997
    %v3204 = vadd.f32 %v2785, %v3144
    %v3205 = vadd.f32 %v2786, %v3146
    %v3206 = vadd.f32 %v2787, %v3001
    %v3207 = vadd.f32 %v2788, %v3003
    %v3208 = vadd.f32 %v2789, %v3150
    %v3209 = vadd.f32 %v2790, %v3152
    %3210 = vmatprep.subr.mxu0 %v1354
    %3211 = vmatpush1.msra.mxu0 %v1353
    %3212 = vmatprep.subr.mxu0 %v1350
    %3213 = vmatpush1.msra.mxu0 %v1349
    %3214 = vmatprep.subr.mxu0 %v1346
    %3215 = vmatpush1.msra.mxu0 %v1345
    %3216 = vmatprep.subr.mxu0 %v1342
    %3217 = vmatpush1.msra.mxu0 %v1341
    %3218 = vmatprep.subr.mxu0 %v1338
    %3219 = vmatpush1.msra.mxu0 %v1337
    %3220 = vmatprep.subr.mxu0 %v1334
    %3221 = vmatpush1.msra.mxu0 %v1333
    %3222 = vmatprep.subr.mxu0 %v1330
    %3223 = vmatpush1.msra.mxu0 %v1329
    %3224 = vmatprep.subr.mxu0 %v1326
    %3225 = vmatpush1.msra.mxu0 %v1325
    %3226 = vmatprep.subr.mxu0 %v1322
    %3227 = vmatpush1.msra.mxu0 %v1321
    %3228 = vmatprep.subr.mxu0 %v1318
    %3229 = vmatpush1.msra.mxu0 %v1317
    %3230 = vmatprep.subr.mxu0 %v1314
    %3231 = vmatpush1.msra.mxu0 %v1313
    %3232 = vmatprep.subr.mxu0 %v1310
    %3233 = vmatpush1.msra.mxu0 %v1309
    %3234 = vmatprep.subr.mxu0 %v1306
    %3235 = vmatpush1.msra.mxu0 %v1305
    %3236 = vmatprep.subr.mxu0 %v1302
    %3237 = vmatpush1.msra.mxu0 %v1301
    %3238 = vmatprep.subr.mxu0 %v1298
    %3239 = vmatpush1.msra.mxu0 %v1297
    %3240 = vmatprep.subr.mxu0 %v1294
    %3241 = vmatpush1.msra.mxu0 %v1293
    %3242 = vmatprep.subr.mxu0 0.0
    %3243 = vmatpush2.msra.mxu0 0.0
    %3244 = vmatprep.subr.mxu0 0.0
    %3245 = vmatpush2.msra.mxu0 0.0
    %3246 = vmatprep.subr.mxu0 0.0
    %3247 = vmatpush2.msra.mxu0 0.0
    %3248 = vmatprep.subr.mxu0 0.0
    %3249 = vmatpush2.msra.mxu0 0.0
    %3250 = vmatprep.subr.mxu0 0.0
    %3251 = vmatpush2.msra.mxu0 0.0
    %3252 = vmatprep.subr.mxu0 0.0
    %3253 = vmatpush2.msra.mxu0 0.0
    %3254 = vmatprep.subr.mxu0 0.0
    %3255 = vmatpush2.msra.mxu0 0.0
    %3256 = vmatprep.subr.mxu0 0.0
    %3257 = vmatpush2.msra.mxu0 0.0
    %3258 = vmatprep.subr.mxu0 0.0
    %3259 = vmatpush2.msra.mxu0 0.0
    %3260 = vmatprep.subr.mxu0 0.0
    %3261 = vmatpush2.msra.mxu0 0.0
    %3262 = vmatprep.subr.mxu0 0.0
    %3263 = vmatpush2.msra.mxu0 0.0
    %3264 = vmatprep.subr.mxu0 0.0
    %3265 = vmatpush2.msra.mxu0 0.0
    %3266 = vmatprep.subr.mxu0 0.0
    %3267 = vmatpush2.msra.mxu0 0.0
    %3268 = vmatprep.subr.mxu0 0.0
    %3269 = vmatpush2.msra.mxu0 0.0
    %3270 = vmatprep.subr.mxu0 0.0
    %3271 = vmatpush2.msra.mxu0 0.0
    %3272 = vmatprep.subr.mxu0 0.0
    %3273 = vmatpush2.msra.mxu0 0.0
    %3274 = vmatprep.mubr.f32.mxu0 0.0
    %3275 = vmatmul.mubr.f32.gmra.mxu0 %v668
    %v3276 = vpop.f32.mrf.mxu0
    %v3277 = vadd.f32 0.0, %v3276
    %v3278 = vpop.f32.mrf.mxu0
    %v3279 = vadd.f32 0.0, %v3278
    %3280 = vmatprep.mubr.f32.mxu0 0.0
    %3281 = vmatmul.mubr.f32.gmra.mxu0 %v673
    %v3282 = vpop.f32.mrf.mxu0
    %v3283 = vadd.f32 0.0, %v3282
    %v3284 = vpop.f32.mrf.mxu0
    %v3285 = vadd.f32 0.0, %v3284
    %3286 = vmatprep.mubr.f32.mxu0 0.0
    %3287 = vmatmul.mubr.f32.gmra.mxu0 %v678
    %v3288 = vpop.f32.mrf.mxu0
    %v3289 = vadd.f32 0.0, %v3288
    %v3290 = vpop.f32.mrf.mxu0
    %v3291 = vadd.f32 0.0, %v3290
    %3292 = vmatprep.mubr.f32.mxu0 0.0
    %3293 = vmatmul.mubr.f32.gmra.mxu0 %v683
    %v3294 = vpop.f32.mrf.mxu0
    %v3295 = vadd.f32 0.0, %v3294
    %v3296 = vpop.f32.mrf.mxu0
    %v3297 = vadd.f32 0.0, %v3296
    %3298 = vmatprep.mubr.f32.mxu0 0.0
    %3299 = vmatmul.mubr.f32.gmra.mxu0 %v688
    %v3300 = vpop.f32.mrf.mxu0
    %v3301 = vadd.f32 0.0, %v3300
    %v3302 = vpop.f32.mrf.mxu0
    %v3303 = vadd.f32 0.0, %v3302
    %3304 = vmatprep.mubr.f32.mxu0 0.0
    %3305 = vmatmul.mubr.f32.gmra.mxu0 %v693
    %v3306 = vpop.f32.mrf.mxu0
    %v3307 = vadd.f32 0.0, %v3306
    %v3308 = vpop.f32.mrf.mxu0
    %v3309 = vadd.f32 0.0, %v3308
    %3310 = vmatprep.mubr.f32.mxu0 0.0
    %3311 = vmatmul.mubr.f32.gmra.mxu0 %v698
    %v3312 = vpop.f32.mrf.mxu0
    %v3313 = vadd.f32 0.0, %v3312
    %v3314 = vpop.f32.mrf.mxu0
    %v3315 = vadd.f32 0.0, %v3314
    %3316 = vmatprep.mubr.f32.mxu0 0.0
    %3317 = vmatmul.mubr.f32.gmra.mxu0 %v703
    %v3318 = vpop.f32.mrf.mxu0
    %v3319 = vadd.f32 0.0, %v3318
    %v3320 = vpop.f32.mrf.mxu0
    %v3321 = vadd.f32 0.0, %v3320
    %3322 = vmatprep.mubr.f32.mxu0 0.0
    %3323 = vmatmul.mubr.f32.gmra.mxu0 %v708
    %v3324 = vpop.f32.mrf.mxu0
    %v3325 = vadd.f32 0.0, %v3324
    %v3326 = vpop.f32.mrf.mxu0
    %v3327 = vadd.f32 0.0, %v3326
    %3328 = vmatprep.mubr.f32.mxu0 0.0
    %3329 = vmatmul.mubr.f32.gmra.mxu0 %v713
    %v3330 = vpop.f32.mrf.mxu0
    %v3331 = vadd.f32 0.0, %v3330
    %v3332 = vpop.f32.mrf.mxu0
    %v3333 = vadd.f32 0.0, %v3332
    %3334 = vmatprep.mubr.f32.mxu0 0.0
    %3335 = vmatmul.mubr.f32.gmra.mxu0 %v718
    %v3336 = vpop.f32.mrf.mxu0
    %v3337 = vadd.f32 0.0, %v3336
    %v3338 = vpop.f32.mrf.mxu0
    %v3339 = vadd.f32 0.0, %v3338
    %3340 = vmatprep.mubr.f32.mxu0 0.0
    %3341 = vmatmul.mubr.f32.gmra.mxu0 %v723
    %v3342 = vpop.f32.mrf.mxu0
    %v3343 = vadd.f32 0.0, %v3342
    %v3344 = vpop.f32.mrf.mxu0
    %v3345 = vadd.f32 0.0, %v3344
    %3346 = vmatprep.mubr.f32.mxu0 0.0
    %3347 = vmatmul.mubr.f32.gmra.mxu0 %v728
    %v3348 = vpop.f32.mrf.mxu0
    %v3349 = vadd.f32 0.0, %v3348
    %v3350 = vpop.f32.mrf.mxu0
    %v3351 = vadd.f32 0.0, %v3350
    %3352 = vmatprep.mubr.f32.mxu0 0.0
    %3353 = vmatmul.mubr.f32.gmra.mxu0 %v733
    %v3354 = vpop.f32.mrf.mxu0
    %v3355 = vadd.f32 0.0, %v3354
    %v3356 = vpop.f32.mrf.mxu0
    %v3357 = vadd.f32 0.0, %v3356
    %3358 = vdwg.mxu0
    %3359 = vmatprep.subr.mxu0 %v1356
    %3360 = vmatpush1.msra.mxu0 %v1355
    %3361 = vmatprep.subr.mxu0 %v1352
    %3362 = vmatpush1.msra.mxu0 %v1351
    %3363 = vmatprep.subr.mxu0 %v1348
    %3364 = vmatpush1.msra.mxu0 %v1347
    %3365 = vmatprep.subr.mxu0 %v1344
    %3366 = vmatpush1.msra.mxu0 %v1343
    %3367 = vmatprep.subr.mxu0 %v1340
    %3368 = vmatpush1.msra.mxu0 %v1339
    %3369 = vmatprep.subr.mxu0 %v1336
    %3370 = vmatpush1.msra.mxu0 %v1335
    %3371 = vmatprep.subr.mxu0 %v1332
    %3372 = vmatpush1.msra.mxu0 %v1331
    %3373 = vmatprep.subr.mxu0 %v1328
    %3374 = vmatpush1.msra.mxu0 %v1327
    %3375 = vmatprep.subr.mxu0 %v1324
    %3376 = vmatpush1.msra.mxu0 %v1323
    %3377 = vmatprep.subr.mxu0 %v1320
    %3378 = vmatpush1.msra.mxu0 %v1319
    %3379 = vmatprep.subr.mxu0 %v1316
    %3380 = vmatpush1.msra.mxu0 %v1315
    %3381 = vmatprep.subr.mxu0 %v1312
    %3382 = vmatpush1.msra.mxu0 %v1311
    %3383 = vmatprep.subr.mxu0 %v1308
    %3384 = vmatpush1.msra.mxu0 %v1307
    %3385 = vmatprep.subr.mxu0 %v1304
    %3386 = vmatpush1.msra.mxu0 %v1303
    %3387 = vmatprep.subr.mxu0 %v1300
    %3388 = vmatpush1.msra.mxu0 %v1299
    %3389 = vmatprep.subr.mxu0 %v1296
    %3390 = vmatpush1.msra.mxu0 %v1295
    %3391 = vmatprep.subr.mxu0 0.0
    %3392 = vmatpush2.msra.mxu0 0.0
    %3393 = vmatprep.subr.mxu0 0.0
    %3394 = vmatpush2.msra.mxu0 0.0
    %3395 = vmatprep.subr.mxu0 0.0
    %3396 = vmatpush2.msra.mxu0 0.0
    %3397 = vmatprep.subr.mxu0 0.0
    %3398 = vmatpush2.msra.mxu0 0.0
    %3399 = vmatprep.subr.mxu0 0.0
    %3400 = vmatpush2.msra.mxu0 0.0
    %3401 = vmatprep.subr.mxu0 0.0
    %3402 = vmatpush2.msra.mxu0 0.0
    %3403 = vmatprep.subr.mxu0 0.0
    %3404 = vmatpush2.msra.mxu0 0.0
    %3405 = vmatprep.subr.mxu0 0.0
    %3406 = vmatpush2.msra.mxu0 0.0
    %3407 = vmatprep.subr.mxu0 0.0
    %3408 = vmatpush2.msra.mxu0 0.0
    %3409 = vmatprep.subr.mxu0 0.0
    %3410 = vmatpush2.msra.mxu0 0.0
    %3411 = vmatprep.subr.mxu0 0.0
    %3412 = vmatpush2.msra.mxu0 0.0
    %3413 = vmatprep.subr.mxu0 0.0
    %3414 = vmatpush2.msra.mxu0 0.0
    %3415 = vmatprep.subr.mxu0 0.0
    %3416 = vmatpush2.msra.mxu0 0.0
    %3417 = vmatprep.subr.mxu0 0.0
    %3418 = vmatpush2.msra.mxu0 0.0
    %3419 = vmatprep.subr.mxu0 0.0
    %3420 = vmatpush2.msra.mxu0 0.0
    %3421 = vmatprep.subr.mxu0 0.0
    %3422 = vmatpush2.msra.mxu0 0.0
    %3423 = vmatprep.mubr.f32.mxu0 0.0
    %3424 = vmatmul.mubr.f32.gmra.mxu0 %v668
    %v3425 = vpop.f32.mrf.mxu0
    %v3426 = vadd.f32 0.0, %v3425
    %v3427 = vpop.f32.mrf.mxu0
    %v3428 = vadd.f32 0.0, %v3427
    %3429 = vmatprep.mubr.f32.mxu0 0.0
    %3430 = vmatmul.mubr.f32.gmra.mxu0 %v673
    %v3431 = vpop.f32.mrf.mxu0
    %v3432 = vadd.f32 0.0, %v3431
    %v3433 = vpop.f32.mrf.mxu0
    %v3434 = vadd.f32 0.0, %v3433
    %3435 = vmatprep.mubr.f32.mxu0 0.0
    %3436 = vmatmul.mubr.f32.gmra.mxu0 %v678
    %v3437 = vpop.f32.mrf.mxu0
    %v3438 = vadd.f32 0.0, %v3437
    %v3439 = vpop.f32.mrf.mxu0
    %v3440 = vadd.f32 0.0, %v3439
    %3441 = vmatprep.mubr.f32.mxu0 0.0
    %3442 = vmatmul.mubr.f32.gmra.mxu0 %v683
    %v3443 = vpop.f32.mrf.mxu0
    %v3444 = vadd.f32 0.0, %v3443
    %v3445 = vpop.f32.mrf.mxu0
    %v3446 = vadd.f32 0.0, %v3445
    %3447 = vmatprep.mubr.f32.mxu0 0.0
    %3448 = vmatmul.mubr.f32.gmra.mxu0 %v688
    %v3449 = vpop.f32.mrf.mxu0
    %v3450 = vadd.f32 0.0, %v3449
    %v3451 = vpop.f32.mrf.mxu0
    %v3452 = vadd.f32 0.0, %v3451
    %3453 = vmatprep.mubr.f32.mxu0 0.0
    %3454 = vmatmul.mubr.f32.gmra.mxu0 %v693
    %v3455 = vpop.f32.mrf.mxu0
    %v3456 = vadd.f32 0.0, %v3455
    %v3457 = vpop.f32.mrf.mxu0
    %v3458 = vadd.f32 0.0, %v3457
    %3459 = vmatprep.mubr.f32.mxu0 0.0
    %3460 = vmatmul.mubr.f32.gmra.mxu0 %v698
    %v3461 = vpop.f32.mrf.mxu0
    %v3462 = vadd.f32 0.0, %v3461
    %v3463 = vpop.f32.mrf.mxu0
    %v3464 = vadd.f32 0.0, %v3463
    %3465 = vmatprep.mubr.f32.mxu0 0.0
    %3466 = vmatmul.mubr.f32.gmra.mxu0 %v703
    %v3467 = vpop.f32.mrf.mxu0
    %v3468 = vadd.f32 0.0, %v3467
    %v3469 = vpop.f32.mrf.mxu0
    %v3470 = vadd.f32 0.0, %v3469
    %3471 = vmatprep.mubr.f32.mxu0 0.0
    %3472 = vmatmul.mubr.f32.gmra.mxu0 %v708
    %v3473 = vpop.f32.mrf.mxu0
    %v3474 = vadd.f32 0.0, %v3473
    %v3475 = vpop.f32.mrf.mxu0
    %v3476 = vadd.f32 0.0, %v3475
    %3477 = vmatprep.mubr.f32.mxu0 0.0
    %3478 = vmatmul.mubr.f32.gmra.mxu0 %v713
    %v3479 = vpop.f32.mrf.mxu0
    %v3480 = vadd.f32 0.0, %v3479
    %v3481 = vpop.f32.mrf.mxu0
    %v3482 = vadd.f32 0.0, %v3481
    %3483 = vmatprep.mubr.f32.mxu0 0.0
    %3484 = vmatmul.mubr.f32.gmra.mxu0 %v718
    %v3485 = vpop.f32.mrf.mxu0
    %v3486 = vadd.f32 0.0, %v3485
    %v3487 = vpop.f32.mrf.mxu0
    %v3488 = vadd.f32 0.0, %v3487
    %3489 = vmatprep.mubr.f32.mxu0 0.0
    %3490 = vmatmul.mubr.f32.gmra.mxu0 %v723
    %v3491 = vpop.f32.mrf.mxu0
    %v3492 = vadd.f32 0.0, %v3491
    %v3493 = vpop.f32.mrf.mxu0
    %v3494 = vadd.f32 0.0, %v3493
    %3495 = vmatprep.mubr.f32.mxu0 0.0
    %3496 = vmatmul.mubr.f32.gmra.mxu0 %v728
    %v3497 = vpop.f32.mrf.mxu0
    %v3498 = vadd.f32 0.0, %v3497
    %v3499 = vpop.f32.mrf.mxu0
    %v3500 = vadd.f32 0.0, %v3499
    %3501 = vmatprep.mubr.f32.mxu0 0.0
    %3502 = vmatmul.mubr.f32.gmra.mxu0 %v733
    %v3503 = vpop.f32.mrf.mxu0
    %v3504 = vadd.f32 0.0, %v3503
    %v3505 = vpop.f32.mrf.mxu0
    %v3506 = vadd.f32 0.0, %v3505
    %3507 = vdwg.mxu0
    %3508 = vmatprep.subr.mxu0 %v1289
    %3509 = vmatpush1.msra.mxu0 %v1288
    %3510 = vmatprep.subr.mxu0 %v1285
    %3511 = vmatpush1.msra.mxu0 %v1284
    %3512 = vmatprep.subr.mxu0 %v1281
    %3513 = vmatpush1.msra.mxu0 %v1280
    %3514 = vmatprep.subr.mxu0 %v1277
    %3515 = vmatpush1.msra.mxu0 %v1276
    %3516 = vmatprep.subr.mxu0 %v1273
    %3517 = vmatpush1.msra.mxu0 %v1272
    %3518 = vmatprep.subr.mxu0 %v1269
    %3519 = vmatpush1.msra.mxu0 %v1268
    %3520 = vmatprep.subr.mxu0 %v1265
    %3521 = vmatpush1.msra.mxu0 %v1264
    %3522 = vmatprep.subr.mxu0 %v1261
    %3523 = vmatpush1.msra.mxu0 %v1260
    %3524 = vmatprep.subr.mxu0 %v1257
    %3525 = vmatpush1.msra.mxu0 %v1256
    %3526 = vmatprep.subr.mxu0 %v1253
    %3527 = vmatpush1.msra.mxu0 %v1252
    %3528 = vmatprep.subr.mxu0 %v1249
    %3529 = vmatpush1.msra.mxu0 %v1248
    %3530 = vmatprep.subr.mxu0 %v1245
    %3531 = vmatpush1.msra.mxu0 %v1244
    %3532 = vmatprep.subr.mxu0 %v1241
    %3533 = vmatpush1.msra.mxu0 %v1240
    %3534 = vmatprep.subr.mxu0 %v1237
    %3535 = vmatpush1.msra.mxu0 %v1236
    %3536 = vmatprep.subr.mxu0 %v1233
    %3537 = vmatpush1.msra.mxu0 %v1232
    %3538 = vmatprep.subr.mxu0 %v1229
    %3539 = vmatpush1.msra.mxu0 %v1228
    %3540 = vmatprep.subr.mxu0 0.0
    %3541 = vmatpush2.msra.mxu0 0.0
    %3542 = vmatprep.subr.mxu0 0.0
    %3543 = vmatpush2.msra.mxu0 0.0
    %3544 = vmatprep.subr.mxu0 0.0
    %3545 = vmatpush2.msra.mxu0 0.0
    %3546 = vmatprep.subr.mxu0 0.0
    %3547 = vmatpush2.msra.mxu0 0.0
    %3548 = vmatprep.subr.mxu0 0.0
    %3549 = vmatpush2.msra.mxu0 0.0
    %3550 = vmatprep.subr.mxu0 0.0
    %3551 = vmatpush2.msra.mxu0 0.0
    %3552 = vmatprep.subr.mxu0 0.0
    %3553 = vmatpush2.msra.mxu0 0.0
    %3554 = vmatprep.subr.mxu0 0.0
    %3555 = vmatpush2.msra.mxu0 0.0
    %3556 = vmatprep.subr.mxu0 0.0
    %3557 = vmatpush2.msra.mxu0 0.0
    %3558 = vmatprep.subr.mxu0 0.0
    %3559 = vmatpush2.msra.mxu0 0.0
    %3560 = vmatprep.subr.mxu0 0.0
    %3561 = vmatpush2.msra.mxu0 0.0
    %3562 = vmatprep.subr.mxu0 0.0
    %3563 = vmatpush2.msra.mxu0 0.0
    %3564 = vmatprep.subr.mxu0 0.0
    %3565 = vmatpush2.msra.mxu0 0.0
    %3566 = vmatprep.subr.mxu0 0.0
    %3567 = vmatpush2.msra.mxu0 0.0
    %3568 = vmatprep.subr.mxu0 0.0
    %3569 = vmatpush2.msra.mxu0 0.0
    %3570 = vmatprep.subr.mxu0 0.0
    %3571 = vmatpush2.msra.mxu0 0.0
    %3572 = vmatprep.mubr.f32.mxu0 0.0
    %3573 = vmatmul.mubr.f32.gmra.mxu0 %v504
    %v3574 = vpop.f32.mrf.mxu0
    %v3575 = vadd.f32 %v3277, %v3574
    %v3576 = vpop.f32.mrf.mxu0
    %v3577 = vadd.f32 %v3279, %v3576
    %3578 = vmatprep.mubr.f32.mxu0 0.0
    %3579 = vmatmul.mubr.f32.gmra.mxu0 %v509
    %v3580 = vpop.f32.mrf.mxu0
    %v3581 = vadd.f32 %v3283, %v3580
    %v3582 = vpop.f32.mrf.mxu0
    %v3583 = vadd.f32 %v3285, %v3582
    %3584 = vmatprep.mubr.f32.mxu0 0.0
    %3585 = vmatmul.mubr.f32.gmra.mxu0 %v514
    %v3586 = vpop.f32.mrf.mxu0
    %v3587 = vadd.f32 %v3289, %v3586
    %v3588 = vpop.f32.mrf.mxu0
    %v3589 = vadd.f32 %v3291, %v3588
    %3590 = vmatprep.mubr.f32.mxu0 0.0
    %3591 = vmatmul.mubr.f32.gmra.mxu0 %v519
    %v3592 = vpop.f32.mrf.mxu0
    %v3593 = vadd.f32 %v3295, %v3592
    %v3594 = vpop.f32.mrf.mxu0
    %v3595 = vadd.f32 %v3297, %v3594
    %3596 = vmatprep.mubr.f32.mxu0 0.0
    %3597 = vmatmul.mubr.f32.gmra.mxu0 %v524
    %v3598 = vpop.f32.mrf.mxu0
    %v3599 = vadd.f32 %v3301, %v3598
    %v3600 = vpop.f32.mrf.mxu0
    %v3601 = vadd.f32 %v3303, %v3600
    %3602 = vmatprep.mubr.f32.mxu0 0.0
    %3603 = vmatmul.mubr.f32.gmra.mxu0 %v529
    %v3604 = vpop.f32.mrf.mxu0
    %v3605 = vadd.f32 %v3307, %v3604
    %v3606 = vpop.f32.mrf.mxu0
    %v3607 = vadd.f32 %v3309, %v3606
    %3608 = vmatprep.mubr.f32.mxu0 0.0
    %3609 = vmatmul.mubr.f32.gmra.mxu0 %v534
    %v3610 = vpop.f32.mrf.mxu0
    %v3611 = vadd.f32 %v3313, %v3610
    %v3612 = vpop.f32.mrf.mxu0
    %v3613 = vadd.f32 %v3315, %v3612
    %3614 = vmatprep.mubr.f32.mxu0 0.0
    %3615 = vmatmul.mubr.f32.gmra.mxu0 %v539
    %v3616 = vpop.f32.mrf.mxu0
    %v3617 = vadd.f32 %v3319, %v3616
    %v3618 = vpop.f32.mrf.mxu0
    %v3619 = vadd.f32 %v3321, %v3618
    %3620 = vmatprep.mubr.f32.mxu0 0.0
    %3621 = vmatmul.mubr.f32.gmra.mxu0 %v544
    %v3622 = vpop.f32.mrf.mxu0
    %v3623 = vadd.f32 %v3325, %v3622
    %v3624 = vpop.f32.mrf.mxu0
    %v3625 = vadd.f32 %v3327, %v3624
    %3626 = vmatprep.mubr.f32.mxu0 0.0
    %3627 = vmatmul.mubr.f32.gmra.mxu0 %v549
    %v3628 = vpop.f32.mrf.mxu0
    %v3629 = vadd.f32 %v3331, %v3628
    %v3630 = vpop.f32.mrf.mxu0
    %v3631 = vadd.f32 %v3333, %v3630
    %3632 = vmatprep.mubr.f32.mxu0 0.0
    %3633 = vmatmul.mubr.f32.gmra.mxu0 %v554
    %v3634 = vpop.f32.mrf.mxu0
    %v3635 = vadd.f32 %v3337, %v3634
    %v3636 = vpop.f32.mrf.mxu0
    %v3637 = vadd.f32 %v3339, %v3636
    %3638 = vmatprep.mubr.f32.mxu0 0.0
    %3639 = vmatmul.mubr.f32.gmra.mxu0 %v559
    %v3640 = vpop.f32.mrf.mxu0
    %v3641 = vadd.f32 %v3343, %v3640
    %v3642 = vpop.f32.mrf.mxu0
    %v3643 = vadd.f32 %v3345, %v3642
    %3644 = vmatprep.mubr.f32.mxu0 0.0
    %3645 = vmatmul.mubr.f32.gmra.mxu0 %v564
    %v3646 = vpop.f32.mrf.mxu0
    %v3647 = vadd.f32 %v3349, %v3646
    %v3648 = vpop.f32.mrf.mxu0
    %v3649 = vadd.f32 %v3351, %v3648
    %3650 = vmatprep.mubr.f32.mxu0 0.0
    %3651 = vmatmul.mubr.f32.gmra.mxu0 %v569
    %v3652 = vpop.f32.mrf.mxu0
    %v3653 = vadd.f32 %v3355, %v3652
    %v3654 = vpop.f32.mrf.mxu0
    %v3655 = vadd.f32 %v3357, %v3654
    %3656 = vdwg.mxu0
    %3657 = vmatprep.subr.mxu0 %v1291
    %3658 = vmatpush1.msra.mxu0 %v1290
    %3659 = vmatprep.subr.mxu0 %v1287
    %3660 = vmatpush1.msra.mxu0 %v1286
    %3661 = vmatprep.subr.mxu0 %v1283
    %3662 = vmatpush1.msra.mxu0 %v1282
    %3663 = vmatprep.subr.mxu0 %v1279
    %3664 = vmatpush1.msra.mxu0 %v1278
    %3665 = vmatprep.subr.mxu0 %v1275
    %3666 = vmatpush1.msra.mxu0 %v1274
    %3667 = vmatprep.subr.mxu0 %v1271
    %3668 = vmatpush1.msra.mxu0 %v1270
    %3669 = vmatprep.subr.mxu0 %v1267
    %3670 = vmatpush1.msra.mxu0 %v1266
    %3671 = vmatprep.subr.mxu0 %v1263
    %3672 = vmatpush1.msra.mxu0 %v1262
    %3673 = vmatprep.subr.mxu0 %v1259
    %3674 = vmatpush1.msra.mxu0 %v1258
    %3675 = vmatprep.subr.mxu0 %v1255
    %3676 = vmatpush1.msra.mxu0 %v1254
    %3677 = vmatprep.subr.mxu0 %v1251
    %3678 = vmatpush1.msra.mxu0 %v1250
    %3679 = vmatprep.subr.mxu0 %v1247
    %3680 = vmatpush1.msra.mxu0 %v1246
    %3681 = vmatprep.subr.mxu0 %v1243
    %3682 = vmatpush1.msra.mxu0 %v1242
    %3683 = vmatprep.subr.mxu0 %v1239
    %3684 = vmatpush1.msra.mxu0 %v1238
    %3685 = vmatprep.subr.mxu0 %v1235
    %3686 = vmatpush1.msra.mxu0 %v1234
    %3687 = vmatprep.subr.mxu0 %v1231
    %3688 = vmatpush1.msra.mxu0 %v1230
    %3689 = vmatprep.subr.mxu0 0.0
    %3690 = vmatpush2.msra.mxu0 0.0
    %3691 = vmatprep.subr.mxu0 0.0
    %3692 = vmatpush2.msra.mxu0 0.0
    %3693 = vmatprep.subr.mxu0 0.0
    %3694 = vmatpush2.msra.mxu0 0.0
    %3695 = vmatprep.subr.mxu0 0.0
    %3696 = vmatpush2.msra.mxu0 0.0
    %3697 = vmatprep.subr.mxu0 0.0
    %3698 = vmatpush2.msra.mxu0 0.0
    %3699 = vmatprep.subr.mxu0 0.0
    %3700 = vmatpush2.msra.mxu0 0.0
    %3701 = vmatprep.subr.mxu0 0.0
    %3702 = vmatpush2.msra.mxu0 0.0
    %3703 = vmatprep.subr.mxu0 0.0
    %3704 = vmatpush2.msra.mxu0 0.0
    %3705 = vmatprep.subr.mxu0 0.0
    %3706 = vmatpush2.msra.mxu0 0.0
    %3707 = vmatprep.subr.mxu0 0.0
    %3708 = vmatpush2.msra.mxu0 0.0
    %3709 = vmatprep.subr.mxu0 0.0
    %3710 = vmatpush2.msra.mxu0 0.0
    %3711 = vmatprep.subr.mxu0 0.0
    %3712 = vmatpush2.msra.mxu0 0.0
    %3713 = vmatprep.subr.mxu0 0.0
    %3714 = vmatpush2.msra.mxu0 0.0
    %3715 = vmatprep.subr.mxu0 0.0
    %3716 = vmatpush2.msra.mxu0 0.0
    %3717 = vmatprep.subr.mxu0 0.0
    %3718 = vmatpush2.msra.mxu0 0.0
    %3719 = vmatprep.subr.mxu0 0.0
    %3720 = vmatpush2.msra.mxu0 0.0
    %3721 = vmatprep.mubr.f32.mxu0 0.0
    %3722 = vmatmul.mubr.f32.gmra.mxu0 %v504
    %v3723 = vpop.f32.mrf.mxu0
    %v3724 = vadd.f32 %v3426, %v3723
    %v3725 = vpop.f32.mrf.mxu0
    %v3726 = vadd.f32 %v3428, %v3725
    %3727 = vmatprep.mubr.f32.mxu0 0.0
    %3728 = vmatmul.mubr.f32.gmra.mxu0 %v509
    %v3729 = vpop.f32.mrf.mxu0
    %v3730 = vadd.f32 %v3432, %v3729
    %v3731 = vpop.f32.mrf.mxu0
    %v3732 = vadd.f32 %v3434, %v3731
    %3733 = vmatprep.mubr.f32.mxu0 0.0
    %3734 = vmatmul.mubr.f32.gmra.mxu0 %v514
    %v3735 = vpop.f32.mrf.mxu0
    %v3736 = vadd.f32 %v3438, %v3735
    %v3737 = vpop.f32.mrf.mxu0
    %v3738 = vadd.f32 %v3440, %v3737
    %3739 = vmatprep.mubr.f32.mxu0 0.0
    %3740 = vmatmul.mubr.f32.gmra.mxu0 %v519
    %v3741 = vpop.f32.mrf.mxu0
    %v3742 = vadd.f32 %v3444, %v3741
    %v3743 = vpop.f32.mrf.mxu0
    %v3744 = vadd.f32 %v3446, %v3743
    %3745 = vmatprep.mubr.f32.mxu0 0.0
    %3746 = vmatmul.mubr.f32.gmra.mxu0 %v524
    %v3747 = vpop.f32.mrf.mxu0
    %v3748 = vadd.f32 %v3450, %v3747
    %v3749 = vpop.f32.mrf.mxu0
    %v3750 = vadd.f32 %v3452, %v3749
    %3751 = vmatprep.mubr.f32.mxu0 0.0
    %3752 = vmatmul.mubr.f32.gmra.mxu0 %v529
    %v3753 = vpop.f32.mrf.mxu0
    %v3754 = vadd.f32 %v3456, %v3753
    %v3755 = vpop.f32.mrf.mxu0
    %v3756 = vadd.f32 %v3458, %v3755
    %3757 = vmatprep.mubr.f32.mxu0 0.0
    %3758 = vmatmul.mubr.f32.gmra.mxu0 %v534
    %v3759 = vpop.f32.mrf.mxu0
    %v3760 = vadd.f32 %v3462, %v3759
    %v3761 = vpop.f32.mrf.mxu0
    %v3762 = vadd.f32 %v3464, %v3761
    %3763 = vmatprep.mubr.f32.mxu0 0.0
    %3764 = vmatmul.mubr.f32.gmra.mxu0 %v539
    %v3765 = vpop.f32.mrf.mxu0
    %v3766 = vadd.f32 %v3468, %v3765
    %v3767 = vpop.f32.mrf.mxu0
    %v3768 = vadd.f32 %v3470, %v3767
    %3769 = vmatprep.mubr.f32.mxu0 0.0
    %3770 = vmatmul.mubr.f32.gmra.mxu0 %v544
    %v3771 = vpop.f32.mrf.mxu0
    %v3772 = vadd.f32 %v3474, %v3771
    %v3773 = vpop.f32.mrf.mxu0
    %v3774 = vadd.f32 %v3476, %v3773
    %3775 = vmatprep.mubr.f32.mxu0 0.0
    %3776 = vmatmul.mubr.f32.gmra.mxu0 %v549
    %v3777 = vpop.f32.mrf.mxu0
    %v3778 = vadd.f32 %v3480, %v3777
    %v3779 = vpop.f32.mrf.mxu0
    %v3780 = vadd.f32 %v3482, %v3779
    %3781 = vmatprep.mubr.f32.mxu0 0.0
    %3782 = vmatmul.mubr.f32.gmra.mxu0 %v554
    %v3783 = vpop.f32.mrf.mxu0
    %v3784 = vadd.f32 %v3486, %v3783
    %v3785 = vpop.f32.mrf.mxu0
    %v3786 = vadd.f32 %v3488, %v3785
    %3787 = vmatprep.mubr.f32.mxu0 0.0
    %3788 = vmatmul.mubr.f32.gmra.mxu0 %v559
    %v3789 = vpop.f32.mrf.mxu0
    %v3790 = vadd.f32 %v3492, %v3789
    %v3791 = vpop.f32.mrf.mxu0
    %v3792 = vadd.f32 %v3494, %v3791
    %3793 = vmatprep.mubr.f32.mxu0 0.0
    %3794 = vmatmul.mubr.f32.gmra.mxu0 %v564
    %v3795 = vpop.f32.mrf.mxu0
    %v3796 = vadd.f32 %v3498, %v3795
    %v3797 = vpop.f32.mrf.mxu0
    %v3798 = vadd.f32 %v3500, %v3797
    %3799 = vmatprep.mubr.f32.mxu0 0.0
    %3800 = vmatmul.mubr.f32.gmra.mxu0 %v569
    %v3801 = vpop.f32.mrf.mxu0
    %v3802 = vadd.f32 %v3504, %v3801
    %v3803 = vpop.f32.mrf.mxu0
    %v3804 = vadd.f32 %v3506, %v3803
    %3805 = vdwg.mxu0
    %3806 = vmatprep.subr.mxu0 %v2015
    %3807 = vmatpush1.msra.mxu0 %v2014
    %3808 = vmatprep.subr.mxu0 %v2011
    %3809 = vmatpush1.msra.mxu0 %v2010
    %3810 = vmatprep.subr.mxu0 %v2007
    %3811 = vmatpush1.msra.mxu0 %v2006
    %3812 = vmatprep.subr.mxu0 %v2003
    %3813 = vmatpush1.msra.mxu0 %v2002
    %3814 = vmatprep.subr.mxu0 %v1999
    %3815 = vmatpush1.msra.mxu0 %v1998
    %3816 = vmatprep.subr.mxu0 %v1995
    %3817 = vmatpush1.msra.mxu0 %v1994
    %3818 = vmatprep.subr.mxu0 %v1991
    %3819 = vmatpush1.msra.mxu0 %v1990
    %3820 = vmatprep.subr.mxu0 %v1987
    %3821 = vmatpush1.msra.mxu0 %v1986
    %3822 = vmatprep.subr.mxu0 %v1983
    %3823 = vmatpush1.msra.mxu0 %v1982
    %3824 = vmatprep.subr.mxu0 %v1979
    %3825 = vmatpush1.msra.mxu0 %v1978
    %3826 = vmatprep.subr.mxu0 %v1975
    %3827 = vmatpush1.msra.mxu0 %v1974
    %3828 = vmatprep.subr.mxu0 %v1971
    %3829 = vmatpush1.msra.mxu0 %v1970
    %3830 = vmatprep.subr.mxu0 %v1967
    %3831 = vmatpush1.msra.mxu0 %v1966
    %3832 = vmatprep.subr.mxu0 %v1963
    %3833 = vmatpush1.msra.mxu0 %v1962
    %3834 = vmatprep.subr.mxu0 %v1959
    %3835 = vmatpush1.msra.mxu0 %v1958
    %3836 = vmatprep.subr.mxu0 %v1955
    %3837 = vmatpush1.msra.mxu0 %v1954
    %3838 = vmatprep.subr.mxu0 0.0
    %3839 = vmatpush2.msra.mxu0 0.0
    %3840 = vmatprep.subr.mxu0 0.0
    %3841 = vmatpush2.msra.mxu0 0.0
    %3842 = vmatprep.subr.mxu0 0.0
    %3843 = vmatpush2.msra.mxu0 0.0
    %3844 = vmatprep.subr.mxu0 0.0
    %3845 = vmatpush2.msra.mxu0 0.0
    %3846 = vmatprep.subr.mxu0 0.0
    %3847 = vmatpush2.msra.mxu0 0.0
    %3848 = vmatprep.subr.mxu0 0.0
    %3849 = vmatpush2.msra.mxu0 0.0
    %3850 = vmatprep.subr.mxu0 0.0
    %3851 = vmatpush2.msra.mxu0 0.0
    %3852 = vmatprep.subr.mxu0 0.0
    %3853 = vmatpush2.msra.mxu0 0.0
    %3854 = vmatprep.subr.mxu0 0.0
    %3855 = vmatpush2.msra.mxu0 0.0
    %3856 = vmatprep.subr.mxu0 0.0
    %3857 = vmatpush2.msra.mxu0 0.0
    %3858 = vmatprep.subr.mxu0 0.0
    %3859 = vmatpush2.msra.mxu0 0.0
    %3860 = vmatprep.subr.mxu0 0.0
    %3861 = vmatpush2.msra.mxu0 0.0
    %3862 = vmatprep.subr.mxu0 0.0
    %3863 = vmatpush2.msra.mxu0 0.0
    %3864 = vmatprep.subr.mxu0 0.0
    %3865 = vmatpush2.msra.mxu0 0.0
    %3866 = vmatprep.subr.mxu0 0.0
    %3867 = vmatpush2.msra.mxu0 0.0
    %3868 = vmatprep.subr.mxu0 0.0
    %3869 = vmatpush2.msra.mxu0 0.0
    %3870 = vmatprep.mubr.f32.mxu0 0.0
    %3871 = vmatmul.mubr.f32.gmra.mxu0 %v832
    %v3872 = vpop.f32.mrf.mxu0
    %v3873 = vadd.f32 0.0, %v3872
    %v3874 = vpop.f32.mrf.mxu0
    %v3875 = vadd.f32 0.0, %v3874
    %3876 = vmatprep.mubr.f32.mxu0 0.0
    %3877 = vmatmul.mubr.f32.gmra.mxu0 %v837
    %v3878 = vpop.f32.mrf.mxu0
    %v3879 = vadd.f32 0.0, %v3878
    %v3880 = vpop.f32.mrf.mxu0
    %v3881 = vadd.f32 0.0, %v3880
    %3882 = vmatprep.mubr.f32.mxu0 0.0
    %3883 = vmatmul.mubr.f32.gmra.mxu0 %v842
    %v3884 = vpop.f32.mrf.mxu0
    %v3885 = vadd.f32 0.0, %v3884
    %v3886 = vpop.f32.mrf.mxu0
    %v3887 = vadd.f32 0.0, %v3886
    %3888 = vmatprep.mubr.f32.mxu0 0.0
    %3889 = vmatmul.mubr.f32.gmra.mxu0 %v847
    %v3890 = vpop.f32.mrf.mxu0
    %v3891 = vadd.f32 0.0, %v3890
    %v3892 = vpop.f32.mrf.mxu0
    %v3893 = vadd.f32 0.0, %v3892
    %3894 = vmatprep.mubr.f32.mxu0 0.0
    %3895 = vmatmul.mubr.f32.gmra.mxu0 %v852
    %v3896 = vpop.f32.mrf.mxu0
    %v3897 = vadd.f32 0.0, %v3896
    %v3898 = vpop.f32.mrf.mxu0
    %v3899 = vadd.f32 0.0, %v3898
    %3900 = vmatprep.mubr.f32.mxu0 0.0
    %3901 = vmatmul.mubr.f32.gmra.mxu0 %v857
    %v3902 = vpop.f32.mrf.mxu0
    %v3903 = vadd.f32 0.0, %v3902
    %v3904 = vpop.f32.mrf.mxu0
    %v3905 = vadd.f32 0.0, %v3904
    %3906 = vmatprep.mubr.f32.mxu0 0.0
    %3907 = vmatmul.mubr.f32.gmra.mxu0 %v862
    %v3908 = vpop.f32.mrf.mxu0
    %v3909 = vadd.f32 0.0, %v3908
    %v3910 = vpop.f32.mrf.mxu0
    %v3911 = vadd.f32 0.0, %v3910
    %3912 = vmatprep.mubr.f32.mxu0 0.0
    %3913 = vmatmul.mubr.f32.gmra.mxu0 %v867
    %v3914 = vpop.f32.mrf.mxu0
    %v3915 = vadd.f32 0.0, %v3914
    %v3916 = vpop.f32.mrf.mxu0
    %v3917 = vadd.f32 0.0, %v3916
    %3918 = vmatprep.mubr.f32.mxu0 0.0
    %3919 = vmatmul.mubr.f32.gmra.mxu0 %v872
    %v3920 = vpop.f32.mrf.mxu0
    %v3921 = vadd.f32 0.0, %v3920
    %v3922 = vpop.f32.mrf.mxu0
    %v3923 = vadd.f32 0.0, %v3922
    %3924 = vmatprep.mubr.f32.mxu0 0.0
    %3925 = vmatmul.mubr.f32.gmra.mxu0 %v877
    %v3926 = vpop.f32.mrf.mxu0
    %v3927 = vadd.f32 0.0, %v3926
    %v3928 = vpop.f32.mrf.mxu0
    %v3929 = vadd.f32 0.0, %v3928
    %3930 = vmatprep.mubr.f32.mxu0 0.0
    %3931 = vmatmul.mubr.f32.gmra.mxu0 %v882
    %v3932 = vpop.f32.mrf.mxu0
    %v3933 = vadd.f32 0.0, %v3932
    %v3934 = vpop.f32.mrf.mxu0
    %v3935 = vadd.f32 0.0, %v3934
    %3936 = vmatprep.mubr.f32.mxu0 0.0
    %3937 = vmatmul.mubr.f32.gmra.mxu0 %v887
    %v3938 = vpop.f32.mrf.mxu0
    %v3939 = vadd.f32 0.0, %v3938
    %v3940 = vpop.f32.mrf.mxu0
    %v3941 = vadd.f32 0.0, %v3940
    %3942 = vmatprep.mubr.f32.mxu0 0.0
    %3943 = vmatmul.mubr.f32.gmra.mxu0 %v892
    %v3944 = vpop.f32.mrf.mxu0
    %v3945 = vadd.f32 0.0, %v3944
    %v3946 = vpop.f32.mrf.mxu0
    %v3947 = vadd.f32 0.0, %v3946
    %3948 = vmatprep.mubr.f32.mxu0 0.0
    %3949 = vmatmul.mubr.f32.gmra.mxu0 %v897
    %v3950 = vpop.f32.mrf.mxu0
    %v3951 = vadd.f32 0.0, %v3950
    %v3952 = vpop.f32.mrf.mxu0
    %v3953 = vadd.f32 0.0, %v3952
    %3954 = vdwg.mxu0
    %3955 = vmatprep.subr.mxu0 %v2017
    %3956 = vmatpush1.msra.mxu0 %v2016
    %3957 = vmatprep.subr.mxu0 %v2013
    %3958 = vmatpush1.msra.mxu0 %v2012
    %3959 = vmatprep.subr.mxu0 %v2009
    %3960 = vmatpush1.msra.mxu0 %v2008
    %3961 = vmatprep.subr.mxu0 %v2005
    %3962 = vmatpush1.msra.mxu0 %v2004
    %3963 = vmatprep.subr.mxu0 %v2001
    %3964 = vmatpush1.msra.mxu0 %v2000
    %3965 = vmatprep.subr.mxu0 %v1997
    %3966 = vmatpush1.msra.mxu0 %v1996
    %3967 = vmatprep.subr.mxu0 %v1993
    %3968 = vmatpush1.msra.mxu0 %v1992
    %3969 = vmatprep.subr.mxu0 %v1989
    %3970 = vmatpush1.msra.mxu0 %v1988
    %3971 = vmatprep.subr.mxu0 %v1985
    %3972 = vmatpush1.msra.mxu0 %v1984
    %3973 = vmatprep.subr.mxu0 %v1981
    %3974 = vmatpush1.msra.mxu0 %v1980
    %3975 = vmatprep.subr.mxu0 %v1977
    %3976 = vmatpush1.msra.mxu0 %v1976
    %3977 = vmatprep.subr.mxu0 %v1973
    %3978 = vmatpush1.msra.mxu0 %v1972
    %3979 = vmatprep.subr.mxu0 %v1969
    %3980 = vmatpush1.msra.mxu0 %v1968
    %3981 = vmatprep.subr.mxu0 %v1965
    %3982 = vmatpush1.msra.mxu0 %v1964
    %3983 = vmatprep.subr.mxu0 %v1961
    %3984 = vmatpush1.msra.mxu0 %v1960
    %3985 = vmatprep.subr.mxu0 %v1957
    %3986 = vmatpush1.msra.mxu0 %v1956
    %3987 = vmatprep.subr.mxu0 0.0
    %3988 = vmatpush2.msra.mxu0 0.0
    %3989 = vmatprep.subr.mxu0 0.0
    %3990 = vmatpush2.msra.mxu0 0.0
    %3991 = vmatprep.subr.mxu0 0.0
    %3992 = vmatpush2.msra.mxu0 0.0
    %3993 = vmatprep.subr.mxu0 0.0
    %3994 = vmatpush2.msra.mxu0 0.0
    %3995 = vmatprep.subr.mxu0 0.0
    %3996 = vmatpush2.msra.mxu0 0.0
    %3997 = vmatprep.subr.mxu0 0.0
    %3998 = vmatpush2.msra.mxu0 0.0
    %3999 = vmatprep.subr.mxu0 0.0
    %4000 = vmatpush2.msra.mxu0 0.0
    %4001 = vmatprep.subr.mxu0 0.0
    %4002 = vmatpush2.msra.mxu0 0.0
    %4003 = vmatprep.subr.mxu0 0.0
    %4004 = vmatpush2.msra.mxu0 0.0
    %4005 = vmatprep.subr.mxu0 0.0
    %4006 = vmatpush2.msra.mxu0 0.0
    %4007 = vmatprep.subr.mxu0 0.0
    %4008 = vmatpush2.msra.mxu0 0.0
    %4009 = vmatprep.subr.mxu0 0.0
    %4010 = vmatpush2.msra.mxu0 0.0
    %4011 = vmatprep.subr.mxu0 0.0
    %4012 = vmatpush2.msra.mxu0 0.0
    %4013 = vmatprep.subr.mxu0 0.0
    %4014 = vmatpush2.msra.mxu0 0.0
    %4015 = vmatprep.subr.mxu0 0.0
    %4016 = vmatpush2.msra.mxu0 0.0
    %4017 = vmatprep.subr.mxu0 0.0
    %4018 = vmatpush2.msra.mxu0 0.0
    %4019 = vmatprep.mubr.f32.mxu0 0.0
    %4020 = vmatmul.mubr.f32.gmra.mxu0 %v832
    %v4021 = vpop.f32.mrf.mxu0
    %v4022 = vadd.f32 0.0, %v4021
    %v4023 = vpop.f32.mrf.mxu0
    %v4024 = vadd.f32 0.0, %v4023
    %4025 = vmatprep.mubr.f32.mxu0 0.0
    %4026 = vmatmul.mubr.f32.gmra.mxu0 %v837
    %v4027 = vpop.f32.mrf.mxu0
    %v4028 = vadd.f32 0.0, %v4027
    %v4029 = vpop.f32.mrf.mxu0
    %v4030 = vadd.f32 0.0, %v4029
    %4031 = vmatprep.mubr.f32.mxu0 0.0
    %4032 = vmatmul.mubr.f32.gmra.mxu0 %v842
    %v4033 = vpop.f32.mrf.mxu0
    %v4034 = vadd.f32 0.0, %v4033
    %v4035 = vpop.f32.mrf.mxu0
    %v4036 = vadd.f32 0.0, %v4035
    %4037 = vmatprep.mubr.f32.mxu0 0.0
    %4038 = vmatmul.mubr.f32.gmra.mxu0 %v847
    %v4039 = vpop.f32.mrf.mxu0
    %v4040 = vadd.f32 0.0, %v4039
    %v4041 = vpop.f32.mrf.mxu0
    %v4042 = vadd.f32 0.0, %v4041
    %4043 = vmatprep.mubr.f32.mxu0 0.0
    %4044 = vmatmul.mubr.f32.gmra.mxu0 %v852
    %v4045 = vpop.f32.mrf.mxu0
    %v4046 = vadd.f32 0.0, %v4045
    %v4047 = vpop.f32.mrf.mxu0
    %v4048 = vadd.f32 0.0, %v4047
    %4049 = vmatprep.mubr.f32.mxu0 0.0
    %4050 = vmatmul.mubr.f32.gmra.mxu0 %v857
    %v4051 = vpop.f32.mrf.mxu0
    %v4052 = vadd.f32 0.0, %v4051
    %v4053 = vpop.f32.mrf.mxu0
    %v4054 = vadd.f32 0.0, %v4053
    %4055 = vmatprep.mubr.f32.mxu0 0.0
    %4056 = vmatmul.mubr.f32.gmra.mxu0 %v862
    %v4057 = vpop.f32.mrf.mxu0
    %v4058 = vadd.f32 0.0, %v4057
    %v4059 = vpop.f32.mrf.mxu0
    %v4060 = vadd.f32 0.0, %v4059
    %4061 = vmatprep.mubr.f32.mxu0 0.0
    %4062 = vmatmul.mubr.f32.gmra.mxu0 %v867
    %v4063 = vpop.f32.mrf.mxu0
    %v4064 = vadd.f32 0.0, %v4063
    %v4065 = vpop.f32.mrf.mxu0
    %v4066 = vadd.f32 0.0, %v4065
    %4067 = vmatprep.mubr.f32.mxu0 0.0
    %4068 = vmatmul.mubr.f32.gmra.mxu0 %v872
    %v4069 = vpop.f32.mrf.mxu0
    %v4070 = vadd.f32 0.0, %v4069
    %v4071 = vpop.f32.mrf.mxu0
    %v4072 = vadd.f32 0.0, %v4071
    %4073 = vmatprep.mubr.f32.mxu0 0.0
    %4074 = vmatmul.mubr.f32.gmra.mxu0 %v877
    %v4075 = vpop.f32.mrf.mxu0
    %v4076 = vadd.f32 0.0, %v4075
    %v4077 = vpop.f32.mrf.mxu0
    %v4078 = vadd.f32 0.0, %v4077
    %4079 = vmatprep.mubr.f32.mxu0 0.0
    %4080 = vmatmul.mubr.f32.gmra.mxu0 %v882
    %v4081 = vpop.f32.mrf.mxu0
    %v4082 = vadd.f32 0.0, %v4081
    %v4083 = vpop.f32.mrf.mxu0
    %v4084 = vadd.f32 0.0, %v4083
    %4085 = vmatprep.mubr.f32.mxu0 0.0
    %4086 = vmatmul.mubr.f32.gmra.mxu0 %v887
    %v4087 = vpop.f32.mrf.mxu0
    %v4088 = vadd.f32 0.0, %v4087
    %v4089 = vpop.f32.mrf.mxu0
    %v4090 = vadd.f32 0.0, %v4089
    %4091 = vmatprep.mubr.f32.mxu0 0.0
    %4092 = vmatmul.mubr.f32.gmra.mxu0 %v892
    %v4093 = vpop.f32.mrf.mxu0
    %v4094 = vadd.f32 0.0, %v4093
    %v4095 = vpop.f32.mrf.mxu0
    %v4096 = vadd.f32 0.0, %v4095
    %4097 = vmatprep.mubr.f32.mxu0 0.0
    %4098 = vmatmul.mubr.f32.gmra.mxu0 %v897
    %v4099 = vpop.f32.mrf.mxu0
    %v4100 = vadd.f32 0.0, %v4099
    %v4101 = vpop.f32.mrf.mxu0
    %v4102 = vadd.f32 0.0, %v4101
    %4103 = vdwg.mxu0
    %v4104 = vadd.f32 %v3575, %v3873
    %v4105 = vadd.f32 %v3577, %v3875
    %v4106 = vadd.f32 %v3724, %v4022
    %v4107 = vadd.f32 %v3726, %v4024
    %v4108 = vadd.f32 %v3581, %v3879
    %v4109 = vadd.f32 %v3583, %v3881
    %v4110 = vadd.f32 %v3730, %v4028
    %v4111 = vadd.f32 %v3732, %v4030
    %v4112 = vadd.f32 %v3587, %v3885
    %v4113 = vadd.f32 %v3589, %v3887
    %v4114 = vadd.f32 %v3736, %v4034
    %v4115 = vadd.f32 %v3738, %v4036
    %v4116 = vadd.f32 %v3593, %v3891
    %v4117 = vadd.f32 %v3595, %v3893
    %v4118 = vadd.f32 %v3742, %v4040
    %v4119 = vadd.f32 %v3744, %v4042
    %v4120 = vadd.f32 %v3599, %v3897
    %v4121 = vadd.f32 %v3601, %v3899
    %v4122 = vadd.f32 %v3748, %v4046
    %v4123 = vadd.f32 %v3750, %v4048
    %v4124 = vadd.f32 %v3605, %v3903
    %v4125 = vadd.f32 %v3607, %v3905
    %v4126 = vadd.f32 %v3754, %v4052
    %v4127 = vadd.f32 %v3756, %v4054
    %v4128 = vadd.f32 %v3611, %v3909
    %v4129 = vadd.f32 %v3613, %v3911
    %v4130 = vadd.f32 %v3760, %v4058
    %v4131 = vadd.f32 %v3762, %v4060
    %v4132 = vadd.f32 %v3617, %v3915
    %v4133 = vadd.f32 %v3619, %v3917
    %v4134 = vadd.f32 %v3766, %v4064
    %v4135 = vadd.f32 %v3768, %v4066
    %v4136 = vadd.f32 %v3623, %v3921
    %v4137 = vadd.f32 %v3625, %v3923
    %v4138 = vadd.f32 %v3772, %v4070
    %v4139 = vadd.f32 %v3774, %v4072
    %v4140 = vadd.f32 %v3629, %v3927
    %v4141 = vadd.f32 %v3631, %v3929
    %v4142 = vadd.f32 %v3778, %v4076
    %v4143 = vadd.f32 %v3780, %v4078
    %v4144 = vadd.f32 %v3635, %v3933
    %v4145 = vadd.f32 %v3637, %v3935
    %v4146 = vadd.f32 %v3784, %v4082
    %v4147 = vadd.f32 %v3786, %v4084
    %v4148 = vadd.f32 %v3641, %v3939
    %v4149 = vadd.f32 %v3643, %v3941
    %v4150 = vadd.f32 %v3790, %v4088
    %v4151 = vadd.f32 %v3792, %v4090
    %v4152 = vadd.f32 %v3647, %v3945
    %v4153 = vadd.f32 %v3649, %v3947
    %v4154 = vadd.f32 %v3796, %v4094
    %v4155 = vadd.f32 %v3798, %v4096
    %v4156 = vadd.f32 %v3653, %v3951
    %v4157 = vadd.f32 %v3655, %v3953
    %v4158 = vadd.f32 %v3802, %v4100
    %v4159 = vadd.f32 %v3804, %v4102
    %4160 = vmatprep.subr.mxu0 %v2434
    %4161 = vmatpush1.msra.mxu0 %v2433
    %4162 = vmatprep.subr.mxu0 %v2430
    %4163 = vmatpush1.msra.mxu0 %v2429
    %4164 = vmatprep.subr.mxu0 %v2426
    %4165 = vmatpush1.msra.mxu0 %v2425
    %4166 = vmatprep.subr.mxu0 %v2422
    %4167 = vmatpush1.msra.mxu0 %v2421
    %4168 = vmatprep.subr.mxu0 %v2418
    %4169 = vmatpush1.msra.mxu0 %v2417
    %4170 = vmatprep.subr.mxu0 %v2414
    %4171 = vmatpush1.msra.mxu0 %v2413
    %4172 = vmatprep.subr.mxu0 %v2410
    %4173 = vmatpush1.msra.mxu0 %v2409
    %4174 = vmatprep.subr.mxu0 %v2406
    %4175 = vmatpush1.msra.mxu0 %v2405
    %4176 = vmatprep.subr.mxu0 %v2402
    %4177 = vmatpush1.msra.mxu0 %v2401
    %4178 = vmatprep.subr.mxu0 %v2398
    %4179 = vmatpush1.msra.mxu0 %v2397
    %4180 = vmatprep.subr.mxu0 %v2394
    %4181 = vmatpush1.msra.mxu0 %v2393
    %4182 = vmatprep.subr.mxu0 %v2390
    %4183 = vmatpush1.msra.mxu0 %v2389
    %4184 = vmatprep.subr.mxu0 %v2386
    %4185 = vmatpush1.msra.mxu0 %v2385
    %4186 = vmatprep.subr.mxu0 %v2382
    %4187 = vmatpush1.msra.mxu0 %v2381
    %4188 = vmatprep.subr.mxu0 %v2378
    %4189 = vmatpush1.msra.mxu0 %v2377
    %4190 = vmatprep.subr.mxu0 %v2374
    %4191 = vmatpush1.msra.mxu0 %v2373
    %4192 = vmatprep.subr.mxu0 0.0
    %4193 = vmatpush2.msra.mxu0 0.0
    %4194 = vmatprep.subr.mxu0 0.0
    %4195 = vmatpush2.msra.mxu0 0.0
    %4196 = vmatprep.subr.mxu0 0.0
    %4197 = vmatpush2.msra.mxu0 0.0
    %4198 = vmatprep.subr.mxu0 0.0
    %4199 = vmatpush2.msra.mxu0 0.0
    %4200 = vmatprep.subr.mxu0 0.0
    %4201 = vmatpush2.msra.mxu0 0.0
    %4202 = vmatprep.subr.mxu0 0.0
    %4203 = vmatpush2.msra.mxu0 0.0
    %4204 = vmatprep.subr.mxu0 0.0
    %4205 = vmatpush2.msra.mxu0 0.0
    %4206 = vmatprep.subr.mxu0 0.0
    %4207 = vmatpush2.msra.mxu0 0.0
    %4208 = vmatprep.subr.mxu0 0.0
    %4209 = vmatpush2.msra.mxu0 0.0
    %4210 = vmatprep.subr.mxu0 0.0
    %4211 = vmatpush2.msra.mxu0 0.0
    %4212 = vmatprep.subr.mxu0 0.0
    %4213 = vmatpush2.msra.mxu0 0.0
    %4214 = vmatprep.subr.mxu0 0.0
    %4215 = vmatpush2.msra.mxu0 0.0
    %4216 = vmatprep.subr.mxu0 0.0
    %4217 = vmatpush2.msra.mxu0 0.0
    %4218 = vmatprep.subr.mxu0 0.0
    %4219 = vmatpush2.msra.mxu0 0.0
    %4220 = vmatprep.subr.mxu0 0.0
    %4221 = vmatpush2.msra.mxu0 0.0
    %4222 = vmatprep.subr.mxu0 0.0
    %4223 = vmatpush2.msra.mxu0 0.0
    %4224 = vmatprep.mubr.f32.mxu0 0.0
    %4225 = vmatmul.mubr.f32.gmra.mxu0 %v996
    %v4226 = vpop.f32.mrf.mxu0
    %v4227 = vadd.f32 0.0, %v4226
    %v4228 = vpop.f32.mrf.mxu0
    %v4229 = vadd.f32 0.0, %v4228
    %4230 = vmatprep.mubr.f32.mxu0 0.0
    %4231 = vmatmul.mubr.f32.gmra.mxu0 %v1001
    %v4232 = vpop.f32.mrf.mxu0
    %v4233 = vadd.f32 0.0, %v4232
    %v4234 = vpop.f32.mrf.mxu0
    %v4235 = vadd.f32 0.0, %v4234
    %4236 = vmatprep.mubr.f32.mxu0 0.0
    %4237 = vmatmul.mubr.f32.gmra.mxu0 %v1006
    %v4238 = vpop.f32.mrf.mxu0
    %v4239 = vadd.f32 0.0, %v4238
    %v4240 = vpop.f32.mrf.mxu0
    %v4241 = vadd.f32 0.0, %v4240
    %4242 = vmatprep.mubr.f32.mxu0 0.0
    %4243 = vmatmul.mubr.f32.gmra.mxu0 %v1011
    %v4244 = vpop.f32.mrf.mxu0
    %v4245 = vadd.f32 0.0, %v4244
    %v4246 = vpop.f32.mrf.mxu0
    %v4247 = vadd.f32 0.0, %v4246
    %4248 = vmatprep.mubr.f32.mxu0 0.0
    %4249 = vmatmul.mubr.f32.gmra.mxu0 %v1016
    %v4250 = vpop.f32.mrf.mxu0
    %v4251 = vadd.f32 0.0, %v4250
    %v4252 = vpop.f32.mrf.mxu0
    %v4253 = vadd.f32 0.0, %v4252
    %4254 = vmatprep.mubr.f32.mxu0 0.0
    %4255 = vmatmul.mubr.f32.gmra.mxu0 %v1021
    %v4256 = vpop.f32.mrf.mxu0
    %v4257 = vadd.f32 0.0, %v4256
    %v4258 = vpop.f32.mrf.mxu0
    %v4259 = vadd.f32 0.0, %v4258
    %4260 = vmatprep.mubr.f32.mxu0 0.0
    %4261 = vmatmul.mubr.f32.gmra.mxu0 %v1026
    %v4262 = vpop.f32.mrf.mxu0
    %v4263 = vadd.f32 0.0, %v4262
    %v4264 = vpop.f32.mrf.mxu0
    %v4265 = vadd.f32 0.0, %v4264
    %4266 = vmatprep.mubr.f32.mxu0 0.0
    %4267 = vmatmul.mubr.f32.gmra.mxu0 %v1031
    %v4268 = vpop.f32.mrf.mxu0
    %v4269 = vadd.f32 0.0, %v4268
    %v4270 = vpop.f32.mrf.mxu0
    %v4271 = vadd.f32 0.0, %v4270
    %4272 = vmatprep.mubr.f32.mxu0 0.0
    %4273 = vmatmul.mubr.f32.gmra.mxu0 %v1036
    %v4274 = vpop.f32.mrf.mxu0
    %v4275 = vadd.f32 0.0, %v4274
    %v4276 = vpop.f32.mrf.mxu0
    %v4277 = vadd.f32 0.0, %v4276
    %4278 = vmatprep.mubr.f32.mxu0 0.0
    %4279 = vmatmul.mubr.f32.gmra.mxu0 %v1041
    %v4280 = vpop.f32.mrf.mxu0
    %v4281 = vadd.f32 0.0, %v4280
    %v4282 = vpop.f32.mrf.mxu0
    %v4283 = vadd.f32 0.0, %v4282
    %4284 = vmatprep.mubr.f32.mxu0 0.0
    %4285 = vmatmul.mubr.f32.gmra.mxu0 %v1046
    %v4286 = vpop.f32.mrf.mxu0
    %v4287 = vadd.f32 0.0, %v4286
    %v4288 = vpop.f32.mrf.mxu0
    %v4289 = vadd.f32 0.0, %v4288
    %4290 = vmatprep.mubr.f32.mxu0 0.0
    %4291 = vmatmul.mubr.f32.gmra.mxu0 %v1051
    %v4292 = vpop.f32.mrf.mxu0
    %v4293 = vadd.f32 0.0, %v4292
    %v4294 = vpop.f32.mrf.mxu0
    %v4295 = vadd.f32 0.0, %v4294
    %4296 = vmatprep.mubr.f32.mxu0 0.0
    %4297 = vmatmul.mubr.f32.gmra.mxu0 %v1056
    %v4298 = vpop.f32.mrf.mxu0
    %v4299 = vadd.f32 0.0, %v4298
    %v4300 = vpop.f32.mrf.mxu0
    %v4301 = vadd.f32 0.0, %v4300
    %4302 = vmatprep.mubr.f32.mxu0 0.0
    %4303 = vmatmul.mubr.f32.gmra.mxu0 %v1061
    %v4304 = vpop.f32.mrf.mxu0
    %v4305 = vadd.f32 0.0, %v4304
    %v4306 = vpop.f32.mrf.mxu0
    %v4307 = vadd.f32 0.0, %v4306
    %4308 = vdwg.mxu0
    %4309 = vmatprep.subr.mxu0 %v2436
    %4310 = vmatpush1.msra.mxu0 %v2435
    %4311 = vmatprep.subr.mxu0 %v2432
    %4312 = vmatpush1.msra.mxu0 %v2431
    %4313 = vmatprep.subr.mxu0 %v2428
    %4314 = vmatpush1.msra.mxu0 %v2427
    %4315 = vmatprep.subr.mxu0 %v2424
    %4316 = vmatpush1.msra.mxu0 %v2423
    %4317 = vmatprep.subr.mxu0 %v2420
    %4318 = vmatpush1.msra.mxu0 %v2419
    %4319 = vmatprep.subr.mxu0 %v2416
    %4320 = vmatpush1.msra.mxu0 %v2415
    %4321 = vmatprep.subr.mxu0 %v2412
    %4322 = vmatpush1.msra.mxu0 %v2411
    %4323 = vmatprep.subr.mxu0 %v2408
    %4324 = vmatpush1.msra.mxu0 %v2407
    %4325 = vmatprep.subr.mxu0 %v2404
    %4326 = vmatpush1.msra.mxu0 %v2403
    %4327 = vmatprep.subr.mxu0 %v2400
    %4328 = vmatpush1.msra.mxu0 %v2399
    %4329 = vmatprep.subr.mxu0 %v2396
    %4330 = vmatpush1.msra.mxu0 %v2395
    %4331 = vmatprep.subr.mxu0 %v2392
    %4332 = vmatpush1.msra.mxu0 %v2391
    %4333 = vmatprep.subr.mxu0 %v2388
    %4334 = vmatpush1.msra.mxu0 %v2387
    %4335 = vmatprep.subr.mxu0 %v2384
    %4336 = vmatpush1.msra.mxu0 %v2383
    %4337 = vmatprep.subr.mxu0 %v2380
    %4338 = vmatpush1.msra.mxu0 %v2379
    %4339 = vmatprep.subr.mxu0 %v2376
    %4340 = vmatpush1.msra.mxu0 %v2375
    %4341 = vmatprep.subr.mxu0 0.0
    %4342 = vmatpush2.msra.mxu0 0.0
    %4343 = vmatprep.subr.mxu0 0.0
    %4344 = vmatpush2.msra.mxu0 0.0
    %4345 = vmatprep.subr.mxu0 0.0
    %4346 = vmatpush2.msra.mxu0 0.0
    %4347 = vmatprep.subr.mxu0 0.0
    %4348 = vmatpush2.msra.mxu0 0.0
    %4349 = vmatprep.subr.mxu0 0.0
    %4350 = vmatpush2.msra.mxu0 0.0
    %4351 = vmatprep.subr.mxu0 0.0
    %4352 = vmatpush2.msra.mxu0 0.0
    %4353 = vmatprep.subr.mxu0 0.0
    %4354 = vmatpush2.msra.mxu0 0.0
    %4355 = vmatprep.subr.mxu0 0.0
    %4356 = vmatpush2.msra.mxu0 0.0
    %4357 = vmatprep.subr.mxu0 0.0
    %4358 = vmatpush2.msra.mxu0 0.0
    %4359 = vmatprep.subr.mxu0 0.0
    %4360 = vmatpush2.msra.mxu0 0.0
    %4361 = vmatprep.subr.mxu0 0.0
    %4362 = vmatpush2.msra.mxu0 0.0
    %4363 = vmatprep.subr.mxu0 0.0
    %4364 = vmatpush2.msra.mxu0 0.0
    %4365 = vmatprep.subr.mxu0 0.0
    %4366 = vmatpush2.msra.mxu0 0.0
    %4367 = vmatprep.subr.mxu0 0.0
    %4368 = vmatpush2.msra.mxu0 0.0
    %4369 = vmatprep.subr.mxu0 0.0
    %4370 = vmatpush2.msra.mxu0 0.0
    %4371 = vmatprep.subr.mxu0 0.0
    %4372 = vmatpush2.msra.mxu0 0.0
    %4373 = vmatprep.mubr.f32.mxu0 0.0
    %4374 = vmatmul.mubr.f32.gmra.mxu0 %v996
    %v4375 = vpop.f32.mrf.mxu0
    %v4376 = vadd.f32 0.0, %v4375
    %v4377 = vpop.f32.mrf.mxu0
    %v4378 = vadd.f32 0.0, %v4377
    %4379 = vmatprep.mubr.f32.mxu0 0.0
    %4380 = vmatmul.mubr.f32.gmra.mxu0 %v1001
    %v4381 = vpop.f32.mrf.mxu0
    %v4382 = vadd.f32 0.0, %v4381
    %v4383 = vpop.f32.mrf.mxu0
    %v4384 = vadd.f32 0.0, %v4383
    %4385 = vmatprep.mubr.f32.mxu0 0.0
    %4386 = vmatmul.mubr.f32.gmra.mxu0 %v1006
    %v4387 = vpop.f32.mrf.mxu0
    %v4388 = vadd.f32 0.0, %v4387
    %v4389 = vpop.f32.mrf.mxu0
    %v4390 = vadd.f32 0.0, %v4389
    %4391 = vmatprep.mubr.f32.mxu0 0.0
    %4392 = vmatmul.mubr.f32.gmra.mxu0 %v1011
    %v4393 = vpop.f32.mrf.mxu0
    %v4394 = vadd.f32 0.0, %v4393
    %v4395 = vpop.f32.mrf.mxu0
    %v4396 = vadd.f32 0.0, %v4395
    %4397 = vmatprep.mubr.f32.mxu0 0.0
    %4398 = vmatmul.mubr.f32.gmra.mxu0 %v1016
    %v4399 = vpop.f32.mrf.mxu0
    %v4400 = vadd.f32 0.0, %v4399
    %v4401 = vpop.f32.mrf.mxu0
    %v4402 = vadd.f32 0.0, %v4401
    %4403 = vmatprep.mubr.f32.mxu0 0.0
    %4404 = vmatmul.mubr.f32.gmra.mxu0 %v1021
    %v4405 = vpop.f32.mrf.mxu0
    %v4406 = vadd.f32 0.0, %v4405
    %v4407 = vpop.f32.mrf.mxu0
    %v4408 = vadd.f32 0.0, %v4407
    %4409 = vmatprep.mubr.f32.mxu0 0.0
    %4410 = vmatmul.mubr.f32.gmra.mxu0 %v1026
    %v4411 = vpop.f32.mrf.mxu0
    %v4412 = vadd.f32 0.0, %v4411
    %v4413 = vpop.f32.mrf.mxu0
    %v4414 = vadd.f32 0.0, %v4413
    %4415 = vmatprep.mubr.f32.mxu0 0.0
    %4416 = vmatmul.mubr.f32.gmra.mxu0 %v1031
    %v4417 = vpop.f32.mrf.mxu0
    %v4418 = vadd.f32 0.0, %v4417
    %v4419 = vpop.f32.mrf.mxu0
    %v4420 = vadd.f32 0.0, %v4419
    %4421 = vmatprep.mubr.f32.mxu0 0.0
    %4422 = vmatmul.mubr.f32.gmra.mxu0 %v1036
    %v4423 = vpop.f32.mrf.mxu0
    %v4424 = vadd.f32 0.0, %v4423
    %v4425 = vpop.f32.mrf.mxu0
    %v4426 = vadd.f32 0.0, %v4425
    %4427 = vmatprep.mubr.f32.mxu0 0.0
    %4428 = vmatmul.mubr.f32.gmra.mxu0 %v1041
    %v4429 = vpop.f32.mrf.mxu0
    %v4430 = vadd.f32 0.0, %v4429
    %v4431 = vpop.f32.mrf.mxu0
    %v4432 = vadd.f32 0.0, %v4431
    %4433 = vmatprep.mubr.f32.mxu0 0.0
    %4434 = vmatmul.mubr.f32.gmra.mxu0 %v1046
    %v4435 = vpop.f32.mrf.mxu0
    %v4436 = vadd.f32 0.0, %v4435
    %v4437 = vpop.f32.mrf.mxu0
    %v4438 = vadd.f32 0.0, %v4437
    %4439 = vmatprep.mubr.f32.mxu0 0.0
    %4440 = vmatmul.mubr.f32.gmra.mxu0 %v1051
    %v4441 = vpop.f32.mrf.mxu0
    %v4442 = vadd.f32 0.0, %v4441
    %v4443 = vpop.f32.mrf.mxu0
    %v4444 = vadd.f32 0.0, %v4443
    %4445 = vmatprep.mubr.f32.mxu0 0.0
    %4446 = vmatmul.mubr.f32.gmra.mxu0 %v1056
    %v4447 = vpop.f32.mrf.mxu0
    %v4448 = vadd.f32 0.0, %v4447
    %v4449 = vpop.f32.mrf.mxu0
    %v4450 = vadd.f32 0.0, %v4449
    %4451 = vmatprep.mubr.f32.mxu0 0.0
    %4452 = vmatmul.mubr.f32.gmra.mxu0 %v1061
    %v4453 = vpop.f32.mrf.mxu0
    %v4454 = vadd.f32 0.0, %v4453
    %v4455 = vpop.f32.mrf.mxu0
    %v4456 = vadd.f32 0.0, %v4455
    %4457 = vdwg.mxu0
    %v4458 = vadd.f32 %v4104, %v4227
    %v4459 = vadd.f32 %v4105, %v4229
    %v4460 = vadd.f32 %v4106, %v4376
    %v4461 = vadd.f32 %v4107, %v4378
    %v4462 = vadd.f32 %v4108, %v4233
    %v4463 = vadd.f32 %v4109, %v4235
    %v4464 = vadd.f32 %v4110, %v4382
    %v4465 = vadd.f32 %v4111, %v4384
    %v4466 = vadd.f32 %v4112, %v4239
    %v4467 = vadd.f32 %v4113, %v4241
    %v4468 = vadd.f32 %v4114, %v4388
    %v4469 = vadd.f32 %v4115, %v4390
    %v4470 = vadd.f32 %v4116, %v4245
    %v4471 = vadd.f32 %v4117, %v4247
    %v4472 = vadd.f32 %v4118, %v4394
    %v4473 = vadd.f32 %v4119, %v4396
    %v4474 = vadd.f32 %v4120, %v4251
    %v4475 = vadd.f32 %v4121, %v4253
    %v4476 = vadd.f32 %v4122, %v4400
    %v4477 = vadd.f32 %v4123, %v4402
    %v4478 = vadd.f32 %v4124, %v4257
    %v4479 = vadd.f32 %v4125, %v4259
    %v4480 = vadd.f32 %v4126, %v4406
    %v4481 = vadd.f32 %v4127, %v4408
    %v4482 = vadd.f32 %v4128, %v4263
    %v4483 = vadd.f32 %v4129, %v4265
    %v4484 = vadd.f32 %v4130, %v4412
    %v4485 = vadd.f32 %v4131, %v4414
    %v4486 = vadd.f32 %v4132, %v4269
    %v4487 = vadd.f32 %v4133, %v4271
    %v4488 = vadd.f32 %v4134, %v4418
    %v4489 = vadd.f32 %v4135, %v4420
    %v4490 = vadd.f32 %v4136, %v4275
    %v4491 = vadd.f32 %v4137, %v4277
    %v4492 = vadd.f32 %v4138, %v4424
    %v4493 = vadd.f32 %v4139, %v4426
    %v4494 = vadd.f32 %v4140, %v4281
    %v4495 = vadd.f32 %v4141, %v4283
    %v4496 = vadd.f32 %v4142, %v4430
    %v4497 = vadd.f32 %v4143, %v4432
    %v4498 = vadd.f32 %v4144, %v4287
    %v4499 = vadd.f32 %v4145, %v4289
    %v4500 = vadd.f32 %v4146, %v4436
    %v4501 = vadd.f32 %v4147, %v4438
    %v4502 = vadd.f32 %v4148, %v4293
    %v4503 = vadd.f32 %v4149, %v4295
    %v4504 = vadd.f32 %v4150, %v4442
    %v4505 = vadd.f32 %v4151, %v4444
    %v4506 = vadd.f32 %v4152, %v4299
    %v4507 = vadd.f32 %v4153, %v4301
    %v4508 = vadd.f32 %v4154, %v4448
    %v4509 = vadd.f32 %v4155, %v4450
    %v4510 = vadd.f32 %v4156, %v4305
    %v4511 = vadd.f32 %v4157, %v4307
    %v4512 = vadd.f32 %v4158, %v4454
    %v4513 = vadd.f32 %v4159, %v4456
    %4514 = vmatprep.subr.mxu0 %v2853
    %4515 = vmatpush1.msra.mxu0 %v2852
    %4516 = vmatprep.subr.mxu0 %v2849
    %4517 = vmatpush1.msra.mxu0 %v2848
    %4518 = vmatprep.subr.mxu0 %v2845
    %4519 = vmatpush1.msra.mxu0 %v2844
    %4520 = vmatprep.subr.mxu0 %v2841
    %4521 = vmatpush1.msra.mxu0 %v2840
    %4522 = vmatprep.subr.mxu0 %v2837
    %4523 = vmatpush1.msra.mxu0 %v2836
    %4524 = vmatprep.subr.mxu0 %v2833
    %4525 = vmatpush1.msra.mxu0 %v2832
    %4526 = vmatprep.subr.mxu0 %v2829
    %4527 = vmatpush1.msra.mxu0 %v2828
    %4528 = vmatprep.subr.mxu0 %v2825
    %4529 = vmatpush1.msra.mxu0 %v2824
    %4530 = vmatprep.subr.mxu0 %v2821
    %4531 = vmatpush1.msra.mxu0 %v2820
    %4532 = vmatprep.subr.mxu0 %v2817
    %4533 = vmatpush1.msra.mxu0 %v2816
    %4534 = vmatprep.subr.mxu0 %v2813
    %4535 = vmatpush1.msra.mxu0 %v2812
    %4536 = vmatprep.subr.mxu0 %v2809
    %4537 = vmatpush1.msra.mxu0 %v2808
    %4538 = vmatprep.subr.mxu0 %v2805
    %4539 = vmatpush1.msra.mxu0 %v2804
    %4540 = vmatprep.subr.mxu0 %v2801
    %4541 = vmatpush1.msra.mxu0 %v2800
    %4542 = vmatprep.subr.mxu0 %v2797
    %4543 = vmatpush1.msra.mxu0 %v2796
    %4544 = vmatprep.subr.mxu0 %v2793
    %4545 = vmatpush1.msra.mxu0 %v2792
    %4546 = vmatprep.subr.mxu0 0.0
    %4547 = vmatpush2.msra.mxu0 0.0
    %4548 = vmatprep.subr.mxu0 0.0
    %4549 = vmatpush2.msra.mxu0 0.0
    %4550 = vmatprep.subr.mxu0 0.0
    %4551 = vmatpush2.msra.mxu0 0.0
    %4552 = vmatprep.subr.mxu0 0.0
    %4553 = vmatpush2.msra.mxu0 0.0
    %4554 = vmatprep.subr.mxu0 0.0
    %4555 = vmatpush2.msra.mxu0 0.0
    %4556 = vmatprep.subr.mxu0 0.0
    %4557 = vmatpush2.msra.mxu0 0.0
    %4558 = vmatprep.subr.mxu0 0.0
    %4559 = vmatpush2.msra.mxu0 0.0
    %4560 = vmatprep.subr.mxu0 0.0
    %4561 = vmatpush2.msra.mxu0 0.0
    %4562 = vmatprep.subr.mxu0 0.0
    %4563 = vmatpush2.msra.mxu0 0.0
    %4564 = vmatprep.subr.mxu0 0.0
    %4565 = vmatpush2.msra.mxu0 0.0
    %4566 = vmatprep.subr.mxu0 0.0
    %4567 = vmatpush2.msra.mxu0 0.0
    %4568 = vmatprep.subr.mxu0 0.0
    %4569 = vmatpush2.msra.mxu0 0.0
    %4570 = vmatprep.subr.mxu0 0.0
    %4571 = vmatpush2.msra.mxu0 0.0
    %4572 = vmatprep.subr.mxu0 0.0
    %4573 = vmatpush2.msra.mxu0 0.0
    %4574 = vmatprep.subr.mxu0 0.0
    %4575 = vmatpush2.msra.mxu0 0.0
    %4576 = vmatprep.subr.mxu0 0.0
    %4577 = vmatpush2.msra.mxu0 0.0
    %4578 = vmatprep.mubr.f32.mxu0 0.0
    %4579 = vmatmul.mubr.f32.gmra.mxu0 %v1160
    %v4580 = vpop.f32.mrf.mxu0
    %v4581 = vadd.f32 0.0, %v4580
    %v4582 = vpop.f32.mrf.mxu0
    %v4583 = vadd.f32 0.0, %v4582
    %4584 = vmatprep.mubr.f32.mxu0 0.0
    %4585 = vmatmul.mubr.f32.gmra.mxu0 %v1165
    %v4586 = vpop.f32.mrf.mxu0
    %v4587 = vadd.f32 0.0, %v4586
    %v4588 = vpop.f32.mrf.mxu0
    %v4589 = vadd.f32 0.0, %v4588
    %4590 = vmatprep.mubr.f32.mxu0 0.0
    %4591 = vmatmul.mubr.f32.gmra.mxu0 %v1170
    %v4592 = vpop.f32.mrf.mxu0
    %v4593 = vadd.f32 0.0, %v4592
    %v4594 = vpop.f32.mrf.mxu0
    %v4595 = vadd.f32 0.0, %v4594
    %4596 = vmatprep.mubr.f32.mxu0 0.0
    %4597 = vmatmul.mubr.f32.gmra.mxu0 %v1175
    %v4598 = vpop.f32.mrf.mxu0
    %v4599 = vadd.f32 0.0, %v4598
    %v4600 = vpop.f32.mrf.mxu0
    %v4601 = vadd.f32 0.0, %v4600
    %4602 = vmatprep.mubr.f32.mxu0 0.0
    %4603 = vmatmul.mubr.f32.gmra.mxu0 %v1180
    %v4604 = vpop.f32.mrf.mxu0
    %v4605 = vadd.f32 0.0, %v4604
    %v4606 = vpop.f32.mrf.mxu0
    %v4607 = vadd.f32 0.0, %v4606
    %4608 = vmatprep.mubr.f32.mxu0 0.0
    %4609 = vmatmul.mubr.f32.gmra.mxu0 %v1185
    %v4610 = vpop.f32.mrf.mxu0
    %v4611 = vadd.f32 0.0, %v4610
    %v4612 = vpop.f32.mrf.mxu0
    %v4613 = vadd.f32 0.0, %v4612
    %4614 = vmatprep.mubr.f32.mxu0 0.0
    %4615 = vmatmul.mubr.f32.gmra.mxu0 %v1190
    %v4616 = vpop.f32.mrf.mxu0
    %v4617 = vadd.f32 0.0, %v4616
    %v4618 = vpop.f32.mrf.mxu0
    %v4619 = vadd.f32 0.0, %v4618
    %4620 = vmatprep.mubr.f32.mxu0 0.0
    %4621 = vmatmul.mubr.f32.gmra.mxu0 %v1195
    %v4622 = vpop.f32.mrf.mxu0
    %v4623 = vadd.f32 0.0, %v4622
    %v4624 = vpop.f32.mrf.mxu0
    %v4625 = vadd.f32 0.0, %v4624
    %4626 = vmatprep.mubr.f32.mxu0 0.0
    %4627 = vmatmul.mubr.f32.gmra.mxu0 %v1200
    %v4628 = vpop.f32.mrf.mxu0
    %v4629 = vadd.f32 0.0, %v4628
    %v4630 = vpop.f32.mrf.mxu0
    %v4631 = vadd.f32 0.0, %v4630
    %4632 = vmatprep.mubr.f32.mxu0 0.0
    %4633 = vmatmul.mubr.f32.gmra.mxu0 %v1205
    %v4634 = vpop.f32.mrf.mxu0
    %v4635 = vadd.f32 0.0, %v4634
    %v4636 = vpop.f32.mrf.mxu0
    %v4637 = vadd.f32 0.0, %v4636
    %4638 = vmatprep.mubr.f32.mxu0 0.0
    %4639 = vmatmul.mubr.f32.gmra.mxu0 %v1210
    %v4640 = vpop.f32.mrf.mxu0
    %v4641 = vadd.f32 0.0, %v4640
    %v4642 = vpop.f32.mrf.mxu0
    %v4643 = vadd.f32 0.0, %v4642
    %4644 = vmatprep.mubr.f32.mxu0 0.0
    %4645 = vmatmul.mubr.f32.gmra.mxu0 %v1215
    %v4646 = vpop.f32.mrf.mxu0
    %v4647 = vadd.f32 0.0, %v4646
    %v4648 = vpop.f32.mrf.mxu0
    %v4649 = vadd.f32 0.0, %v4648
    %4650 = vmatprep.mubr.f32.mxu0 0.0
    %4651 = vmatmul.mubr.f32.gmra.mxu0 %v1220
    %v4652 = vpop.f32.mrf.mxu0
    %v4653 = vadd.f32 0.0, %v4652
    %v4654 = vpop.f32.mrf.mxu0
    %v4655 = vadd.f32 0.0, %v4654
    %4656 = vmatprep.mubr.f32.mxu0 0.0
    %4657 = vmatmul.mubr.f32.gmra.mxu0 %v1225
    %v4658 = vpop.f32.mrf.mxu0
    %v4659 = vadd.f32 0.0, %v4658
    %v4660 = vpop.f32.mrf.mxu0
    %v4661 = vadd.f32 0.0, %v4660
    %4662 = vdwg.mxu0
    %4663 = vmatprep.subr.mxu0 %v2855
    %4664 = vmatpush1.msra.mxu0 %v2854
    %4665 = vmatprep.subr.mxu0 %v2851
    %4666 = vmatpush1.msra.mxu0 %v2850
    %4667 = vmatprep.subr.mxu0 %v2847
    %4668 = vmatpush1.msra.mxu0 %v2846
    %4669 = vmatprep.subr.mxu0 %v2843
    %4670 = vmatpush1.msra.mxu0 %v2842
    %4671 = vmatprep.subr.mxu0 %v2839
    %4672 = vmatpush1.msra.mxu0 %v2838
    %4673 = vmatprep.subr.mxu0 %v2835
    %4674 = vmatpush1.msra.mxu0 %v2834
    %4675 = vmatprep.subr.mxu0 %v2831
    %4676 = vmatpush1.msra.mxu0 %v2830
    %4677 = vmatprep.subr.mxu0 %v2827
    %4678 = vmatpush1.msra.mxu0 %v2826
    %4679 = vmatprep.subr.mxu0 %v2823
    %4680 = vmatpush1.msra.mxu0 %v2822
    %4681 = vmatprep.subr.mxu0 %v2819
    %4682 = vmatpush1.msra.mxu0 %v2818
    %4683 = vmatprep.subr.mxu0 %v2815
    %4684 = vmatpush1.msra.mxu0 %v2814
    %4685 = vmatprep.subr.mxu0 %v2811
    %4686 = vmatpush1.msra.mxu0 %v2810
    %4687 = vmatprep.subr.mxu0 %v2807
    %4688 = vmatpush1.msra.mxu0 %v2806
    %4689 = vmatprep.subr.mxu0 %v2803
    %4690 = vmatpush1.msra.mxu0 %v2802
    %4691 = vmatprep.subr.mxu0 %v2799
    %4692 = vmatpush1.msra.mxu0 %v2798
    %4693 = vmatprep.subr.mxu0 %v2795
    %4694 = vmatpush1.msra.mxu0 %v2794
    %4695 = vmatprep.subr.mxu0 0.0
    %4696 = vmatpush2.msra.mxu0 0.0
    %4697 = vmatprep.subr.mxu0 0.0
    %4698 = vmatpush2.msra.mxu0 0.0
    %4699 = vmatprep.subr.mxu0 0.0
    %4700 = vmatpush2.msra.mxu0 0.0
    %4701 = vmatprep.subr.mxu0 0.0
    %4702 = vmatpush2.msra.mxu0 0.0
    %4703 = vmatprep.subr.mxu0 0.0
    %4704 = vmatpush2.msra.mxu0 0.0
    %4705 = vmatprep.subr.mxu0 0.0
    %4706 = vmatpush2.msra.mxu0 0.0
    %4707 = vmatprep.subr.mxu0 0.0
    %4708 = vmatpush2.msra.mxu0 0.0
    %4709 = vmatprep.subr.mxu0 0.0
    %4710 = vmatpush2.msra.mxu0 0.0
    %4711 = vmatprep.subr.mxu0 0.0
    %4712 = vmatpush2.msra.mxu0 0.0
    %4713 = vmatprep.subr.mxu0 0.0
    %4714 = vmatpush2.msra.mxu0 0.0
    %4715 = vmatprep.subr.mxu0 0.0
    %4716 = vmatpush2.msra.mxu0 0.0
    %4717 = vmatprep.subr.mxu0 0.0
    %4718 = vmatpush2.msra.mxu0 0.0
    %4719 = vmatprep.subr.mxu0 0.0
    %4720 = vmatpush2.msra.mxu0 0.0
    %4721 = vmatprep.subr.mxu0 0.0
    %4722 = vmatpush2.msra.mxu0 0.0
    %4723 = vmatprep.subr.mxu0 0.0
    %4724 = vmatpush2.msra.mxu0 0.0
    %4725 = vmatprep.subr.mxu0 0.0
    %4726 = vmatpush2.msra.mxu0 0.0
    %4727 = vmatprep.mubr.f32.mxu0 0.0
    %4728 = vmatmul.mubr.f32.gmra.mxu0 %v1160
    %v4729 = vpop.f32.mrf.mxu0
    %v4730 = vadd.f32 0.0, %v4729
    %v4731 = vpop.f32.mrf.mxu0
    %v4732 = vadd.f32 0.0, %v4731
    %4733 = vmatprep.mubr.f32.mxu0 0.0
    %4734 = vmatmul.mubr.f32.gmra.mxu0 %v1165
    %v4735 = vpop.f32.mrf.mxu0
    %v4736 = vadd.f32 0.0, %v4735
    %v4737 = vpop.f32.mrf.mxu0
    %v4738 = vadd.f32 0.0, %v4737
    %4739 = vmatprep.mubr.f32.mxu0 0.0
    %4740 = vmatmul.mubr.f32.gmra.mxu0 %v1170
    %v4741 = vpop.f32.mrf.mxu0
    %v4742 = vadd.f32 0.0, %v4741
    %v4743 = vpop.f32.mrf.mxu0
    %v4744 = vadd.f32 0.0, %v4743
    %4745 = vmatprep.mubr.f32.mxu0 0.0
    %4746 = vmatmul.mubr.f32.gmra.mxu0 %v1175
    %v4747 = vpop.f32.mrf.mxu0
    %v4748 = vadd.f32 0.0, %v4747
    %v4749 = vpop.f32.mrf.mxu0
    %v4750 = vadd.f32 0.0, %v4749
    %4751 = vmatprep.mubr.f32.mxu0 0.0
    %4752 = vmatmul.mubr.f32.gmra.mxu0 %v1180
    %v4753 = vpop.f32.mrf.mxu0
    %v4754 = vadd.f32 0.0, %v4753
    %v4755 = vpop.f32.mrf.mxu0
    %v4756 = vadd.f32 0.0, %v4755
    %4757 = vmatprep.mubr.f32.mxu0 0.0
    %4758 = vmatmul.mubr.f32.gmra.mxu0 %v1185
    %v4759 = vpop.f32.mrf.mxu0
    %v4760 = vadd.f32 0.0, %v4759
    %v4761 = vpop.f32.mrf.mxu0
    %v4762 = vadd.f32 0.0, %v4761
    %4763 = vmatprep.mubr.f32.mxu0 0.0
    %4764 = vmatmul.mubr.f32.gmra.mxu0 %v1190
    %v4765 = vpop.f32.mrf.mxu0
    %v4766 = vadd.f32 0.0, %v4765
    %v4767 = vpop.f32.mrf.mxu0
    %v4768 = vadd.f32 0.0, %v4767
    %4769 = vmatprep.mubr.f32.mxu0 0.0
    %4770 = vmatmul.mubr.f32.gmra.mxu0 %v1195
    %v4771 = vpop.f32.mrf.mxu0
    %v4772 = vadd.f32 0.0, %v4771
    %v4773 = vpop.f32.mrf.mxu0
    %v4774 = vadd.f32 0.0, %v4773
    %4775 = vmatprep.mubr.f32.mxu0 0.0
    %4776 = vmatmul.mubr.f32.gmra.mxu0 %v1200
    %v4777 = vpop.f32.mrf.mxu0
    %v4778 = vadd.f32 0.0, %v4777
    %v4779 = vpop.f32.mrf.mxu0
    %v4780 = vadd.f32 0.0, %v4779
    %4781 = vmatprep.mubr.f32.mxu0 0.0
    %4782 = vmatmul.mubr.f32.gmra.mxu0 %v1205
    %v4783 = vpop.f32.mrf.mxu0
    %v4784 = vadd.f32 0.0, %v4783
    %v4785 = vpop.f32.mrf.mxu0
    %v4786 = vadd.f32 0.0, %v4785
    %4787 = vmatprep.mubr.f32.mxu0 0.0
    %4788 = vmatmul.mubr.f32.gmra.mxu0 %v1210
    %v4789 = vpop.f32.mrf.mxu0
    %v4790 = vadd.f32 0.0, %v4789
    %v4791 = vpop.f32.mrf.mxu0
    %v4792 = vadd.f32 0.0, %v4791
    %4793 = vmatprep.mubr.f32.mxu0 0.0
    %4794 = vmatmul.mubr.f32.gmra.mxu0 %v1215
    %v4795 = vpop.f32.mrf.mxu0
    %v4796 = vadd.f32 0.0, %v4795
    %v4797 = vpop.f32.mrf.mxu0
    %v4798 = vadd.f32 0.0, %v4797
    %4799 = vmatprep.mubr.f32.mxu0 0.0
    %4800 = vmatmul.mubr.f32.gmra.mxu0 %v1220
    %v4801 = vpop.f32.mrf.mxu0
    %v4802 = vadd.f32 0.0, %v4801
    %v4803 = vpop.f32.mrf.mxu0
    %v4804 = vadd.f32 0.0, %v4803
    %4805 = vmatprep.mubr.f32.mxu0 0.0
    %4806 = vmatmul.mubr.f32.gmra.mxu0 %v1225
    %v4807 = vpop.f32.mrf.mxu0
    %v4808 = vadd.f32 0.0, %v4807
    %v4809 = vpop.f32.mrf.mxu0
    %v4810 = vadd.f32 0.0, %v4809
    %4811 = vdwg.mxu0
    %v4812 = vadd.f32 %v4458, %v4581
    %v4813 = vadd.f32 %v4459, %v4583
    %v4814 = vadd.f32 %v4460, %v4730
    %v4815 = vadd.f32 %v4461, %v4732
    %v4816 = vadd.f32 %v4462, %v4587
    %v4817 = vadd.f32 %v4463, %v4589
    %v4818 = vadd.f32 %v4464, %v4736
    %v4819 = vadd.f32 %v4465, %v4738
    %v4820 = vadd.f32 %v4466, %v4593
    %v4821 = vadd.f32 %v4467, %v4595
    %v4822 = vadd.f32 %v4468, %v4742
    %v4823 = vadd.f32 %v4469, %v4744
    %v4824 = vadd.f32 %v4470, %v4599
    %v4825 = vadd.f32 %v4471, %v4601
    %v4826 = vadd.f32 %v4472, %v4748
    %v4827 = vadd.f32 %v4473, %v4750
    %v4828 = vadd.f32 %v4474, %v4605
    %v4829 = vadd.f32 %v4475, %v4607
    %v4830 = vadd.f32 %v4476, %v4754
    %v4831 = vadd.f32 %v4477, %v4756
    %v4832 = vadd.f32 %v4478, %v4611
    %v4833 = vadd.f32 %v4479, %v4613
    %v4834 = vadd.f32 %v4480, %v4760
    %v4835 = vadd.f32 %v4481, %v4762
    %v4836 = vadd.f32 %v4482, %v4617
    %v4837 = vadd.f32 %v4483, %v4619
    %v4838 = vadd.f32 %v4484, %v4766
    %v4839 = vadd.f32 %v4485, %v4768
    %v4840 = vadd.f32 %v4486, %v4623
    %v4841 = vadd.f32 %v4487, %v4625
    %v4842 = vadd.f32 %v4488, %v4772
    %v4843 = vadd.f32 %v4489, %v4774
    %v4844 = vadd.f32 %v4490, %v4629
    %v4845 = vadd.f32 %v4491, %v4631
    %v4846 = vadd.f32 %v4492, %v4778
    %v4847 = vadd.f32 %v4493, %v4780
    %v4848 = vadd.f32 %v4494, %v4635
    %v4849 = vadd.f32 %v4495, %v4637
    %v4850 = vadd.f32 %v4496, %v4784
    %v4851 = vadd.f32 %v4497, %v4786
    %v4852 = vadd.f32 %v4498, %v4641
    %v4853 = vadd.f32 %v4499, %v4643
    %v4854 = vadd.f32 %v4500, %v4790
    %v4855 = vadd.f32 %v4501, %v4792
    %v4856 = vadd.f32 %v4502, %v4647
    %v4857 = vadd.f32 %v4503, %v4649
    %v4858 = vadd.f32 %v4504, %v4796
    %v4859 = vadd.f32 %v4505, %v4798
    %v4860 = vadd.f32 %v4506, %v4653
    %v4861 = vadd.f32 %v4507, %v4655
    %v4862 = vadd.f32 %v4508, %v4802
    %v4863 = vadd.f32 %v4509, %v4804
    %v4864 = vadd.f32 %v4510, %v4659
    %v4865 = vadd.f32 %v4511, %v4661
    %v4866 = vadd.f32 %v4512, %v4808
    %v4867 = vadd.f32 %v4513, %v4810
    %v4868 = vmax.f32 %v3154, %v4812
    %v4869 = vmax.f32 %v3155, %v4813
    %v4870 = vmax.f32 %v3156, %v4814
    %v4871 = vmax.f32 %v3157, %v4815
    %v4872 = vmax.f32 %v3158, %v4816
    %v4873 = vmax.f32 %v3159, %v4817
    %v4874 = vmax.f32 %v3160, %v4818
    %v4875 = vmax.f32 %v3161, %v4819
    %v4876 = vmax.f32 %v3162, %v4820
    %v4877 = vmax.f32 %v3163, %v4821
    %v4878 = vmax.f32 %v3164, %v4822
    %v4879 = vmax.f32 %v3165, %v4823
    %v4880 = vmax.f32 %v3166, %v4824
    %v4881 = vmax.f32 %v3167, %v4825
    %v4882 = vmax.f32 %v3168, %v4826
    %v4883 = vmax.f32 %v3169, %v4827
    %v4884 = vmax.f32 %v3170, %v4828
    %v4885 = vmax.f32 %v3171, %v4829
    %v4886 = vmax.f32 %v3172, %v4830
    %v4887 = vmax.f32 %v3173, %v4831
    %v4888 = vmax.f32 %v3174, %v4832
    %v4889 = vmax.f32 %v3175, %v4833
    %v4890 = vmax.f32 %v3176, %v4834
    %v4891 = vmax.f32 %v3177, %v4835
    %v4892 = vmax.f32 %v3178, %v4836
    %v4893 = vmax.f32 %v3179, %v4837
    %v4894 = vmax.f32 %v3180, %v4838
    %v4895 = vmax.f32 %v3181, %v4839
    %v4896 = vmax.f32 %v3182, %v4840
    %v4897 = vmax.f32 %v3183, %v4841
    %v4898 = vmax.f32 %v3184, %v4842
    %v4899 = vmax.f32 %v3185, %v4843
    %v4900 = vmax.f32 %v3186, %v4844
    %v4901 = vmax.f32 %v3187, %v4845
    %v4902 = vmax.f32 %v3188, %v4846
    %v4903 = vmax.f32 %v3189, %v4847
    %v4904 = vmax.f32 %v3190, %v4848
    %v4905 = vmax.f32 %v3191, %v4849
    %v4906 = vmax.f32 %v3192, %v4850
    %v4907 = vmax.f32 %v3193, %v4851
    %v4908 = vmax.f32 %v3194, %v4852
    %v4909 = vmax.f32 %v3195, %v4853
    %v4910 = vmax.f32 %v3196, %v4854
    %v4911 = vmax.f32 %v3197, %v4855
    %v4912 = vmax.f32 %v3198, %v4856
    %v4913 = vmax.f32 %v3199, %v4857
    %v4914 = vmax.f32 %v3200, %v4858
    %v4915 = vmax.f32 %v3201, %v4859
    %v4916 = vmax.f32 %v3202, %v4860
    %v4917 = vmax.f32 %v3203, %v4861
    %v4918 = vmax.f32 %v3204, %v4862
    %v4919 = vmax.f32 %v3205, %v4863
    %v4920 = vmax.f32 %v3206, %v4864
    %v4921 = vmax.f32 %v3207, %v4865
    %v4922 = vmax.f32 %v3208, %v4866
    %v4923 = vmax.f32 %v3209, %v4867
    %v4924 = vld [vmem:[#allocation6] sm:$0xf]
    %v4926 = vlaneseq
    %v4927 = vshrl.u32 %v4926, 7
    %v4928 = vsub.s32 0, %v4927
    %v4929 = vrot.slane %v4924, %v4928
    %v4930 = vlaneseq
    %v4931 = vshrl.u32 %v4930, 7
    %v4932 = vsub.s32 1, %v4931
    %v4933 = vrot.slane %v4924, %v4932
    %v4934 = vlaneseq
    %v4935 = vshrl.u32 %v4934, 7
    %v4936 = vsub.s32 2, %v4935
    %v4937 = vrot.slane %v4924, %v4936
    %v4938 = vlaneseq
    %v4939 = vshrl.u32 %v4938, 7
    %v4940 = vsub.s32 3, %v4939
    %v4941 = vrot.slane %v4924, %v4940
    %v4946 = vadd.f32 %v4868, %v4929
    %v4947 = vadd.f32 %v4869, %v4933
    %v4948 = vadd.f32 %v4870, %v4937
    %v4949 = vadd.f32 %v4871, %v4941
    %v4950 = vadd.f32 %v4872, %v4929
    %v4951 = vadd.f32 %v4873, %v4933
    %v4952 = vadd.f32 %v4874, %v4937
    %v4953 = vadd.f32 %v4875, %v4941
    %v4954 = vadd.f32 %v4876, %v4929
    %v4955 = vadd.f32 %v4877, %v4933
    %v4956 = vadd.f32 %v4878, %v4937
    %v4957 = vadd.f32 %v4879, %v4941
    %v4958 = vadd.f32 %v4880, %v4929
    %v4959 = vadd.f32 %v4881, %v4933
    %v4960 = vadd.f32 %v4882, %v4937
    %v4961 = vadd.f32 %v4883, %v4941
    %v4962 = vadd.f32 %v4884, %v4929
    %v4963 = vadd.f32 %v4885, %v4933
    %v4964 = vadd.f32 %v4886, %v4937
    %v4965 = vadd.f32 %v4887, %v4941
    %v4966 = vadd.f32 %v4888, %v4929
    %v4967 = vadd.f32 %v4889, %v4933
    %v4968 = vadd.f32 %v4890, %v4937
    %v4969 = vadd.f32 %v4891, %v4941
    %v4970 = vadd.f32 %v4892, %v4929
    %v4971 = vadd.f32 %v4893, %v4933
    %v4972 = vadd.f32 %v4894, %v4937
    %v4973 = vadd.f32 %v4895, %v4941
    %v4974 = vadd.f32 %v4896, %v4929
    %v4975 = vadd.f32 %v4897, %v4933
    %v4976 = vadd.f32 %v4898, %v4937
    %v4977 = vadd.f32 %v4899, %v4941
    %v4978 = vadd.f32 %v4900, %v4929
    %v4979 = vadd.f32 %v4901, %v4933
    %v4980 = vadd.f32 %v4902, %v4937
    %v4981 = vadd.f32 %v4903, %v4941
    %v4982 = vadd.f32 %v4904, %v4929
    %v4983 = vadd.f32 %v4905, %v4933
    %v4984 = vadd.f32 %v4906, %v4937
    %v4985 = vadd.f32 %v4907, %v4941
    %v4986 = vadd.f32 %v4908, %v4929
    %v4987 = vadd.f32 %v4909, %v4933
    %v4988 = vadd.f32 %v4910, %v4937
    %v4989 = vadd.f32 %v4911, %v4941
    %v4990 = vadd.f32 %v4912, %v4929
    %v4991 = vadd.f32 %v4913, %v4933
    %v4992 = vadd.f32 %v4914, %v4937
    %v4993 = vadd.f32 %v4915, %v4941
    %v4994 = vadd.f32 %v4916, %v4929
    %v4995 = vadd.f32 %v4917, %v4933
    %v4996 = vadd.f32 %v4918, %v4937
    %v4997 = vadd.f32 %v4919, %v4941
    %v4998 = vadd.f32 %v4920, %v4929
    %v4999 = vadd.f32 %v4921, %v4933
    %v5000 = vadd.f32 %v4922, %v4937
    %v5001 = vadd.f32 %v4923, %v4941
    %v5002 = vmax.f32 %v4946, %v4948
    %v5003 = vmax.f32 %v4947, %v4949
    %v5004 = vmax.f32 %v4950, %v4952
    %v5005 = vmax.f32 %v4951, %v4953
    %v5006 = vmax.f32 %v4954, %v4956
    %v5007 = vmax.f32 %v4955, %v4957
    %v5008 = vmax.f32 %v4958, %v4960
    %v5009 = vmax.f32 %v4959, %v4961
    %v5010 = vmax.f32 %v4962, %v4964
    %v5011 = vmax.f32 %v4963, %v4965
    %v5012 = vmax.f32 %v4966, %v4968
    %v5013 = vmax.f32 %v4967, %v4969
    %v5014 = vmax.f32 %v4970, %v4972
    %v5015 = vmax.f32 %v4971, %v4973
    %v5016 = vmax.f32 %v4974, %v4976
    %v5017 = vmax.f32 %v4975, %v4977
    %v5018 = vmax.f32 %v4978, %v4980
    %v5019 = vmax.f32 %v4979, %v4981
    %v5020 = vmax.f32 %v4982, %v4984
    %v5021 = vmax.f32 %v4983, %v4985
    %v5022 = vmax.f32 %v4986, %v4988
    %v5023 = vmax.f32 %v4987, %v4989
    %v5024 = vmax.f32 %v4990, %v4992
    %v5025 = vmax.f32 %v4991, %v4993
    %v5026 = vmax.f32 %v4994, %v4996
    %v5027 = vmax.f32 %v4995, %v4997
    %v5028 = vmax.f32 %v4998, %v5000
    %v5029 = vmax.f32 %v4999, %v5001
    %v5030 = vmul.f32 %v5002, 0.1
    %v5031 = vmul.f32 %v5003, 0.1
    %v5032 = vmul.f32 %v5004, 0.1
    %v5033 = vmul.f32 %v5005, 0.1
    %v5034 = vmul.f32 %v5006, 0.1
    %v5035 = vmul.f32 %v5007, 0.1
    %v5036 = vmul.f32 %v5008, 0.1
    %v5037 = vmul.f32 %v5009, 0.1
    %v5038 = vmul.f32 %v5010, 0.1
    %v5039 = vmul.f32 %v5011, 0.1
    %v5040 = vmul.f32 %v5012, 0.1
    %v5041 = vmul.f32 %v5013, 0.1
    %v5042 = vmul.f32 %v5014, 0.1
    %v5043 = vmul.f32 %v5015, 0.1
    %v5044 = vmul.f32 %v5016, 0.1
    %v5045 = vmul.f32 %v5017, 0.1
    %v5046 = vmul.f32 %v5018, 0.1
    %v5047 = vmul.f32 %v5019, 0.1
    %v5048 = vmul.f32 %v5020, 0.1
    %v5049 = vmul.f32 %v5021, 0.1
    %v5050 = vmul.f32 %v5022, 0.1
    %v5051 = vmul.f32 %v5023, 0.1
    %v5052 = vmul.f32 %v5024, 0.1
    %v5053 = vmul.f32 %v5025, 0.1
    %v5054 = vmul.f32 %v5026, 0.1
    %v5055 = vmul.f32 %v5027, 0.1
    %v5056 = vmul.f32 %v5028, 0.1
    %v5057 = vmul.f32 %v5029, 0.1
    %v5058 = vmax.f32 %v5002, %v5030
    %v5059 = vmax.f32 %v5003, %v5031
    %v5060 = vmax.f32 %v5004, %v5032
    %v5061 = vmax.f32 %v5005, %v5033
    %v5062 = vmax.f32 %v5006, %v5034
    %v5063 = vmax.f32 %v5007, %v5035
    %v5064 = vmax.f32 %v5008, %v5036
    %v5065 = vmax.f32 %v5009, %v5037
    %v5066 = vmax.f32 %v5010, %v5038
    %v5067 = vmax.f32 %v5011, %v5039
    %v5068 = vmax.f32 %v5012, %v5040
    %v5069 = vmax.f32 %v5013, %v5041
    %v5070 = vmax.f32 %v5014, %v5042
    %v5071 = vmax.f32 %v5015, %v5043
    %v5072 = vmax.f32 %v5016, %v5044
    %v5073 = vmax.f32 %v5017, %v5045
    %v5074 = vmax.f32 %v5018, %v5046
    %v5075 = vmax.f32 %v5019, %v5047
    %v5076 = vmax.f32 %v5020, %v5048
    %v5077 = vmax.f32 %v5021, %v5049
    %v5078 = vmax.f32 %v5022, %v5050
    %v5079 = vmax.f32 %v5023, %v5051
    %v5080 = vmax.f32 %v5024, %v5052
    %v5081 = vmax.f32 %v5025, %v5053
    %v5082 = vmax.f32 %v5026, %v5054
    %v5083 = vmax.f32 %v5027, %v5055
    %v5084 = vmax.f32 %v5028, %v5056
    %v5085 = vmax.f32 %v5029, %v5057
    %v5086 = vld [vmem:[#allocation7] sm:$0xff]
    %v5087 = vld [vmem:[#allocation7 + $0x8] sm:$0xff]
    %v5088 = vld [vmem:[#allocation7 + $0x10] sm:$0xff]
    %v5089 = vld [vmem:[#allocation7 + $0x18] sm:$0xff]
    %v5090 = vld [vmem:[#allocation7 + $0x20] sm:$0xff]
    %vm5091 = vcmask 916480
    %v5093 = vsel %vm5091, %v5086, 0
    %v5096 = vsel %vm5091, %v5087, 0
    %v5099 = vsel %vm5091, %v5088, 0
    %v5102 = vsel %vm5091, %v5089, 0
    %v5105 = vsel %vm5091, %v5090, 0
    %5107 = vmatprep.subr.mxu0 0.0
    %5108 = vmatpush1.msra.mxu0 0.0
    %5109 = vmatprep.subr.mxu0 0.0
    %5110 = vmatpush1.msra.mxu0 0.0
    %5111 = vmatprep.subr.mxu0 %v5085
    %5112 = vmatpush1.msra.mxu0 %v5084
    %5113 = vmatprep.subr.mxu0 %v5083
    %5114 = vmatpush1.msra.mxu0 %v5082
    %5115 = vmatprep.subr.mxu0 %v5081
    %5116 = vmatpush1.msra.mxu0 %v5080
    %5117 = vmatprep.subr.mxu0 %v5079
    %5118 = vmatpush1.msra.mxu0 %v5078
    %5119 = vmatprep.subr.mxu0 %v5077
    %5120 = vmatpush1.msra.mxu0 %v5076
    %5121 = vmatprep.subr.mxu0 %v5075
    %5122 = vmatpush1.msra.mxu0 %v5074
    %5123 = vmatprep.subr.mxu0 %v5073
    %5124 = vmatpush1.msra.mxu0 %v5072
    %5125 = vmatprep.subr.mxu0 %v5071
    %5126 = vmatpush1.msra.mxu0 %v5070
    %5127 = vmatprep.subr.mxu0 %v5069
    %5128 = vmatpush1.msra.mxu0 %v5068
    %5129 = vmatprep.subr.mxu0 %v5067
    %5130 = vmatpush1.msra.mxu0 %v5066
    %5131 = vmatprep.subr.mxu0 %v5065
    %5132 = vmatpush1.msra.mxu0 %v5064
    %5133 = vmatprep.subr.mxu0 %v5063
    %5134 = vmatpush1.msra.mxu0 %v5062
    %5135 = vmatprep.subr.mxu0 %v5061
    %5136 = vmatpush1.msra.mxu0 %v5060
    %5137 = vmatprep.subr.mxu0 %v5059
    %5138 = vmatpush1.msra.mxu0 %v5058
    %5139 = vmatprep.subr.mxu0 0.0
    %5140 = vmatpush2.msra.mxu0 0.0
    %5141 = vmatprep.subr.mxu0 0.0
    %5142 = vmatpush2.msra.mxu0 0.0
    %5143 = vmatprep.subr.mxu0 0.0
    %5144 = vmatpush2.msra.mxu0 0.0
    %5145 = vmatprep.subr.mxu0 0.0
    %5146 = vmatpush2.msra.mxu0 0.0
    %5147 = vmatprep.subr.mxu0 0.0
    %5148 = vmatpush2.msra.mxu0 0.0
    %5149 = vmatprep.subr.mxu0 0.0
    %5150 = vmatpush2.msra.mxu0 0.0
    %5151 = vmatprep.subr.mxu0 0.0
    %5152 = vmatpush2.msra.mxu0 0.0
    %5153 = vmatprep.subr.mxu0 0.0
    %5154 = vmatpush2.msra.mxu0 0.0
    %5155 = vmatprep.subr.mxu0 0.0
    %5156 = vmatpush2.msra.mxu0 0.0
    %5157 = vmatprep.subr.mxu0 0.0
    %5158 = vmatpush2.msra.mxu0 0.0
    %5159 = vmatprep.subr.mxu0 0.0
    %5160 = vmatpush2.msra.mxu0 0.0
    %5161 = vmatprep.subr.mxu0 0.0
    %5162 = vmatpush2.msra.mxu0 0.0
    %5163 = vmatprep.subr.mxu0 0.0
    %5164 = vmatpush2.msra.mxu0 0.0
    %5165 = vmatprep.subr.mxu0 0.0
    %5166 = vmatpush2.msra.mxu0 0.0
    %5167 = vmatprep.subr.mxu0 0.0
    %5168 = vmatpush2.msra.mxu0 0.0
    %5169 = vmatprep.subr.mxu0 0.0
    %5170 = vmatpush2.msra.mxu0 0.0
    %5171 = vmatprep.mubr.f32.mxu0 0.0
    %5172 = vmatmul.mubr.f32.gmra.mxu0 %v5093
    %v5173 = vpop.f32.mrf.mxu0
    %v5174 = vadd.f32 0.0, %v5173
    %v5175 = vpop.f32.mrf.mxu0
    %v5176 = vadd.f32 0.0, %v5175
    %5177 = vmatprep.mubr.f32.mxu0 0.0
    %5178 = vmatmul.mubr.f32.gmra.mxu0 %v5096
    %v5179 = vpop.f32.mrf.mxu0
    %v5180 = vadd.f32 0.0, %v5179
    %v5181 = vpop.f32.mrf.mxu0
    %v5182 = vadd.f32 0.0, %v5181
    %5183 = vmatprep.mubr.f32.mxu0 0.0
    %5184 = vmatmul.mubr.f32.gmra.mxu0 %v5099
    %v5185 = vpop.f32.mrf.mxu0
    %v5186 = vadd.f32 0.0, %v5185
    %v5187 = vpop.f32.mrf.mxu0
    %v5188 = vadd.f32 0.0, %v5187
    %5189 = vmatprep.mubr.f32.mxu0 0.0
    %5190 = vmatmul.mubr.f32.gmra.mxu0 %v5102
    %v5191 = vpop.f32.mrf.mxu0
    %v5192 = vadd.f32 0.0, %v5191
    %v5193 = vpop.f32.mrf.mxu0
    %v5194 = vadd.f32 0.0, %v5193
    %5195 = vmatprep.mubr.f32.mxu0 0.0
    %5196 = vmatmul.mubr.f32.gmra.mxu0 %v5105
    %v5197 = vpop.f32.mrf.mxu0
    %v5198 = vadd.f32 0.0, %v5197
    %v5199 = vpop.f32.mrf.mxu0
    %v5200 = vadd.f32 0.0, %v5199
    %5201 = vdwg.mxu0
    %s5202 = scalar_lea.vmem [#allocation7], 40
    %v5203 = vld [vmem:[%s5202] sm:$0xff]
    %v5204 = vld [vmem:[%s5202 + $0x8] sm:$0xff]
    %v5205 = vld [vmem:[%s5202 + $0x10] sm:$0xff]
    %v5206 = vld [vmem:[%s5202 + $0x18] sm:$0xff]
    %v5207 = vld [vmem:[%s5202 + $0x20] sm:$0xff]
    %v5209 = vsel %vm5091, %v5203, 0
    %v5212 = vsel %vm5091, %v5204, 0
    %v5215 = vsel %vm5091, %v5205, 0
    %v5218 = vsel %vm5091, %v5206, 0
    %v5221 = vsel %vm5091, %v5207, 0
    %5223 = vmatprep.subr.mxu0 0.0
    %5224 = vmatpush1.msra.mxu0 0.0
    %5225 = vmatprep.subr.mxu0 0.0
    %5226 = vmatpush1.msra.mxu0 0.0
    %5227 = vmatprep.subr.mxu0 %v5085
    %5228 = vmatpush1.msra.mxu0 %v5084
    %5229 = vmatprep.subr.mxu0 %v5083
    %5230 = vmatpush1.msra.mxu0 %v5082
    %5231 = vmatprep.subr.mxu0 %v5081
    %5232 = vmatpush1.msra.mxu0 %v5080
    %5233 = vmatprep.subr.mxu0 %v5079
    %5234 = vmatpush1.msra.mxu0 %v5078
    %5235 = vmatprep.subr.mxu0 %v5077
    %5236 = vmatpush1.msra.mxu0 %v5076
    %5237 = vmatprep.subr.mxu0 %v5075
    %5238 = vmatpush1.msra.mxu0 %v5074
    %5239 = vmatprep.subr.mxu0 %v5073
    %5240 = vmatpush1.msra.mxu0 %v5072
    %5241 = vmatprep.subr.mxu0 %v5071
    %5242 = vmatpush1.msra.mxu0 %v5070
    %5243 = vmatprep.subr.mxu0 %v5069
    %5244 = vmatpush1.msra.mxu0 %v5068
    %5245 = vmatprep.subr.mxu0 %v5067
    %5246 = vmatpush1.msra.mxu0 %v5066
    %5247 = vmatprep.subr.mxu0 %v5065
    %5248 = vmatpush1.msra.mxu0 %v5064
    %5249 = vmatprep.subr.mxu0 %v5063
    %5250 = vmatpush1.msra.mxu0 %v5062
    %5251 = vmatprep.subr.mxu0 %v5061
    %5252 = vmatpush1.msra.mxu0 %v5060
    %5253 = vmatprep.subr.mxu0 %v5059
    %5254 = vmatpush1.msra.mxu0 %v5058
    %5255 = vmatprep.subr.mxu0 0.0
    %5256 = vmatpush2.msra.mxu0 0.0
    %5257 = vmatprep.subr.mxu0 0.0
    %5258 = vmatpush2.msra.mxu0 0.0
    %5259 = vmatprep.subr.mxu0 0.0
    %5260 = vmatpush2.msra.mxu0 0.0
    %5261 = vmatprep.subr.mxu0 0.0
    %5262 = vmatpush2.msra.mxu0 0.0
    %5263 = vmatprep.subr.mxu0 0.0
    %5264 = vmatpush2.msra.mxu0 0.0
    %5265 = vmatprep.subr.mxu0 0.0
    %5266 = vmatpush2.msra.mxu0 0.0
    %5267 = vmatprep.subr.mxu0 0.0
    %5268 = vmatpush2.msra.mxu0 0.0
    %5269 = vmatprep.subr.mxu0 0.0
    %5270 = vmatpush2.msra.mxu0 0.0
    %5271 = vmatprep.subr.mxu0 0.0
    %5272 = vmatpush2.msra.mxu0 0.0
    %5273 = vmatprep.subr.mxu0 0.0
    %5274 = vmatpush2.msra.mxu0 0.0
    %5275 = vmatprep.subr.mxu0 0.0
    %5276 = vmatpush2.msra.mxu0 0.0
    %5277 = vmatprep.subr.mxu0 0.0
    %5278 = vmatpush2.msra.mxu0 0.0
    %5279 = vmatprep.subr.mxu0 0.0
    %5280 = vmatpush2.msra.mxu0 0.0
    %5281 = vmatprep.subr.mxu0 0.0
    %5282 = vmatpush2.msra.mxu0 0.0
    %5283 = vmatprep.subr.mxu0 0.0
    %5284 = vmatpush2.msra.mxu0 0.0
    %5285 = vmatprep.subr.mxu0 0.0
    %5286 = vmatpush2.msra.mxu0 0.0
    %5287 = vmatprep.mubr.f32.mxu0 0.0
    %5288 = vmatmul.mubr.f32.gmra.mxu0 %v5209
    %v5289 = vpop.f32.mrf.mxu0
    %v5290 = vadd.f32 0.0, %v5289
    %v5291 = vpop.f32.mrf.mxu0
    %v5292 = vadd.f32 0.0, %v5291
    %5293 = vmatprep.mubr.f32.mxu0 0.0
    %5294 = vmatmul.mubr.f32.gmra.mxu0 %v5212
    %v5295 = vpop.f32.mrf.mxu0
    %v5296 = vadd.f32 0.0, %v5295
    %v5297 = vpop.f32.mrf.mxu0
    %v5298 = vadd.f32 0.0, %v5297
    %5299 = vmatprep.mubr.f32.mxu0 0.0
    %5300 = vmatmul.mubr.f32.gmra.mxu0 %v5215
    %v5301 = vpop.f32.mrf.mxu0
    %v5302 = vadd.f32 0.0, %v5301
    %v5303 = vpop.f32.mrf.mxu0
    %v5304 = vadd.f32 0.0, %v5303
    %5305 = vmatprep.mubr.f32.mxu0 0.0
    %5306 = vmatmul.mubr.f32.gmra.mxu0 %v5218
    %v5307 = vpop.f32.mrf.mxu0
    %v5308 = vadd.f32 0.0, %v5307
    %v5309 = vpop.f32.mrf.mxu0
    %v5310 = vadd.f32 0.0, %v5309
    %5311 = vmatprep.mubr.f32.mxu0 0.0
    %5312 = vmatmul.mubr.f32.gmra.mxu0 %v5221
    %v5313 = vpop.f32.mrf.mxu0
    %v5314 = vadd.f32 0.0, %v5313
    %v5315 = vpop.f32.mrf.mxu0
    %v5316 = vadd.f32 0.0, %v5315
    %5317 = vdwg.mxu0
    %s5318 = scalar_lea.vmem [#allocation7], 80
    %v5319 = vld [vmem:[%s5318] sm:$0xff]
    %v5320 = vld [vmem:[%s5318 + $0x8] sm:$0xff]
    %v5321 = vld [vmem:[%s5318 + $0x10] sm:$0xff]
    %v5322 = vld [vmem:[%s5318 + $0x18] sm:$0xff]
    %v5323 = vld [vmem:[%s5318 + $0x20] sm:$0xff]
    %v5325 = vsel %vm5091, %v5319, 0
    %v5328 = vsel %vm5091, %v5320, 0
    %v5331 = vsel %vm5091, %v5321, 0
    %v5334 = vsel %vm5091, %v5322, 0
    %v5337 = vsel %vm5091, %v5323, 0
    %5339 = vmatprep.subr.mxu0 0.0
    %5340 = vmatpush1.msra.mxu0 0.0
    %5341 = vmatprep.subr.mxu0 0.0
    %5342 = vmatpush1.msra.mxu0 0.0
    %5343 = vmatprep.subr.mxu0 %v5085
    %5344 = vmatpush1.msra.mxu0 %v5084
    %5345 = vmatprep.subr.mxu0 %v5083
    %5346 = vmatpush1.msra.mxu0 %v5082
    %5347 = vmatprep.subr.mxu0 %v5081
    %5348 = vmatpush1.msra.mxu0 %v5080
    %5349 = vmatprep.subr.mxu0 %v5079
    %5350 = vmatpush1.msra.mxu0 %v5078
    %5351 = vmatprep.subr.mxu0 %v5077
    %5352 = vmatpush1.msra.mxu0 %v5076
    %5353 = vmatprep.subr.mxu0 %v5075
    %5354 = vmatpush1.msra.mxu0 %v5074
    %5355 = vmatprep.subr.mxu0 %v5073
    %5356 = vmatpush1.msra.mxu0 %v5072
    %5357 = vmatprep.subr.mxu0 %v5071
    %5358 = vmatpush1.msra.mxu0 %v5070
    %5359 = vmatprep.subr.mxu0 %v5069
    %5360 = vmatpush1.msra.mxu0 %v5068
    %5361 = vmatprep.subr.mxu0 %v5067
    %5362 = vmatpush1.msra.mxu0 %v5066
    %5363 = vmatprep.subr.mxu0 %v5065
    %5364 = vmatpush1.msra.mxu0 %v5064
    %5365 = vmatprep.subr.mxu0 %v5063
    %5366 = vmatpush1.msra.mxu0 %v5062
    %5367 = vmatprep.subr.mxu0 %v5061
    %5368 = vmatpush1.msra.mxu0 %v5060
    %5369 = vmatprep.subr.mxu0 %v5059
    %5370 = vmatpush1.msra.mxu0 %v5058
    %5371 = vmatprep.subr.mxu0 0.0
    %5372 = vmatpush2.msra.mxu0 0.0
    %5373 = vmatprep.subr.mxu0 0.0
    %5374 = vmatpush2.msra.mxu0 0.0
    %5375 = vmatprep.subr.mxu0 0.0
    %5376 = vmatpush2.msra.mxu0 0.0
    %5377 = vmatprep.subr.mxu0 0.0
    %5378 = vmatpush2.msra.mxu0 0.0
    %5379 = vmatprep.subr.mxu0 0.0
    %5380 = vmatpush2.msra.mxu0 0.0
    %5381 = vmatprep.subr.mxu0 0.0
    %5382 = vmatpush2.msra.mxu0 0.0
    %5383 = vmatprep.subr.mxu0 0.0
    %5384 = vmatpush2.msra.mxu0 0.0
    %5385 = vmatprep.subr.mxu0 0.0
    %5386 = vmatpush2.msra.mxu0 0.0
    %5387 = vmatprep.subr.mxu0 0.0
    %5388 = vmatpush2.msra.mxu0 0.0
    %5389 = vmatprep.subr.mxu0 0.0
    %5390 = vmatpush2.msra.mxu0 0.0
    %5391 = vmatprep.subr.mxu0 0.0
    %5392 = vmatpush2.msra.mxu0 0.0
    %5393 = vmatprep.subr.mxu0 0.0
    %5394 = vmatpush2.msra.mxu0 0.0
    %5395 = vmatprep.subr.mxu0 0.0
    %5396 = vmatpush2.msra.mxu0 0.0
    %5397 = vmatprep.subr.mxu0 0.0
    %5398 = vmatpush2.msra.mxu0 0.0
    %5399 = vmatprep.subr.mxu0 0.0
    %5400 = vmatpush2.msra.mxu0 0.0
    %5401 = vmatprep.subr.mxu0 0.0
    %5402 = vmatpush2.msra.mxu0 0.0
    %5403 = vmatprep.mubr.f32.mxu0 0.0
    %5404 = vmatmul.mubr.f32.gmra.mxu0 %v5325
    %v5405 = vpop.f32.mrf.mxu0
    %v5406 = vadd.f32 0.0, %v5405
    %v5407 = vpop.f32.mrf.mxu0
    %v5408 = vadd.f32 0.0, %v5407
    %5409 = vmatprep.mubr.f32.mxu0 0.0
    %5410 = vmatmul.mubr.f32.gmra.mxu0 %v5328
    %v5411 = vpop.f32.mrf.mxu0
    %v5412 = vadd.f32 0.0, %v5411
    %v5413 = vpop.f32.mrf.mxu0
    %v5414 = vadd.f32 0.0, %v5413
    %5415 = vmatprep.mubr.f32.mxu0 0.0
    %5416 = vmatmul.mubr.f32.gmra.mxu0 %v5331
    %v5417 = vpop.f32.mrf.mxu0
    %v5418 = vadd.f32 0.0, %v5417
    %v5419 = vpop.f32.mrf.mxu0
    %v5420 = vadd.f32 0.0, %v5419
    %5421 = vmatprep.mubr.f32.mxu0 0.0
    %5422 = vmatmul.mubr.f32.gmra.mxu0 %v5334
    %v5423 = vpop.f32.mrf.mxu0
    %v5424 = vadd.f32 0.0, %v5423
    %v5425 = vpop.f32.mrf.mxu0
    %v5426 = vadd.f32 0.0, %v5425
    %5427 = vmatprep.mubr.f32.mxu0 0.0
    %5428 = vmatmul.mubr.f32.gmra.mxu0 %v5337
    %v5429 = vpop.f32.mrf.mxu0
    %v5430 = vadd.f32 0.0, %v5429
    %v5431 = vpop.f32.mrf.mxu0
    %v5432 = vadd.f32 0.0, %v5431
    %5433 = vdwg.mxu0
    %s5434 = scalar_lea.vmem [#allocation7], 120
    %v5435 = vld [vmem:[%s5434] sm:$0xff]
    %v5436 = vld [vmem:[%s5434 + $0x8] sm:$0xff]
    %v5437 = vld [vmem:[%s5434 + $0x10] sm:$0xff]
    %v5438 = vld [vmem:[%s5434 + $0x18] sm:$0xff]
    %v5439 = vld [vmem:[%s5434 + $0x20] sm:$0xff]
    %v5441 = vsel %vm5091, %v5435, 0
    %v5444 = vsel %vm5091, %v5436, 0
    %v5447 = vsel %vm5091, %v5437, 0
    %v5450 = vsel %vm5091, %v5438, 0
    %v5453 = vsel %vm5091, %v5439, 0
    %5455 = vmatprep.subr.mxu0 0.0
    %5456 = vmatpush1.msra.mxu0 0.0
    %5457 = vmatprep.subr.mxu0 0.0
    %5458 = vmatpush1.msra.mxu0 0.0
    %5459 = vmatprep.subr.mxu0 %v5085
    %5460 = vmatpush1.msra.mxu0 %v5084
    %5461 = vmatprep.subr.mxu0 %v5083
    %5462 = vmatpush1.msra.mxu0 %v5082
    %5463 = vmatprep.subr.mxu0 %v5081
    %5464 = vmatpush1.msra.mxu0 %v5080
    %5465 = vmatprep.subr.mxu0 %v5079
    %5466 = vmatpush1.msra.mxu0 %v5078
    %5467 = vmatprep.subr.mxu0 %v5077
    %5468 = vmatpush1.msra.mxu0 %v5076
    %5469 = vmatprep.subr.mxu0 %v5075
    %5470 = vmatpush1.msra.mxu0 %v5074
    %5471 = vmatprep.subr.mxu0 %v5073
    %5472 = vmatpush1.msra.mxu0 %v5072
    %5473 = vmatprep.subr.mxu0 %v5071
    %5474 = vmatpush1.msra.mxu0 %v5070
    %5475 = vmatprep.subr.mxu0 %v5069
    %5476 = vmatpush1.msra.mxu0 %v5068
    %5477 = vmatprep.subr.mxu0 %v5067
    %5478 = vmatpush1.msra.mxu0 %v5066
    %5479 = vmatprep.subr.mxu0 %v5065
    %5480 = vmatpush1.msra.mxu0 %v5064
    %5481 = vmatprep.subr.mxu0 %v5063
    %5482 = vmatpush1.msra.mxu0 %v5062
    %5483 = vmatprep.subr.mxu0 %v5061
    %5484 = vmatpush1.msra.mxu0 %v5060
    %5485 = vmatprep.subr.mxu0 %v5059
    %5486 = vmatpush1.msra.mxu0 %v5058
    %5487 = vmatprep.subr.mxu0 0.0
    %5488 = vmatpush2.msra.mxu0 0.0
    %5489 = vmatprep.subr.mxu0 0.0
    %5490 = vmatpush2.msra.mxu0 0.0
    %5491 = vmatprep.subr.mxu0 0.0
    %5492 = vmatpush2.msra.mxu0 0.0
    %5493 = vmatprep.subr.mxu0 0.0
    %5494 = vmatpush2.msra.mxu0 0.0
    %5495 = vmatprep.subr.mxu0 0.0
    %5496 = vmatpush2.msra.mxu0 0.0
    %5497 = vmatprep.subr.mxu0 0.0
    %5498 = vmatpush2.msra.mxu0 0.0
    %5499 = vmatprep.subr.mxu0 0.0
    %5500 = vmatpush2.msra.mxu0 0.0
    %5501 = vmatprep.subr.mxu0 0.0
    %5502 = vmatpush2.msra.mxu0 0.0
    %5503 = vmatprep.subr.mxu0 0.0
    %5504 = vmatpush2.msra.mxu0 0.0
    %5505 = vmatprep.subr.mxu0 0.0
    %5506 = vmatpush2.msra.mxu0 0.0
    %5507 = vmatprep.subr.mxu0 0.0
    %5508 = vmatpush2.msra.mxu0 0.0
    %5509 = vmatprep.subr.mxu0 0.0
    %5510 = vmatpush2.msra.mxu0 0.0
    %5511 = vmatprep.subr.mxu0 0.0
    %5512 = vmatpush2.msra.mxu0 0.0
    %5513 = vmatprep.subr.mxu0 0.0
    %5514 = vmatpush2.msra.mxu0 0.0
    %5515 = vmatprep.subr.mxu0 0.0
    %5516 = vmatpush2.msra.mxu0 0.0
    %5517 = vmatprep.subr.mxu0 0.0
    %5518 = vmatpush2.msra.mxu0 0.0
    %5519 = vmatprep.mubr.f32.mxu0 0.0
    %5520 = vmatmul.mubr.f32.gmra.mxu0 %v5441
    %v5521 = vpop.f32.mrf.mxu0
    %v5522 = vadd.f32 0.0, %v5521
    %v5523 = vpop.f32.mrf.mxu0
    %v5524 = vadd.f32 0.0, %v5523
    %5525 = vmatprep.mubr.f32.mxu0 0.0
    %5526 = vmatmul.mubr.f32.gmra.mxu0 %v5444
    %v5527 = vpop.f32.mrf.mxu0
    %v5528 = vadd.f32 0.0, %v5527
    %v5529 = vpop.f32.mrf.mxu0
    %v5530 = vadd.f32 0.0, %v5529
    %5531 = vmatprep.mubr.f32.mxu0 0.0
    %5532 = vmatmul.mubr.f32.gmra.mxu0 %v5447
    %v5533 = vpop.f32.mrf.mxu0
    %v5534 = vadd.f32 0.0, %v5533
    %v5535 = vpop.f32.mrf.mxu0
    %v5536 = vadd.f32 0.0, %v5535
    %5537 = vmatprep.mubr.f32.mxu0 0.0
    %5538 = vmatmul.mubr.f32.gmra.mxu0 %v5450
    %v5539 = vpop.f32.mrf.mxu0
    %v5540 = vadd.f32 0.0, %v5539
    %v5541 = vpop.f32.mrf.mxu0
    %v5542 = vadd.f32 0.0, %v5541
    %5543 = vmatprep.mubr.f32.mxu0 0.0
    %5544 = vmatmul.mubr.f32.gmra.mxu0 %v5453
    %v5545 = vpop.f32.mrf.mxu0
    %v5546 = vadd.f32 0.0, %v5545
    %v5547 = vpop.f32.mrf.mxu0
    %v5548 = vadd.f32 0.0, %v5547
    %5549 = vdwg.mxu0
    %s5550 = scalar_lea.vmem [#allocation7], 160
    %v5551 = vld [vmem:[%s5550] sm:$0xff]
    %v5552 = vld [vmem:[%s5550 + $0x8] sm:$0xff]
    %v5553 = vld [vmem:[%s5550 + $0x10] sm:$0xff]
    %v5554 = vld [vmem:[%s5550 + $0x18] sm:$0xff]
    %v5555 = vld [vmem:[%s5550 + $0x20] sm:$0xff]
    %v5557 = vsel %vm5091, %v5551, 0
    %v5560 = vsel %vm5091, %v5552, 0
    %v5563 = vsel %vm5091, %v5553, 0
    %v5566 = vsel %vm5091, %v5554, 0
    %v5569 = vsel %vm5091, %v5555, 0
    %5571 = vmatprep.subr.mxu0 0.0
    %5572 = vmatpush1.msra.mxu0 0.0
    %5573 = vmatprep.subr.mxu0 0.0
    %5574 = vmatpush1.msra.mxu0 0.0
    %5575 = vmatprep.subr.mxu0 %v5085
    %5576 = vmatpush1.msra.mxu0 %v5084
    %5577 = vmatprep.subr.mxu0 %v5083
    %5578 = vmatpush1.msra.mxu0 %v5082
    %5579 = vmatprep.subr.mxu0 %v5081
    %5580 = vmatpush1.msra.mxu0 %v5080
    %5581 = vmatprep.subr.mxu0 %v5079
    %5582 = vmatpush1.msra.mxu0 %v5078
    %5583 = vmatprep.subr.mxu0 %v5077
    %5584 = vmatpush1.msra.mxu0 %v5076
    %5585 = vmatprep.subr.mxu0 %v5075
    %5586 = vmatpush1.msra.mxu0 %v5074
    %5587 = vmatprep.subr.mxu0 %v5073
    %5588 = vmatpush1.msra.mxu0 %v5072
    %5589 = vmatprep.subr.mxu0 %v5071
    %5590 = vmatpush1.msra.mxu0 %v5070
    %5591 = vmatprep.subr.mxu0 %v5069
    %5592 = vmatpush1.msra.mxu0 %v5068
    %5593 = vmatprep.subr.mxu0 %v5067
    %5594 = vmatpush1.msra.mxu0 %v5066
    %5595 = vmatprep.subr.mxu0 %v5065
    %5596 = vmatpush1.msra.mxu0 %v5064
    %5597 = vmatprep.subr.mxu0 %v5063
    %5598 = vmatpush1.msra.mxu0 %v5062
    %5599 = vmatprep.subr.mxu0 %v5061
    %5600 = vmatpush1.msra.mxu0 %v5060
    %5601 = vmatprep.subr.mxu0 %v5059
    %5602 = vmatpush1.msra.mxu0 %v5058
    %5603 = vmatprep.subr.mxu0 0.0
    %5604 = vmatpush2.msra.mxu0 0.0
    %5605 = vmatprep.subr.mxu0 0.0
    %5606 = vmatpush2.msra.mxu0 0.0
    %5607 = vmatprep.subr.mxu0 0.0
    %5608 = vmatpush2.msra.mxu0 0.0
    %5609 = vmatprep.subr.mxu0 0.0
    %5610 = vmatpush2.msra.mxu0 0.0
    %5611 = vmatprep.subr.mxu0 0.0
    %5612 = vmatpush2.msra.mxu0 0.0
    %5613 = vmatprep.subr.mxu0 0.0
    %5614 = vmatpush2.msra.mxu0 0.0
    %5615 = vmatprep.subr.mxu0 0.0
    %5616 = vmatpush2.msra.mxu0 0.0
    %5617 = vmatprep.subr.mxu0 0.0
    %5618 = vmatpush2.msra.mxu0 0.0
    %5619 = vmatprep.subr.mxu0 0.0
    %5620 = vmatpush2.msra.mxu0 0.0
    %5621 = vmatprep.subr.mxu0 0.0
    %5622 = vmatpush2.msra.mxu0 0.0
    %5623 = vmatprep.subr.mxu0 0.0
    %5624 = vmatpush2.msra.mxu0 0.0
    %5625 = vmatprep.subr.mxu0 0.0
    %5626 = vmatpush2.msra.mxu0 0.0
    %5627 = vmatprep.subr.mxu0 0.0
    %5628 = vmatpush2.msra.mxu0 0.0
    %5629 = vmatprep.subr.mxu0 0.0
    %5630 = vmatpush2.msra.mxu0 0.0
    %5631 = vmatprep.subr.mxu0 0.0
    %5632 = vmatpush2.msra.mxu0 0.0
    %5633 = vmatprep.subr.mxu0 0.0
    %5634 = vmatpush2.msra.mxu0 0.0
    %5635 = vmatprep.mubr.f32.mxu0 0.0
    %5636 = vmatmul.mubr.f32.gmra.mxu0 %v5557
    %v5637 = vpop.f32.mrf.mxu0
    %v5638 = vadd.f32 0.0, %v5637
    %v5639 = vpop.f32.mrf.mxu0
    %v5640 = vadd.f32 0.0, %v5639
    %5641 = vmatprep.mubr.f32.mxu0 0.0
    %5642 = vmatmul.mubr.f32.gmra.mxu0 %v5560
    %v5643 = vpop.f32.mrf.mxu0
    %v5644 = vadd.f32 0.0, %v5643
    %v5645 = vpop.f32.mrf.mxu0
    %v5646 = vadd.f32 0.0, %v5645
    %5647 = vmatprep.mubr.f32.mxu0 0.0
    %5648 = vmatmul.mubr.f32.gmra.mxu0 %v5563
    %v5649 = vpop.f32.mrf.mxu0
    %v5650 = vadd.f32 0.0, %v5649
    %v5651 = vpop.f32.mrf.mxu0
    %v5652 = vadd.f32 0.0, %v5651
    %5653 = vmatprep.mubr.f32.mxu0 0.0
    %5654 = vmatmul.mubr.f32.gmra.mxu0 %v5566
    %v5655 = vpop.f32.mrf.mxu0
    %v5656 = vadd.f32 0.0, %v5655
    %v5657 = vpop.f32.mrf.mxu0
    %v5658 = vadd.f32 0.0, %v5657
    %5659 = vmatprep.mubr.f32.mxu0 0.0
    %5660 = vmatmul.mubr.f32.gmra.mxu0 %v5569
    %v5661 = vpop.f32.mrf.mxu0
    %v5662 = vadd.f32 0.0, %v5661
    %v5663 = vpop.f32.mrf.mxu0
    %v5664 = vadd.f32 0.0, %v5663
    %5665 = vdwg.mxu0
    %s5666 = scalar_lea.vmem [#allocation7], 200
    %v5667 = vld [vmem:[%s5666] sm:$0xff]
    %v5668 = vld [vmem:[%s5666 + $0x8] sm:$0xff]
    %v5669 = vld [vmem:[%s5666 + $0x10] sm:$0xff]
    %v5670 = vld [vmem:[%s5666 + $0x18] sm:$0xff]
    %v5671 = vld [vmem:[%s5666 + $0x20] sm:$0xff]
    %v5673 = vsel %vm5091, %v5667, 0
    %v5676 = vsel %vm5091, %v5668, 0
    %v5679 = vsel %vm5091, %v5669, 0
    %v5682 = vsel %vm5091, %v5670, 0
    %v5685 = vsel %vm5091, %v5671, 0
    %5687 = vmatprep.subr.mxu0 0.0
    %5688 = vmatpush1.msra.mxu0 0.0
    %5689 = vmatprep.subr.mxu0 0.0
    %5690 = vmatpush1.msra.mxu0 0.0
    %5691 = vmatprep.subr.mxu0 %v5085
    %5692 = vmatpush1.msra.mxu0 %v5084
    %5693 = vmatprep.subr.mxu0 %v5083
    %5694 = vmatpush1.msra.mxu0 %v5082
    %5695 = vmatprep.subr.mxu0 %v5081
    %5696 = vmatpush1.msra.mxu0 %v5080
    %5697 = vmatprep.subr.mxu0 %v5079
    %5698 = vmatpush1.msra.mxu0 %v5078
    %5699 = vmatprep.subr.mxu0 %v5077
    %5700 = vmatpush1.msra.mxu0 %v5076
    %5701 = vmatprep.subr.mxu0 %v5075
    %5702 = vmatpush1.msra.mxu0 %v5074
    %5703 = vmatprep.subr.mxu0 %v5073
    %5704 = vmatpush1.msra.mxu0 %v5072
    %5705 = vmatprep.subr.mxu0 %v5071
    %5706 = vmatpush1.msra.mxu0 %v5070
    %5707 = vmatprep.subr.mxu0 %v5069
    %5708 = vmatpush1.msra.mxu0 %v5068
    %5709 = vmatprep.subr.mxu0 %v5067
    %5710 = vmatpush1.msra.mxu0 %v5066
    %5711 = vmatprep.subr.mxu0 %v5065
    %5712 = vmatpush1.msra.mxu0 %v5064
    %5713 = vmatprep.subr.mxu0 %v5063
    %5714 = vmatpush1.msra.mxu0 %v5062
    %5715 = vmatprep.subr.mxu0 %v5061
    %5716 = vmatpush1.msra.mxu0 %v5060
    %5717 = vmatprep.subr.mxu0 %v5059
    %5718 = vmatpush1.msra.mxu0 %v5058
    %5719 = vmatprep.subr.mxu0 0.0
    %5720 = vmatpush2.msra.mxu0 0.0
    %5721 = vmatprep.subr.mxu0 0.0
    %5722 = vmatpush2.msra.mxu0 0.0
    %5723 = vmatprep.subr.mxu0 0.0
    %5724 = vmatpush2.msra.mxu0 0.0
    %5725 = vmatprep.subr.mxu0 0.0
    %5726 = vmatpush2.msra.mxu0 0.0
    %5727 = vmatprep.subr.mxu0 0.0
    %5728 = vmatpush2.msra.mxu0 0.0
    %5729 = vmatprep.subr.mxu0 0.0
    %5730 = vmatpush2.msra.mxu0 0.0
    %5731 = vmatprep.subr.mxu0 0.0
    %5732 = vmatpush2.msra.mxu0 0.0
    %5733 = vmatprep.subr.mxu0 0.0
    %5734 = vmatpush2.msra.mxu0 0.0
    %5735 = vmatprep.subr.mxu0 0.0
    %5736 = vmatpush2.msra.mxu0 0.0
    %5737 = vmatprep.subr.mxu0 0.0
    %5738 = vmatpush2.msra.mxu0 0.0
    %5739 = vmatprep.subr.mxu0 0.0
    %5740 = vmatpush2.msra.mxu0 0.0
    %5741 = vmatprep.subr.mxu0 0.0
    %5742 = vmatpush2.msra.mxu0 0.0
    %5743 = vmatprep.subr.mxu0 0.0
    %5744 = vmatpush2.msra.mxu0 0.0
    %5745 = vmatprep.subr.mxu0 0.0
    %5746 = vmatpush2.msra.mxu0 0.0
    %5747 = vmatprep.subr.mxu0 0.0
    %5748 = vmatpush2.msra.mxu0 0.0
    %5749 = vmatprep.subr.mxu0 0.0
    %5750 = vmatpush2.msra.mxu0 0.0
    %5751 = vmatprep.mubr.f32.mxu0 0.0
    %5752 = vmatmul.mubr.f32.gmra.mxu0 %v5673
    %v5753 = vpop.f32.mrf.mxu0
    %v5754 = vadd.f32 0.0, %v5753
    %v5755 = vpop.f32.mrf.mxu0
    %v5756 = vadd.f32 0.0, %v5755
    %5757 = vmatprep.mubr.f32.mxu0 0.0
    %5758 = vmatmul.mubr.f32.gmra.mxu0 %v5676
    %v5759 = vpop.f32.mrf.mxu0
    %v5760 = vadd.f32 0.0, %v5759
    %v5761 = vpop.f32.mrf.mxu0
    %v5762 = vadd.f32 0.0, %v5761
    %5763 = vmatprep.mubr.f32.mxu0 0.0
    %5764 = vmatmul.mubr.f32.gmra.mxu0 %v5679
    %v5765 = vpop.f32.mrf.mxu0
    %v5766 = vadd.f32 0.0, %v5765
    %v5767 = vpop.f32.mrf.mxu0
    %v5768 = vadd.f32 0.0, %v5767
    %5769 = vmatprep.mubr.f32.mxu0 0.0
    %5770 = vmatmul.mubr.f32.gmra.mxu0 %v5682
    %v5771 = vpop.f32.mrf.mxu0
    %v5772 = vadd.f32 0.0, %v5771
    %v5773 = vpop.f32.mrf.mxu0
    %v5774 = vadd.f32 0.0, %v5773
    %5775 = vmatprep.mubr.f32.mxu0 0.0
    %5776 = vmatmul.mubr.f32.gmra.mxu0 %v5685
    %v5777 = vpop.f32.mrf.mxu0
    %v5778 = vadd.f32 0.0, %v5777
    %v5779 = vpop.f32.mrf.mxu0
    %v5780 = vadd.f32 0.0, %v5779
    %5781 = vdwg.mxu0
    %v5782 = vld [vmem:[#allocation9] sm:$0xff]
    %v5783 = vld [vmem:[#allocation9 + $0x8] sm:$0xff]
    %v5784 = vld [vmem:[#allocation9 + $0x10] sm:$0xff]
    %v5785 = vld [vmem:[#allocation9 + $0x18] sm:$0xff]
    %v5786 = vld [vmem:[#allocation9 + $0x20] sm:$0xff]
    %v5787 = vld [vmem:[#allocation9 + $0x28] sm:$0xff]
    %v5788 = vld [vmem:[#allocation9 + $0x30] sm:$0xff]
    %v5789 = vld [vmem:[#allocation9 + $0x38] sm:$0xff]
    %v5790 = vld [vmem:[#allocation9 + $0x40] sm:$0xff]
    %v5791 = vld [vmem:[#allocation9 + $0x48] sm:$0xff]
    %v5792 = vld [vmem:[#allocation9 + $0x50] sm:$0xff]
    %v5793 = vld [vmem:[#allocation9 + $0x58] sm:$0xff]
    %v5794 = vld [vmem:[#allocation9 + $0x60] sm:$0xff]
    %v5795 = vld [vmem:[#allocation9 + $0x68] sm:$0xff]
    %v5796 = vld [vmem:[#allocation9 + $0x70] sm:$0xff]
    %v5797 = vld [vmem:[#allocation9 + $0x78] sm:$0xff]
    %v5798 = vld [vmem:[#allocation9 + $0x80] sm:$0xff]
    %v5799 = vld [vmem:[#allocation9 + $0x88] sm:$0xff]
    %v5800 = vld [vmem:[#allocation9 + $0x90] sm:$0xff]
    %v5801 = vld [vmem:[#allocation9 + $0x98] sm:$0xff]
    %v5802 = vld [vmem:[#allocation9 + $0xa0] sm:$0xff]
    %v5803 = vld [vmem:[#allocation9 + $0xa8] sm:$0xff]
    %v5804 = vld [vmem:[#allocation9 + $0xb0] sm:$0xff]
    %v5805 = vld [vmem:[#allocation9 + $0xb8] sm:$0xff]
    %v5806 = vld [vmem:[#allocation9 + $0xc0] sm:$0xff]
    %v5807 = vld [vmem:[#allocation9 + $0xc8] sm:$0xff]
    %v5808 = vld [vmem:[#allocation9 + $0xd0] sm:$0xff]
    %v5809 = vld [vmem:[#allocation9 + $0xd8] sm:$0xff]
    %v5810 = vld [vmem:[#allocation9 + $0xe0] sm:$0xff]
    %v5811 = vld [vmem:[#allocation9 + $0xe8] sm:$0xff]
    %v5812 = vld [vmem:[#allocation9 + $0xf0] sm:$0xff]
    %v5813 = vld [vmem:[#allocation9 + $0xf8] sm:$0xff]
    %v5814 = vld [vmem:[#allocation9 + $0x100] sm:$0xff]
    %v5815 = vld [vmem:[#allocation9 + $0x108] sm:$0xff]
    %v5816 = vld [vmem:[#allocation9 + $0x110] sm:$0xff]
    %v5817 = vld [vmem:[#allocation9 + $0x118] sm:$0xff]
    %v5818 = vld [vmem:[#allocation9 + $0x120] sm:$0xff]
    %v5819 = vld [vmem:[#allocation9 + $0x128] sm:$0xff]
    %v5820 = vld [vmem:[#allocation9 + $0x130] sm:$0xff]
    %v5821 = vld [vmem:[#allocation9 + $0x138] sm:$0xff]
    %v5822 = vld [vmem:[#allocation9 + $0x140] sm:$0xff]
    %v5823 = vld [vmem:[#allocation9 + $0x148] sm:$0xff]
    %v5824 = vld [vmem:[#allocation9 + $0x150] sm:$0xff]
    %v5825 = vld [vmem:[#allocation9 + $0x158] sm:$0xff]
    %v5826 = vld [vmem:[#allocation9 + $0x160] sm:$0xff]
    %v5827 = vld [vmem:[#allocation9 + $0x168] sm:$0xff]
    %v5828 = vld [vmem:[#allocation9 + $0x170] sm:$0xff]
    %v5829 = vld [vmem:[#allocation9 + $0x178] sm:$0xff]
    %v5830 = vld [vmem:[#allocation9 + $0x180] sm:$0xff]
    %v5831 = vld [vmem:[#allocation9 + $0x188] sm:$0xff]
    %v5832 = vld [vmem:[#allocation9 + $0x190] sm:$0xff]
    %v5833 = vld [vmem:[#allocation9 + $0x198] sm:$0xff]
    %v5834 = vld [vmem:[#allocation9 + $0x1a0] sm:$0xff]
    %v5835 = vld [vmem:[#allocation9 + $0x1a8] sm:$0xff]
    %v5836 = vld [vmem:[#allocation9 + $0x1b0] sm:$0xff]
    %v5837 = vld [vmem:[#allocation9 + $0x1b8] sm:$0xff]
    %v5838 = vld [vmem:[#allocation9 + $0x1c0] sm:$0xff]
    %v5839 = vld [vmem:[#allocation9 + $0x1c8] sm:$0xff]
    %v5840 = vld [vmem:[#allocation9 + $0x1d0] sm:$0xff]
    %v5841 = vld [vmem:[#allocation9 + $0x1d8] sm:$0xff]
    %v5842 = vld [vmem:[#allocation9 + $0x1e0] sm:$0xff]
    %v5843 = vld [vmem:[#allocation9 + $0x1e8] sm:$0xff]
    %v5844 = vld [vmem:[#allocation9 + $0x1f0] sm:$0xff]
    %v5845 = vld [vmem:[#allocation9 + $0x1f8] sm:$0xff]
    %v5846 = vld [vmem:[#allocation9 + $0x200] sm:$0xff]
    %v5847 = vld [vmem:[#allocation9 + $0x208] sm:$0xff]
    %v5848 = vld [vmem:[#allocation9 + $0x210] sm:$0xff]
    %v5849 = vld [vmem:[#allocation9 + $0x218] sm:$0xff]
    %v5850 = vld [vmem:[#allocation9 + $0x220] sm:$0xff]
    %v5851 = vld [vmem:[#allocation9 + $0x228] sm:$0xff]
    %v5852 = vld [vmem:[#allocation9 + $0x230] sm:$0xff]
    %v5853 = vld [vmem:[#allocation9 + $0x238] sm:$0xff]
    %v5854 = vld [vmem:[#allocation9 + $0x240] sm:$0xff]
    %v5855 = vld [vmem:[#allocation9 + $0x248] sm:$0xff]
    %v5856 = vld [vmem:[#allocation9 + $0x250] sm:$0xff]
    %v5857 = vld [vmem:[#allocation9 + $0x258] sm:$0xff]
    %v5858 = vld [vmem:[#allocation9 + $0x260] sm:$0xff]
    %v5859 = vld [vmem:[#allocation9 + $0x268] sm:$0xff]
    %v5860 = vld [vmem:[#allocation9 + $0x270] sm:$0xff]
    %v5861 = vld [vmem:[#allocation9 + $0x278] sm:$0xff]
    %v5862 = vld [vmem:[#allocation9 + $0x280] sm:$0xff]
    %v5863 = vld [vmem:[#allocation9 + $0x288] sm:$0xff]
    %v5864 = vld [vmem:[#allocation9 + $0x290] sm:$0xff]
    %v5865 = vld [vmem:[#allocation9 + $0x298] sm:$0xff]
    %v5866 = vld [vmem:[#allocation9 + $0x2a0] sm:$0xff]
    %v5867 = vld [vmem:[#allocation9 + $0x2a8] sm:$0xff]
    %v5868 = vld [vmem:[#allocation9 + $0x2b0] sm:$0xff]
    %v5869 = vld [vmem:[#allocation9 + $0x2b8] sm:$0xff]
    %v5870 = vld [vmem:[#allocation9 + $0x2c0] sm:$0xff]
    %v5871 = vld [vmem:[#allocation9 + $0x2c8] sm:$0xff]
    %v5872 = vld [vmem:[#allocation9 + $0x2d0] sm:$0xff]
    %v5873 = vld [vmem:[#allocation9 + $0x2d8] sm:$0xff]
    %v5874 = vld [vmem:[#allocation9 + $0x2e0] sm:$0xff]
    %v5875 = vld [vmem:[#allocation9 + $0x2e8] sm:$0xff]
    %v5876 = vld [vmem:[#allocation9 + $0x2f0] sm:$0xff]
    %v5877 = vld [vmem:[#allocation9 + $0x2f8] sm:$0xff]
    %v5878 = vld [vmem:[#allocation9 + $0x300] sm:$0xff]
    %v5879 = vld [vmem:[#allocation9 + $0x308] sm:$0xff]
    %v5880 = vld [vmem:[#allocation9 + $0x310] sm:$0xff]
    %v5881 = vld [vmem:[#allocation9 + $0x318] sm:$0xff]
    %v5882 = vld [vmem:[#allocation9 + $0x320] sm:$0xff]
    %v5883 = vld [vmem:[#allocation9 + $0x328] sm:$0xff]
    %v5884 = vld [vmem:[#allocation9 + $0x330] sm:$0xff]
    %v5885 = vld [vmem:[#allocation9 + $0x338] sm:$0xff]
    %v5886 = vld [vmem:[#allocation9 + $0x340] sm:$0xff]
    %v5887 = vld [vmem:[#allocation9 + $0x348] sm:$0xff]
    %v5888 = vld [vmem:[#allocation9 + $0x350] sm:$0xff]
    %v5889 = vld [vmem:[#allocation9 + $0x358] sm:$0xff]
    %v5890 = vld [vmem:[#allocation9 + $0x360] sm:$0xff]
    %v5891 = vld [vmem:[#allocation9 + $0x368] sm:$0xff]
    %v5892 = vld [vmem:[#allocation9 + $0x370] sm:$0xff]
    %v5893 = vld [vmem:[#allocation9 + $0x378] sm:$0xff]
    %v5894 = vld [vmem:[#allocation9 + $0x380] sm:$0xff]
    %v5895 = vld [vmem:[#allocation9 + $0x388] sm:$0xff]
    %v5896 = vld [vmem:[#allocation9 + $0x390] sm:$0xff]
    %v5897 = vld [vmem:[#allocation9 + $0x398] sm:$0xff]
    %v5898 = vld [vmem:[#allocation9 + $0x3a0] sm:$0xff]
    %v5899 = vld [vmem:[#allocation9 + $0x3a8] sm:$0xff]
    %v5900 = vld [vmem:[#allocation9 + $0x3b0] sm:$0xff]
    %v5901 = vld [vmem:[#allocation9 + $0x3b8] sm:$0xff]
    %v5902 = vld [vmem:[#allocation9 + $0x3c0] sm:$0xff]
    %v5903 = vld [vmem:[#allocation9 + $0x3c8] sm:$0xff]
    %v5904 = vld [vmem:[#allocation9 + $0x3d0] sm:$0xff]
    %v5905 = vld [vmem:[#allocation9 + $0x3d8] sm:$0xff]
    %v5906 = vld [vmem:[#allocation9 + $0x3e0] sm:$0xff]
    %v5907 = vld [vmem:[#allocation9 + $0x3e8] sm:$0xff]
    %v5908 = vld [vmem:[#allocation9 + $0x3f0] sm:$0xff]
    %v5909 = vld [vmem:[#allocation9 + $0x3f8] sm:$0xff]
    %s5910 = scalar_lea.vmem [#allocation9], 1024
    %v5911 = vld [vmem:[%s5910] sm:$0xff]
    %v5912 = vld [vmem:[%s5910 + $0x8] sm:$0xff]
    %v5913 = vld [vmem:[%s5910 + $0x10] sm:$0xff]
    %v5914 = vld [vmem:[%s5910 + $0x18] sm:$0xff]
    %v5915 = vld [vmem:[%s5910 + $0x20] sm:$0xff]
    %v5916 = vld [vmem:[%s5910 + $0x28] sm:$0xff]
    %v5917 = vld [vmem:[%s5910 + $0x30] sm:$0xff]
    %v5918 = vld [vmem:[%s5910 + $0x38] sm:$0xff]
    %v5919 = vld [vmem:[%s5910 + $0x40] sm:$0xff]
    %v5920 = vld [vmem:[%s5910 + $0x48] sm:$0xff]
    %v5921 = vld [vmem:[%s5910 + $0x50] sm:$0xff]
    %v5922 = vld [vmem:[%s5910 + $0x58] sm:$0xff]
    %v5923 = vld [vmem:[%s5910 + $0x60] sm:$0xff]
    %v5924 = vld [vmem:[%s5910 + $0x68] sm:$0xff]
    %v5925 = vld [vmem:[%s5910 + $0x70] sm:$0xff]
    %v5926 = vld [vmem:[%s5910 + $0x78] sm:$0xff]
    %v5927 = vld [vmem:[%s5910 + $0x80] sm:$0xff]
    %v5928 = vld [vmem:[%s5910 + $0x88] sm:$0xff]
    %v5929 = vld [vmem:[%s5910 + $0x90] sm:$0xff]
    %v5930 = vld [vmem:[%s5910 + $0x98] sm:$0xff]
    %v5931 = vld [vmem:[%s5910 + $0xa0] sm:$0xff]
    %v5932 = vld [vmem:[%s5910 + $0xa8] sm:$0xff]
    %v5933 = vld [vmem:[%s5910 + $0xb0] sm:$0xff]
    %v5934 = vld [vmem:[%s5910 + $0xb8] sm:$0xff]
    %v5935 = vld [vmem:[%s5910 + $0xc0] sm:$0xff]
    %v5936 = vld [vmem:[%s5910 + $0xc8] sm:$0xff]
    %v5937 = vld [vmem:[%s5910 + $0xd0] sm:$0xff]
    %v5938 = vld [vmem:[%s5910 + $0xd8] sm:$0xff]
    %v5939 = vld [vmem:[%s5910 + $0xe0] sm:$0xff]
    %v5940 = vld [vmem:[%s5910 + $0xe8] sm:$0xff]
    %v5941 = vld [vmem:[%s5910 + $0xf0] sm:$0xff]
    %v5942 = vld [vmem:[%s5910 + $0xf8] sm:$0xff]
    %v5943 = vld [vmem:[%s5910 + $0x100] sm:$0xff]
    %v5944 = vld [vmem:[%s5910 + $0x108] sm:$0xff]
    %v5945 = vld [vmem:[%s5910 + $0x110] sm:$0xff]
    %v5946 = vld [vmem:[%s5910 + $0x118] sm:$0xff]
    %v5947 = vld [vmem:[%s5910 + $0x120] sm:$0xff]
    %v5948 = vld [vmem:[%s5910 + $0x128] sm:$0xff]
    %v5949 = vld [vmem:[%s5910 + $0x130] sm:$0xff]
    %v5950 = vld [vmem:[%s5910 + $0x138] sm:$0xff]
    %v5951 = vld [vmem:[%s5910 + $0x140] sm:$0xff]
    %v5952 = vld [vmem:[%s5910 + $0x148] sm:$0xff]
    %v5953 = vld [vmem:[%s5910 + $0x150] sm:$0xff]
    %v5954 = vld [vmem:[%s5910 + $0x158] sm:$0xff]
    %v5955 = vld [vmem:[%s5910 + $0x160] sm:$0xff]
    %v5956 = vld [vmem:[%s5910 + $0x168] sm:$0xff]
    %v5957 = vld [vmem:[%s5910 + $0x170] sm:$0xff]
    %v5958 = vld [vmem:[%s5910 + $0x178] sm:$0xff]
    %v5959 = vld [vmem:[%s5910 + $0x180] sm:$0xff]
    %v5960 = vld [vmem:[%s5910 + $0x188] sm:$0xff]
    %v5961 = vld [vmem:[%s5910 + $0x190] sm:$0xff]
    %v5962 = vld [vmem:[%s5910 + $0x198] sm:$0xff]
    %v5963 = vld [vmem:[%s5910 + $0x1a0] sm:$0xff]
    %v5964 = vld [vmem:[%s5910 + $0x1a8] sm:$0xff]
    %v5965 = vld [vmem:[%s5910 + $0x1b0] sm:$0xff]
    %v5966 = vld [vmem:[%s5910 + $0x1b8] sm:$0xff]
    %v5967 = vld [vmem:[%s5910 + $0x1c0] sm:$0xff]
    %v5968 = vld [vmem:[%s5910 + $0x1c8] sm:$0xff]
    %v5969 = vld [vmem:[%s5910 + $0x1d0] sm:$0xff]
    %v5970 = vld [vmem:[%s5910 + $0x1d8] sm:$0xff]
    %v5971 = vld [vmem:[%s5910 + $0x1e0] sm:$0xff]
    %v5972 = vld [vmem:[%s5910 + $0x1e8] sm:$0xff]
    %v5973 = vld [vmem:[%s5910 + $0x1f0] sm:$0xff]
    %v5974 = vld [vmem:[%s5910 + $0x1f8] sm:$0xff]
    %v5975 = vld [vmem:[%s5910 + $0x200] sm:$0xff]
    %v5976 = vld [vmem:[%s5910 + $0x208] sm:$0xff]
    %v5977 = vld [vmem:[%s5910 + $0x210] sm:$0xff]
    %v5978 = vld [vmem:[%s5910 + $0x218] sm:$0xff]
    %v5979 = vld [vmem:[%s5910 + $0x220] sm:$0xff]
    %v5980 = vld [vmem:[%s5910 + $0x228] sm:$0xff]
    %v5981 = vld [vmem:[%s5910 + $0x230] sm:$0xff]
    %v5982 = vld [vmem:[%s5910 + $0x238] sm:$0xff]
    %v5983 = vld [vmem:[%s5910 + $0x240] sm:$0xff]
    %v5984 = vld [vmem:[%s5910 + $0x248] sm:$0xff]
    %v5985 = vld [vmem:[%s5910 + $0x250] sm:$0xff]
    %v5986 = vld [vmem:[%s5910 + $0x258] sm:$0xff]
    %v5987 = vld [vmem:[%s5910 + $0x260] sm:$0xff]
    %v5988 = vld [vmem:[%s5910 + $0x268] sm:$0xff]
    %v5989 = vld [vmem:[%s5910 + $0x270] sm:$0xff]
    %v5990 = vld [vmem:[%s5910 + $0x278] sm:$0xff]
    %v5991 = vld [vmem:[%s5910 + $0x280] sm:$0xff]
    %v5992 = vld [vmem:[%s5910 + $0x288] sm:$0xff]
    %v5993 = vld [vmem:[%s5910 + $0x290] sm:$0xff]
    %v5994 = vld [vmem:[%s5910 + $0x298] sm:$0xff]
    %v5995 = vld [vmem:[%s5910 + $0x2a0] sm:$0xff]
    %v5996 = vld [vmem:[%s5910 + $0x2a8] sm:$0xff]
    %v5997 = vld [vmem:[%s5910 + $0x2b0] sm:$0xff]
    %v5998 = vld [vmem:[%s5910 + $0x2b8] sm:$0xff]
    %v5999 = vld [vmem:[%s5910 + $0x2c0] sm:$0xff]
    %v6000 = vld [vmem:[%s5910 + $0x2c8] sm:$0xff]
    %v6001 = vld [vmem:[%s5910 + $0x2d0] sm:$0xff]
    %v6002 = vld [vmem:[%s5910 + $0x2d8] sm:$0xff]
    %v6003 = vld [vmem:[%s5910 + $0x2e0] sm:$0xff]
    %v6004 = vld [vmem:[%s5910 + $0x2e8] sm:$0xff]
    %v6005 = vld [vmem:[%s5910 + $0x2f0] sm:$0xff]
    %v6006 = vld [vmem:[%s5910 + $0x2f8] sm:$0xff]
    %v6007 = vld [vmem:[%s5910 + $0x300] sm:$0xff]
    %v6008 = vld [vmem:[%s5910 + $0x308] sm:$0xff]
    %v6009 = vld [vmem:[%s5910 + $0x310] sm:$0xff]
    %v6010 = vld [vmem:[%s5910 + $0x318] sm:$0xff]
    %v6011 = vld [vmem:[%s5910 + $0x320] sm:$0xff]
    %v6012 = vld [vmem:[%s5910 + $0x328] sm:$0xff]
    %v6013 = vld [vmem:[%s5910 + $0x330] sm:$0xff]
    %v6014 = vld [vmem:[%s5910 + $0x338] sm:$0xff]
    %v6015 = vld [vmem:[%s5910 + $0x340] sm:$0xff]
    %v6016 = vld [vmem:[%s5910 + $0x348] sm:$0xff]
    %v6017 = vld [vmem:[%s5910 + $0x350] sm:$0xff]
    %v6018 = vld [vmem:[%s5910 + $0x358] sm:$0xff]
    %v6019 = vld [vmem:[%s5910 + $0x360] sm:$0xff]
    %v6020 = vld [vmem:[%s5910 + $0x368] sm:$0xff]
    %v6021 = vld [vmem:[%s5910 + $0x370] sm:$0xff]
    %v6022 = vld [vmem:[%s5910 + $0x378] sm:$0xff]
    %v6023 = vld [vmem:[%s5910 + $0x380] sm:$0xff]
    %v6024 = vld [vmem:[%s5910 + $0x388] sm:$0xff]
    %v6025 = vld [vmem:[%s5910 + $0x390] sm:$0xff]
    %v6026 = vld [vmem:[%s5910 + $0x398] sm:$0xff]
    %v6027 = vld [vmem:[%s5910 + $0x3a0] sm:$0xff]
    %v6028 = vld [vmem:[%s5910 + $0x3a8] sm:$0xff]
    %v6029 = vld [vmem:[%s5910 + $0x3b0] sm:$0xff]
    %v6030 = vld [vmem:[%s5910 + $0x3b8] sm:$0xff]
    %v6031 = vld [vmem:[%s5910 + $0x3c0] sm:$0xff]
    %v6032 = vld [vmem:[%s5910 + $0x3c8] sm:$0xff]
    %v6033 = vld [vmem:[%s5910 + $0x3d0] sm:$0xff]
    %v6034 = vld [vmem:[%s5910 + $0x3d8] sm:$0xff]
    %v6035 = vld [vmem:[%s5910 + $0x3e0] sm:$0xff]
    %v6036 = vld [vmem:[%s5910 + $0x3e8] sm:$0xff]
    %v6037 = vld [vmem:[%s5910 + $0x3f0] sm:$0xff]
    %v6038 = vld [vmem:[%s5910 + $0x3f8] sm:$0xff]
    %6039 = vmatprep.subr.mxu0 %v5972
    %6040 = vmatpush1.msra.mxu0 %v5971
    %6041 = vmatprep.subr.mxu0 %v5968
    %6042 = vmatpush1.msra.mxu0 %v5967
    %6043 = vmatprep.subr.mxu0 %v5964
    %6044 = vmatpush1.msra.mxu0 %v5963
    %6045 = vmatprep.subr.mxu0 %v5960
    %6046 = vmatpush1.msra.mxu0 %v5959
    %6047 = vmatprep.subr.mxu0 %v5956
    %6048 = vmatpush1.msra.mxu0 %v5955
    %6049 = vmatprep.subr.mxu0 %v5952
    %6050 = vmatpush1.msra.mxu0 %v5951
    %6051 = vmatprep.subr.mxu0 %v5948
    %6052 = vmatpush1.msra.mxu0 %v5947
    %6053 = vmatprep.subr.mxu0 %v5944
    %6054 = vmatpush1.msra.mxu0 %v5943
    %6055 = vmatprep.subr.mxu0 %v5940
    %6056 = vmatpush1.msra.mxu0 %v5939
    %6057 = vmatprep.subr.mxu0 %v5936
    %6058 = vmatpush1.msra.mxu0 %v5935
    %6059 = vmatprep.subr.mxu0 %v5932
    %6060 = vmatpush1.msra.mxu0 %v5931
    %6061 = vmatprep.subr.mxu0 %v5928
    %6062 = vmatpush1.msra.mxu0 %v5927
    %6063 = vmatprep.subr.mxu0 %v5924
    %6064 = vmatpush1.msra.mxu0 %v5923
    %6065 = vmatprep.subr.mxu0 %v5920
    %6066 = vmatpush1.msra.mxu0 %v5919
    %6067 = vmatprep.subr.mxu0 %v5916
    %6068 = vmatpush1.msra.mxu0 %v5915
    %6069 = vmatprep.subr.mxu0 %v5912
    %6070 = vmatpush1.msra.mxu0 %v5911
    %6071 = vmatprep.subr.mxu0 %v6036
    %6072 = vmatpush2.msra.mxu0 %v6035
    %6073 = vmatprep.subr.mxu0 %v6032
    %6074 = vmatpush2.msra.mxu0 %v6031
    %6075 = vmatprep.subr.mxu0 %v6028
    %6076 = vmatpush2.msra.mxu0 %v6027
    %6077 = vmatprep.subr.mxu0 %v6024
    %6078 = vmatpush2.msra.mxu0 %v6023
    %6079 = vmatprep.subr.mxu0 %v6020
    %6080 = vmatpush2.msra.mxu0 %v6019
    %6081 = vmatprep.subr.mxu0 %v6016
    %6082 = vmatpush2.msra.mxu0 %v6015
    %6083 = vmatprep.subr.mxu0 %v6012
    %6084 = vmatpush2.msra.mxu0 %v6011
    %6085 = vmatprep.subr.mxu0 %v6008
    %6086 = vmatpush2.msra.mxu0 %v6007
    %6087 = vmatprep.subr.mxu0 %v6004
    %6088 = vmatpush2.msra.mxu0 %v6003
    %6089 = vmatprep.subr.mxu0 %v6000
    %6090 = vmatpush2.msra.mxu0 %v5999
    %6091 = vmatprep.subr.mxu0 %v5996
    %6092 = vmatpush2.msra.mxu0 %v5995
    %6093 = vmatprep.subr.mxu0 %v5992
    %6094 = vmatpush2.msra.mxu0 %v5991
    %6095 = vmatprep.subr.mxu0 %v5988
    %6096 = vmatpush2.msra.mxu0 %v5987
    %6097 = vmatprep.subr.mxu0 %v5984
    %6098 = vmatpush2.msra.mxu0 %v5983
    %6099 = vmatprep.subr.mxu0 %v5980
    %6100 = vmatpush2.msra.mxu0 %v5979
    %6101 = vmatprep.subr.mxu0 %v5976
    %6102 = vmatpush2.msra.mxu0 %v5975
    %6103 = vmatprep.mubr.f32.mxu0 %v5292
    %6104 = vmatmul.mubr.f32.gmra.mxu0 %v5290
    %v6105 = vpop.f32.mrf.mxu0
    %v6106 = vadd.f32 0.0, %v6105
    %v6107 = vpop.f32.mrf.mxu0
    %v6108 = vadd.f32 0.0, %v6107
    %6109 = vmatprep.mubr.f32.mxu0 %v5298
    %6110 = vmatmul.mubr.f32.gmra.mxu0 %v5296
    %v6111 = vpop.f32.mrf.mxu0
    %v6112 = vadd.f32 0.0, %v6111
    %v6113 = vpop.f32.mrf.mxu0
    %v6114 = vadd.f32 0.0, %v6113
    %6115 = vmatprep.mubr.f32.mxu0 %v5304
    %6116 = vmatmul.mubr.f32.gmra.mxu0 %v5302
    %v6117 = vpop.f32.mrf.mxu0
    %v6118 = vadd.f32 0.0, %v6117
    %v6119 = vpop.f32.mrf.mxu0
    %v6120 = vadd.f32 0.0, %v6119
    %6121 = vmatprep.mubr.f32.mxu0 %v5310
    %6122 = vmatmul.mubr.f32.gmra.mxu0 %v5308
    %v6123 = vpop.f32.mrf.mxu0
    %v6124 = vadd.f32 0.0, %v6123
    %v6125 = vpop.f32.mrf.mxu0
    %v6126 = vadd.f32 0.0, %v6125
    %6127 = vmatprep.mubr.f32.mxu0 %v5316
    %6128 = vmatmul.mubr.f32.gmra.mxu0 %v5314
    %v6129 = vpop.f32.mrf.mxu0
    %v6130 = vadd.f32 0.0, %v6129
    %v6131 = vpop.f32.mrf.mxu0
    %v6132 = vadd.f32 0.0, %v6131
    %6133 = vdwg.mxu0
    %6134 = vmatprep.subr.mxu0 %v5974
    %6135 = vmatpush1.msra.mxu0 %v5973
    %6136 = vmatprep.subr.mxu0 %v5970
    %6137 = vmatpush1.msra.mxu0 %v5969
    %6138 = vmatprep.subr.mxu0 %v5966
    %6139 = vmatpush1.msra.mxu0 %v5965
    %6140 = vmatprep.subr.mxu0 %v5962
    %6141 = vmatpush1.msra.mxu0 %v5961
    %6142 = vmatprep.subr.mxu0 %v5958
    %6143 = vmatpush1.msra.mxu0 %v5957
    %6144 = vmatprep.subr.mxu0 %v5954
    %6145 = vmatpush1.msra.mxu0 %v5953
    %6146 = vmatprep.subr.mxu0 %v5950
    %6147 = vmatpush1.msra.mxu0 %v5949
    %6148 = vmatprep.subr.mxu0 %v5946
    %6149 = vmatpush1.msra.mxu0 %v5945
    %6150 = vmatprep.subr.mxu0 %v5942
    %6151 = vmatpush1.msra.mxu0 %v5941
    %6152 = vmatprep.subr.mxu0 %v5938
    %6153 = vmatpush1.msra.mxu0 %v5937
    %6154 = vmatprep.subr.mxu0 %v5934
    %6155 = vmatpush1.msra.mxu0 %v5933
    %6156 = vmatprep.subr.mxu0 %v5930
    %6157 = vmatpush1.msra.mxu0 %v5929
    %6158 = vmatprep.subr.mxu0 %v5926
    %6159 = vmatpush1.msra.mxu0 %v5925
    %6160 = vmatprep.subr.mxu0 %v5922
    %6161 = vmatpush1.msra.mxu0 %v5921
    %6162 = vmatprep.subr.mxu0 %v5918
    %6163 = vmatpush1.msra.mxu0 %v5917
    %6164 = vmatprep.subr.mxu0 %v5914
    %6165 = vmatpush1.msra.mxu0 %v5913
    %6166 = vmatprep.subr.mxu0 %v6038
    %6167 = vmatpush2.msra.mxu0 %v6037
    %6168 = vmatprep.subr.mxu0 %v6034
    %6169 = vmatpush2.msra.mxu0 %v6033
    %6170 = vmatprep.subr.mxu0 %v6030
    %6171 = vmatpush2.msra.mxu0 %v6029
    %6172 = vmatprep.subr.mxu0 %v6026
    %6173 = vmatpush2.msra.mxu0 %v6025
    %6174 = vmatprep.subr.mxu0 %v6022
    %6175 = vmatpush2.msra.mxu0 %v6021
    %6176 = vmatprep.subr.mxu0 %v6018
    %6177 = vmatpush2.msra.mxu0 %v6017
    %6178 = vmatprep.subr.mxu0 %v6014
    %6179 = vmatpush2.msra.mxu0 %v6013
    %6180 = vmatprep.subr.mxu0 %v6010
    %6181 = vmatpush2.msra.mxu0 %v6009
    %6182 = vmatprep.subr.mxu0 %v6006
    %6183 = vmatpush2.msra.mxu0 %v6005
    %6184 = vmatprep.subr.mxu0 %v6002
    %6185 = vmatpush2.msra.mxu0 %v6001
    %6186 = vmatprep.subr.mxu0 %v5998
    %6187 = vmatpush2.msra.mxu0 %v5997
    %6188 = vmatprep.subr.mxu0 %v5994
    %6189 = vmatpush2.msra.mxu0 %v5993
    %6190 = vmatprep.subr.mxu0 %v5990
    %6191 = vmatpush2.msra.mxu0 %v5989
    %6192 = vmatprep.subr.mxu0 %v5986
    %6193 = vmatpush2.msra.mxu0 %v5985
    %6194 = vmatprep.subr.mxu0 %v5982
    %6195 = vmatpush2.msra.mxu0 %v5981
    %6196 = vmatprep.subr.mxu0 %v5978
    %6197 = vmatpush2.msra.mxu0 %v5977
    %6198 = vmatprep.mubr.f32.mxu0 %v5292
    %6199 = vmatmul.mubr.f32.gmra.mxu0 %v5290
    %v6200 = vpop.f32.mrf.mxu0
    %v6201 = vadd.f32 0.0, %v6200
    %v6202 = vpop.f32.mrf.mxu0
    %v6203 = vadd.f32 0.0, %v6202
    %6204 = vmatprep.mubr.f32.mxu0 %v5298
    %6205 = vmatmul.mubr.f32.gmra.mxu0 %v5296
    %v6206 = vpop.f32.mrf.mxu0
    %v6207 = vadd.f32 0.0, %v6206
    %v6208 = vpop.f32.mrf.mxu0
    %v6209 = vadd.f32 0.0, %v6208
    %6210 = vmatprep.mubr.f32.mxu0 %v5304
    %6211 = vmatmul.mubr.f32.gmra.mxu0 %v5302
    %v6212 = vpop.f32.mrf.mxu0
    %v6213 = vadd.f32 0.0, %v6212
    %v6214 = vpop.f32.mrf.mxu0
    %v6215 = vadd.f32 0.0, %v6214
    %6216 = vmatprep.mubr.f32.mxu0 %v5310
    %6217 = vmatmul.mubr.f32.gmra.mxu0 %v5308
    %v6218 = vpop.f32.mrf.mxu0
    %v6219 = vadd.f32 0.0, %v6218
    %v6220 = vpop.f32.mrf.mxu0
    %v6221 = vadd.f32 0.0, %v6220
    %6222 = vmatprep.mubr.f32.mxu0 %v5316
    %6223 = vmatmul.mubr.f32.gmra.mxu0 %v5314
    %v6224 = vpop.f32.mrf.mxu0
    %v6225 = vadd.f32 0.0, %v6224
    %v6226 = vpop.f32.mrf.mxu0
    %v6227 = vadd.f32 0.0, %v6226
    %6228 = vdwg.mxu0
    %6229 = vmatprep.subr.mxu0 %v5843
    %6230 = vmatpush1.msra.mxu0 %v5842
    %6231 = vmatprep.subr.mxu0 %v5839
    %6232 = vmatpush1.msra.mxu0 %v5838
    %6233 = vmatprep.subr.mxu0 %v5835
    %6234 = vmatpush1.msra.mxu0 %v5834
    %6235 = vmatprep.subr.mxu0 %v5831
    %6236 = vmatpush1.msra.mxu0 %v5830
    %6237 = vmatprep.subr.mxu0 %v5827
    %6238 = vmatpush1.msra.mxu0 %v5826
    %6239 = vmatprep.subr.mxu0 %v5823
    %6240 = vmatpush1.msra.mxu0 %v5822
    %6241 = vmatprep.subr.mxu0 %v5819
    %6242 = vmatpush1.msra.mxu0 %v5818
    %6243 = vmatprep.subr.mxu0 %v5815
    %6244 = vmatpush1.msra.mxu0 %v5814
    %6245 = vmatprep.subr.mxu0 %v5811
    %6246 = vmatpush1.msra.mxu0 %v5810
    %6247 = vmatprep.subr.mxu0 %v5807
    %6248 = vmatpush1.msra.mxu0 %v5806
    %6249 = vmatprep.subr.mxu0 %v5803
    %6250 = vmatpush1.msra.mxu0 %v5802
    %6251 = vmatprep.subr.mxu0 %v5799
    %6252 = vmatpush1.msra.mxu0 %v5798
    %6253 = vmatprep.subr.mxu0 %v5795
    %6254 = vmatpush1.msra.mxu0 %v5794
    %6255 = vmatprep.subr.mxu0 %v5791
    %6256 = vmatpush1.msra.mxu0 %v5790
    %6257 = vmatprep.subr.mxu0 %v5787
    %6258 = vmatpush1.msra.mxu0 %v5786
    %6259 = vmatprep.subr.mxu0 %v5783
    %6260 = vmatpush1.msra.mxu0 %v5782
    %6261 = vmatprep.subr.mxu0 %v5907
    %6262 = vmatpush2.msra.mxu0 %v5906
    %6263 = vmatprep.subr.mxu0 %v5903
    %6264 = vmatpush2.msra.mxu0 %v5902
    %6265 = vmatprep.subr.mxu0 %v5899
    %6266 = vmatpush2.msra.mxu0 %v5898
    %6267 = vmatprep.subr.mxu0 %v5895
    %6268 = vmatpush2.msra.mxu0 %v5894
    %6269 = vmatprep.subr.mxu0 %v5891
    %6270 = vmatpush2.msra.mxu0 %v5890
    %6271 = vmatprep.subr.mxu0 %v5887
    %6272 = vmatpush2.msra.mxu0 %v5886
    %6273 = vmatprep.subr.mxu0 %v5883
    %6274 = vmatpush2.msra.mxu0 %v5882
    %6275 = vmatprep.subr.mxu0 %v5879
    %6276 = vmatpush2.msra.mxu0 %v5878
    %6277 = vmatprep.subr.mxu0 %v5875
    %6278 = vmatpush2.msra.mxu0 %v5874
    %6279 = vmatprep.subr.mxu0 %v5871
    %6280 = vmatpush2.msra.mxu0 %v5870
    %6281 = vmatprep.subr.mxu0 %v5867
    %6282 = vmatpush2.msra.mxu0 %v5866
    %6283 = vmatprep.subr.mxu0 %v5863
    %6284 = vmatpush2.msra.mxu0 %v5862
    %6285 = vmatprep.subr.mxu0 %v5859
    %6286 = vmatpush2.msra.mxu0 %v5858
    %6287 = vmatprep.subr.mxu0 %v5855
    %6288 = vmatpush2.msra.mxu0 %v5854
    %6289 = vmatprep.subr.mxu0 %v5851
    %6290 = vmatpush2.msra.mxu0 %v5850
    %6291 = vmatprep.subr.mxu0 %v5847
    %6292 = vmatpush2.msra.mxu0 %v5846
    %6293 = vmatprep.mubr.f32.mxu0 %v5176
    %6294 = vmatmul.mubr.f32.gmra.mxu0 %v5174
    %v6295 = vpop.f32.mrf.mxu0
    %v6296 = vadd.f32 %v6106, %v6295
    %v6297 = vpop.f32.mrf.mxu0
    %v6298 = vadd.f32 %v6108, %v6297
    %6299 = vmatprep.mubr.f32.mxu0 %v5182
    %6300 = vmatmul.mubr.f32.gmra.mxu0 %v5180
    %v6301 = vpop.f32.mrf.mxu0
    %v6302 = vadd.f32 %v6112, %v6301
    %v6303 = vpop.f32.mrf.mxu0
    %v6304 = vadd.f32 %v6114, %v6303
    %6305 = vmatprep.mubr.f32.mxu0 %v5188
    %6306 = vmatmul.mubr.f32.gmra.mxu0 %v5186
    %v6307 = vpop.f32.mrf.mxu0
    %v6308 = vadd.f32 %v6118, %v6307
    %v6309 = vpop.f32.mrf.mxu0
    %v6310 = vadd.f32 %v6120, %v6309
    %6311 = vmatprep.mubr.f32.mxu0 %v5194
    %6312 = vmatmul.mubr.f32.gmra.mxu0 %v5192
    %v6313 = vpop.f32.mrf.mxu0
    %v6314 = vadd.f32 %v6124, %v6313
    %v6315 = vpop.f32.mrf.mxu0
    %v6316 = vadd.f32 %v6126, %v6315
    %6317 = vmatprep.mubr.f32.mxu0 %v5200
    %6318 = vmatmul.mubr.f32.gmra.mxu0 %v5198
    %v6319 = vpop.f32.mrf.mxu0
    %v6320 = vadd.f32 %v6130, %v6319
    %v6321 = vpop.f32.mrf.mxu0
    %v6322 = vadd.f32 %v6132, %v6321
    %6323 = vdwg.mxu0
    %6324 = vmatprep.subr.mxu0 %v5845
    %6325 = vmatpush1.msra.mxu0 %v5844
    %6326 = vmatprep.subr.mxu0 %v5841
    %6327 = vmatpush1.msra.mxu0 %v5840
    %6328 = vmatprep.subr.mxu0 %v5837
    %6329 = vmatpush1.msra.mxu0 %v5836
    %6330 = vmatprep.subr.mxu0 %v5833
    %6331 = vmatpush1.msra.mxu0 %v5832
    %6332 = vmatprep.subr.mxu0 %v5829
    %6333 = vmatpush1.msra.mxu0 %v5828
    %6334 = vmatprep.subr.mxu0 %v5825
    %6335 = vmatpush1.msra.mxu0 %v5824
    %6336 = vmatprep.subr.mxu0 %v5821
    %6337 = vmatpush1.msra.mxu0 %v5820
    %6338 = vmatprep.subr.mxu0 %v5817
    %6339 = vmatpush1.msra.mxu0 %v5816
    %6340 = vmatprep.subr.mxu0 %v5813
    %6341 = vmatpush1.msra.mxu0 %v5812
    %6342 = vmatprep.subr.mxu0 %v5809
    %6343 = vmatpush1.msra.mxu0 %v5808
    %6344 = vmatprep.subr.mxu0 %v5805
    %6345 = vmatpush1.msra.mxu0 %v5804
    %6346 = vmatprep.subr.mxu0 %v5801
    %6347 = vmatpush1.msra.mxu0 %v5800
    %6348 = vmatprep.subr.mxu0 %v5797
    %6349 = vmatpush1.msra.mxu0 %v5796
    %6350 = vmatprep.subr.mxu0 %v5793
    %6351 = vmatpush1.msra.mxu0 %v5792
    %6352 = vmatprep.subr.mxu0 %v5789
    %6353 = vmatpush1.msra.mxu0 %v5788
    %6354 = vmatprep.subr.mxu0 %v5785
    %6355 = vmatpush1.msra.mxu0 %v5784
    %6356 = vmatprep.subr.mxu0 %v5909
    %6357 = vmatpush2.msra.mxu0 %v5908
    %6358 = vmatprep.subr.mxu0 %v5905
    %6359 = vmatpush2.msra.mxu0 %v5904
    %6360 = vmatprep.subr.mxu0 %v5901
    %6361 = vmatpush2.msra.mxu0 %v5900
    %6362 = vmatprep.subr.mxu0 %v5897
    %6363 = vmatpush2.msra.mxu0 %v5896
    %6364 = vmatprep.subr.mxu0 %v5893
    %6365 = vmatpush2.msra.mxu0 %v5892
    %6366 = vmatprep.subr.mxu0 %v5889
    %6367 = vmatpush2.msra.mxu0 %v5888
    %6368 = vmatprep.subr.mxu0 %v5885
    %6369 = vmatpush2.msra.mxu0 %v5884
    %6370 = vmatprep.subr.mxu0 %v5881
    %6371 = vmatpush2.msra.mxu0 %v5880
    %6372 = vmatprep.subr.mxu0 %v5877
    %6373 = vmatpush2.msra.mxu0 %v5876
    %6374 = vmatprep.subr.mxu0 %v5873
    %6375 = vmatpush2.msra.mxu0 %v5872
    %6376 = vmatprep.subr.mxu0 %v5869
    %6377 = vmatpush2.msra.mxu0 %v5868
    %6378 = vmatprep.subr.mxu0 %v5865
    %6379 = vmatpush2.msra.mxu0 %v5864
    %6380 = vmatprep.subr.mxu0 %v5861
    %6381 = vmatpush2.msra.mxu0 %v5860
    %6382 = vmatprep.subr.mxu0 %v5857
    %6383 = vmatpush2.msra.mxu0 %v5856
    %6384 = vmatprep.subr.mxu0 %v5853
    %6385 = vmatpush2.msra.mxu0 %v5852
    %6386 = vmatprep.subr.mxu0 %v5849
    %6387 = vmatpush2.msra.mxu0 %v5848
    %6388 = vmatprep.mubr.f32.mxu0 %v5176
    %6389 = vmatmul.mubr.f32.gmra.mxu0 %v5174
    %v6390 = vpop.f32.mrf.mxu0
    %v6391 = vadd.f32 %v6201, %v6390
    %v6392 = vpop.f32.mrf.mxu0
    %v6393 = vadd.f32 %v6203, %v6392
    %6394 = vmatprep.mubr.f32.mxu0 %v5182
    %6395 = vmatmul.mubr.f32.gmra.mxu0 %v5180
    %v6396 = vpop.f32.mrf.mxu0
    %v6397 = vadd.f32 %v6207, %v6396
    %v6398 = vpop.f32.mrf.mxu0
    %v6399 = vadd.f32 %v6209, %v6398
    %6400 = vmatprep.mubr.f32.mxu0 %v5188
    %6401 = vmatmul.mubr.f32.gmra.mxu0 %v5186
    %v6402 = vpop.f32.mrf.mxu0
    %v6403 = vadd.f32 %v6213, %v6402
    %v6404 = vpop.f32.mrf.mxu0
    %v6405 = vadd.f32 %v6215, %v6404
    %6406 = vmatprep.mubr.f32.mxu0 %v5194
    %6407 = vmatmul.mubr.f32.gmra.mxu0 %v5192
    %v6408 = vpop.f32.mrf.mxu0
    %v6409 = vadd.f32 %v6219, %v6408
    %v6410 = vpop.f32.mrf.mxu0
    %v6411 = vadd.f32 %v6221, %v6410
    %6412 = vmatprep.mubr.f32.mxu0 %v5200
    %6413 = vmatmul.mubr.f32.gmra.mxu0 %v5198
    %v6414 = vpop.f32.mrf.mxu0
    %v6415 = vadd.f32 %v6225, %v6414
    %v6416 = vpop.f32.mrf.mxu0
    %v6417 = vadd.f32 %v6227, %v6416
    %6418 = vdwg.mxu0
    %s6419 = scalar_lea.vmem [#allocation9], 2048
    %v6420 = vld [vmem:[%s6419] sm:$0xff]
    %v6421 = vld [vmem:[%s6419 + $0x8] sm:$0xff]
    %v6422 = vld [vmem:[%s6419 + $0x10] sm:$0xff]
    %v6423 = vld [vmem:[%s6419 + $0x18] sm:$0xff]
    %v6424 = vld [vmem:[%s6419 + $0x20] sm:$0xff]
    %v6425 = vld [vmem:[%s6419 + $0x28] sm:$0xff]
    %v6426 = vld [vmem:[%s6419 + $0x30] sm:$0xff]
    %v6427 = vld [vmem:[%s6419 + $0x38] sm:$0xff]
    %v6428 = vld [vmem:[%s6419 + $0x40] sm:$0xff]
    %v6429 = vld [vmem:[%s6419 + $0x48] sm:$0xff]
    %v6430 = vld [vmem:[%s6419 + $0x50] sm:$0xff]
    %v6431 = vld [vmem:[%s6419 + $0x58] sm:$0xff]
    %v6432 = vld [vmem:[%s6419 + $0x60] sm:$0xff]
    %v6433 = vld [vmem:[%s6419 + $0x68] sm:$0xff]
    %v6434 = vld [vmem:[%s6419 + $0x70] sm:$0xff]
    %v6435 = vld [vmem:[%s6419 + $0x78] sm:$0xff]
    %v6436 = vld [vmem:[%s6419 + $0x80] sm:$0xff]
    %v6437 = vld [vmem:[%s6419 + $0x88] sm:$0xff]
    %v6438 = vld [vmem:[%s6419 + $0x90] sm:$0xff]
    %v6439 = vld [vmem:[%s6419 + $0x98] sm:$0xff]
    %v6440 = vld [vmem:[%s6419 + $0xa0] sm:$0xff]
    %v6441 = vld [vmem:[%s6419 + $0xa8] sm:$0xff]
    %v6442 = vld [vmem:[%s6419 + $0xb0] sm:$0xff]
    %v6443 = vld [vmem:[%s6419 + $0xb8] sm:$0xff]
    %v6444 = vld [vmem:[%s6419 + $0xc0] sm:$0xff]
    %v6445 = vld [vmem:[%s6419 + $0xc8] sm:$0xff]
    %v6446 = vld [vmem:[%s6419 + $0xd0] sm:$0xff]
    %v6447 = vld [vmem:[%s6419 + $0xd8] sm:$0xff]
    %v6448 = vld [vmem:[%s6419 + $0xe0] sm:$0xff]
    %v6449 = vld [vmem:[%s6419 + $0xe8] sm:$0xff]
    %v6450 = vld [vmem:[%s6419 + $0xf0] sm:$0xff]
    %v6451 = vld [vmem:[%s6419 + $0xf8] sm:$0xff]
    %v6452 = vld [vmem:[%s6419 + $0x100] sm:$0xff]
    %v6453 = vld [vmem:[%s6419 + $0x108] sm:$0xff]
    %v6454 = vld [vmem:[%s6419 + $0x110] sm:$0xff]
    %v6455 = vld [vmem:[%s6419 + $0x118] sm:$0xff]
    %v6456 = vld [vmem:[%s6419 + $0x120] sm:$0xff]
    %v6457 = vld [vmem:[%s6419 + $0x128] sm:$0xff]
    %v6458 = vld [vmem:[%s6419 + $0x130] sm:$0xff]
    %v6459 = vld [vmem:[%s6419 + $0x138] sm:$0xff]
    %v6460 = vld [vmem:[%s6419 + $0x140] sm:$0xff]
    %v6461 = vld [vmem:[%s6419 + $0x148] sm:$0xff]
    %v6462 = vld [vmem:[%s6419 + $0x150] sm:$0xff]
    %v6463 = vld [vmem:[%s6419 + $0x158] sm:$0xff]
    %v6464 = vld [vmem:[%s6419 + $0x160] sm:$0xff]
    %v6465 = vld [vmem:[%s6419 + $0x168] sm:$0xff]
    %v6466 = vld [vmem:[%s6419 + $0x170] sm:$0xff]
    %v6467 = vld [vmem:[%s6419 + $0x178] sm:$0xff]
    %v6468 = vld [vmem:[%s6419 + $0x180] sm:$0xff]
    %v6469 = vld [vmem:[%s6419 + $0x188] sm:$0xff]
    %v6470 = vld [vmem:[%s6419 + $0x190] sm:$0xff]
    %v6471 = vld [vmem:[%s6419 + $0x198] sm:$0xff]
    %v6472 = vld [vmem:[%s6419 + $0x1a0] sm:$0xff]
    %v6473 = vld [vmem:[%s6419 + $0x1a8] sm:$0xff]
    %v6474 = vld [vmem:[%s6419 + $0x1b0] sm:$0xff]
    %v6475 = vld [vmem:[%s6419 + $0x1b8] sm:$0xff]
    %v6476 = vld [vmem:[%s6419 + $0x1c0] sm:$0xff]
    %v6477 = vld [vmem:[%s6419 + $0x1c8] sm:$0xff]
    %v6478 = vld [vmem:[%s6419 + $0x1d0] sm:$0xff]
    %v6479 = vld [vmem:[%s6419 + $0x1d8] sm:$0xff]
    %v6480 = vld [vmem:[%s6419 + $0x1e0] sm:$0xff]
    %v6481 = vld [vmem:[%s6419 + $0x1e8] sm:$0xff]
    %v6482 = vld [vmem:[%s6419 + $0x1f0] sm:$0xff]
    %v6483 = vld [vmem:[%s6419 + $0x1f8] sm:$0xff]
    %v6484 = vld [vmem:[%s6419 + $0x200] sm:$0xff]
    %v6485 = vld [vmem:[%s6419 + $0x208] sm:$0xff]
    %v6486 = vld [vmem:[%s6419 + $0x210] sm:$0xff]
    %v6487 = vld [vmem:[%s6419 + $0x218] sm:$0xff]
    %v6488 = vld [vmem:[%s6419 + $0x220] sm:$0xff]
    %v6489 = vld [vmem:[%s6419 + $0x228] sm:$0xff]
    %v6490 = vld [vmem:[%s6419 + $0x230] sm:$0xff]
    %v6491 = vld [vmem:[%s6419 + $0x238] sm:$0xff]
    %v6492 = vld [vmem:[%s6419 + $0x240] sm:$0xff]
    %v6493 = vld [vmem:[%s6419 + $0x248] sm:$0xff]
    %v6494 = vld [vmem:[%s6419 + $0x250] sm:$0xff]
    %v6495 = vld [vmem:[%s6419 + $0x258] sm:$0xff]
    %v6496 = vld [vmem:[%s6419 + $0x260] sm:$0xff]
    %v6497 = vld [vmem:[%s6419 + $0x268] sm:$0xff]
    %v6498 = vld [vmem:[%s6419 + $0x270] sm:$0xff]
    %v6499 = vld [vmem:[%s6419 + $0x278] sm:$0xff]
    %v6500 = vld [vmem:[%s6419 + $0x280] sm:$0xff]
    %v6501 = vld [vmem:[%s6419 + $0x288] sm:$0xff]
    %v6502 = vld [vmem:[%s6419 + $0x290] sm:$0xff]
    %v6503 = vld [vmem:[%s6419 + $0x298] sm:$0xff]
    %v6504 = vld [vmem:[%s6419 + $0x2a0] sm:$0xff]
    %v6505 = vld [vmem:[%s6419 + $0x2a8] sm:$0xff]
    %v6506 = vld [vmem:[%s6419 + $0x2b0] sm:$0xff]
    %v6507 = vld [vmem:[%s6419 + $0x2b8] sm:$0xff]
    %v6508 = vld [vmem:[%s6419 + $0x2c0] sm:$0xff]
    %v6509 = vld [vmem:[%s6419 + $0x2c8] sm:$0xff]
    %v6510 = vld [vmem:[%s6419 + $0x2d0] sm:$0xff]
    %v6511 = vld [vmem:[%s6419 + $0x2d8] sm:$0xff]
    %v6512 = vld [vmem:[%s6419 + $0x2e0] sm:$0xff]
    %v6513 = vld [vmem:[%s6419 + $0x2e8] sm:$0xff]
    %v6514 = vld [vmem:[%s6419 + $0x2f0] sm:$0xff]
    %v6515 = vld [vmem:[%s6419 + $0x2f8] sm:$0xff]
    %v6516 = vld [vmem:[%s6419 + $0x300] sm:$0xff]
    %v6517 = vld [vmem:[%s6419 + $0x308] sm:$0xff]
    %v6518 = vld [vmem:[%s6419 + $0x310] sm:$0xff]
    %v6519 = vld [vmem:[%s6419 + $0x318] sm:$0xff]
    %v6520 = vld [vmem:[%s6419 + $0x320] sm:$0xff]
    %v6521 = vld [vmem:[%s6419 + $0x328] sm:$0xff]
    %v6522 = vld [vmem:[%s6419 + $0x330] sm:$0xff]
    %v6523 = vld [vmem:[%s6419 + $0x338] sm:$0xff]
    %v6524 = vld [vmem:[%s6419 + $0x340] sm:$0xff]
    %v6525 = vld [vmem:[%s6419 + $0x348] sm:$0xff]
    %v6526 = vld [vmem:[%s6419 + $0x350] sm:$0xff]
    %v6527 = vld [vmem:[%s6419 + $0x358] sm:$0xff]
    %v6528 = vld [vmem:[%s6419 + $0x360] sm:$0xff]
    %v6529 = vld [vmem:[%s6419 + $0x368] sm:$0xff]
    %v6530 = vld [vmem:[%s6419 + $0x370] sm:$0xff]
    %v6531 = vld [vmem:[%s6419 + $0x378] sm:$0xff]
    %v6532 = vld [vmem:[%s6419 + $0x380] sm:$0xff]
    %v6533 = vld [vmem:[%s6419 + $0x388] sm:$0xff]
    %v6534 = vld [vmem:[%s6419 + $0x390] sm:$0xff]
    %v6535 = vld [vmem:[%s6419 + $0x398] sm:$0xff]
    %v6536 = vld [vmem:[%s6419 + $0x3a0] sm:$0xff]
    %v6537 = vld [vmem:[%s6419 + $0x3a8] sm:$0xff]
    %v6538 = vld [vmem:[%s6419 + $0x3b0] sm:$0xff]
    %v6539 = vld [vmem:[%s6419 + $0x3b8] sm:$0xff]
    %v6540 = vld [vmem:[%s6419 + $0x3c0] sm:$0xff]
    %v6541 = vld [vmem:[%s6419 + $0x3c8] sm:$0xff]
    %v6542 = vld [vmem:[%s6419 + $0x3d0] sm:$0xff]
    %v6543 = vld [vmem:[%s6419 + $0x3d8] sm:$0xff]
    %v6544 = vld [vmem:[%s6419 + $0x3e0] sm:$0xff]
    %v6545 = vld [vmem:[%s6419 + $0x3e8] sm:$0xff]
    %v6546 = vld [vmem:[%s6419 + $0x3f0] sm:$0xff]
    %v6547 = vld [vmem:[%s6419 + $0x3f8] sm:$0xff]
    %6548 = vmatprep.subr.mxu0 %v6481
    %6549 = vmatpush1.msra.mxu0 %v6480
    %6550 = vmatprep.subr.mxu0 %v6477
    %6551 = vmatpush1.msra.mxu0 %v6476
    %6552 = vmatprep.subr.mxu0 %v6473
    %6553 = vmatpush1.msra.mxu0 %v6472
    %6554 = vmatprep.subr.mxu0 %v6469
    %6555 = vmatpush1.msra.mxu0 %v6468
    %6556 = vmatprep.subr.mxu0 %v6465
    %6557 = vmatpush1.msra.mxu0 %v6464
    %6558 = vmatprep.subr.mxu0 %v6461
    %6559 = vmatpush1.msra.mxu0 %v6460
    %6560 = vmatprep.subr.mxu0 %v6457
    %6561 = vmatpush1.msra.mxu0 %v6456
    %6562 = vmatprep.subr.mxu0 %v6453
    %6563 = vmatpush1.msra.mxu0 %v6452
    %6564 = vmatprep.subr.mxu0 %v6449
    %6565 = vmatpush1.msra.mxu0 %v6448
    %6566 = vmatprep.subr.mxu0 %v6445
    %6567 = vmatpush1.msra.mxu0 %v6444
    %6568 = vmatprep.subr.mxu0 %v6441
    %6569 = vmatpush1.msra.mxu0 %v6440
    %6570 = vmatprep.subr.mxu0 %v6437
    %6571 = vmatpush1.msra.mxu0 %v6436
    %6572 = vmatprep.subr.mxu0 %v6433
    %6573 = vmatpush1.msra.mxu0 %v6432
    %6574 = vmatprep.subr.mxu0 %v6429
    %6575 = vmatpush1.msra.mxu0 %v6428
    %6576 = vmatprep.subr.mxu0 %v6425
    %6577 = vmatpush1.msra.mxu0 %v6424
    %6578 = vmatprep.subr.mxu0 %v6421
    %6579 = vmatpush1.msra.mxu0 %v6420
    %6580 = vmatprep.subr.mxu0 %v6545
    %6581 = vmatpush2.msra.mxu0 %v6544
    %6582 = vmatprep.subr.mxu0 %v6541
    %6583 = vmatpush2.msra.mxu0 %v6540
    %6584 = vmatprep.subr.mxu0 %v6537
    %6585 = vmatpush2.msra.mxu0 %v6536
    %6586 = vmatprep.subr.mxu0 %v6533
    %6587 = vmatpush2.msra.mxu0 %v6532
    %6588 = vmatprep.subr.mxu0 %v6529
    %6589 = vmatpush2.msra.mxu0 %v6528
    %6590 = vmatprep.subr.mxu0 %v6525
    %6591 = vmatpush2.msra.mxu0 %v6524
    %6592 = vmatprep.subr.mxu0 %v6521
    %6593 = vmatpush2.msra.mxu0 %v6520
    %6594 = vmatprep.subr.mxu0 %v6517
    %6595 = vmatpush2.msra.mxu0 %v6516
    %6596 = vmatprep.subr.mxu0 %v6513
    %6597 = vmatpush2.msra.mxu0 %v6512
    %6598 = vmatprep.subr.mxu0 %v6509
    %6599 = vmatpush2.msra.mxu0 %v6508
    %6600 = vmatprep.subr.mxu0 %v6505
    %6601 = vmatpush2.msra.mxu0 %v6504
    %6602 = vmatprep.subr.mxu0 %v6501
    %6603 = vmatpush2.msra.mxu0 %v6500
    %6604 = vmatprep.subr.mxu0 %v6497
    %6605 = vmatpush2.msra.mxu0 %v6496
    %6606 = vmatprep.subr.mxu0 %v6493
    %6607 = vmatpush2.msra.mxu0 %v6492
    %6608 = vmatprep.subr.mxu0 %v6489
    %6609 = vmatpush2.msra.mxu0 %v6488
    %6610 = vmatprep.subr.mxu0 %v6485
    %6611 = vmatpush2.msra.mxu0 %v6484
    %6612 = vmatprep.mubr.f32.mxu0 %v5408
    %6613 = vmatmul.mubr.f32.gmra.mxu0 %v5406
    %v6614 = vpop.f32.mrf.mxu0
    %v6615 = vadd.f32 0.0, %v6614
    %v6616 = vpop.f32.mrf.mxu0
    %v6617 = vadd.f32 0.0, %v6616
    %6618 = vmatprep.mubr.f32.mxu0 %v5414
    %6619 = vmatmul.mubr.f32.gmra.mxu0 %v5412
    %v6620 = vpop.f32.mrf.mxu0
    %v6621 = vadd.f32 0.0, %v6620
    %v6622 = vpop.f32.mrf.mxu0
    %v6623 = vadd.f32 0.0, %v6622
    %6624 = vmatprep.mubr.f32.mxu0 %v5420
    %6625 = vmatmul.mubr.f32.gmra.mxu0 %v5418
    %v6626 = vpop.f32.mrf.mxu0
    %v6627 = vadd.f32 0.0, %v6626
    %v6628 = vpop.f32.mrf.mxu0
    %v6629 = vadd.f32 0.0, %v6628
    %6630 = vmatprep.mubr.f32.mxu0 %v5426
    %6631 = vmatmul.mubr.f32.gmra.mxu0 %v5424
    %v6632 = vpop.f32.mrf.mxu0
    %v6633 = vadd.f32 0.0, %v6632
    %v6634 = vpop.f32.mrf.mxu0
    %v6635 = vadd.f32 0.0, %v6634
    %6636 = vmatprep.mubr.f32.mxu0 %v5432
    %6637 = vmatmul.mubr.f32.gmra.mxu0 %v5430
    %v6638 = vpop.f32.mrf.mxu0
    %v6639 = vadd.f32 0.0, %v6638
    %v6640 = vpop.f32.mrf.mxu0
    %v6641 = vadd.f32 0.0, %v6640
    %6642 = vdwg.mxu0
    %6643 = vmatprep.subr.mxu0 %v6483
    %6644 = vmatpush1.msra.mxu0 %v6482
    %6645 = vmatprep.subr.mxu0 %v6479
    %6646 = vmatpush1.msra.mxu0 %v6478
    %6647 = vmatprep.subr.mxu0 %v6475
    %6648 = vmatpush1.msra.mxu0 %v6474
    %6649 = vmatprep.subr.mxu0 %v6471
    %6650 = vmatpush1.msra.mxu0 %v6470
    %6651 = vmatprep.subr.mxu0 %v6467
    %6652 = vmatpush1.msra.mxu0 %v6466
    %6653 = vmatprep.subr.mxu0 %v6463
    %6654 = vmatpush1.msra.mxu0 %v6462
    %6655 = vmatprep.subr.mxu0 %v6459
    %6656 = vmatpush1.msra.mxu0 %v6458
    %6657 = vmatprep.subr.mxu0 %v6455
    %6658 = vmatpush1.msra.mxu0 %v6454
    %6659 = vmatprep.subr.mxu0 %v6451
    %6660 = vmatpush1.msra.mxu0 %v6450
    %6661 = vmatprep.subr.mxu0 %v6447
    %6662 = vmatpush1.msra.mxu0 %v6446
    %6663 = vmatprep.subr.mxu0 %v6443
    %6664 = vmatpush1.msra.mxu0 %v6442
    %6665 = vmatprep.subr.mxu0 %v6439
    %6666 = vmatpush1.msra.mxu0 %v6438
    %6667 = vmatprep.subr.mxu0 %v6435
    %6668 = vmatpush1.msra.mxu0 %v6434
    %6669 = vmatprep.subr.mxu0 %v6431
    %6670 = vmatpush1.msra.mxu0 %v6430
    %6671 = vmatprep.subr.mxu0 %v6427
    %6672 = vmatpush1.msra.mxu0 %v6426
    %6673 = vmatprep.subr.mxu0 %v6423
    %6674 = vmatpush1.msra.mxu0 %v6422
    %6675 = vmatprep.subr.mxu0 %v6547
    %6676 = vmatpush2.msra.mxu0 %v6546
    %6677 = vmatprep.subr.mxu0 %v6543
    %6678 = vmatpush2.msra.mxu0 %v6542
    %6679 = vmatprep.subr.mxu0 %v6539
    %6680 = vmatpush2.msra.mxu0 %v6538
    %6681 = vmatprep.subr.mxu0 %v6535
    %6682 = vmatpush2.msra.mxu0 %v6534
    %6683 = vmatprep.subr.mxu0 %v6531
    %6684 = vmatpush2.msra.mxu0 %v6530
    %6685 = vmatprep.subr.mxu0 %v6527
    %6686 = vmatpush2.msra.mxu0 %v6526
    %6687 = vmatprep.subr.mxu0 %v6523
    %6688 = vmatpush2.msra.mxu0 %v6522
    %6689 = vmatprep.subr.mxu0 %v6519
    %6690 = vmatpush2.msra.mxu0 %v6518
    %6691 = vmatprep.subr.mxu0 %v6515
    %6692 = vmatpush2.msra.mxu0 %v6514
    %6693 = vmatprep.subr.mxu0 %v6511
    %6694 = vmatpush2.msra.mxu0 %v6510
    %6695 = vmatprep.subr.mxu0 %v6507
    %6696 = vmatpush2.msra.mxu0 %v6506
    %6697 = vmatprep.subr.mxu0 %v6503
    %6698 = vmatpush2.msra.mxu0 %v6502
    %6699 = vmatprep.subr.mxu0 %v6499
    %6700 = vmatpush2.msra.mxu0 %v6498
    %6701 = vmatprep.subr.mxu0 %v6495
    %6702 = vmatpush2.msra.mxu0 %v6494
    %6703 = vmatprep.subr.mxu0 %v6491
    %6704 = vmatpush2.msra.mxu0 %v6490
    %6705 = vmatprep.subr.mxu0 %v6487
    %6706 = vmatpush2.msra.mxu0 %v6486
    %6707 = vmatprep.mubr.f32.mxu0 %v5408
    %6708 = vmatmul.mubr.f32.gmra.mxu0 %v5406
    %v6709 = vpop.f32.mrf.mxu0
    %v6710 = vadd.f32 0.0, %v6709
    %v6711 = vpop.f32.mrf.mxu0
    %v6712 = vadd.f32 0.0, %v6711
    %6713 = vmatprep.mubr.f32.mxu0 %v5414
    %6714 = vmatmul.mubr.f32.gmra.mxu0 %v5412
    %v6715 = vpop.f32.mrf.mxu0
    %v6716 = vadd.f32 0.0, %v6715
    %v6717 = vpop.f32.mrf.mxu0
    %v6718 = vadd.f32 0.0, %v6717
    %6719 = vmatprep.mubr.f32.mxu0 %v5420
    %6720 = vmatmul.mubr.f32.gmra.mxu0 %v5418
    %v6721 = vpop.f32.mrf.mxu0
    %v6722 = vadd.f32 0.0, %v6721
    %v6723 = vpop.f32.mrf.mxu0
    %v6724 = vadd.f32 0.0, %v6723
    %6725 = vmatprep.mubr.f32.mxu0 %v5426
    %6726 = vmatmul.mubr.f32.gmra.mxu0 %v5424
    %v6727 = vpop.f32.mrf.mxu0
    %v6728 = vadd.f32 0.0, %v6727
    %v6729 = vpop.f32.mrf.mxu0
    %v6730 = vadd.f32 0.0, %v6729
    %6731 = vmatprep.mubr.f32.mxu0 %v5432
    %6732 = vmatmul.mubr.f32.gmra.mxu0 %v5430
    %v6733 = vpop.f32.mrf.mxu0
    %v6734 = vadd.f32 0.0, %v6733
    %v6735 = vpop.f32.mrf.mxu0
    %v6736 = vadd.f32 0.0, %v6735
    %6737 = vdwg.mxu0
    %v6738 = vadd.f32 %v6296, %v6615
    %v6739 = vadd.f32 %v6298, %v6617
    %v6740 = vadd.f32 %v6391, %v6710
    %v6741 = vadd.f32 %v6393, %v6712
    %v6742 = vadd.f32 %v6302, %v6621
    %v6743 = vadd.f32 %v6304, %v6623
    %v6744 = vadd.f32 %v6397, %v6716
    %v6745 = vadd.f32 %v6399, %v6718
    %v6746 = vadd.f32 %v6308, %v6627
    %v6747 = vadd.f32 %v6310, %v6629
    %v6748 = vadd.f32 %v6403, %v6722
    %v6749 = vadd.f32 %v6405, %v6724
    %v6750 = vadd.f32 %v6314, %v6633
    %v6751 = vadd.f32 %v6316, %v6635
    %v6752 = vadd.f32 %v6409, %v6728
    %v6753 = vadd.f32 %v6411, %v6730
    %v6754 = vadd.f32 %v6320, %v6639
    %v6755 = vadd.f32 %v6322, %v6641
    %v6756 = vadd.f32 %v6415, %v6734
    %v6757 = vadd.f32 %v6417, %v6736
    %s6758 = scalar_lea.vmem [#allocation9], 3072
    %v6759 = vld [vmem:[%s6758] sm:$0xff]
    %v6760 = vld [vmem:[%s6758 + $0x8] sm:$0xff]
    %v6761 = vld [vmem:[%s6758 + $0x10] sm:$0xff]
    %v6762 = vld [vmem:[%s6758 + $0x18] sm:$0xff]
    %v6763 = vld [vmem:[%s6758 + $0x20] sm:$0xff]
    %v6764 = vld [vmem:[%s6758 + $0x28] sm:$0xff]
    %v6765 = vld [vmem:[%s6758 + $0x30] sm:$0xff]
    %v6766 = vld [vmem:[%s6758 + $0x38] sm:$0xff]
    %v6767 = vld [vmem:[%s6758 + $0x40] sm:$0xff]
    %v6768 = vld [vmem:[%s6758 + $0x48] sm:$0xff]
    %v6769 = vld [vmem:[%s6758 + $0x50] sm:$0xff]
    %v6770 = vld [vmem:[%s6758 + $0x58] sm:$0xff]
    %v6771 = vld [vmem:[%s6758 + $0x60] sm:$0xff]
    %v6772 = vld [vmem:[%s6758 + $0x68] sm:$0xff]
    %v6773 = vld [vmem:[%s6758 + $0x70] sm:$0xff]
    %v6774 = vld [vmem:[%s6758 + $0x78] sm:$0xff]
    %v6775 = vld [vmem:[%s6758 + $0x80] sm:$0xff]
    %v6776 = vld [vmem:[%s6758 + $0x88] sm:$0xff]
    %v6777 = vld [vmem:[%s6758 + $0x90] sm:$0xff]
    %v6778 = vld [vmem:[%s6758 + $0x98] sm:$0xff]
    %v6779 = vld [vmem:[%s6758 + $0xa0] sm:$0xff]
    %v6780 = vld [vmem:[%s6758 + $0xa8] sm:$0xff]
    %v6781 = vld [vmem:[%s6758 + $0xb0] sm:$0xff]
    %v6782 = vld [vmem:[%s6758 + $0xb8] sm:$0xff]
    %v6783 = vld [vmem:[%s6758 + $0xc0] sm:$0xff]
    %v6784 = vld [vmem:[%s6758 + $0xc8] sm:$0xff]
    %v6785 = vld [vmem:[%s6758 + $0xd0] sm:$0xff]
    %v6786 = vld [vmem:[%s6758 + $0xd8] sm:$0xff]
    %v6787 = vld [vmem:[%s6758 + $0xe0] sm:$0xff]
    %v6788 = vld [vmem:[%s6758 + $0xe8] sm:$0xff]
    %v6789 = vld [vmem:[%s6758 + $0xf0] sm:$0xff]
    %v6790 = vld [vmem:[%s6758 + $0xf8] sm:$0xff]
    %v6791 = vld [vmem:[%s6758 + $0x100] sm:$0xff]
    %v6792 = vld [vmem:[%s6758 + $0x108] sm:$0xff]
    %v6793 = vld [vmem:[%s6758 + $0x110] sm:$0xff]
    %v6794 = vld [vmem:[%s6758 + $0x118] sm:$0xff]
    %v6795 = vld [vmem:[%s6758 + $0x120] sm:$0xff]
    %v6796 = vld [vmem:[%s6758 + $0x128] sm:$0xff]
    %v6797 = vld [vmem:[%s6758 + $0x130] sm:$0xff]
    %v6798 = vld [vmem:[%s6758 + $0x138] sm:$0xff]
    %v6799 = vld [vmem:[%s6758 + $0x140] sm:$0xff]
    %v6800 = vld [vmem:[%s6758 + $0x148] sm:$0xff]
    %v6801 = vld [vmem:[%s6758 + $0x150] sm:$0xff]
    %v6802 = vld [vmem:[%s6758 + $0x158] sm:$0xff]
    %v6803 = vld [vmem:[%s6758 + $0x160] sm:$0xff]
    %v6804 = vld [vmem:[%s6758 + $0x168] sm:$0xff]
    %v6805 = vld [vmem:[%s6758 + $0x170] sm:$0xff]
    %v6806 = vld [vmem:[%s6758 + $0x178] sm:$0xff]
    %v6807 = vld [vmem:[%s6758 + $0x180] sm:$0xff]
    %v6808 = vld [vmem:[%s6758 + $0x188] sm:$0xff]
    %v6809 = vld [vmem:[%s6758 + $0x190] sm:$0xff]
    %v6810 = vld [vmem:[%s6758 + $0x198] sm:$0xff]
    %v6811 = vld [vmem:[%s6758 + $0x1a0] sm:$0xff]
    %v6812 = vld [vmem:[%s6758 + $0x1a8] sm:$0xff]
    %v6813 = vld [vmem:[%s6758 + $0x1b0] sm:$0xff]
    %v6814 = vld [vmem:[%s6758 + $0x1b8] sm:$0xff]
    %v6815 = vld [vmem:[%s6758 + $0x1c0] sm:$0xff]
    %v6816 = vld [vmem:[%s6758 + $0x1c8] sm:$0xff]
    %v6817 = vld [vmem:[%s6758 + $0x1d0] sm:$0xff]
    %v6818 = vld [vmem:[%s6758 + $0x1d8] sm:$0xff]
    %v6819 = vld [vmem:[%s6758 + $0x1e0] sm:$0xff]
    %v6820 = vld [vmem:[%s6758 + $0x1e8] sm:$0xff]
    %v6821 = vld [vmem:[%s6758 + $0x1f0] sm:$0xff]
    %v6822 = vld [vmem:[%s6758 + $0x1f8] sm:$0xff]
    %v6823 = vld [vmem:[%s6758 + $0x200] sm:$0xff]
    %v6824 = vld [vmem:[%s6758 + $0x208] sm:$0xff]
    %v6825 = vld [vmem:[%s6758 + $0x210] sm:$0xff]
    %v6826 = vld [vmem:[%s6758 + $0x218] sm:$0xff]
    %v6827 = vld [vmem:[%s6758 + $0x220] sm:$0xff]
    %v6828 = vld [vmem:[%s6758 + $0x228] sm:$0xff]
    %v6829 = vld [vmem:[%s6758 + $0x230] sm:$0xff]
    %v6830 = vld [vmem:[%s6758 + $0x238] sm:$0xff]
    %v6831 = vld [vmem:[%s6758 + $0x240] sm:$0xff]
    %v6832 = vld [vmem:[%s6758 + $0x248] sm:$0xff]
    %v6833 = vld [vmem:[%s6758 + $0x250] sm:$0xff]
    %v6834 = vld [vmem:[%s6758 + $0x258] sm:$0xff]
    %v6835 = vld [vmem:[%s6758 + $0x260] sm:$0xff]
    %v6836 = vld [vmem:[%s6758 + $0x268] sm:$0xff]
    %v6837 = vld [vmem:[%s6758 + $0x270] sm:$0xff]
    %v6838 = vld [vmem:[%s6758 + $0x278] sm:$0xff]
    %v6839 = vld [vmem:[%s6758 + $0x280] sm:$0xff]
    %v6840 = vld [vmem:[%s6758 + $0x288] sm:$0xff]
    %v6841 = vld [vmem:[%s6758 + $0x290] sm:$0xff]
    %v6842 = vld [vmem:[%s6758 + $0x298] sm:$0xff]
    %v6843 = vld [vmem:[%s6758 + $0x2a0] sm:$0xff]
    %v6844 = vld [vmem:[%s6758 + $0x2a8] sm:$0xff]
    %v6845 = vld [vmem:[%s6758 + $0x2b0] sm:$0xff]
    %v6846 = vld [vmem:[%s6758 + $0x2b8] sm:$0xff]
    %v6847 = vld [vmem:[%s6758 + $0x2c0] sm:$0xff]
    %v6848 = vld [vmem:[%s6758 + $0x2c8] sm:$0xff]
    %v6849 = vld [vmem:[%s6758 + $0x2d0] sm:$0xff]
    %v6850 = vld [vmem:[%s6758 + $0x2d8] sm:$0xff]
    %v6851 = vld [vmem:[%s6758 + $0x2e0] sm:$0xff]
    %v6852 = vld [vmem:[%s6758 + $0x2e8] sm:$0xff]
    %v6853 = vld [vmem:[%s6758 + $0x2f0] sm:$0xff]
    %v6854 = vld [vmem:[%s6758 + $0x2f8] sm:$0xff]
    %v6855 = vld [vmem:[%s6758 + $0x300] sm:$0xff]
    %v6856 = vld [vmem:[%s6758 + $0x308] sm:$0xff]
    %v6857 = vld [vmem:[%s6758 + $0x310] sm:$0xff]
    %v6858 = vld [vmem:[%s6758 + $0x318] sm:$0xff]
    %v6859 = vld [vmem:[%s6758 + $0x320] sm:$0xff]
    %v6860 = vld [vmem:[%s6758 + $0x328] sm:$0xff]
    %v6861 = vld [vmem:[%s6758 + $0x330] sm:$0xff]
    %v6862 = vld [vmem:[%s6758 + $0x338] sm:$0xff]
    %v6863 = vld [vmem:[%s6758 + $0x340] sm:$0xff]
    %v6864 = vld [vmem:[%s6758 + $0x348] sm:$0xff]
    %v6865 = vld [vmem:[%s6758 + $0x350] sm:$0xff]
    %v6866 = vld [vmem:[%s6758 + $0x358] sm:$0xff]
    %v6867 = vld [vmem:[%s6758 + $0x360] sm:$0xff]
    %v6868 = vld [vmem:[%s6758 + $0x368] sm:$0xff]
    %v6869 = vld [vmem:[%s6758 + $0x370] sm:$0xff]
    %v6870 = vld [vmem:[%s6758 + $0x378] sm:$0xff]
    %v6871 = vld [vmem:[%s6758 + $0x380] sm:$0xff]
    %v6872 = vld [vmem:[%s6758 + $0x388] sm:$0xff]
    %v6873 = vld [vmem:[%s6758 + $0x390] sm:$0xff]
    %v6874 = vld [vmem:[%s6758 + $0x398] sm:$0xff]
    %v6875 = vld [vmem:[%s6758 + $0x3a0] sm:$0xff]
    %v6876 = vld [vmem:[%s6758 + $0x3a8] sm:$0xff]
    %v6877 = vld [vmem:[%s6758 + $0x3b0] sm:$0xff]
    %v6878 = vld [vmem:[%s6758 + $0x3b8] sm:$0xff]
    %v6879 = vld [vmem:[%s6758 + $0x3c0] sm:$0xff]
    %v6880 = vld [vmem:[%s6758 + $0x3c8] sm:$0xff]
    %v6881 = vld [vmem:[%s6758 + $0x3d0] sm:$0xff]
    %v6882 = vld [vmem:[%s6758 + $0x3d8] sm:$0xff]
    %v6883 = vld [vmem:[%s6758 + $0x3e0] sm:$0xff]
    %v6884 = vld [vmem:[%s6758 + $0x3e8] sm:$0xff]
    %v6885 = vld [vmem:[%s6758 + $0x3f0] sm:$0xff]
    %v6886 = vld [vmem:[%s6758 + $0x3f8] sm:$0xff]
    %6887 = vmatprep.subr.mxu0 %v6820
    %6888 = vmatpush1.msra.mxu0 %v6819
    %6889 = vmatprep.subr.mxu0 %v6816
    %6890 = vmatpush1.msra.mxu0 %v6815
    %6891 = vmatprep.subr.mxu0 %v6812
    %6892 = vmatpush1.msra.mxu0 %v6811
    %6893 = vmatprep.subr.mxu0 %v6808
    %6894 = vmatpush1.msra.mxu0 %v6807
    %6895 = vmatprep.subr.mxu0 %v6804
    %6896 = vmatpush1.msra.mxu0 %v6803
    %6897 = vmatprep.subr.mxu0 %v6800
    %6898 = vmatpush1.msra.mxu0 %v6799
    %6899 = vmatprep.subr.mxu0 %v6796
    %6900 = vmatpush1.msra.mxu0 %v6795
    %6901 = vmatprep.subr.mxu0 %v6792
    %6902 = vmatpush1.msra.mxu0 %v6791
    %6903 = vmatprep.subr.mxu0 %v6788
    %6904 = vmatpush1.msra.mxu0 %v6787
    %6905 = vmatprep.subr.mxu0 %v6784
    %6906 = vmatpush1.msra.mxu0 %v6783
    %6907 = vmatprep.subr.mxu0 %v6780
    %6908 = vmatpush1.msra.mxu0 %v6779
    %6909 = vmatprep.subr.mxu0 %v6776
    %6910 = vmatpush1.msra.mxu0 %v6775
    %6911 = vmatprep.subr.mxu0 %v6772
    %6912 = vmatpush1.msra.mxu0 %v6771
    %6913 = vmatprep.subr.mxu0 %v6768
    %6914 = vmatpush1.msra.mxu0 %v6767
    %6915 = vmatprep.subr.mxu0 %v6764
    %6916 = vmatpush1.msra.mxu0 %v6763
    %6917 = vmatprep.subr.mxu0 %v6760
    %6918 = vmatpush1.msra.mxu0 %v6759
    %6919 = vmatprep.subr.mxu0 %v6884
    %6920 = vmatpush2.msra.mxu0 %v6883
    %6921 = vmatprep.subr.mxu0 %v6880
    %6922 = vmatpush2.msra.mxu0 %v6879
    %6923 = vmatprep.subr.mxu0 %v6876
    %6924 = vmatpush2.msra.mxu0 %v6875
    %6925 = vmatprep.subr.mxu0 %v6872
    %6926 = vmatpush2.msra.mxu0 %v6871
    %6927 = vmatprep.subr.mxu0 %v6868
    %6928 = vmatpush2.msra.mxu0 %v6867
    %6929 = vmatprep.subr.mxu0 %v6864
    %6930 = vmatpush2.msra.mxu0 %v6863
    %6931 = vmatprep.subr.mxu0 %v6860
    %6932 = vmatpush2.msra.mxu0 %v6859
    %6933 = vmatprep.subr.mxu0 %v6856
    %6934 = vmatpush2.msra.mxu0 %v6855
    %6935 = vmatprep.subr.mxu0 %v6852
    %6936 = vmatpush2.msra.mxu0 %v6851
    %6937 = vmatprep.subr.mxu0 %v6848
    %6938 = vmatpush2.msra.mxu0 %v6847
    %6939 = vmatprep.subr.mxu0 %v6844
    %6940 = vmatpush2.msra.mxu0 %v6843
    %6941 = vmatprep.subr.mxu0 %v6840
    %6942 = vmatpush2.msra.mxu0 %v6839
    %6943 = vmatprep.subr.mxu0 %v6836
    %6944 = vmatpush2.msra.mxu0 %v6835
    %6945 = vmatprep.subr.mxu0 %v6832
    %6946 = vmatpush2.msra.mxu0 %v6831
    %6947 = vmatprep.subr.mxu0 %v6828
    %6948 = vmatpush2.msra.mxu0 %v6827
    %6949 = vmatprep.subr.mxu0 %v6824
    %6950 = vmatpush2.msra.mxu0 %v6823
    %6951 = vmatprep.mubr.f32.mxu0 %v5524
    %6952 = vmatmul.mubr.f32.gmra.mxu0 %v5522
    %v6953 = vpop.f32.mrf.mxu0
    %v6954 = vadd.f32 0.0, %v6953
    %v6955 = vpop.f32.mrf.mxu0
    %v6956 = vadd.f32 0.0, %v6955
    %6957 = vmatprep.mubr.f32.mxu0 %v5530
    %6958 = vmatmul.mubr.f32.gmra.mxu0 %v5528
    %v6959 = vpop.f32.mrf.mxu0
    %v6960 = vadd.f32 0.0, %v6959
    %v6961 = vpop.f32.mrf.mxu0
    %v6962 = vadd.f32 0.0, %v6961
    %6963 = vmatprep.mubr.f32.mxu0 %v5536
    %6964 = vmatmul.mubr.f32.gmra.mxu0 %v5534
    %v6965 = vpop.f32.mrf.mxu0
    %v6966 = vadd.f32 0.0, %v6965
    %v6967 = vpop.f32.mrf.mxu0
    %v6968 = vadd.f32 0.0, %v6967
    %6969 = vmatprep.mubr.f32.mxu0 %v5542
    %6970 = vmatmul.mubr.f32.gmra.mxu0 %v5540
    %v6971 = vpop.f32.mrf.mxu0
    %v6972 = vadd.f32 0.0, %v6971
    %v6973 = vpop.f32.mrf.mxu0
    %v6974 = vadd.f32 0.0, %v6973
    %6975 = vmatprep.mubr.f32.mxu0 %v5548
    %6976 = vmatmul.mubr.f32.gmra.mxu0 %v5546
    %v6977 = vpop.f32.mrf.mxu0
    %v6978 = vadd.f32 0.0, %v6977
    %v6979 = vpop.f32.mrf.mxu0
    %v6980 = vadd.f32 0.0, %v6979
    %6981 = vdwg.mxu0
    %6982 = vmatprep.subr.mxu0 %v6822
    %6983 = vmatpush1.msra.mxu0 %v6821
    %6984 = vmatprep.subr.mxu0 %v6818
    %6985 = vmatpush1.msra.mxu0 %v6817
    %6986 = vmatprep.subr.mxu0 %v6814
    %6987 = vmatpush1.msra.mxu0 %v6813
    %6988 = vmatprep.subr.mxu0 %v6810
    %6989 = vmatpush1.msra.mxu0 %v6809
    %6990 = vmatprep.subr.mxu0 %v6806
    %6991 = vmatpush1.msra.mxu0 %v6805
    %6992 = vmatprep.subr.mxu0 %v6802
    %6993 = vmatpush1.msra.mxu0 %v6801
    %6994 = vmatprep.subr.mxu0 %v6798
    %6995 = vmatpush1.msra.mxu0 %v6797
    %6996 = vmatprep.subr.mxu0 %v6794
    %6997 = vmatpush1.msra.mxu0 %v6793
    %6998 = vmatprep.subr.mxu0 %v6790
    %6999 = vmatpush1.msra.mxu0 %v6789
    %7000 = vmatprep.subr.mxu0 %v6786
    %7001 = vmatpush1.msra.mxu0 %v6785
    %7002 = vmatprep.subr.mxu0 %v6782
    %7003 = vmatpush1.msra.mxu0 %v6781
    %7004 = vmatprep.subr.mxu0 %v6778
    %7005 = vmatpush1.msra.mxu0 %v6777
    %7006 = vmatprep.subr.mxu0 %v6774
    %7007 = vmatpush1.msra.mxu0 %v6773
    %7008 = vmatprep.subr.mxu0 %v6770
    %7009 = vmatpush1.msra.mxu0 %v6769
    %7010 = vmatprep.subr.mxu0 %v6766
    %7011 = vmatpush1.msra.mxu0 %v6765
    %7012 = vmatprep.subr.mxu0 %v6762
    %7013 = vmatpush1.msra.mxu0 %v6761
    %7014 = vmatprep.subr.mxu0 %v6886
    %7015 = vmatpush2.msra.mxu0 %v6885
    %7016 = vmatprep.subr.mxu0 %v6882
    %7017 = vmatpush2.msra.mxu0 %v6881
    %7018 = vmatprep.subr.mxu0 %v6878
    %7019 = vmatpush2.msra.mxu0 %v6877
    %7020 = vmatprep.subr.mxu0 %v6874
    %7021 = vmatpush2.msra.mxu0 %v6873
    %7022 = vmatprep.subr.mxu0 %v6870
    %7023 = vmatpush2.msra.mxu0 %v6869
    %7024 = vmatprep.subr.mxu0 %v6866
    %7025 = vmatpush2.msra.mxu0 %v6865
    %7026 = vmatprep.subr.mxu0 %v6862
    %7027 = vmatpush2.msra.mxu0 %v6861
    %7028 = vmatprep.subr.mxu0 %v6858
    %7029 = vmatpush2.msra.mxu0 %v6857
    %7030 = vmatprep.subr.mxu0 %v6854
    %7031 = vmatpush2.msra.mxu0 %v6853
    %7032 = vmatprep.subr.mxu0 %v6850
    %7033 = vmatpush2.msra.mxu0 %v6849
    %7034 = vmatprep.subr.mxu0 %v6846
    %7035 = vmatpush2.msra.mxu0 %v6845
    %7036 = vmatprep.subr.mxu0 %v6842
    %7037 = vmatpush2.msra.mxu0 %v6841
    %7038 = vmatprep.subr.mxu0 %v6838
    %7039 = vmatpush2.msra.mxu0 %v6837
    %7040 = vmatprep.subr.mxu0 %v6834
    %7041 = vmatpush2.msra.mxu0 %v6833
    %7042 = vmatprep.subr.mxu0 %v6830
    %7043 = vmatpush2.msra.mxu0 %v6829
    %7044 = vmatprep.subr.mxu0 %v6826
    %7045 = vmatpush2.msra.mxu0 %v6825
    %7046 = vmatprep.mubr.f32.mxu0 %v5524
    %7047 = vmatmul.mubr.f32.gmra.mxu0 %v5522
    %v7048 = vpop.f32.mrf.mxu0
    %v7049 = vadd.f32 0.0, %v7048
    %v7050 = vpop.f32.mrf.mxu0
    %v7051 = vadd.f32 0.0, %v7050
    %7052 = vmatprep.mubr.f32.mxu0 %v5530
    %7053 = vmatmul.mubr.f32.gmra.mxu0 %v5528
    %v7054 = vpop.f32.mrf.mxu0
    %v7055 = vadd.f32 0.0, %v7054
    %v7056 = vpop.f32.mrf.mxu0
    %v7057 = vadd.f32 0.0, %v7056
    %7058 = vmatprep.mubr.f32.mxu0 %v5536
    %7059 = vmatmul.mubr.f32.gmra.mxu0 %v5534
    %v7060 = vpop.f32.mrf.mxu0
    %v7061 = vadd.f32 0.0, %v7060
    %v7062 = vpop.f32.mrf.mxu0
    %v7063 = vadd.f32 0.0, %v7062
    %7064 = vmatprep.mubr.f32.mxu0 %v5542
    %7065 = vmatmul.mubr.f32.gmra.mxu0 %v5540
    %v7066 = vpop.f32.mrf.mxu0
    %v7067 = vadd.f32 0.0, %v7066
    %v7068 = vpop.f32.mrf.mxu0
    %v7069 = vadd.f32 0.0, %v7068
    %7070 = vmatprep.mubr.f32.mxu0 %v5548
    %7071 = vmatmul.mubr.f32.gmra.mxu0 %v5546
    %v7072 = vpop.f32.mrf.mxu0
    %v7073 = vadd.f32 0.0, %v7072
    %v7074 = vpop.f32.mrf.mxu0
    %v7075 = vadd.f32 0.0, %v7074
    %7076 = vdwg.mxu0
    %v7077 = vadd.f32 %v6738, %v6954
    %v7078 = vadd.f32 %v6739, %v6956
    %v7079 = vadd.f32 %v6740, %v7049
    %v7080 = vadd.f32 %v6741, %v7051
    %v7081 = vadd.f32 %v6742, %v6960
    %v7082 = vadd.f32 %v6743, %v6962
    %v7083 = vadd.f32 %v6744, %v7055
    %v7084 = vadd.f32 %v6745, %v7057
    %v7085 = vadd.f32 %v6746, %v6966
    %v7086 = vadd.f32 %v6747, %v6968
    %v7087 = vadd.f32 %v6748, %v7061
    %v7088 = vadd.f32 %v6749, %v7063
    %v7089 = vadd.f32 %v6750, %v6972
    %v7090 = vadd.f32 %v6751, %v6974
    %v7091 = vadd.f32 %v6752, %v7067
    %v7092 = vadd.f32 %v6753, %v7069
    %v7093 = vadd.f32 %v6754, %v6978
    %v7094 = vadd.f32 %v6755, %v6980
    %v7095 = vadd.f32 %v6756, %v7073
    %v7096 = vadd.f32 %v6757, %v7075
    %s7097 = scalar_lea.vmem [#allocation9], 4096
    %v7098 = vld [vmem:[%s7097] sm:$0xff]
    %v7099 = vld [vmem:[%s7097 + $0x8] sm:$0xff]
    %v7100 = vld [vmem:[%s7097 + $0x10] sm:$0xff]
    %v7101 = vld [vmem:[%s7097 + $0x18] sm:$0xff]
    %v7102 = vld [vmem:[%s7097 + $0x20] sm:$0xff]
    %v7103 = vld [vmem:[%s7097 + $0x28] sm:$0xff]
    %v7104 = vld [vmem:[%s7097 + $0x30] sm:$0xff]
    %v7105 = vld [vmem:[%s7097 + $0x38] sm:$0xff]
    %v7106 = vld [vmem:[%s7097 + $0x40] sm:$0xff]
    %v7107 = vld [vmem:[%s7097 + $0x48] sm:$0xff]
    %v7108 = vld [vmem:[%s7097 + $0x50] sm:$0xff]
    %v7109 = vld [vmem:[%s7097 + $0x58] sm:$0xff]
    %v7110 = vld [vmem:[%s7097 + $0x60] sm:$0xff]
    %v7111 = vld [vmem:[%s7097 + $0x68] sm:$0xff]
    %v7112 = vld [vmem:[%s7097 + $0x70] sm:$0xff]
    %v7113 = vld [vmem:[%s7097 + $0x78] sm:$0xff]
    %v7114 = vld [vmem:[%s7097 + $0x80] sm:$0xff]
    %v7115 = vld [vmem:[%s7097 + $0x88] sm:$0xff]
    %v7116 = vld [vmem:[%s7097 + $0x90] sm:$0xff]
    %v7117 = vld [vmem:[%s7097 + $0x98] sm:$0xff]
    %v7118 = vld [vmem:[%s7097 + $0xa0] sm:$0xff]
    %v7119 = vld [vmem:[%s7097 + $0xa8] sm:$0xff]
    %v7120 = vld [vmem:[%s7097 + $0xb0] sm:$0xff]
    %v7121 = vld [vmem:[%s7097 + $0xb8] sm:$0xff]
    %v7122 = vld [vmem:[%s7097 + $0xc0] sm:$0xff]
    %v7123 = vld [vmem:[%s7097 + $0xc8] sm:$0xff]
    %v7124 = vld [vmem:[%s7097 + $0xd0] sm:$0xff]
    %v7125 = vld [vmem:[%s7097 + $0xd8] sm:$0xff]
    %v7126 = vld [vmem:[%s7097 + $0xe0] sm:$0xff]
    %v7127 = vld [vmem:[%s7097 + $0xe8] sm:$0xff]
    %v7128 = vld [vmem:[%s7097 + $0xf0] sm:$0xff]
    %v7129 = vld [vmem:[%s7097 + $0xf8] sm:$0xff]
    %v7130 = vld [vmem:[%s7097 + $0x100] sm:$0xff]
    %v7131 = vld [vmem:[%s7097 + $0x108] sm:$0xff]
    %v7132 = vld [vmem:[%s7097 + $0x110] sm:$0xff]
    %v7133 = vld [vmem:[%s7097 + $0x118] sm:$0xff]
    %v7134 = vld [vmem:[%s7097 + $0x120] sm:$0xff]
    %v7135 = vld [vmem:[%s7097 + $0x128] sm:$0xff]
    %v7136 = vld [vmem:[%s7097 + $0x130] sm:$0xff]
    %v7137 = vld [vmem:[%s7097 + $0x138] sm:$0xff]
    %v7138 = vld [vmem:[%s7097 + $0x140] sm:$0xff]
    %v7139 = vld [vmem:[%s7097 + $0x148] sm:$0xff]
    %v7140 = vld [vmem:[%s7097 + $0x150] sm:$0xff]
    %v7141 = vld [vmem:[%s7097 + $0x158] sm:$0xff]
    %v7142 = vld [vmem:[%s7097 + $0x160] sm:$0xff]
    %v7143 = vld [vmem:[%s7097 + $0x168] sm:$0xff]
    %v7144 = vld [vmem:[%s7097 + $0x170] sm:$0xff]
    %v7145 = vld [vmem:[%s7097 + $0x178] sm:$0xff]
    %v7146 = vld [vmem:[%s7097 + $0x180] sm:$0xff]
    %v7147 = vld [vmem:[%s7097 + $0x188] sm:$0xff]
    %v7148 = vld [vmem:[%s7097 + $0x190] sm:$0xff]
    %v7149 = vld [vmem:[%s7097 + $0x198] sm:$0xff]
    %v7150 = vld [vmem:[%s7097 + $0x1a0] sm:$0xff]
    %v7151 = vld [vmem:[%s7097 + $0x1a8] sm:$0xff]
    %v7152 = vld [vmem:[%s7097 + $0x1b0] sm:$0xff]
    %v7153 = vld [vmem:[%s7097 + $0x1b8] sm:$0xff]
    %v7154 = vld [vmem:[%s7097 + $0x1c0] sm:$0xff]
    %v7155 = vld [vmem:[%s7097 + $0x1c8] sm:$0xff]
    %v7156 = vld [vmem:[%s7097 + $0x1d0] sm:$0xff]
    %v7157 = vld [vmem:[%s7097 + $0x1d8] sm:$0xff]
    %v7158 = vld [vmem:[%s7097 + $0x1e0] sm:$0xff]
    %v7159 = vld [vmem:[%s7097 + $0x1e8] sm:$0xff]
    %v7160 = vld [vmem:[%s7097 + $0x1f0] sm:$0xff]
    %v7161 = vld [vmem:[%s7097 + $0x1f8] sm:$0xff]
    %v7162 = vld [vmem:[%s7097 + $0x200] sm:$0xff]
    %v7163 = vld [vmem:[%s7097 + $0x208] sm:$0xff]
    %v7164 = vld [vmem:[%s7097 + $0x210] sm:$0xff]
    %v7165 = vld [vmem:[%s7097 + $0x218] sm:$0xff]
    %v7166 = vld [vmem:[%s7097 + $0x220] sm:$0xff]
    %v7167 = vld [vmem:[%s7097 + $0x228] sm:$0xff]
    %v7168 = vld [vmem:[%s7097 + $0x230] sm:$0xff]
    %v7169 = vld [vmem:[%s7097 + $0x238] sm:$0xff]
    %v7170 = vld [vmem:[%s7097 + $0x240] sm:$0xff]
    %v7171 = vld [vmem:[%s7097 + $0x248] sm:$0xff]
    %v7172 = vld [vmem:[%s7097 + $0x250] sm:$0xff]
    %v7173 = vld [vmem:[%s7097 + $0x258] sm:$0xff]
    %v7174 = vld [vmem:[%s7097 + $0x260] sm:$0xff]
    %v7175 = vld [vmem:[%s7097 + $0x268] sm:$0xff]
    %v7176 = vld [vmem:[%s7097 + $0x270] sm:$0xff]
    %v7177 = vld [vmem:[%s7097 + $0x278] sm:$0xff]
    %v7178 = vld [vmem:[%s7097 + $0x280] sm:$0xff]
    %v7179 = vld [vmem:[%s7097 + $0x288] sm:$0xff]
    %v7180 = vld [vmem:[%s7097 + $0x290] sm:$0xff]
    %v7181 = vld [vmem:[%s7097 + $0x298] sm:$0xff]
    %v7182 = vld [vmem:[%s7097 + $0x2a0] sm:$0xff]
    %v7183 = vld [vmem:[%s7097 + $0x2a8] sm:$0xff]
    %v7184 = vld [vmem:[%s7097 + $0x2b0] sm:$0xff]
    %v7185 = vld [vmem:[%s7097 + $0x2b8] sm:$0xff]
    %v7186 = vld [vmem:[%s7097 + $0x2c0] sm:$0xff]
    %v7187 = vld [vmem:[%s7097 + $0x2c8] sm:$0xff]
    %v7188 = vld [vmem:[%s7097 + $0x2d0] sm:$0xff]
    %v7189 = vld [vmem:[%s7097 + $0x2d8] sm:$0xff]
    %v7190 = vld [vmem:[%s7097 + $0x2e0] sm:$0xff]
    %v7191 = vld [vmem:[%s7097 + $0x2e8] sm:$0xff]
    %v7192 = vld [vmem:[%s7097 + $0x2f0] sm:$0xff]
    %v7193 = vld [vmem:[%s7097 + $0x2f8] sm:$0xff]
    %v7194 = vld [vmem:[%s7097 + $0x300] sm:$0xff]
    %v7195 = vld [vmem:[%s7097 + $0x308] sm:$0xff]
    %v7196 = vld [vmem:[%s7097 + $0x310] sm:$0xff]
    %v7197 = vld [vmem:[%s7097 + $0x318] sm:$0xff]
    %v7198 = vld [vmem:[%s7097 + $0x320] sm:$0xff]
    %v7199 = vld [vmem:[%s7097 + $0x328] sm:$0xff]
    %v7200 = vld [vmem:[%s7097 + $0x330] sm:$0xff]
    %v7201 = vld [vmem:[%s7097 + $0x338] sm:$0xff]
    %v7202 = vld [vmem:[%s7097 + $0x340] sm:$0xff]
    %v7203 = vld [vmem:[%s7097 + $0x348] sm:$0xff]
    %v7204 = vld [vmem:[%s7097 + $0x350] sm:$0xff]
    %v7205 = vld [vmem:[%s7097 + $0x358] sm:$0xff]
    %v7206 = vld [vmem:[%s7097 + $0x360] sm:$0xff]
    %v7207 = vld [vmem:[%s7097 + $0x368] sm:$0xff]
    %v7208 = vld [vmem:[%s7097 + $0x370] sm:$0xff]
    %v7209 = vld [vmem:[%s7097 + $0x378] sm:$0xff]
    %v7210 = vld [vmem:[%s7097 + $0x380] sm:$0xff]
    %v7211 = vld [vmem:[%s7097 + $0x388] sm:$0xff]
    %v7212 = vld [vmem:[%s7097 + $0x390] sm:$0xff]
    %v7213 = vld [vmem:[%s7097 + $0x398] sm:$0xff]
    %v7214 = vld [vmem:[%s7097 + $0x3a0] sm:$0xff]
    %v7215 = vld [vmem:[%s7097 + $0x3a8] sm:$0xff]
    %v7216 = vld [vmem:[%s7097 + $0x3b0] sm:$0xff]
    %v7217 = vld [vmem:[%s7097 + $0x3b8] sm:$0xff]
    %v7218 = vld [vmem:[%s7097 + $0x3c0] sm:$0xff]
    %v7219 = vld [vmem:[%s7097 + $0x3c8] sm:$0xff]
    %v7220 = vld [vmem:[%s7097 + $0x3d0] sm:$0xff]
    %v7221 = vld [vmem:[%s7097 + $0x3d8] sm:$0xff]
    %v7222 = vld [vmem:[%s7097 + $0x3e0] sm:$0xff]
    %v7223 = vld [vmem:[%s7097 + $0x3e8] sm:$0xff]
    %v7224 = vld [vmem:[%s7097 + $0x3f0] sm:$0xff]
    %v7225 = vld [vmem:[%s7097 + $0x3f8] sm:$0xff]
    %7226 = vmatprep.subr.mxu0 %v7159
    %7227 = vmatpush1.msra.mxu0 %v7158
    %7228 = vmatprep.subr.mxu0 %v7155
    %7229 = vmatpush1.msra.mxu0 %v7154
    %7230 = vmatprep.subr.mxu0 %v7151
    %7231 = vmatpush1.msra.mxu0 %v7150
    %7232 = vmatprep.subr.mxu0 %v7147
    %7233 = vmatpush1.msra.mxu0 %v7146
    %7234 = vmatprep.subr.mxu0 %v7143
    %7235 = vmatpush1.msra.mxu0 %v7142
    %7236 = vmatprep.subr.mxu0 %v7139
    %7237 = vmatpush1.msra.mxu0 %v7138
    %7238 = vmatprep.subr.mxu0 %v7135
    %7239 = vmatpush1.msra.mxu0 %v7134
    %7240 = vmatprep.subr.mxu0 %v7131
    %7241 = vmatpush1.msra.mxu0 %v7130
    %7242 = vmatprep.subr.mxu0 %v7127
    %7243 = vmatpush1.msra.mxu0 %v7126
    %7244 = vmatprep.subr.mxu0 %v7123
    %7245 = vmatpush1.msra.mxu0 %v7122
    %7246 = vmatprep.subr.mxu0 %v7119
    %7247 = vmatpush1.msra.mxu0 %v7118
    %7248 = vmatprep.subr.mxu0 %v7115
    %7249 = vmatpush1.msra.mxu0 %v7114
    %7250 = vmatprep.subr.mxu0 %v7111
    %7251 = vmatpush1.msra.mxu0 %v7110
    %7252 = vmatprep.subr.mxu0 %v7107
    %7253 = vmatpush1.msra.mxu0 %v7106
    %7254 = vmatprep.subr.mxu0 %v7103
    %7255 = vmatpush1.msra.mxu0 %v7102
    %7256 = vmatprep.subr.mxu0 %v7099
    %7257 = vmatpush1.msra.mxu0 %v7098
    %7258 = vmatprep.subr.mxu0 %v7223
    %7259 = vmatpush2.msra.mxu0 %v7222
    %7260 = vmatprep.subr.mxu0 %v7219
    %7261 = vmatpush2.msra.mxu0 %v7218
    %7262 = vmatprep.subr.mxu0 %v7215
    %7263 = vmatpush2.msra.mxu0 %v7214
    %7264 = vmatprep.subr.mxu0 %v7211
    %7265 = vmatpush2.msra.mxu0 %v7210
    %7266 = vmatprep.subr.mxu0 %v7207
    %7267 = vmatpush2.msra.mxu0 %v7206
    %7268 = vmatprep.subr.mxu0 %v7203
    %7269 = vmatpush2.msra.mxu0 %v7202
    %7270 = vmatprep.subr.mxu0 %v7199
    %7271 = vmatpush2.msra.mxu0 %v7198
    %7272 = vmatprep.subr.mxu0 %v7195
    %7273 = vmatpush2.msra.mxu0 %v7194
    %7274 = vmatprep.subr.mxu0 %v7191
    %7275 = vmatpush2.msra.mxu0 %v7190
    %7276 = vmatprep.subr.mxu0 %v7187
    %7277 = vmatpush2.msra.mxu0 %v7186
    %7278 = vmatprep.subr.mxu0 %v7183
    %7279 = vmatpush2.msra.mxu0 %v7182
    %7280 = vmatprep.subr.mxu0 %v7179
    %7281 = vmatpush2.msra.mxu0 %v7178
    %7282 = vmatprep.subr.mxu0 %v7175
    %7283 = vmatpush2.msra.mxu0 %v7174
    %7284 = vmatprep.subr.mxu0 %v7171
    %7285 = vmatpush2.msra.mxu0 %v7170
    %7286 = vmatprep.subr.mxu0 %v7167
    %7287 = vmatpush2.msra.mxu0 %v7166
    %7288 = vmatprep.subr.mxu0 %v7163
    %7289 = vmatpush2.msra.mxu0 %v7162
    %7290 = vmatprep.mubr.f32.mxu0 %v5640
    %7291 = vmatmul.mubr.f32.gmra.mxu0 %v5638
    %v7292 = vpop.f32.mrf.mxu0
    %v7293 = vadd.f32 0.0, %v7292
    %v7294 = vpop.f32.mrf.mxu0
    %v7295 = vadd.f32 0.0, %v7294
    %7296 = vmatprep.mubr.f32.mxu0 %v5646
    %7297 = vmatmul.mubr.f32.gmra.mxu0 %v5644
    %v7298 = vpop.f32.mrf.mxu0
    %v7299 = vadd.f32 0.0, %v7298
    %v7300 = vpop.f32.mrf.mxu0
    %v7301 = vadd.f32 0.0, %v7300
    %7302 = vmatprep.mubr.f32.mxu0 %v5652
    %7303 = vmatmul.mubr.f32.gmra.mxu0 %v5650
    %v7304 = vpop.f32.mrf.mxu0
    %v7305 = vadd.f32 0.0, %v7304
    %v7306 = vpop.f32.mrf.mxu0
    %v7307 = vadd.f32 0.0, %v7306
    %7308 = vmatprep.mubr.f32.mxu0 %v5658
    %7309 = vmatmul.mubr.f32.gmra.mxu0 %v5656
    %v7310 = vpop.f32.mrf.mxu0
    %v7311 = vadd.f32 0.0, %v7310
    %v7312 = vpop.f32.mrf.mxu0
    %v7313 = vadd.f32 0.0, %v7312
    %7314 = vmatprep.mubr.f32.mxu0 %v5664
    %7315 = vmatmul.mubr.f32.gmra.mxu0 %v5662
    %v7316 = vpop.f32.mrf.mxu0
    %v7317 = vadd.f32 0.0, %v7316
    %v7318 = vpop.f32.mrf.mxu0
    %v7319 = vadd.f32 0.0, %v7318
    %7320 = vdwg.mxu0
    %7321 = vmatprep.subr.mxu0 %v7161
    %7322 = vmatpush1.msra.mxu0 %v7160
    %7323 = vmatprep.subr.mxu0 %v7157
    %7324 = vmatpush1.msra.mxu0 %v7156
    %7325 = vmatprep.subr.mxu0 %v7153
    %7326 = vmatpush1.msra.mxu0 %v7152
    %7327 = vmatprep.subr.mxu0 %v7149
    %7328 = vmatpush1.msra.mxu0 %v7148
    %7329 = vmatprep.subr.mxu0 %v7145
    %7330 = vmatpush1.msra.mxu0 %v7144
    %7331 = vmatprep.subr.mxu0 %v7141
    %7332 = vmatpush1.msra.mxu0 %v7140
    %7333 = vmatprep.subr.mxu0 %v7137
    %7334 = vmatpush1.msra.mxu0 %v7136
    %7335 = vmatprep.subr.mxu0 %v7133
    %7336 = vmatpush1.msra.mxu0 %v7132
    %7337 = vmatprep.subr.mxu0 %v7129
    %7338 = vmatpush1.msra.mxu0 %v7128
    %7339 = vmatprep.subr.mxu0 %v7125
    %7340 = vmatpush1.msra.mxu0 %v7124
    %7341 = vmatprep.subr.mxu0 %v7121
    %7342 = vmatpush1.msra.mxu0 %v7120
    %7343 = vmatprep.subr.mxu0 %v7117
    %7344 = vmatpush1.msra.mxu0 %v7116
    %7345 = vmatprep.subr.mxu0 %v7113
    %7346 = vmatpush1.msra.mxu0 %v7112
    %7347 = vmatprep.subr.mxu0 %v7109
    %7348 = vmatpush1.msra.mxu0 %v7108
    %7349 = vmatprep.subr.mxu0 %v7105
    %7350 = vmatpush1.msra.mxu0 %v7104
    %7351 = vmatprep.subr.mxu0 %v7101
    %7352 = vmatpush1.msra.mxu0 %v7100
    %7353 = vmatprep.subr.mxu0 %v7225
    %7354 = vmatpush2.msra.mxu0 %v7224
    %7355 = vmatprep.subr.mxu0 %v7221
    %7356 = vmatpush2.msra.mxu0 %v7220
    %7357 = vmatprep.subr.mxu0 %v7217
    %7358 = vmatpush2.msra.mxu0 %v7216
    %7359 = vmatprep.subr.mxu0 %v7213
    %7360 = vmatpush2.msra.mxu0 %v7212
    %7361 = vmatprep.subr.mxu0 %v7209
    %7362 = vmatpush2.msra.mxu0 %v7208
    %7363 = vmatprep.subr.mxu0 %v7205
    %7364 = vmatpush2.msra.mxu0 %v7204
    %7365 = vmatprep.subr.mxu0 %v7201
    %7366 = vmatpush2.msra.mxu0 %v7200
    %7367 = vmatprep.subr.mxu0 %v7197
    %7368 = vmatpush2.msra.mxu0 %v7196
    %7369 = vmatprep.subr.mxu0 %v7193
    %7370 = vmatpush2.msra.mxu0 %v7192
    %7371 = vmatprep.subr.mxu0 %v7189
    %7372 = vmatpush2.msra.mxu0 %v7188
    %7373 = vmatprep.subr.mxu0 %v7185
    %7374 = vmatpush2.msra.mxu0 %v7184
    %7375 = vmatprep.subr.mxu0 %v7181
    %7376 = vmatpush2.msra.mxu0 %v7180
    %7377 = vmatprep.subr.mxu0 %v7177
    %7378 = vmatpush2.msra.mxu0 %v7176
    %7379 = vmatprep.subr.mxu0 %v7173
    %7380 = vmatpush2.msra.mxu0 %v7172
    %7381 = vmatprep.subr.mxu0 %v7169
    %7382 = vmatpush2.msra.mxu0 %v7168
    %7383 = vmatprep.subr.mxu0 %v7165
    %7384 = vmatpush2.msra.mxu0 %v7164
    %7385 = vmatprep.mubr.f32.mxu0 %v5640
    %7386 = vmatmul.mubr.f32.gmra.mxu0 %v5638
    %v7387 = vpop.f32.mrf.mxu0
    %v7388 = vadd.f32 0.0, %v7387
    %v7389 = vpop.f32.mrf.mxu0
    %v7390 = vadd.f32 0.0, %v7389
    %7391 = vmatprep.mubr.f32.mxu0 %v5646
    %7392 = vmatmul.mubr.f32.gmra.mxu0 %v5644
    %v7393 = vpop.f32.mrf.mxu0
    %v7394 = vadd.f32 0.0, %v7393
    %v7395 = vpop.f32.mrf.mxu0
    %v7396 = vadd.f32 0.0, %v7395
    %7397 = vmatprep.mubr.f32.mxu0 %v5652
    %7398 = vmatmul.mubr.f32.gmra.mxu0 %v5650
    %v7399 = vpop.f32.mrf.mxu0
    %v7400 = vadd.f32 0.0, %v7399
    %v7401 = vpop.f32.mrf.mxu0
    %v7402 = vadd.f32 0.0, %v7401
    %7403 = vmatprep.mubr.f32.mxu0 %v5658
    %7404 = vmatmul.mubr.f32.gmra.mxu0 %v5656
    %v7405 = vpop.f32.mrf.mxu0
    %v7406 = vadd.f32 0.0, %v7405
    %v7407 = vpop.f32.mrf.mxu0
    %v7408 = vadd.f32 0.0, %v7407
    %7409 = vmatprep.mubr.f32.mxu0 %v5664
    %7410 = vmatmul.mubr.f32.gmra.mxu0 %v5662
    %v7411 = vpop.f32.mrf.mxu0
    %v7412 = vadd.f32 0.0, %v7411
    %v7413 = vpop.f32.mrf.mxu0
    %v7414 = vadd.f32 0.0, %v7413
    %7415 = vdwg.mxu0
    %v7416 = vadd.f32 %v7077, %v7293
    %v7417 = vadd.f32 %v7078, %v7295
    %v7418 = vadd.f32 %v7079, %v7388
    %v7419 = vadd.f32 %v7080, %v7390
    %v7420 = vadd.f32 %v7081, %v7299
    %v7421 = vadd.f32 %v7082, %v7301
    %v7422 = vadd.f32 %v7083, %v7394
    %v7423 = vadd.f32 %v7084, %v7396
    %v7424 = vadd.f32 %v7085, %v7305
    %v7425 = vadd.f32 %v7086, %v7307
    %v7426 = vadd.f32 %v7087, %v7400
    %v7427 = vadd.f32 %v7088, %v7402
    %v7428 = vadd.f32 %v7089, %v7311
    %v7429 = vadd.f32 %v7090, %v7313
    %v7430 = vadd.f32 %v7091, %v7406
    %v7431 = vadd.f32 %v7092, %v7408
    %v7432 = vadd.f32 %v7093, %v7317
    %v7433 = vadd.f32 %v7094, %v7319
    %v7434 = vadd.f32 %v7095, %v7412
    %v7435 = vadd.f32 %v7096, %v7414
    %7436 = vmatprep.subr.mxu0 %v5972
    %7437 = vmatpush1.msra.mxu0 %v5971
    %7438 = vmatprep.subr.mxu0 %v5968
    %7439 = vmatpush1.msra.mxu0 %v5967
    %7440 = vmatprep.subr.mxu0 %v5964
    %7441 = vmatpush1.msra.mxu0 %v5963
    %7442 = vmatprep.subr.mxu0 %v5960
    %7443 = vmatpush1.msra.mxu0 %v5959
    %7444 = vmatprep.subr.mxu0 %v5956
    %7445 = vmatpush1.msra.mxu0 %v5955
    %7446 = vmatprep.subr.mxu0 %v5952
    %7447 = vmatpush1.msra.mxu0 %v5951
    %7448 = vmatprep.subr.mxu0 %v5948
    %7449 = vmatpush1.msra.mxu0 %v5947
    %7450 = vmatprep.subr.mxu0 %v5944
    %7451 = vmatpush1.msra.mxu0 %v5943
    %7452 = vmatprep.subr.mxu0 %v5940
    %7453 = vmatpush1.msra.mxu0 %v5939
    %7454 = vmatprep.subr.mxu0 %v5936
    %7455 = vmatpush1.msra.mxu0 %v5935
    %7456 = vmatprep.subr.mxu0 %v5932
    %7457 = vmatpush1.msra.mxu0 %v5931
    %7458 = vmatprep.subr.mxu0 %v5928
    %7459 = vmatpush1.msra.mxu0 %v5927
    %7460 = vmatprep.subr.mxu0 %v5924
    %7461 = vmatpush1.msra.mxu0 %v5923
    %7462 = vmatprep.subr.mxu0 %v5920
    %7463 = vmatpush1.msra.mxu0 %v5919
    %7464 = vmatprep.subr.mxu0 %v5916
    %7465 = vmatpush1.msra.mxu0 %v5915
    %7466 = vmatprep.subr.mxu0 %v5912
    %7467 = vmatpush1.msra.mxu0 %v5911
    %7468 = vmatprep.subr.mxu0 %v6036
    %7469 = vmatpush2.msra.mxu0 %v6035
    %7470 = vmatprep.subr.mxu0 %v6032
    %7471 = vmatpush2.msra.mxu0 %v6031
    %7472 = vmatprep.subr.mxu0 %v6028
    %7473 = vmatpush2.msra.mxu0 %v6027
    %7474 = vmatprep.subr.mxu0 %v6024
    %7475 = vmatpush2.msra.mxu0 %v6023
    %7476 = vmatprep.subr.mxu0 %v6020
    %7477 = vmatpush2.msra.mxu0 %v6019
    %7478 = vmatprep.subr.mxu0 %v6016
    %7479 = vmatpush2.msra.mxu0 %v6015
    %7480 = vmatprep.subr.mxu0 %v6012
    %7481 = vmatpush2.msra.mxu0 %v6011
    %7482 = vmatprep.subr.mxu0 %v6008
    %7483 = vmatpush2.msra.mxu0 %v6007
    %7484 = vmatprep.subr.mxu0 %v6004
    %7485 = vmatpush2.msra.mxu0 %v6003
    %7486 = vmatprep.subr.mxu0 %v6000
    %7487 = vmatpush2.msra.mxu0 %v5999
    %7488 = vmatprep.subr.mxu0 %v5996
    %7489 = vmatpush2.msra.mxu0 %v5995
    %7490 = vmatprep.subr.mxu0 %v5992
    %7491 = vmatpush2.msra.mxu0 %v5991
    %7492 = vmatprep.subr.mxu0 %v5988
    %7493 = vmatpush2.msra.mxu0 %v5987
    %7494 = vmatprep.subr.mxu0 %v5984
    %7495 = vmatpush2.msra.mxu0 %v5983
    %7496 = vmatprep.subr.mxu0 %v5980
    %7497 = vmatpush2.msra.mxu0 %v5979
    %7498 = vmatprep.subr.mxu0 %v5976
    %7499 = vmatpush2.msra.mxu0 %v5975
    %7500 = vmatprep.mubr.f32.mxu0 %v5408
    %7501 = vmatmul.mubr.f32.gmra.mxu0 %v5406
    %v7502 = vpop.f32.mrf.mxu0
    %v7503 = vadd.f32 0.0, %v7502
    %v7504 = vpop.f32.mrf.mxu0
    %v7505 = vadd.f32 0.0, %v7504
    %7506 = vmatprep.mubr.f32.mxu0 %v5414
    %7507 = vmatmul.mubr.f32.gmra.mxu0 %v5412
    %v7508 = vpop.f32.mrf.mxu0
    %v7509 = vadd.f32 0.0, %v7508
    %v7510 = vpop.f32.mrf.mxu0
    %v7511 = vadd.f32 0.0, %v7510
    %7512 = vmatprep.mubr.f32.mxu0 %v5420
    %7513 = vmatmul.mubr.f32.gmra.mxu0 %v5418
    %v7514 = vpop.f32.mrf.mxu0
    %v7515 = vadd.f32 0.0, %v7514
    %v7516 = vpop.f32.mrf.mxu0
    %v7517 = vadd.f32 0.0, %v7516
    %7518 = vmatprep.mubr.f32.mxu0 %v5426
    %7519 = vmatmul.mubr.f32.gmra.mxu0 %v5424
    %v7520 = vpop.f32.mrf.mxu0
    %v7521 = vadd.f32 0.0, %v7520
    %v7522 = vpop.f32.mrf.mxu0
    %v7523 = vadd.f32 0.0, %v7522
    %7524 = vmatprep.mubr.f32.mxu0 %v5432
    %7525 = vmatmul.mubr.f32.gmra.mxu0 %v5430
    %v7526 = vpop.f32.mrf.mxu0
    %v7527 = vadd.f32 0.0, %v7526
    %v7528 = vpop.f32.mrf.mxu0
    %v7529 = vadd.f32 0.0, %v7528
    %7530 = vdwg.mxu0
    %7531 = vmatprep.subr.mxu0 %v5974
    %7532 = vmatpush1.msra.mxu0 %v5973
    %7533 = vmatprep.subr.mxu0 %v5970
    %7534 = vmatpush1.msra.mxu0 %v5969
    %7535 = vmatprep.subr.mxu0 %v5966
    %7536 = vmatpush1.msra.mxu0 %v5965
    %7537 = vmatprep.subr.mxu0 %v5962
    %7538 = vmatpush1.msra.mxu0 %v5961
    %7539 = vmatprep.subr.mxu0 %v5958
    %7540 = vmatpush1.msra.mxu0 %v5957
    %7541 = vmatprep.subr.mxu0 %v5954
    %7542 = vmatpush1.msra.mxu0 %v5953
    %7543 = vmatprep.subr.mxu0 %v5950
    %7544 = vmatpush1.msra.mxu0 %v5949
    %7545 = vmatprep.subr.mxu0 %v5946
    %7546 = vmatpush1.msra.mxu0 %v5945
    %7547 = vmatprep.subr.mxu0 %v5942
    %7548 = vmatpush1.msra.mxu0 %v5941
    %7549 = vmatprep.subr.mxu0 %v5938
    %7550 = vmatpush1.msra.mxu0 %v5937
    %7551 = vmatprep.subr.mxu0 %v5934
    %7552 = vmatpush1.msra.mxu0 %v5933
    %7553 = vmatprep.subr.mxu0 %v5930
    %7554 = vmatpush1.msra.mxu0 %v5929
    %7555 = vmatprep.subr.mxu0 %v5926
    %7556 = vmatpush1.msra.mxu0 %v5925
    %7557 = vmatprep.subr.mxu0 %v5922
    %7558 = vmatpush1.msra.mxu0 %v5921
    %7559 = vmatprep.subr.mxu0 %v5918
    %7560 = vmatpush1.msra.mxu0 %v5917
    %7561 = vmatprep.subr.mxu0 %v5914
    %7562 = vmatpush1.msra.mxu0 %v5913
    %7563 = vmatprep.subr.mxu0 %v6038
    %7564 = vmatpush2.msra.mxu0 %v6037
    %7565 = vmatprep.subr.mxu0 %v6034
    %7566 = vmatpush2.msra.mxu0 %v6033
    %7567 = vmatprep.subr.mxu0 %v6030
    %7568 = vmatpush2.msra.mxu0 %v6029
    %7569 = vmatprep.subr.mxu0 %v6026
    %7570 = vmatpush2.msra.mxu0 %v6025
    %7571 = vmatprep.subr.mxu0 %v6022
    %7572 = vmatpush2.msra.mxu0 %v6021
    %7573 = vmatprep.subr.mxu0 %v6018
    %7574 = vmatpush2.msra.mxu0 %v6017
    %7575 = vmatprep.subr.mxu0 %v6014
    %7576 = vmatpush2.msra.mxu0 %v6013
    %7577 = vmatprep.subr.mxu0 %v6010
    %7578 = vmatpush2.msra.mxu0 %v6009
    %7579 = vmatprep.subr.mxu0 %v6006
    %7580 = vmatpush2.msra.mxu0 %v6005
    %7581 = vmatprep.subr.mxu0 %v6002
    %7582 = vmatpush2.msra.mxu0 %v6001
    %7583 = vmatprep.subr.mxu0 %v5998
    %7584 = vmatpush2.msra.mxu0 %v5997
    %7585 = vmatprep.subr.mxu0 %v5994
    %7586 = vmatpush2.msra.mxu0 %v5993
    %7587 = vmatprep.subr.mxu0 %v5990
    %7588 = vmatpush2.msra.mxu0 %v5989
    %7589 = vmatprep.subr.mxu0 %v5986
    %7590 = vmatpush2.msra.mxu0 %v5985
    %7591 = vmatprep.subr.mxu0 %v5982
    %7592 = vmatpush2.msra.mxu0 %v5981
    %7593 = vmatprep.subr.mxu0 %v5978
    %7594 = vmatpush2.msra.mxu0 %v5977
    %7595 = vmatprep.mubr.f32.mxu0 %v5408
    %7596 = vmatmul.mubr.f32.gmra.mxu0 %v5406
    %v7597 = vpop.f32.mrf.mxu0
    %v7598 = vadd.f32 0.0, %v7597
    %v7599 = vpop.f32.mrf.mxu0
    %v7600 = vadd.f32 0.0, %v7599
    %7601 = vmatprep.mubr.f32.mxu0 %v5414
    %7602 = vmatmul.mubr.f32.gmra.mxu0 %v5412
    %v7603 = vpop.f32.mrf.mxu0
    %v7604 = vadd.f32 0.0, %v7603
    %v7605 = vpop.f32.mrf.mxu0
    %v7606 = vadd.f32 0.0, %v7605
    %7607 = vmatprep.mubr.f32.mxu0 %v5420
    %7608 = vmatmul.mubr.f32.gmra.mxu0 %v5418
    %v7609 = vpop.f32.mrf.mxu0
    %v7610 = vadd.f32 0.0, %v7609
    %v7611 = vpop.f32.mrf.mxu0
    %v7612 = vadd.f32 0.0, %v7611
    %7613 = vmatprep.mubr.f32.mxu0 %v5426
    %7614 = vmatmul.mubr.f32.gmra.mxu0 %v5424
    %v7615 = vpop.f32.mrf.mxu0
    %v7616 = vadd.f32 0.0, %v7615
    %v7617 = vpop.f32.mrf.mxu0
    %v7618 = vadd.f32 0.0, %v7617
    %7619 = vmatprep.mubr.f32.mxu0 %v5432
    %7620 = vmatmul.mubr.f32.gmra.mxu0 %v5430
    %v7621 = vpop.f32.mrf.mxu0
    %v7622 = vadd.f32 0.0, %v7621
    %v7623 = vpop.f32.mrf.mxu0
    %v7624 = vadd.f32 0.0, %v7623
    %7625 = vdwg.mxu0
    %7626 = vmatprep.subr.mxu0 %v5843
    %7627 = vmatpush1.msra.mxu0 %v5842
    %7628 = vmatprep.subr.mxu0 %v5839
    %7629 = vmatpush1.msra.mxu0 %v5838
    %7630 = vmatprep.subr.mxu0 %v5835
    %7631 = vmatpush1.msra.mxu0 %v5834
    %7632 = vmatprep.subr.mxu0 %v5831
    %7633 = vmatpush1.msra.mxu0 %v5830
    %7634 = vmatprep.subr.mxu0 %v5827
    %7635 = vmatpush1.msra.mxu0 %v5826
    %7636 = vmatprep.subr.mxu0 %v5823
    %7637 = vmatpush1.msra.mxu0 %v5822
    %7638 = vmatprep.subr.mxu0 %v5819
    %7639 = vmatpush1.msra.mxu0 %v5818
    %7640 = vmatprep.subr.mxu0 %v5815
    %7641 = vmatpush1.msra.mxu0 %v5814
    %7642 = vmatprep.subr.mxu0 %v5811
    %7643 = vmatpush1.msra.mxu0 %v5810
    %7644 = vmatprep.subr.mxu0 %v5807
    %7645 = vmatpush1.msra.mxu0 %v5806
    %7646 = vmatprep.subr.mxu0 %v5803
    %7647 = vmatpush1.msra.mxu0 %v5802
    %7648 = vmatprep.subr.mxu0 %v5799
    %7649 = vmatpush1.msra.mxu0 %v5798
    %7650 = vmatprep.subr.mxu0 %v5795
    %7651 = vmatpush1.msra.mxu0 %v5794
    %7652 = vmatprep.subr.mxu0 %v5791
    %7653 = vmatpush1.msra.mxu0 %v5790
    %7654 = vmatprep.subr.mxu0 %v5787
    %7655 = vmatpush1.msra.mxu0 %v5786
    %7656 = vmatprep.subr.mxu0 %v5783
    %7657 = vmatpush1.msra.mxu0 %v5782
    %7658 = vmatprep.subr.mxu0 %v5907
    %7659 = vmatpush2.msra.mxu0 %v5906
    %7660 = vmatprep.subr.mxu0 %v5903
    %7661 = vmatpush2.msra.mxu0 %v5902
    %7662 = vmatprep.subr.mxu0 %v5899
    %7663 = vmatpush2.msra.mxu0 %v5898
    %7664 = vmatprep.subr.mxu0 %v5895
    %7665 = vmatpush2.msra.mxu0 %v5894
    %7666 = vmatprep.subr.mxu0 %v5891
    %7667 = vmatpush2.msra.mxu0 %v5890
    %7668 = vmatprep.subr.mxu0 %v5887
    %7669 = vmatpush2.msra.mxu0 %v5886
    %7670 = vmatprep.subr.mxu0 %v5883
    %7671 = vmatpush2.msra.mxu0 %v5882
    %7672 = vmatprep.subr.mxu0 %v5879
    %7673 = vmatpush2.msra.mxu0 %v5878
    %7674 = vmatprep.subr.mxu0 %v5875
    %7675 = vmatpush2.msra.mxu0 %v5874
    %7676 = vmatprep.subr.mxu0 %v5871
    %7677 = vmatpush2.msra.mxu0 %v5870
    %7678 = vmatprep.subr.mxu0 %v5867
    %7679 = vmatpush2.msra.mxu0 %v5866
    %7680 = vmatprep.subr.mxu0 %v5863
    %7681 = vmatpush2.msra.mxu0 %v5862
    %7682 = vmatprep.subr.mxu0 %v5859
    %7683 = vmatpush2.msra.mxu0 %v5858
    %7684 = vmatprep.subr.mxu0 %v5855
    %7685 = vmatpush2.msra.mxu0 %v5854
    %7686 = vmatprep.subr.mxu0 %v5851
    %7687 = vmatpush2.msra.mxu0 %v5850
    %7688 = vmatprep.subr.mxu0 %v5847
    %7689 = vmatpush2.msra.mxu0 %v5846
    %7690 = vmatprep.mubr.f32.mxu0 %v5292
    %7691 = vmatmul.mubr.f32.gmra.mxu0 %v5290
    %v7692 = vpop.f32.mrf.mxu0
    %v7693 = vadd.f32 %v7503, %v7692
    %v7694 = vpop.f32.mrf.mxu0
    %v7695 = vadd.f32 %v7505, %v7694
    %7696 = vmatprep.mubr.f32.mxu0 %v5298
    %7697 = vmatmul.mubr.f32.gmra.mxu0 %v5296
    %v7698 = vpop.f32.mrf.mxu0
    %v7699 = vadd.f32 %v7509, %v7698
    %v7700 = vpop.f32.mrf.mxu0
    %v7701 = vadd.f32 %v7511, %v7700
    %7702 = vmatprep.mubr.f32.mxu0 %v5304
    %7703 = vmatmul.mubr.f32.gmra.mxu0 %v5302
    %v7704 = vpop.f32.mrf.mxu0
    %v7705 = vadd.f32 %v7515, %v7704
    %v7706 = vpop.f32.mrf.mxu0
    %v7707 = vadd.f32 %v7517, %v7706
    %7708 = vmatprep.mubr.f32.mxu0 %v5310
    %7709 = vmatmul.mubr.f32.gmra.mxu0 %v5308
    %v7710 = vpop.f32.mrf.mxu0
    %v7711 = vadd.f32 %v7521, %v7710
    %v7712 = vpop.f32.mrf.mxu0
    %v7713 = vadd.f32 %v7523, %v7712
    %7714 = vmatprep.mubr.f32.mxu0 %v5316
    %7715 = vmatmul.mubr.f32.gmra.mxu0 %v5314
    %v7716 = vpop.f32.mrf.mxu0
    %v7717 = vadd.f32 %v7527, %v7716
    %v7718 = vpop.f32.mrf.mxu0
    %v7719 = vadd.f32 %v7529, %v7718
    %7720 = vdwg.mxu0
    %7721 = vmatprep.subr.mxu0 %v5845
    %7722 = vmatpush1.msra.mxu0 %v5844
    %7723 = vmatprep.subr.mxu0 %v5841
    %7724 = vmatpush1.msra.mxu0 %v5840
    %7725 = vmatprep.subr.mxu0 %v5837
    %7726 = vmatpush1.msra.mxu0 %v5836
    %7727 = vmatprep.subr.mxu0 %v5833
    %7728 = vmatpush1.msra.mxu0 %v5832
    %7729 = vmatprep.subr.mxu0 %v5829
    %7730 = vmatpush1.msra.mxu0 %v5828
    %7731 = vmatprep.subr.mxu0 %v5825
    %7732 = vmatpush1.msra.mxu0 %v5824
    %7733 = vmatprep.subr.mxu0 %v5821
    %7734 = vmatpush1.msra.mxu0 %v5820
    %7735 = vmatprep.subr.mxu0 %v5817
    %7736 = vmatpush1.msra.mxu0 %v5816
    %7737 = vmatprep.subr.mxu0 %v5813
    %7738 = vmatpush1.msra.mxu0 %v5812
    %7739 = vmatprep.subr.mxu0 %v5809
    %7740 = vmatpush1.msra.mxu0 %v5808
    %7741 = vmatprep.subr.mxu0 %v5805
    %7742 = vmatpush1.msra.mxu0 %v5804
    %7743 = vmatprep.subr.mxu0 %v5801
    %7744 = vmatpush1.msra.mxu0 %v5800
    %7745 = vmatprep.subr.mxu0 %v5797
    %7746 = vmatpush1.msra.mxu0 %v5796
    %7747 = vmatprep.subr.mxu0 %v5793
    %7748 = vmatpush1.msra.mxu0 %v5792
    %7749 = vmatprep.subr.mxu0 %v5789
    %7750 = vmatpush1.msra.mxu0 %v5788
    %7751 = vmatprep.subr.mxu0 %v5785
    %7752 = vmatpush1.msra.mxu0 %v5784
    %7753 = vmatprep.subr.mxu0 %v5909
    %7754 = vmatpush2.msra.mxu0 %v5908
    %7755 = vmatprep.subr.mxu0 %v5905
    %7756 = vmatpush2.msra.mxu0 %v5904
    %7757 = vmatprep.subr.mxu0 %v5901
    %7758 = vmatpush2.msra.mxu0 %v5900
    %7759 = vmatprep.subr.mxu0 %v5897
    %7760 = vmatpush2.msra.mxu0 %v5896
    %7761 = vmatprep.subr.mxu0 %v5893
    %7762 = vmatpush2.msra.mxu0 %v5892
    %7763 = vmatprep.subr.mxu0 %v5889
    %7764 = vmatpush2.msra.mxu0 %v5888
    %7765 = vmatprep.subr.mxu0 %v5885
    %7766 = vmatpush2.msra.mxu0 %v5884
    %7767 = vmatprep.subr.mxu0 %v5881
    %7768 = vmatpush2.msra.mxu0 %v5880
    %7769 = vmatprep.subr.mxu0 %v5877
    %7770 = vmatpush2.msra.mxu0 %v5876
    %7771 = vmatprep.subr.mxu0 %v5873
    %7772 = vmatpush2.msra.mxu0 %v5872
    %7773 = vmatprep.subr.mxu0 %v5869
    %7774 = vmatpush2.msra.mxu0 %v5868
    %7775 = vmatprep.subr.mxu0 %v5865
    %7776 = vmatpush2.msra.mxu0 %v5864
    %7777 = vmatprep.subr.mxu0 %v5861
    %7778 = vmatpush2.msra.mxu0 %v5860
    %7779 = vmatprep.subr.mxu0 %v5857
    %7780 = vmatpush2.msra.mxu0 %v5856
    %7781 = vmatprep.subr.mxu0 %v5853
    %7782 = vmatpush2.msra.mxu0 %v5852
    %7783 = vmatprep.subr.mxu0 %v5849
    %7784 = vmatpush2.msra.mxu0 %v5848
    %7785 = vmatprep.mubr.f32.mxu0 %v5292
    %7786 = vmatmul.mubr.f32.gmra.mxu0 %v5290
    %v7787 = vpop.f32.mrf.mxu0
    %v7788 = vadd.f32 %v7598, %v7787
    %v7789 = vpop.f32.mrf.mxu0
    %v7790 = vadd.f32 %v7600, %v7789
    %7791 = vmatprep.mubr.f32.mxu0 %v5298
    %7792 = vmatmul.mubr.f32.gmra.mxu0 %v5296
    %v7793 = vpop.f32.mrf.mxu0
    %v7794 = vadd.f32 %v7604, %v7793
    %v7795 = vpop.f32.mrf.mxu0
    %v7796 = vadd.f32 %v7606, %v7795
    %7797 = vmatprep.mubr.f32.mxu0 %v5304
    %7798 = vmatmul.mubr.f32.gmra.mxu0 %v5302
    %v7799 = vpop.f32.mrf.mxu0
    %v7800 = vadd.f32 %v7610, %v7799
    %v7801 = vpop.f32.mrf.mxu0
    %v7802 = vadd.f32 %v7612, %v7801
    %7803 = vmatprep.mubr.f32.mxu0 %v5310
    %7804 = vmatmul.mubr.f32.gmra.mxu0 %v5308
    %v7805 = vpop.f32.mrf.mxu0
    %v7806 = vadd.f32 %v7616, %v7805
    %v7807 = vpop.f32.mrf.mxu0
    %v7808 = vadd.f32 %v7618, %v7807
    %7809 = vmatprep.mubr.f32.mxu0 %v5316
    %7810 = vmatmul.mubr.f32.gmra.mxu0 %v5314
    %v7811 = vpop.f32.mrf.mxu0
    %v7812 = vadd.f32 %v7622, %v7811
    %v7813 = vpop.f32.mrf.mxu0
    %v7814 = vadd.f32 %v7624, %v7813
    %7815 = vdwg.mxu0
    %7816 = vmatprep.subr.mxu0 %v6481
    %7817 = vmatpush1.msra.mxu0 %v6480
    %7818 = vmatprep.subr.mxu0 %v6477
    %7819 = vmatpush1.msra.mxu0 %v6476
    %7820 = vmatprep.subr.mxu0 %v6473
    %7821 = vmatpush1.msra.mxu0 %v6472
    %7822 = vmatprep.subr.mxu0 %v6469
    %7823 = vmatpush1.msra.mxu0 %v6468
    %7824 = vmatprep.subr.mxu0 %v6465
    %7825 = vmatpush1.msra.mxu0 %v6464
    %7826 = vmatprep.subr.mxu0 %v6461
    %7827 = vmatpush1.msra.mxu0 %v6460
    %7828 = vmatprep.subr.mxu0 %v6457
    %7829 = vmatpush1.msra.mxu0 %v6456
    %7830 = vmatprep.subr.mxu0 %v6453
    %7831 = vmatpush1.msra.mxu0 %v6452
    %7832 = vmatprep.subr.mxu0 %v6449
    %7833 = vmatpush1.msra.mxu0 %v6448
    %7834 = vmatprep.subr.mxu0 %v6445
    %7835 = vmatpush1.msra.mxu0 %v6444
    %7836 = vmatprep.subr.mxu0 %v6441
    %7837 = vmatpush1.msra.mxu0 %v6440
    %7838 = vmatprep.subr.mxu0 %v6437
    %7839 = vmatpush1.msra.mxu0 %v6436
    %7840 = vmatprep.subr.mxu0 %v6433
    %7841 = vmatpush1.msra.mxu0 %v6432
    %7842 = vmatprep.subr.mxu0 %v6429
    %7843 = vmatpush1.msra.mxu0 %v6428
    %7844 = vmatprep.subr.mxu0 %v6425
    %7845 = vmatpush1.msra.mxu0 %v6424
    %7846 = vmatprep.subr.mxu0 %v6421
    %7847 = vmatpush1.msra.mxu0 %v6420
    %7848 = vmatprep.subr.mxu0 %v6545
    %7849 = vmatpush2.msra.mxu0 %v6544
    %7850 = vmatprep.subr.mxu0 %v6541
    %7851 = vmatpush2.msra.mxu0 %v6540
    %7852 = vmatprep.subr.mxu0 %v6537
    %7853 = vmatpush2.msra.mxu0 %v6536
    %7854 = vmatprep.subr.mxu0 %v6533
    %7855 = vmatpush2.msra.mxu0 %v6532
    %7856 = vmatprep.subr.mxu0 %v6529
    %7857 = vmatpush2.msra.mxu0 %v6528
    %7858 = vmatprep.subr.mxu0 %v6525
    %7859 = vmatpush2.msra.mxu0 %v6524
    %7860 = vmatprep.subr.mxu0 %v6521
    %7861 = vmatpush2.msra.mxu0 %v6520
    %7862 = vmatprep.subr.mxu0 %v6517
    %7863 = vmatpush2.msra.mxu0 %v6516
    %7864 = vmatprep.subr.mxu0 %v6513
    %7865 = vmatpush2.msra.mxu0 %v6512
    %7866 = vmatprep.subr.mxu0 %v6509
    %7867 = vmatpush2.msra.mxu0 %v6508
    %7868 = vmatprep.subr.mxu0 %v6505
    %7869 = vmatpush2.msra.mxu0 %v6504
    %7870 = vmatprep.subr.mxu0 %v6501
    %7871 = vmatpush2.msra.mxu0 %v6500
    %7872 = vmatprep.subr.mxu0 %v6497
    %7873 = vmatpush2.msra.mxu0 %v6496
    %7874 = vmatprep.subr.mxu0 %v6493
    %7875 = vmatpush2.msra.mxu0 %v6492
    %7876 = vmatprep.subr.mxu0 %v6489
    %7877 = vmatpush2.msra.mxu0 %v6488
    %7878 = vmatprep.subr.mxu0 %v6485
    %7879 = vmatpush2.msra.mxu0 %v6484
    %7880 = vmatprep.mubr.f32.mxu0 %v5524
    %7881 = vmatmul.mubr.f32.gmra.mxu0 %v5522
    %v7882 = vpop.f32.mrf.mxu0
    %v7883 = vadd.f32 0.0, %v7882
    %v7884 = vpop.f32.mrf.mxu0
    %v7885 = vadd.f32 0.0, %v7884
    %7886 = vmatprep.mubr.f32.mxu0 %v5530
    %7887 = vmatmul.mubr.f32.gmra.mxu0 %v5528
    %v7888 = vpop.f32.mrf.mxu0
    %v7889 = vadd.f32 0.0, %v7888
    %v7890 = vpop.f32.mrf.mxu0
    %v7891 = vadd.f32 0.0, %v7890
    %7892 = vmatprep.mubr.f32.mxu0 %v5536
    %7893 = vmatmul.mubr.f32.gmra.mxu0 %v5534
    %v7894 = vpop.f32.mrf.mxu0
    %v7895 = vadd.f32 0.0, %v7894
    %v7896 = vpop.f32.mrf.mxu0
    %v7897 = vadd.f32 0.0, %v7896
    %7898 = vmatprep.mubr.f32.mxu0 %v5542
    %7899 = vmatmul.mubr.f32.gmra.mxu0 %v5540
    %v7900 = vpop.f32.mrf.mxu0
    %v7901 = vadd.f32 0.0, %v7900
    %v7902 = vpop.f32.mrf.mxu0
    %v7903 = vadd.f32 0.0, %v7902
    %7904 = vmatprep.mubr.f32.mxu0 %v5548
    %7905 = vmatmul.mubr.f32.gmra.mxu0 %v5546
    %v7906 = vpop.f32.mrf.mxu0
    %v7907 = vadd.f32 0.0, %v7906
    %v7908 = vpop.f32.mrf.mxu0
    %v7909 = vadd.f32 0.0, %v7908
    %7910 = vdwg.mxu0
    %7911 = vmatprep.subr.mxu0 %v6483
    %7912 = vmatpush1.msra.mxu0 %v6482
    %7913 = vmatprep.subr.mxu0 %v6479
    %7914 = vmatpush1.msra.mxu0 %v6478
    %7915 = vmatprep.subr.mxu0 %v6475
    %7916 = vmatpush1.msra.mxu0 %v6474
    %7917 = vmatprep.subr.mxu0 %v6471
    %7918 = vmatpush1.msra.mxu0 %v6470
    %7919 = vmatprep.subr.mxu0 %v6467
    %7920 = vmatpush1.msra.mxu0 %v6466
    %7921 = vmatprep.subr.mxu0 %v6463
    %7922 = vmatpush1.msra.mxu0 %v6462
    %7923 = vmatprep.subr.mxu0 %v6459
    %7924 = vmatpush1.msra.mxu0 %v6458
    %7925 = vmatprep.subr.mxu0 %v6455
    %7926 = vmatpush1.msra.mxu0 %v6454
    %7927 = vmatprep.subr.mxu0 %v6451
    %7928 = vmatpush1.msra.mxu0 %v6450
    %7929 = vmatprep.subr.mxu0 %v6447
    %7930 = vmatpush1.msra.mxu0 %v6446
    %7931 = vmatprep.subr.mxu0 %v6443
    %7932 = vmatpush1.msra.mxu0 %v6442
    %7933 = vmatprep.subr.mxu0 %v6439
    %7934 = vmatpush1.msra.mxu0 %v6438
    %7935 = vmatprep.subr.mxu0 %v6435
    %7936 = vmatpush1.msra.mxu0 %v6434
    %7937 = vmatprep.subr.mxu0 %v6431
    %7938 = vmatpush1.msra.mxu0 %v6430
    %7939 = vmatprep.subr.mxu0 %v6427
    %7940 = vmatpush1.msra.mxu0 %v6426
    %7941 = vmatprep.subr.mxu0 %v6423
    %7942 = vmatpush1.msra.mxu0 %v6422
    %7943 = vmatprep.subr.mxu0 %v6547
    %7944 = vmatpush2.msra.mxu0 %v6546
    %7945 = vmatprep.subr.mxu0 %v6543
    %7946 = vmatpush2.msra.mxu0 %v6542
    %7947 = vmatprep.subr.mxu0 %v6539
    %7948 = vmatpush2.msra.mxu0 %v6538
    %7949 = vmatprep.subr.mxu0 %v6535
    %7950 = vmatpush2.msra.mxu0 %v6534
    %7951 = vmatprep.subr.mxu0 %v6531
    %7952 = vmatpush2.msra.mxu0 %v6530
    %7953 = vmatprep.subr.mxu0 %v6527
    %7954 = vmatpush2.msra.mxu0 %v6526
    %7955 = vmatprep.subr.mxu0 %v6523
    %7956 = vmatpush2.msra.mxu0 %v6522
    %7957 = vmatprep.subr.mxu0 %v6519
    %7958 = vmatpush2.msra.mxu0 %v6518
    %7959 = vmatprep.subr.mxu0 %v6515
    %7960 = vmatpush2.msra.mxu0 %v6514
    %7961 = vmatprep.subr.mxu0 %v6511
    %7962 = vmatpush2.msra.mxu0 %v6510
    %7963 = vmatprep.subr.mxu0 %v6507
    %7964 = vmatpush2.msra.mxu0 %v6506
    %7965 = vmatprep.subr.mxu0 %v6503
    %7966 = vmatpush2.msra.mxu0 %v6502
    %7967 = vmatprep.subr.mxu0 %v6499
    %7968 = vmatpush2.msra.mxu0 %v6498
    %7969 = vmatprep.subr.mxu0 %v6495
    %7970 = vmatpush2.msra.mxu0 %v6494
    %7971 = vmatprep.subr.mxu0 %v6491
    %7972 = vmatpush2.msra.mxu0 %v6490
    %7973 = vmatprep.subr.mxu0 %v6487
    %7974 = vmatpush2.msra.mxu0 %v6486
    %7975 = vmatprep.mubr.f32.mxu0 %v5524
    %7976 = vmatmul.mubr.f32.gmra.mxu0 %v5522
    %v7977 = vpop.f32.mrf.mxu0
    %v7978 = vadd.f32 0.0, %v7977
    %v7979 = vpop.f32.mrf.mxu0
    %v7980 = vadd.f32 0.0, %v7979
    %7981 = vmatprep.mubr.f32.mxu0 %v5530
    %7982 = vmatmul.mubr.f32.gmra.mxu0 %v5528
    %v7983 = vpop.f32.mrf.mxu0
    %v7984 = vadd.f32 0.0, %v7983
    %v7985 = vpop.f32.mrf.mxu0
    %v7986 = vadd.f32 0.0, %v7985
    %7987 = vmatprep.mubr.f32.mxu0 %v5536
    %7988 = vmatmul.mubr.f32.gmra.mxu0 %v5534
    %v7989 = vpop.f32.mrf.mxu0
    %v7990 = vadd.f32 0.0, %v7989
    %v7991 = vpop.f32.mrf.mxu0
    %v7992 = vadd.f32 0.0, %v7991
    %7993 = vmatprep.mubr.f32.mxu0 %v5542
    %7994 = vmatmul.mubr.f32.gmra.mxu0 %v5540
    %v7995 = vpop.f32.mrf.mxu0
    %v7996 = vadd.f32 0.0, %v7995
    %v7997 = vpop.f32.mrf.mxu0
    %v7998 = vadd.f32 0.0, %v7997
    %7999 = vmatprep.mubr.f32.mxu0 %v5548
    %8000 = vmatmul.mubr.f32.gmra.mxu0 %v5546
    %v8001 = vpop.f32.mrf.mxu0
    %v8002 = vadd.f32 0.0, %v8001
    %v8003 = vpop.f32.mrf.mxu0
    %v8004 = vadd.f32 0.0, %v8003
    %8005 = vdwg.mxu0
    %v8006 = vadd.f32 %v7693, %v7883
    %v8007 = vadd.f32 %v7695, %v7885
    %v8008 = vadd.f32 %v7788, %v7978
    %v8009 = vadd.f32 %v7790, %v7980
    %v8010 = vadd.f32 %v7699, %v7889
    %v8011 = vadd.f32 %v7701, %v7891
    %v8012 = vadd.f32 %v7794, %v7984
    %v8013 = vadd.f32 %v7796, %v7986
    %v8014 = vadd.f32 %v7705, %v7895
    %v8015 = vadd.f32 %v7707, %v7897
    %v8016 = vadd.f32 %v7800, %v7990
    %v8017 = vadd.f32 %v7802, %v7992
    %v8018 = vadd.f32 %v7711, %v7901
    %v8019 = vadd.f32 %v7713, %v7903
    %v8020 = vadd.f32 %v7806, %v7996
    %v8021 = vadd.f32 %v7808, %v7998
    %v8022 = vadd.f32 %v7717, %v7907
    %v8023 = vadd.f32 %v7719, %v7909
    %v8024 = vadd.f32 %v7812, %v8002
    %v8025 = vadd.f32 %v7814, %v8004
    %8026 = vmatprep.subr.mxu0 %v6820
    %8027 = vmatpush1.msra.mxu0 %v6819
    %8028 = vmatprep.subr.mxu0 %v6816
    %8029 = vmatpush1.msra.mxu0 %v6815
    %8030 = vmatprep.subr.mxu0 %v6812
    %8031 = vmatpush1.msra.mxu0 %v6811
    %8032 = vmatprep.subr.mxu0 %v6808
    %8033 = vmatpush1.msra.mxu0 %v6807
    %8034 = vmatprep.subr.mxu0 %v6804
    %8035 = vmatpush1.msra.mxu0 %v6803
    %8036 = vmatprep.subr.mxu0 %v6800
    %8037 = vmatpush1.msra.mxu0 %v6799
    %8038 = vmatprep.subr.mxu0 %v6796
    %8039 = vmatpush1.msra.mxu0 %v6795
    %8040 = vmatprep.subr.mxu0 %v6792
    %8041 = vmatpush1.msra.mxu0 %v6791
    %8042 = vmatprep.subr.mxu0 %v6788
    %8043 = vmatpush1.msra.mxu0 %v6787
    %8044 = vmatprep.subr.mxu0 %v6784
    %8045 = vmatpush1.msra.mxu0 %v6783
    %8046 = vmatprep.subr.mxu0 %v6780
    %8047 = vmatpush1.msra.mxu0 %v6779
    %8048 = vmatprep.subr.mxu0 %v6776
    %8049 = vmatpush1.msra.mxu0 %v6775
    %8050 = vmatprep.subr.mxu0 %v6772
    %8051 = vmatpush1.msra.mxu0 %v6771
    %8052 = vmatprep.subr.mxu0 %v6768
    %8053 = vmatpush1.msra.mxu0 %v6767
    %8054 = vmatprep.subr.mxu0 %v6764
    %8055 = vmatpush1.msra.mxu0 %v6763
    %8056 = vmatprep.subr.mxu0 %v6760
    %8057 = vmatpush1.msra.mxu0 %v6759
    %8058 = vmatprep.subr.mxu0 %v6884
    %8059 = vmatpush2.msra.mxu0 %v6883
    %8060 = vmatprep.subr.mxu0 %v6880
    %8061 = vmatpush2.msra.mxu0 %v6879
    %8062 = vmatprep.subr.mxu0 %v6876
    %8063 = vmatpush2.msra.mxu0 %v6875
    %8064 = vmatprep.subr.mxu0 %v6872
    %8065 = vmatpush2.msra.mxu0 %v6871
    %8066 = vmatprep.subr.mxu0 %v6868
    %8067 = vmatpush2.msra.mxu0 %v6867
    %8068 = vmatprep.subr.mxu0 %v6864
    %8069 = vmatpush2.msra.mxu0 %v6863
    %8070 = vmatprep.subr.mxu0 %v6860
    %8071 = vmatpush2.msra.mxu0 %v6859
    %8072 = vmatprep.subr.mxu0 %v6856
    %8073 = vmatpush2.msra.mxu0 %v6855
    %8074 = vmatprep.subr.mxu0 %v6852
    %8075 = vmatpush2.msra.mxu0 %v6851
    %8076 = vmatprep.subr.mxu0 %v6848
    %8077 = vmatpush2.msra.mxu0 %v6847
    %8078 = vmatprep.subr.mxu0 %v6844
    %8079 = vmatpush2.msra.mxu0 %v6843
    %8080 = vmatprep.subr.mxu0 %v6840
    %8081 = vmatpush2.msra.mxu0 %v6839
    %8082 = vmatprep.subr.mxu0 %v6836
    %8083 = vmatpush2.msra.mxu0 %v6835
    %8084 = vmatprep.subr.mxu0 %v6832
    %8085 = vmatpush2.msra.mxu0 %v6831
    %8086 = vmatprep.subr.mxu0 %v6828
    %8087 = vmatpush2.msra.mxu0 %v6827
    %8088 = vmatprep.subr.mxu0 %v6824
    %8089 = vmatpush2.msra.mxu0 %v6823
    %8090 = vmatprep.mubr.f32.mxu0 %v5640
    %8091 = vmatmul.mubr.f32.gmra.mxu0 %v5638
    %v8092 = vpop.f32.mrf.mxu0
    %v8093 = vadd.f32 0.0, %v8092
    %v8094 = vpop.f32.mrf.mxu0
    %v8095 = vadd.f32 0.0, %v8094
    %8096 = vmatprep.mubr.f32.mxu0 %v5646
    %8097 = vmatmul.mubr.f32.gmra.mxu0 %v5644
    %v8098 = vpop.f32.mrf.mxu0
    %v8099 = vadd.f32 0.0, %v8098
    %v8100 = vpop.f32.mrf.mxu0
    %v8101 = vadd.f32 0.0, %v8100
    %8102 = vmatprep.mubr.f32.mxu0 %v5652
    %8103 = vmatmul.mubr.f32.gmra.mxu0 %v5650
    %v8104 = vpop.f32.mrf.mxu0
    %v8105 = vadd.f32 0.0, %v8104
    %v8106 = vpop.f32.mrf.mxu0
    %v8107 = vadd.f32 0.0, %v8106
    %8108 = vmatprep.mubr.f32.mxu0 %v5658
    %8109 = vmatmul.mubr.f32.gmra.mxu0 %v5656
    %v8110 = vpop.f32.mrf.mxu0
    %v8111 = vadd.f32 0.0, %v8110
    %v8112 = vpop.f32.mrf.mxu0
    %v8113 = vadd.f32 0.0, %v8112
    %8114 = vmatprep.mubr.f32.mxu0 %v5664
    %8115 = vmatmul.mubr.f32.gmra.mxu0 %v5662
    %v8116 = vpop.f32.mrf.mxu0
    %v8117 = vadd.f32 0.0, %v8116
    %v8118 = vpop.f32.mrf.mxu0
    %v8119 = vadd.f32 0.0, %v8118
    %8120 = vdwg.mxu0
    %8121 = vmatprep.subr.mxu0 %v6822
    %8122 = vmatpush1.msra.mxu0 %v6821
    %8123 = vmatprep.subr.mxu0 %v6818
    %8124 = vmatpush1.msra.mxu0 %v6817
    %8125 = vmatprep.subr.mxu0 %v6814
    %8126 = vmatpush1.msra.mxu0 %v6813
    %8127 = vmatprep.subr.mxu0 %v6810
    %8128 = vmatpush1.msra.mxu0 %v6809
    %8129 = vmatprep.subr.mxu0 %v6806
    %8130 = vmatpush1.msra.mxu0 %v6805
    %8131 = vmatprep.subr.mxu0 %v6802
    %8132 = vmatpush1.msra.mxu0 %v6801
    %8133 = vmatprep.subr.mxu0 %v6798
    %8134 = vmatpush1.msra.mxu0 %v6797
    %8135 = vmatprep.subr.mxu0 %v6794
    %8136 = vmatpush1.msra.mxu0 %v6793
    %8137 = vmatprep.subr.mxu0 %v6790
    %8138 = vmatpush1.msra.mxu0 %v6789
    %8139 = vmatprep.subr.mxu0 %v6786
    %8140 = vmatpush1.msra.mxu0 %v6785
    %8141 = vmatprep.subr.mxu0 %v6782
    %8142 = vmatpush1.msra.mxu0 %v6781
    %8143 = vmatprep.subr.mxu0 %v6778
    %8144 = vmatpush1.msra.mxu0 %v6777
    %8145 = vmatprep.subr.mxu0 %v6774
    %8146 = vmatpush1.msra.mxu0 %v6773
    %8147 = vmatprep.subr.mxu0 %v6770
    %8148 = vmatpush1.msra.mxu0 %v6769
    %8149 = vmatprep.subr.mxu0 %v6766
    %8150 = vmatpush1.msra.mxu0 %v6765
    %8151 = vmatprep.subr.mxu0 %v6762
    %8152 = vmatpush1.msra.mxu0 %v6761
    %8153 = vmatprep.subr.mxu0 %v6886
    %8154 = vmatpush2.msra.mxu0 %v6885
    %8155 = vmatprep.subr.mxu0 %v6882
    %8156 = vmatpush2.msra.mxu0 %v6881
    %8157 = vmatprep.subr.mxu0 %v6878
    %8158 = vmatpush2.msra.mxu0 %v6877
    %8159 = vmatprep.subr.mxu0 %v6874
    %8160 = vmatpush2.msra.mxu0 %v6873
    %8161 = vmatprep.subr.mxu0 %v6870
    %8162 = vmatpush2.msra.mxu0 %v6869
    %8163 = vmatprep.subr.mxu0 %v6866
    %8164 = vmatpush2.msra.mxu0 %v6865
    %8165 = vmatprep.subr.mxu0 %v6862
    %8166 = vmatpush2.msra.mxu0 %v6861
    %8167 = vmatprep.subr.mxu0 %v6858
    %8168 = vmatpush2.msra.mxu0 %v6857
    %8169 = vmatprep.subr.mxu0 %v6854
    %8170 = vmatpush2.msra.mxu0 %v6853
    %8171 = vmatprep.subr.mxu0 %v6850
    %8172 = vmatpush2.msra.mxu0 %v6849
    %8173 = vmatprep.subr.mxu0 %v6846
    %8174 = vmatpush2.msra.mxu0 %v6845
    %8175 = vmatprep.subr.mxu0 %v6842
    %8176 = vmatpush2.msra.mxu0 %v6841
    %8177 = vmatprep.subr.mxu0 %v6838
    %8178 = vmatpush2.msra.mxu0 %v6837
    %8179 = vmatprep.subr.mxu0 %v6834
    %8180 = vmatpush2.msra.mxu0 %v6833
    %8181 = vmatprep.subr.mxu0 %v6830
    %8182 = vmatpush2.msra.mxu0 %v6829
    %8183 = vmatprep.subr.mxu0 %v6826
    %8184 = vmatpush2.msra.mxu0 %v6825
    %8185 = vmatprep.mubr.f32.mxu0 %v5640
    %8186 = vmatmul.mubr.f32.gmra.mxu0 %v5638
    %v8187 = vpop.f32.mrf.mxu0
    %v8188 = vadd.f32 0.0, %v8187
    %v8189 = vpop.f32.mrf.mxu0
    %v8190 = vadd.f32 0.0, %v8189
    %8191 = vmatprep.mubr.f32.mxu0 %v5646
    %8192 = vmatmul.mubr.f32.gmra.mxu0 %v5644
    %v8193 = vpop.f32.mrf.mxu0
    %v8194 = vadd.f32 0.0, %v8193
    %v8195 = vpop.f32.mrf.mxu0
    %v8196 = vadd.f32 0.0, %v8195
    %8197 = vmatprep.mubr.f32.mxu0 %v5652
    %8198 = vmatmul.mubr.f32.gmra.mxu0 %v5650
    %v8199 = vpop.f32.mrf.mxu0
    %v8200 = vadd.f32 0.0, %v8199
    %v8201 = vpop.f32.mrf.mxu0
    %v8202 = vadd.f32 0.0, %v8201
    %8203 = vmatprep.mubr.f32.mxu0 %v5658
    %8204 = vmatmul.mubr.f32.gmra.mxu0 %v5656
    %v8205 = vpop.f32.mrf.mxu0
    %v8206 = vadd.f32 0.0, %v8205
    %v8207 = vpop.f32.mrf.mxu0
    %v8208 = vadd.f32 0.0, %v8207
    %8209 = vmatprep.mubr.f32.mxu0 %v5664
    %8210 = vmatmul.mubr.f32.gmra.mxu0 %v5662
    %v8211 = vpop.f32.mrf.mxu0
    %v8212 = vadd.f32 0.0, %v8211
    %v8213 = vpop.f32.mrf.mxu0
    %v8214 = vadd.f32 0.0, %v8213
    %8215 = vdwg.mxu0
    %v8216 = vadd.f32 %v8006, %v8093
    %v8217 = vadd.f32 %v8007, %v8095
    %v8218 = vadd.f32 %v8008, %v8188
    %v8219 = vadd.f32 %v8009, %v8190
    %v8220 = vadd.f32 %v8010, %v8099
    %v8221 = vadd.f32 %v8011, %v8101
    %v8222 = vadd.f32 %v8012, %v8194
    %v8223 = vadd.f32 %v8013, %v8196
    %v8224 = vadd.f32 %v8014, %v8105
    %v8225 = vadd.f32 %v8015, %v8107
    %v8226 = vadd.f32 %v8016, %v8200
    %v8227 = vadd.f32 %v8017, %v8202
    %v8228 = vadd.f32 %v8018, %v8111
    %v8229 = vadd.f32 %v8019, %v8113
    %v8230 = vadd.f32 %v8020, %v8206
    %v8231 = vadd.f32 %v8021, %v8208
    %v8232 = vadd.f32 %v8022, %v8117
    %v8233 = vadd.f32 %v8023, %v8119
    %v8234 = vadd.f32 %v8024, %v8212
    %v8235 = vadd.f32 %v8025, %v8214
    %8236 = vmatprep.subr.mxu0 %v7159
    %8237 = vmatpush1.msra.mxu0 %v7158
    %8238 = vmatprep.subr.mxu0 %v7155
    %8239 = vmatpush1.msra.mxu0 %v7154
    %8240 = vmatprep.subr.mxu0 %v7151
    %8241 = vmatpush1.msra.mxu0 %v7150
    %8242 = vmatprep.subr.mxu0 %v7147
    %8243 = vmatpush1.msra.mxu0 %v7146
    %8244 = vmatprep.subr.mxu0 %v7143
    %8245 = vmatpush1.msra.mxu0 %v7142
    %8246 = vmatprep.subr.mxu0 %v7139
    %8247 = vmatpush1.msra.mxu0 %v7138
    %8248 = vmatprep.subr.mxu0 %v7135
    %8249 = vmatpush1.msra.mxu0 %v7134
    %8250 = vmatprep.subr.mxu0 %v7131
    %8251 = vmatpush1.msra.mxu0 %v7130
    %8252 = vmatprep.subr.mxu0 %v7127
    %8253 = vmatpush1.msra.mxu0 %v7126
    %8254 = vmatprep.subr.mxu0 %v7123
    %8255 = vmatpush1.msra.mxu0 %v7122
    %8256 = vmatprep.subr.mxu0 %v7119
    %8257 = vmatpush1.msra.mxu0 %v7118
    %8258 = vmatprep.subr.mxu0 %v7115
    %8259 = vmatpush1.msra.mxu0 %v7114
    %8260 = vmatprep.subr.mxu0 %v7111
    %8261 = vmatpush1.msra.mxu0 %v7110
    %8262 = vmatprep.subr.mxu0 %v7107
    %8263 = vmatpush1.msra.mxu0 %v7106
    %8264 = vmatprep.subr.mxu0 %v7103
    %8265 = vmatpush1.msra.mxu0 %v7102
    %8266 = vmatprep.subr.mxu0 %v7099
    %8267 = vmatpush1.msra.mxu0 %v7098
    %8268 = vmatprep.subr.mxu0 %v7223
    %8269 = vmatpush2.msra.mxu0 %v7222
    %8270 = vmatprep.subr.mxu0 %v7219
    %8271 = vmatpush2.msra.mxu0 %v7218
    %8272 = vmatprep.subr.mxu0 %v7215
    %8273 = vmatpush2.msra.mxu0 %v7214
    %8274 = vmatprep.subr.mxu0 %v7211
    %8275 = vmatpush2.msra.mxu0 %v7210
    %8276 = vmatprep.subr.mxu0 %v7207
    %8277 = vmatpush2.msra.mxu0 %v7206
    %8278 = vmatprep.subr.mxu0 %v7203
    %8279 = vmatpush2.msra.mxu0 %v7202
    %8280 = vmatprep.subr.mxu0 %v7199
    %8281 = vmatpush2.msra.mxu0 %v7198
    %8282 = vmatprep.subr.mxu0 %v7195
    %8283 = vmatpush2.msra.mxu0 %v7194
    %8284 = vmatprep.subr.mxu0 %v7191
    %8285 = vmatpush2.msra.mxu0 %v7190
    %8286 = vmatprep.subr.mxu0 %v7187
    %8287 = vmatpush2.msra.mxu0 %v7186
    %8288 = vmatprep.subr.mxu0 %v7183
    %8289 = vmatpush2.msra.mxu0 %v7182
    %8290 = vmatprep.subr.mxu0 %v7179
    %8291 = vmatpush2.msra.mxu0 %v7178
    %8292 = vmatprep.subr.mxu0 %v7175
    %8293 = vmatpush2.msra.mxu0 %v7174
    %8294 = vmatprep.subr.mxu0 %v7171
    %8295 = vmatpush2.msra.mxu0 %v7170
    %8296 = vmatprep.subr.mxu0 %v7167
    %8297 = vmatpush2.msra.mxu0 %v7166
    %8298 = vmatprep.subr.mxu0 %v7163
    %8299 = vmatpush2.msra.mxu0 %v7162
    %8300 = vmatprep.mubr.f32.mxu0 %v5756
    %8301 = vmatmul.mubr.f32.gmra.mxu0 %v5754
    %v8302 = vpop.f32.mrf.mxu0
    %v8303 = vadd.f32 0.0, %v8302
    %v8304 = vpop.f32.mrf.mxu0
    %v8305 = vadd.f32 0.0, %v8304
    %8306 = vmatprep.mubr.f32.mxu0 %v5762
    %8307 = vmatmul.mubr.f32.gmra.mxu0 %v5760
    %v8308 = vpop.f32.mrf.mxu0
    %v8309 = vadd.f32 0.0, %v8308
    %v8310 = vpop.f32.mrf.mxu0
    %v8311 = vadd.f32 0.0, %v8310
    %8312 = vmatprep.mubr.f32.mxu0 %v5768
    %8313 = vmatmul.mubr.f32.gmra.mxu0 %v5766
    %v8314 = vpop.f32.mrf.mxu0
    %v8315 = vadd.f32 0.0, %v8314
    %v8316 = vpop.f32.mrf.mxu0
    %v8317 = vadd.f32 0.0, %v8316
    %8318 = vmatprep.mubr.f32.mxu0 %v5774
    %8319 = vmatmul.mubr.f32.gmra.mxu0 %v5772
    %v8320 = vpop.f32.mrf.mxu0
    %v8321 = vadd.f32 0.0, %v8320
    %v8322 = vpop.f32.mrf.mxu0
    %v8323 = vadd.f32 0.0, %v8322
    %8324 = vmatprep.mubr.f32.mxu0 %v5780
    %8325 = vmatmul.mubr.f32.gmra.mxu0 %v5778
    %v8326 = vpop.f32.mrf.mxu0
    %v8327 = vadd.f32 0.0, %v8326
    %v8328 = vpop.f32.mrf.mxu0
    %v8329 = vadd.f32 0.0, %v8328
    %8330 = vdwg.mxu0
    %8331 = vmatprep.subr.mxu0 %v7161
    %8332 = vmatpush1.msra.mxu0 %v7160
    %8333 = vmatprep.subr.mxu0 %v7157
    %8334 = vmatpush1.msra.mxu0 %v7156
    %8335 = vmatprep.subr.mxu0 %v7153
    %8336 = vmatpush1.msra.mxu0 %v7152
    %8337 = vmatprep.subr.mxu0 %v7149
    %8338 = vmatpush1.msra.mxu0 %v7148
    %8339 = vmatprep.subr.mxu0 %v7145
    %8340 = vmatpush1.msra.mxu0 %v7144
    %8341 = vmatprep.subr.mxu0 %v7141
    %8342 = vmatpush1.msra.mxu0 %v7140
    %8343 = vmatprep.subr.mxu0 %v7137
    %8344 = vmatpush1.msra.mxu0 %v7136
    %8345 = vmatprep.subr.mxu0 %v7133
    %8346 = vmatpush1.msra.mxu0 %v7132
    %8347 = vmatprep.subr.mxu0 %v7129
    %8348 = vmatpush1.msra.mxu0 %v7128
    %8349 = vmatprep.subr.mxu0 %v7125
    %8350 = vmatpush1.msra.mxu0 %v7124
    %8351 = vmatprep.subr.mxu0 %v7121
    %8352 = vmatpush1.msra.mxu0 %v7120
    %8353 = vmatprep.subr.mxu0 %v7117
    %8354 = vmatpush1.msra.mxu0 %v7116
    %8355 = vmatprep.subr.mxu0 %v7113
    %8356 = vmatpush1.msra.mxu0 %v7112
    %8357 = vmatprep.subr.mxu0 %v7109
    %8358 = vmatpush1.msra.mxu0 %v7108
    %8359 = vmatprep.subr.mxu0 %v7105
    %8360 = vmatpush1.msra.mxu0 %v7104
    %8361 = vmatprep.subr.mxu0 %v7101
    %8362 = vmatpush1.msra.mxu0 %v7100
    %8363 = vmatprep.subr.mxu0 %v7225
    %8364 = vmatpush2.msra.mxu0 %v7224
    %8365 = vmatprep.subr.mxu0 %v7221
    %8366 = vmatpush2.msra.mxu0 %v7220
    %8367 = vmatprep.subr.mxu0 %v7217
    %8368 = vmatpush2.msra.mxu0 %v7216
    %8369 = vmatprep.subr.mxu0 %v7213
    %8370 = vmatpush2.msra.mxu0 %v7212
    %8371 = vmatprep.subr.mxu0 %v7209
    %8372 = vmatpush2.msra.mxu0 %v7208
    %8373 = vmatprep.subr.mxu0 %v7205
    %8374 = vmatpush2.msra.mxu0 %v7204
    %8375 = vmatprep.subr.mxu0 %v7201
    %8376 = vmatpush2.msra.mxu0 %v7200
    %8377 = vmatprep.subr.mxu0 %v7197
    %8378 = vmatpush2.msra.mxu0 %v7196
    %8379 = vmatprep.subr.mxu0 %v7193
    %8380 = vmatpush2.msra.mxu0 %v7192
    %8381 = vmatprep.subr.mxu0 %v7189
    %8382 = vmatpush2.msra.mxu0 %v7188
    %8383 = vmatprep.subr.mxu0 %v7185
    %8384 = vmatpush2.msra.mxu0 %v7184
    %8385 = vmatprep.subr.mxu0 %v7181
    %8386 = vmatpush2.msra.mxu0 %v7180
    %8387 = vmatprep.subr.mxu0 %v7177
    %8388 = vmatpush2.msra.mxu0 %v7176
    %8389 = vmatprep.subr.mxu0 %v7173
    %8390 = vmatpush2.msra.mxu0 %v7172
    %8391 = vmatprep.subr.mxu0 %v7169
    %8392 = vmatpush2.msra.mxu0 %v7168
    %8393 = vmatprep.subr.mxu0 %v7165
    %8394 = vmatpush2.msra.mxu0 %v7164
    %8395 = vmatprep.mubr.f32.mxu0 %v5756
    %8396 = vmatmul.mubr.f32.gmra.mxu0 %v5754
    %v8397 = vpop.f32.mrf.mxu0
    %v8398 = vadd.f32 0.0, %v8397
    %v8399 = vpop.f32.mrf.mxu0
    %v8400 = vadd.f32 0.0, %v8399
    %8401 = vmatprep.mubr.f32.mxu0 %v5762
    %8402 = vmatmul.mubr.f32.gmra.mxu0 %v5760
    %v8403 = vpop.f32.mrf.mxu0
    %v8404 = vadd.f32 0.0, %v8403
    %v8405 = vpop.f32.mrf.mxu0
    %v8406 = vadd.f32 0.0, %v8405
    %8407 = vmatprep.mubr.f32.mxu0 %v5768
    %8408 = vmatmul.mubr.f32.gmra.mxu0 %v5766
    %v8409 = vpop.f32.mrf.mxu0
    %v8410 = vadd.f32 0.0, %v8409
    %v8411 = vpop.f32.mrf.mxu0
    %v8412 = vadd.f32 0.0, %v8411
    %8413 = vmatprep.mubr.f32.mxu0 %v5774
    %8414 = vmatmul.mubr.f32.gmra.mxu0 %v5772
    %v8415 = vpop.f32.mrf.mxu0
    %v8416 = vadd.f32 0.0, %v8415
    %v8417 = vpop.f32.mrf.mxu0
    %v8418 = vadd.f32 0.0, %v8417
    %8419 = vmatprep.mubr.f32.mxu0 %v5780
    %8420 = vmatmul.mubr.f32.gmra.mxu0 %v5778
    %v8421 = vpop.f32.mrf.mxu0
    %v8422 = vadd.f32 0.0, %v8421
    %v8423 = vpop.f32.mrf.mxu0
    %v8424 = vadd.f32 0.0, %v8423
    %8425 = vdwg.mxu0
    %v8426 = vadd.f32 %v8216, %v8303
    %v8427 = vadd.f32 %v8217, %v8305
    %v8428 = vadd.f32 %v8218, %v8398
    %v8429 = vadd.f32 %v8219, %v8400
    %v8430 = vadd.f32 %v8220, %v8309
    %v8431 = vadd.f32 %v8221, %v8311
    %v8432 = vadd.f32 %v8222, %v8404
    %v8433 = vadd.f32 %v8223, %v8406
    %v8434 = vadd.f32 %v8224, %v8315
    %v8435 = vadd.f32 %v8225, %v8317
    %v8436 = vadd.f32 %v8226, %v8410
    %v8437 = vadd.f32 %v8227, %v8412
    %v8438 = vadd.f32 %v8228, %v8321
    %v8439 = vadd.f32 %v8229, %v8323
    %v8440 = vadd.f32 %v8230, %v8416
    %v8441 = vadd.f32 %v8231, %v8418
    %v8442 = vadd.f32 %v8232, %v8327
    %v8443 = vadd.f32 %v8233, %v8329
    %v8444 = vadd.f32 %v8234, %v8422
    %v8445 = vadd.f32 %v8235, %v8424
    %v8446 = vmax.f32 %v7416, %v8426
    %v8447 = vmax.f32 %v7417, %v8427
    %v8448 = vmax.f32 %v7418, %v8428
    %v8449 = vmax.f32 %v7419, %v8429
    %v8450 = vmax.f32 %v7420, %v8430
    %v8451 = vmax.f32 %v7421, %v8431
    %v8452 = vmax.f32 %v7422, %v8432
    %v8453 = vmax.f32 %v7423, %v8433
    %v8454 = vmax.f32 %v7424, %v8434
    %v8455 = vmax.f32 %v7425, %v8435
    %v8456 = vmax.f32 %v7426, %v8436
    %v8457 = vmax.f32 %v7427, %v8437
    %v8458 = vmax.f32 %v7428, %v8438
    %v8459 = vmax.f32 %v7429, %v8439
    %v8460 = vmax.f32 %v7430, %v8440
    %v8461 = vmax.f32 %v7431, %v8441
    %v8462 = vmax.f32 %v7432, %v8442
    %v8463 = vmax.f32 %v7433, %v8443
    %v8464 = vmax.f32 %v7434, %v8444
    %v8465 = vmax.f32 %v7435, %v8445
    %v8466 = vld [vmem:[#allocation10] sm:$0xf]
    %v8468 = vlaneseq
    %v8469 = vshrl.u32 %v8468, 7
    %v8470 = vsub.s32 0, %v8469
    %v8471 = vrot.slane %v8466, %v8470
    %v8472 = vlaneseq
    %v8473 = vshrl.u32 %v8472, 7
    %v8474 = vsub.s32 1, %v8473
    %v8475 = vrot.slane %v8466, %v8474
    %v8476 = vlaneseq
    %v8477 = vshrl.u32 %v8476, 7
    %v8478 = vsub.s32 2, %v8477
    %v8479 = vrot.slane %v8466, %v8478
    %v8480 = vlaneseq
    %v8481 = vshrl.u32 %v8480, 7
    %v8482 = vsub.s32 3, %v8481
    %v8483 = vrot.slane %v8466, %v8482
    %v8488 = vadd.f32 %v8446, %v8471
    %v8489 = vadd.f32 %v8447, %v8475
    %v8490 = vadd.f32 %v8448, %v8479
    %v8491 = vadd.f32 %v8449, %v8483
    %v8492 = vadd.f32 %v8450, %v8471
    %v8493 = vadd.f32 %v8451, %v8475
    %v8494 = vadd.f32 %v8452, %v8479
    %v8495 = vadd.f32 %v8453, %v8483
    %v8496 = vadd.f32 %v8454, %v8471
    %v8497 = vadd.f32 %v8455, %v8475
    %v8498 = vadd.f32 %v8456, %v8479
    %v8499 = vadd.f32 %v8457, %v8483
    %v8500 = vadd.f32 %v8458, %v8471
    %v8501 = vadd.f32 %v8459, %v8475
    %v8502 = vadd.f32 %v8460, %v8479
    %v8503 = vadd.f32 %v8461, %v8483
    %v8504 = vadd.f32 %v8462, %v8471
    %v8505 = vadd.f32 %v8463, %v8475
    %v8506 = vadd.f32 %v8464, %v8479
    %v8507 = vadd.f32 %v8465, %v8483
    %v8508 = vmax.f32 %v8488, %v8490
    %v8509 = vmax.f32 %v8489, %v8491
    %v8510 = vmax.f32 %v8492, %v8494
    %v8511 = vmax.f32 %v8493, %v8495
    %v8512 = vmax.f32 %v8496, %v8498
    %v8513 = vmax.f32 %v8497, %v8499
    %v8514 = vmax.f32 %v8500, %v8502
    %v8515 = vmax.f32 %v8501, %v8503
    %v8516 = vmax.f32 %v8504, %v8506
    %v8517 = vmax.f32 %v8505, %v8507
    %v8518 = vmul.f32 %v8508, 0.1
    %v8519 = vmul.f32 %v8509, 0.1
    %v8520 = vmul.f32 %v8510, 0.1
    %v8521 = vmul.f32 %v8511, 0.1
    %v8522 = vmul.f32 %v8512, 0.1
    %v8523 = vmul.f32 %v8513, 0.1
    %v8524 = vmul.f32 %v8514, 0.1
    %v8525 = vmul.f32 %v8515, 0.1
    %v8526 = vmul.f32 %v8516, 0.1
    %v8527 = vmul.f32 %v8517, 0.1
    %v8528 = vmax.f32 %v8508, %v8518
    %v8529 = vmax.f32 %v8509, %v8519
    %v8530 = vmax.f32 %v8510, %v8520
    %v8531 = vmax.f32 %v8511, %v8521
    %v8532 = vmax.f32 %v8512, %v8522
    %v8533 = vmax.f32 %v8513, %v8523
    %v8534 = vmax.f32 %v8514, %v8524
    %v8535 = vmax.f32 %v8515, %v8525
    %v8536 = vmax.f32 %v8516, %v8526
    %v8537 = vmax.f32 %v8517, %v8527
    %v8538 = vld [vmem:[#allocation12] sm:$0xff]
    %vm8539 = vcmask 326656
    %v8541 = vsel %vm8539, %v8538, 0
    %8543 = vmatprep.subr.mxu0 0.0
    %8544 = vmatpush1.msra.mxu0 0.0
    %8545 = vmatprep.subr.mxu0 0.0
    %8546 = vmatpush1.msra.mxu0 0.0
    %8547 = vmatprep.subr.mxu0 0.0
    %8548 = vmatpush1.msra.mxu0 0.0
    %8549 = vmatprep.subr.mxu0 0.0
    %8550 = vmatpush1.msra.mxu0 0.0
    %8551 = vmatprep.subr.mxu0 0.0
    %8552 = vmatpush1.msra.mxu0 0.0
    %8553 = vmatprep.subr.mxu0 0.0
    %8554 = vmatpush1.msra.mxu0 0.0
    %8555 = vmatprep.subr.mxu0 0.0
    %8556 = vmatpush1.msra.mxu0 0.0
    %8557 = vmatprep.subr.mxu0 0.0
    %8558 = vmatpush1.msra.mxu0 0.0
    %8559 = vmatprep.subr.mxu0 0.0
    %8560 = vmatpush1.msra.mxu0 0.0
    %8561 = vmatprep.subr.mxu0 0.0
    %8562 = vmatpush1.msra.mxu0 0.0
    %8563 = vmatprep.subr.mxu0 0.0
    %8564 = vmatpush1.msra.mxu0 0.0
    %8565 = vmatprep.subr.mxu0 %v8537
    %8566 = vmatpush1.msra.mxu0 %v8536
    %8567 = vmatprep.subr.mxu0 %v8535
    %8568 = vmatpush1.msra.mxu0 %v8534
    %8569 = vmatprep.subr.mxu0 %v8533
    %8570 = vmatpush1.msra.mxu0 %v8532
    %8571 = vmatprep.subr.mxu0 %v8531
    %8572 = vmatpush1.msra.mxu0 %v8530
    %8573 = vmatprep.subr.mxu0 %v8529
    %8574 = vmatpush1.msra.mxu0 %v8528
    %8575 = vmatprep.subr.mxu0 0.0
    %8576 = vmatpush2.msra.mxu0 0.0
    %8577 = vmatprep.subr.mxu0 0.0
    %8578 = vmatpush2.msra.mxu0 0.0
    %8579 = vmatprep.subr.mxu0 0.0
    %8580 = vmatpush2.msra.mxu0 0.0
    %8581 = vmatprep.subr.mxu0 0.0
    %8582 = vmatpush2.msra.mxu0 0.0
    %8583 = vmatprep.subr.mxu0 0.0
    %8584 = vmatpush2.msra.mxu0 0.0
    %8585 = vmatprep.subr.mxu0 0.0
    %8586 = vmatpush2.msra.mxu0 0.0
    %8587 = vmatprep.subr.mxu0 0.0
    %8588 = vmatpush2.msra.mxu0 0.0
    %8589 = vmatprep.subr.mxu0 0.0
    %8590 = vmatpush2.msra.mxu0 0.0
    %8591 = vmatprep.subr.mxu0 0.0
    %8592 = vmatpush2.msra.mxu0 0.0
    %8593 = vmatprep.subr.mxu0 0.0
    %8594 = vmatpush2.msra.mxu0 0.0
    %8595 = vmatprep.subr.mxu0 0.0
    %8596 = vmatpush2.msra.mxu0 0.0
    %8597 = vmatprep.subr.mxu0 0.0
    %8598 = vmatpush2.msra.mxu0 0.0
    %8599 = vmatprep.subr.mxu0 0.0
    %8600 = vmatpush2.msra.mxu0 0.0
    %8601 = vmatprep.subr.mxu0 0.0
    %8602 = vmatpush2.msra.mxu0 0.0
    %8603 = vmatprep.subr.mxu0 0.0
    %8604 = vmatpush2.msra.mxu0 0.0
    %8605 = vmatprep.subr.mxu0 0.0
    %8606 = vmatpush2.msra.mxu0 0.0
    %8607 = vmatprep.mubr.f32.mxu0 0.0
    %8608 = vmatmul.mubr.f32.gmra.mxu0 %v8541
    %v8609 = vpop.f32.mrf.mxu0
    %v8610 = vadd.f32 0.0, %v8609
    %v8611 = vpop.f32.mrf.mxu0
    %v8612 = vadd.f32 0.0, %v8611
    %8613 = vdwg.mxu0
    %v8614 = vld [vmem:[#allocation13] sm:$0xff]
    %v8615 = vld [vmem:[#allocation13 + $0x8] sm:$0xff]
    %v8616 = vld [vmem:[#allocation13 + $0x10] sm:$0xff]
    %v8617 = vld [vmem:[#allocation13 + $0x18] sm:$0xff]
    %v8618 = vld [vmem:[#allocation13 + $0x20] sm:$0xff]
    %v8619 = vld [vmem:[#allocation13 + $0x28] sm:$0xff]
    %v8620 = vld [vmem:[#allocation13 + $0x30] sm:$0xff]
    %v8621 = vld [vmem:[#allocation13 + $0x38] sm:$0xff]
    %v8622 = vld [vmem:[#allocation13 + $0x40] sm:$0xff]
    %v8623 = vld [vmem:[#allocation13 + $0x48] sm:$0xff]
    %v8624 = vld [vmem:[#allocation13 + $0x50] sm:$0xff]
    %v8625 = vld [vmem:[#allocation13 + $0x58] sm:$0xff]
    %v8626 = vld [vmem:[#allocation13 + $0x60] sm:$0xff]
    %v8627 = vld [vmem:[#allocation13 + $0x68] sm:$0xff]
    %v8628 = vld [vmem:[#allocation13 + $0x70] sm:$0xff]
    %v8629 = vld [vmem:[#allocation13 + $0x78] sm:$0xff]
    %v8630 = vld [vmem:[#allocation13 + $0x80] sm:$0xff]
    %v8631 = vld [vmem:[#allocation13 + $0x88] sm:$0xff]
    %v8632 = vld [vmem:[#allocation13 + $0x90] sm:$0xff]
    %v8633 = vld [vmem:[#allocation13 + $0x98] sm:$0xff]
    %v8634 = vld [vmem:[#allocation13 + $0xa0] sm:$0xff]
    %v8635 = vld [vmem:[#allocation13 + $0xa8] sm:$0xff]
    %v8636 = vld [vmem:[#allocation13 + $0xb0] sm:$0xff]
    %v8637 = vld [vmem:[#allocation13 + $0xb8] sm:$0xff]
    %v8638 = vld [vmem:[#allocation13 + $0xc0] sm:$0xff]
    %v8639 = vld [vmem:[#allocation13 + $0xc8] sm:$0xff]
    %v8640 = vld [vmem:[#allocation13 + $0xd0] sm:$0xff]
    %v8641 = vld [vmem:[#allocation13 + $0xd8] sm:$0xff]
    %v8642 = vld [vmem:[#allocation13 + $0xe0] sm:$0xff]
    %v8643 = vld [vmem:[#allocation13 + $0xe8] sm:$0xff]
    %v8644 = vld [vmem:[#allocation13 + $0xf0] sm:$0xff]
    %v8645 = vld [vmem:[#allocation13 + $0xf8] sm:$0xff]
    %s8646 = scalar_lea.vmem [#allocation12], 8
    %v8647 = vld [vmem:[%s8646] sm:$0xff]
    %v8649 = vsel %vm8539, %v8647, 0
    %8651 = vmatprep.subr.mxu0 0.0
    %8652 = vmatpush1.msra.mxu0 0.0
    %8653 = vmatprep.subr.mxu0 0.0
    %8654 = vmatpush1.msra.mxu0 0.0
    %8655 = vmatprep.subr.mxu0 0.0
    %8656 = vmatpush1.msra.mxu0 0.0
    %8657 = vmatprep.subr.mxu0 0.0
    %8658 = vmatpush1.msra.mxu0 0.0
    %8659 = vmatprep.subr.mxu0 0.0
    %8660 = vmatpush1.msra.mxu0 0.0
    %8661 = vmatprep.subr.mxu0 0.0
    %8662 = vmatpush1.msra.mxu0 0.0
    %8663 = vmatprep.subr.mxu0 0.0
    %8664 = vmatpush1.msra.mxu0 0.0
    %8665 = vmatprep.subr.mxu0 0.0
    %8666 = vmatpush1.msra.mxu0 0.0
    %8667 = vmatprep.subr.mxu0 0.0
    %8668 = vmatpush1.msra.mxu0 0.0
    %8669 = vmatprep.subr.mxu0 0.0
    %8670 = vmatpush1.msra.mxu0 0.0
    %8671 = vmatprep.subr.mxu0 0.0
    %8672 = vmatpush1.msra.mxu0 0.0
    %8673 = vmatprep.subr.mxu0 %v8537
    %8674 = vmatpush1.msra.mxu0 %v8536
    %8675 = vmatprep.subr.mxu0 %v8535
    %8676 = vmatpush1.msra.mxu0 %v8534
    %8677 = vmatprep.subr.mxu0 %v8533
    %8678 = vmatpush1.msra.mxu0 %v8532
    %8679 = vmatprep.subr.mxu0 %v8531
    %8680 = vmatpush1.msra.mxu0 %v8530
    %8681 = vmatprep.subr.mxu0 %v8529
    %8682 = vmatpush1.msra.mxu0 %v8528
    %8683 = vmatprep.subr.mxu0 0.0
    %8684 = vmatpush2.msra.mxu0 0.0
    %8685 = vmatprep.subr.mxu0 0.0
    %8686 = vmatpush2.msra.mxu0 0.0
    %8687 = vmatprep.subr.mxu0 0.0
    %8688 = vmatpush2.msra.mxu0 0.0
    %8689 = vmatprep.subr.mxu0 0.0
    %8690 = vmatpush2.msra.mxu0 0.0
    %8691 = vmatprep.subr.mxu0 0.0
    %8692 = vmatpush2.msra.mxu0 0.0
    %8693 = vmatprep.subr.mxu0 0.0
    %8694 = vmatpush2.msra.mxu0 0.0
    %8695 = vmatprep.subr.mxu0 0.0
    %8696 = vmatpush2.msra.mxu0 0.0
    %8697 = vmatprep.subr.mxu0 0.0
    %8698 = vmatpush2.msra.mxu0 0.0
    %8699 = vmatprep.subr.mxu0 0.0
    %8700 = vmatpush2.msra.mxu0 0.0
    %8701 = vmatprep.subr.mxu0 0.0
    %8702 = vmatpush2.msra.mxu0 0.0
    %8703 = vmatprep.subr.mxu0 0.0
    %8704 = vmatpush2.msra.mxu0 0.0
    %8705 = vmatprep.subr.mxu0 0.0
    %8706 = vmatpush2.msra.mxu0 0.0
    %8707 = vmatprep.subr.mxu0 0.0
    %8708 = vmatpush2.msra.mxu0 0.0
    %8709 = vmatprep.subr.mxu0 0.0
    %8710 = vmatpush2.msra.mxu0 0.0
    %8711 = vmatprep.subr.mxu0 0.0
    %8712 = vmatpush2.msra.mxu0 0.0
    %8713 = vmatprep.subr.mxu0 0.0
    %8714 = vmatpush2.msra.mxu0 0.0
    %8715 = vmatprep.mubr.f32.mxu0 0.0
    %8716 = vmatmul.mubr.f32.gmra.mxu0 %v8649
    %v8717 = vpop.f32.mrf.mxu0
    %v8718 = vadd.f32 0.0, %v8717
    %v8719 = vpop.f32.mrf.mxu0
    %v8720 = vadd.f32 0.0, %v8719
    %8721 = vdwg.mxu0
    %s8722 = scalar_lea.vmem [#allocation13], 256
    %v8723 = vld [vmem:[%s8722] sm:$0xff]
    %v8724 = vld [vmem:[%s8722 + $0x8] sm:$0xff]
    %v8725 = vld [vmem:[%s8722 + $0x10] sm:$0xff]
    %v8726 = vld [vmem:[%s8722 + $0x18] sm:$0xff]
    %v8727 = vld [vmem:[%s8722 + $0x20] sm:$0xff]
    %v8728 = vld [vmem:[%s8722 + $0x28] sm:$0xff]
    %v8729 = vld [vmem:[%s8722 + $0x30] sm:$0xff]
    %v8730 = vld [vmem:[%s8722 + $0x38] sm:$0xff]
    %v8731 = vld [vmem:[%s8722 + $0x40] sm:$0xff]
    %v8732 = vld [vmem:[%s8722 + $0x48] sm:$0xff]
    %v8733 = vld [vmem:[%s8722 + $0x50] sm:$0xff]
    %v8734 = vld [vmem:[%s8722 + $0x58] sm:$0xff]
    %v8735 = vld [vmem:[%s8722 + $0x60] sm:$0xff]
    %v8736 = vld [vmem:[%s8722 + $0x68] sm:$0xff]
    %v8737 = vld [vmem:[%s8722 + $0x70] sm:$0xff]
    %v8738 = vld [vmem:[%s8722 + $0x78] sm:$0xff]
    %v8739 = vld [vmem:[%s8722 + $0x80] sm:$0xff]
    %v8740 = vld [vmem:[%s8722 + $0x88] sm:$0xff]
    %v8741 = vld [vmem:[%s8722 + $0x90] sm:$0xff]
    %v8742 = vld [vmem:[%s8722 + $0x98] sm:$0xff]
    %v8743 = vld [vmem:[%s8722 + $0xa0] sm:$0xff]
    %v8744 = vld [vmem:[%s8722 + $0xa8] sm:$0xff]
    %v8745 = vld [vmem:[%s8722 + $0xb0] sm:$0xff]
    %v8746 = vld [vmem:[%s8722 + $0xb8] sm:$0xff]
    %v8747 = vld [vmem:[%s8722 + $0xc0] sm:$0xff]
    %v8748 = vld [vmem:[%s8722 + $0xc8] sm:$0xff]
    %v8749 = vld [vmem:[%s8722 + $0xd0] sm:$0xff]
    %v8750 = vld [vmem:[%s8722 + $0xd8] sm:$0xff]
    %v8751 = vld [vmem:[%s8722 + $0xe0] sm:$0xff]
    %v8752 = vld [vmem:[%s8722 + $0xe8] sm:$0xff]
    %v8753 = vld [vmem:[%s8722 + $0xf0] sm:$0xff]
    %v8754 = vld [vmem:[%s8722 + $0xf8] sm:$0xff]
    %8755 = vmatprep.subr.mxu0 0.0
    %8756 = vmatpush1.msra.mxu0 %v8738
    %8757 = vmatprep.subr.mxu0 0.0
    %8758 = vmatpush1.msra.mxu0 %v8737
    %8759 = vmatprep.subr.mxu0 0.0
    %8760 = vmatpush1.msra.mxu0 %v8736
    %8761 = vmatprep.subr.mxu0 0.0
    %8762 = vmatpush1.msra.mxu0 %v8735
    %8763 = vmatprep.subr.mxu0 0.0
    %8764 = vmatpush1.msra.mxu0 %v8734
    %8765 = vmatprep.subr.mxu0 0.0
    %8766 = vmatpush1.msra.mxu0 %v8733
    %8767 = vmatprep.subr.mxu0 0.0
    %8768 = vmatpush1.msra.mxu0 %v8732
    %8769 = vmatprep.subr.mxu0 0.0
    %8770 = vmatpush1.msra.mxu0 %v8731
    %8771 = vmatprep.subr.mxu0 0.0
    %8772 = vmatpush1.msra.mxu0 %v8730
    %8773 = vmatprep.subr.mxu0 0.0
    %8774 = vmatpush1.msra.mxu0 %v8729
    %8775 = vmatprep.subr.mxu0 0.0
    %8776 = vmatpush1.msra.mxu0 %v8728
    %8777 = vmatprep.subr.mxu0 0.0
    %8778 = vmatpush1.msra.mxu0 %v8727
    %8779 = vmatprep.subr.mxu0 0.0
    %8780 = vmatpush1.msra.mxu0 %v8726
    %8781 = vmatprep.subr.mxu0 0.0
    %8782 = vmatpush1.msra.mxu0 %v8725
    %8783 = vmatprep.subr.mxu0 0.0
    %8784 = vmatpush1.msra.mxu0 %v8724
    %8785 = vmatprep.subr.mxu0 0.0
    %8786 = vmatpush1.msra.mxu0 %v8723
    %8787 = vmatprep.subr.mxu0 0.0
    %8788 = vmatpush2.msra.mxu0 %v8754
    %8789 = vmatprep.subr.mxu0 0.0
    %8790 = vmatpush2.msra.mxu0 %v8753
    %8791 = vmatprep.subr.mxu0 0.0
    %8792 = vmatpush2.msra.mxu0 %v8752
    %8793 = vmatprep.subr.mxu0 0.0
    %8794 = vmatpush2.msra.mxu0 %v8751
    %8795 = vmatprep.subr.mxu0 0.0
    %8796 = vmatpush2.msra.mxu0 %v8750
    %8797 = vmatprep.subr.mxu0 0.0
    %8798 = vmatpush2.msra.mxu0 %v8749
    %8799 = vmatprep.subr.mxu0 0.0
    %8800 = vmatpush2.msra.mxu0 %v8748
    %8801 = vmatprep.subr.mxu0 0.0
    %8802 = vmatpush2.msra.mxu0 %v8747
    %8803 = vmatprep.subr.mxu0 0.0
    %8804 = vmatpush2.msra.mxu0 %v8746
    %8805 = vmatprep.subr.mxu0 0.0
    %8806 = vmatpush2.msra.mxu0 %v8745
    %8807 = vmatprep.subr.mxu0 0.0
    %8808 = vmatpush2.msra.mxu0 %v8744
    %8809 = vmatprep.subr.mxu0 0.0
    %8810 = vmatpush2.msra.mxu0 %v8743
    %8811 = vmatprep.subr.mxu0 0.0
    %8812 = vmatpush2.msra.mxu0 %v8742
    %8813 = vmatprep.subr.mxu0 0.0
    %8814 = vmatpush2.msra.mxu0 %v8741
    %8815 = vmatprep.subr.mxu0 0.0
    %8816 = vmatpush2.msra.mxu0 %v8740
    %8817 = vmatprep.subr.mxu0 0.0
    %8818 = vmatpush2.msra.mxu0 %v8739
    %8819 = vmatprep.mubr.f32.mxu0 %v8720
    %8820 = vmatmul.mubr.f32.gmra.mxu0 %v8718
    %v8821 = vpop.f32.mrf.mxu0
    %v8822 = vadd.f32 0.0, %v8821
    %v8823 = vpop.f32.mrf.mxu0
    %8824 = vdwg.mxu0
    %8825 = vmatprep.subr.mxu0 0.0
    %8826 = vmatpush1.msra.mxu0 %v8629
    %8827 = vmatprep.subr.mxu0 0.0
    %8828 = vmatpush1.msra.mxu0 %v8628
    %8829 = vmatprep.subr.mxu0 0.0
    %8830 = vmatpush1.msra.mxu0 %v8627
    %8831 = vmatprep.subr.mxu0 0.0
    %8832 = vmatpush1.msra.mxu0 %v8626
    %8833 = vmatprep.subr.mxu0 0.0
    %8834 = vmatpush1.msra.mxu0 %v8625
    %8835 = vmatprep.subr.mxu0 0.0
    %8836 = vmatpush1.msra.mxu0 %v8624
    %8837 = vmatprep.subr.mxu0 0.0
    %8838 = vmatpush1.msra.mxu0 %v8623
    %8839 = vmatprep.subr.mxu0 0.0
    %8840 = vmatpush1.msra.mxu0 %v8622
    %8841 = vmatprep.subr.mxu0 0.0
    %8842 = vmatpush1.msra.mxu0 %v8621
    %8843 = vmatprep.subr.mxu0 0.0
    %8844 = vmatpush1.msra.mxu0 %v8620
    %8845 = vmatprep.subr.mxu0 0.0
    %8846 = vmatpush1.msra.mxu0 %v8619
    %8847 = vmatprep.subr.mxu0 0.0
    %8848 = vmatpush1.msra.mxu0 %v8618
    %8849 = vmatprep.subr.mxu0 0.0
    %8850 = vmatpush1.msra.mxu0 %v8617
    %8851 = vmatprep.subr.mxu0 0.0
    %8852 = vmatpush1.msra.mxu0 %v8616
    %8853 = vmatprep.subr.mxu0 0.0
    %8854 = vmatpush1.msra.mxu0 %v8615
    %8855 = vmatprep.subr.mxu0 0.0
    %8856 = vmatpush1.msra.mxu0 %v8614
    %8857 = vmatprep.subr.mxu0 0.0
    %8858 = vmatpush2.msra.mxu0 %v8645
    %8859 = vmatprep.subr.mxu0 0.0
    %8860 = vmatpush2.msra.mxu0 %v8644
    %8861 = vmatprep.subr.mxu0 0.0
    %8862 = vmatpush2.msra.mxu0 %v8643
    %8863 = vmatprep.subr.mxu0 0.0
    %8864 = vmatpush2.msra.mxu0 %v8642
    %8865 = vmatprep.subr.mxu0 0.0
    %8866 = vmatpush2.msra.mxu0 %v8641
    %8867 = vmatprep.subr.mxu0 0.0
    %8868 = vmatpush2.msra.mxu0 %v8640
    %8869 = vmatprep.subr.mxu0 0.0
    %8870 = vmatpush2.msra.mxu0 %v8639
    %8871 = vmatprep.subr.mxu0 0.0
    %8872 = vmatpush2.msra.mxu0 %v8638
    %8873 = vmatprep.subr.mxu0 0.0
    %8874 = vmatpush2.msra.mxu0 %v8637
    %8875 = vmatprep.subr.mxu0 0.0
    %8876 = vmatpush2.msra.mxu0 %v8636
    %8877 = vmatprep.subr.mxu0 0.0
    %8878 = vmatpush2.msra.mxu0 %v8635
    %8879 = vmatprep.subr.mxu0 0.0
    %8880 = vmatpush2.msra.mxu0 %v8634
    %8881 = vmatprep.subr.mxu0 0.0
    %8882 = vmatpush2.msra.mxu0 %v8633
    %8883 = vmatprep.subr.mxu0 0.0
    %8884 = vmatpush2.msra.mxu0 %v8632
    %8885 = vmatprep.subr.mxu0 0.0
    %8886 = vmatpush2.msra.mxu0 %v8631
    %8887 = vmatprep.subr.mxu0 0.0
    %8888 = vmatpush2.msra.mxu0 %v8630
    %8889 = vmatprep.mubr.f32.mxu0 %v8612
    %8890 = vmatmul.mubr.f32.gmra.mxu0 %v8610
    %v8891 = vpop.f32.mrf.mxu0
    %v8892 = vadd.f32 %v8822, %v8891
    %v8893 = vpop.f32.mrf.mxu0
    %8894 = vdwg.mxu0
    %s8895 = scalar_lea.vmem [#allocation12], 16
    %v8896 = vld [vmem:[%s8895] sm:$0xff]
    %v8898 = vsel %vm8539, %v8896, 0
    %8900 = vmatprep.subr.mxu0 0.0
    %8901 = vmatpush1.msra.mxu0 0.0
    %8902 = vmatprep.subr.mxu0 0.0
    %8903 = vmatpush1.msra.mxu0 0.0
    %8904 = vmatprep.subr.mxu0 0.0
    %8905 = vmatpush1.msra.mxu0 0.0
    %8906 = vmatprep.subr.mxu0 0.0
    %8907 = vmatpush1.msra.mxu0 0.0
    %8908 = vmatprep.subr.mxu0 0.0
    %8909 = vmatpush1.msra.mxu0 0.0
    %8910 = vmatprep.subr.mxu0 0.0
    %8911 = vmatpush1.msra.mxu0 0.0
    %8912 = vmatprep.subr.mxu0 0.0
    %8913 = vmatpush1.msra.mxu0 0.0
    %8914 = vmatprep.subr.mxu0 0.0
    %8915 = vmatpush1.msra.mxu0 0.0
    %8916 = vmatprep.subr.mxu0 0.0
    %8917 = vmatpush1.msra.mxu0 0.0
    %8918 = vmatprep.subr.mxu0 0.0
    %8919 = vmatpush1.msra.mxu0 0.0
    %8920 = vmatprep.subr.mxu0 0.0
    %8921 = vmatpush1.msra.mxu0 0.0
    %8922 = vmatprep.subr.mxu0 %v8537
    %8923 = vmatpush1.msra.mxu0 %v8536
    %8924 = vmatprep.subr.mxu0 %v8535
    %8925 = vmatpush1.msra.mxu0 %v8534
    %8926 = vmatprep.subr.mxu0 %v8533
    %8927 = vmatpush1.msra.mxu0 %v8532
    %8928 = vmatprep.subr.mxu0 %v8531
    %8929 = vmatpush1.msra.mxu0 %v8530
    %8930 = vmatprep.subr.mxu0 %v8529
    %8931 = vmatpush1.msra.mxu0 %v8528
    %8932 = vmatprep.subr.mxu0 0.0
    %8933 = vmatpush2.msra.mxu0 0.0
    %8934 = vmatprep.subr.mxu0 0.0
    %8935 = vmatpush2.msra.mxu0 0.0
    %8936 = vmatprep.subr.mxu0 0.0
    %8937 = vmatpush2.msra.mxu0 0.0
    %8938 = vmatprep.subr.mxu0 0.0
    %8939 = vmatpush2.msra.mxu0 0.0
    %8940 = vmatprep.subr.mxu0 0.0
    %8941 = vmatpush2.msra.mxu0 0.0
    %8942 = vmatprep.subr.mxu0 0.0
    %8943 = vmatpush2.msra.mxu0 0.0
    %8944 = vmatprep.subr.mxu0 0.0
    %8945 = vmatpush2.msra.mxu0 0.0
    %8946 = vmatprep.subr.mxu0 0.0
    %8947 = vmatpush2.msra.mxu0 0.0
    %8948 = vmatprep.subr.mxu0 0.0
    %8949 = vmatpush2.msra.mxu0 0.0
    %8950 = vmatprep.subr.mxu0 0.0
    %8951 = vmatpush2.msra.mxu0 0.0
    %8952 = vmatprep.subr.mxu0 0.0
    %8953 = vmatpush2.msra.mxu0 0.0
    %8954 = vmatprep.subr.mxu0 0.0
    %8955 = vmatpush2.msra.mxu0 0.0
    %8956 = vmatprep.subr.mxu0 0.0
    %8957 = vmatpush2.msra.mxu0 0.0
    %8958 = vmatprep.subr.mxu0 0.0
    %8959 = vmatpush2.msra.mxu0 0.0
    %8960 = vmatprep.subr.mxu0 0.0
    %8961 = vmatpush2.msra.mxu0 0.0
    %8962 = vmatprep.subr.mxu0 0.0
    %8963 = vmatpush2.msra.mxu0 0.0
    %8964 = vmatprep.mubr.f32.mxu0 0.0
    %8965 = vmatmul.mubr.f32.gmra.mxu0 %v8898
    %v8966 = vpop.f32.mrf.mxu0
    %v8967 = vadd.f32 0.0, %v8966
    %v8968 = vpop.f32.mrf.mxu0
    %v8969 = vadd.f32 0.0, %v8968
    %8970 = vdwg.mxu0
    %s8971 = scalar_lea.vmem [#allocation13], 512
    %v8972 = vld [vmem:[%s8971] sm:$0xff]
    %v8973 = vld [vmem:[%s8971 + $0x8] sm:$0xff]
    %v8974 = vld [vmem:[%s8971 + $0x10] sm:$0xff]
    %v8975 = vld [vmem:[%s8971 + $0x18] sm:$0xff]
    %v8976 = vld [vmem:[%s8971 + $0x20] sm:$0xff]
    %v8977 = vld [vmem:[%s8971 + $0x28] sm:$0xff]
    %v8978 = vld [vmem:[%s8971 + $0x30] sm:$0xff]
    %v8979 = vld [vmem:[%s8971 + $0x38] sm:$0xff]
    %v8980 = vld [vmem:[%s8971 + $0x40] sm:$0xff]
    %v8981 = vld [vmem:[%s8971 + $0x48] sm:$0xff]
    %v8982 = vld [vmem:[%s8971 + $0x50] sm:$0xff]
    %v8983 = vld [vmem:[%s8971 + $0x58] sm:$0xff]
    %v8984 = vld [vmem:[%s8971 + $0x60] sm:$0xff]
    %v8985 = vld [vmem:[%s8971 + $0x68] sm:$0xff]
    %v8986 = vld [vmem:[%s8971 + $0x70] sm:$0xff]
    %v8987 = vld [vmem:[%s8971 + $0x78] sm:$0xff]
    %v8988 = vld [vmem:[%s8971 + $0x80] sm:$0xff]
    %v8989 = vld [vmem:[%s8971 + $0x88] sm:$0xff]
    %v8990 = vld [vmem:[%s8971 + $0x90] sm:$0xff]
    %v8991 = vld [vmem:[%s8971 + $0x98] sm:$0xff]
    %v8992 = vld [vmem:[%s8971 + $0xa0] sm:$0xff]
    %v8993 = vld [vmem:[%s8971 + $0xa8] sm:$0xff]
    %v8994 = vld [vmem:[%s8971 + $0xb0] sm:$0xff]
    %v8995 = vld [vmem:[%s8971 + $0xb8] sm:$0xff]
    %v8996 = vld [vmem:[%s8971 + $0xc0] sm:$0xff]
    %v8997 = vld [vmem:[%s8971 + $0xc8] sm:$0xff]
    %v8998 = vld [vmem:[%s8971 + $0xd0] sm:$0xff]
    %v8999 = vld [vmem:[%s8971 + $0xd8] sm:$0xff]
    %v9000 = vld [vmem:[%s8971 + $0xe0] sm:$0xff]
    %v9001 = vld [vmem:[%s8971 + $0xe8] sm:$0xff]
    %v9002 = vld [vmem:[%s8971 + $0xf0] sm:$0xff]
    %v9003 = vld [vmem:[%s8971 + $0xf8] sm:$0xff]
    %9004 = vmatprep.subr.mxu0 0.0
    %9005 = vmatpush1.msra.mxu0 %v8987
    %9006 = vmatprep.subr.mxu0 0.0
    %9007 = vmatpush1.msra.mxu0 %v8986
    %9008 = vmatprep.subr.mxu0 0.0
    %9009 = vmatpush1.msra.mxu0 %v8985
    %9010 = vmatprep.subr.mxu0 0.0
    %9011 = vmatpush1.msra.mxu0 %v8984
    %9012 = vmatprep.subr.mxu0 0.0
    %9013 = vmatpush1.msra.mxu0 %v8983
    %9014 = vmatprep.subr.mxu0 0.0
    %9015 = vmatpush1.msra.mxu0 %v8982
    %9016 = vmatprep.subr.mxu0 0.0
    %9017 = vmatpush1.msra.mxu0 %v8981
    %9018 = vmatprep.subr.mxu0 0.0
    %9019 = vmatpush1.msra.mxu0 %v8980
    %9020 = vmatprep.subr.mxu0 0.0
    %9021 = vmatpush1.msra.mxu0 %v8979
    %9022 = vmatprep.subr.mxu0 0.0
    %9023 = vmatpush1.msra.mxu0 %v8978
    %9024 = vmatprep.subr.mxu0 0.0
    %9025 = vmatpush1.msra.mxu0 %v8977
    %9026 = vmatprep.subr.mxu0 0.0
    %9027 = vmatpush1.msra.mxu0 %v8976
    %9028 = vmatprep.subr.mxu0 0.0
    %9029 = vmatpush1.msra.mxu0 %v8975
    %9030 = vmatprep.subr.mxu0 0.0
    %9031 = vmatpush1.msra.mxu0 %v8974
    %9032 = vmatprep.subr.mxu0 0.0
    %9033 = vmatpush1.msra.mxu0 %v8973
    %9034 = vmatprep.subr.mxu0 0.0
    %9035 = vmatpush1.msra.mxu0 %v8972
    %9036 = vmatprep.subr.mxu0 0.0
    %9037 = vmatpush2.msra.mxu0 %v9003
    %9038 = vmatprep.subr.mxu0 0.0
    %9039 = vmatpush2.msra.mxu0 %v9002
    %9040 = vmatprep.subr.mxu0 0.0
    %9041 = vmatpush2.msra.mxu0 %v9001
    %9042 = vmatprep.subr.mxu0 0.0
    %9043 = vmatpush2.msra.mxu0 %v9000
    %9044 = vmatprep.subr.mxu0 0.0
    %9045 = vmatpush2.msra.mxu0 %v8999
    %9046 = vmatprep.subr.mxu0 0.0
    %9047 = vmatpush2.msra.mxu0 %v8998
    %9048 = vmatprep.subr.mxu0 0.0
    %9049 = vmatpush2.msra.mxu0 %v8997
    %9050 = vmatprep.subr.mxu0 0.0
    %9051 = vmatpush2.msra.mxu0 %v8996
    %9052 = vmatprep.subr.mxu0 0.0
    %9053 = vmatpush2.msra.mxu0 %v8995
    %9054 = vmatprep.subr.mxu0 0.0
    %9055 = vmatpush2.msra.mxu0 %v8994
    %9056 = vmatprep.subr.mxu0 0.0
    %9057 = vmatpush2.msra.mxu0 %v8993
    %9058 = vmatprep.subr.mxu0 0.0
    %9059 = vmatpush2.msra.mxu0 %v8992
    %9060 = vmatprep.subr.mxu0 0.0
    %9061 = vmatpush2.msra.mxu0 %v8991
    %9062 = vmatprep.subr.mxu0 0.0
    %9063 = vmatpush2.msra.mxu0 %v8990
    %9064 = vmatprep.subr.mxu0 0.0
    %9065 = vmatpush2.msra.mxu0 %v8989
    %9066 = vmatprep.subr.mxu0 0.0
    %9067 = vmatpush2.msra.mxu0 %v8988
    %9068 = vmatprep.mubr.f32.mxu0 %v8969
    %9069 = vmatmul.mubr.f32.gmra.mxu0 %v8967
    %v9070 = vpop.f32.mrf.mxu0
    %v9071 = vadd.f32 0.0, %v9070
    %v9072 = vpop.f32.mrf.mxu0
    %9073 = vdwg.mxu0
    %v9074 = vadd.f32 %v8892, %v9071
    %s9075 = scalar_lea.vmem [#allocation12], 24
    %v9076 = vld [vmem:[%s9075] sm:$0xff]
    %v9078 = vsel %vm8539, %v9076, 0
    %9080 = vmatprep.subr.mxu0 0.0
    %9081 = vmatpush1.msra.mxu0 0.0
    %9082 = vmatprep.subr.mxu0 0.0
    %9083 = vmatpush1.msra.mxu0 0.0
    %9084 = vmatprep.subr.mxu0 0.0
    %9085 = vmatpush1.msra.mxu0 0.0
    %9086 = vmatprep.subr.mxu0 0.0
    %9087 = vmatpush1.msra.mxu0 0.0
    %9088 = vmatprep.subr.mxu0 0.0
    %9089 = vmatpush1.msra.mxu0 0.0
    %9090 = vmatprep.subr.mxu0 0.0
    %9091 = vmatpush1.msra.mxu0 0.0
    %9092 = vmatprep.subr.mxu0 0.0
    %9093 = vmatpush1.msra.mxu0 0.0
    %9094 = vmatprep.subr.mxu0 0.0
    %9095 = vmatpush1.msra.mxu0 0.0
    %9096 = vmatprep.subr.mxu0 0.0
    %9097 = vmatpush1.msra.mxu0 0.0
    %9098 = vmatprep.subr.mxu0 0.0
    %9099 = vmatpush1.msra.mxu0 0.0
    %9100 = vmatprep.subr.mxu0 0.0
    %9101 = vmatpush1.msra.mxu0 0.0
    %9102 = vmatprep.subr.mxu0 %v8537
    %9103 = vmatpush1.msra.mxu0 %v8536
    %9104 = vmatprep.subr.mxu0 %v8535
    %9105 = vmatpush1.msra.mxu0 %v8534
    %9106 = vmatprep.subr.mxu0 %v8533
    %9107 = vmatpush1.msra.mxu0 %v8532
    %9108 = vmatprep.subr.mxu0 %v8531
    %9109 = vmatpush1.msra.mxu0 %v8530
    %9110 = vmatprep.subr.mxu0 %v8529
    %9111 = vmatpush1.msra.mxu0 %v8528
    %9112 = vmatprep.subr.mxu0 0.0
    %9113 = vmatpush2.msra.mxu0 0.0
    %9114 = vmatprep.subr.mxu0 0.0
    %9115 = vmatpush2.msra.mxu0 0.0
    %9116 = vmatprep.subr.mxu0 0.0
    %9117 = vmatpush2.msra.mxu0 0.0
    %9118 = vmatprep.subr.mxu0 0.0
    %9119 = vmatpush2.msra.mxu0 0.0
    %9120 = vmatprep.subr.mxu0 0.0
    %9121 = vmatpush2.msra.mxu0 0.0
    %9122 = vmatprep.subr.mxu0 0.0
    %9123 = vmatpush2.msra.mxu0 0.0
    %9124 = vmatprep.subr.mxu0 0.0
    %9125 = vmatpush2.msra.mxu0 0.0
    %9126 = vmatprep.subr.mxu0 0.0
    %9127 = vmatpush2.msra.mxu0 0.0
    %9128 = vmatprep.subr.mxu0 0.0
    %9129 = vmatpush2.msra.mxu0 0.0
    %9130 = vmatprep.subr.mxu0 0.0
    %9131 = vmatpush2.msra.mxu0 0.0
    %9132 = vmatprep.subr.mxu0 0.0
    %9133 = vmatpush2.msra.mxu0 0.0
    %9134 = vmatprep.subr.mxu0 0.0
    %9135 = vmatpush2.msra.mxu0 0.0
    %9136 = vmatprep.subr.mxu0 0.0
    %9137 = vmatpush2.msra.mxu0 0.0
    %9138 = vmatprep.subr.mxu0 0.0
    %9139 = vmatpush2.msra.mxu0 0.0
    %9140 = vmatprep.subr.mxu0 0.0
    %9141 = vmatpush2.msra.mxu0 0.0
    %9142 = vmatprep.subr.mxu0 0.0
    %9143 = vmatpush2.msra.mxu0 0.0
    %9144 = vmatprep.mubr.f32.mxu0 0.0
    %9145 = vmatmul.mubr.f32.gmra.mxu0 %v9078
    %v9146 = vpop.f32.mrf.mxu0
    %v9147 = vadd.f32 0.0, %v9146
    %v9148 = vpop.f32.mrf.mxu0
    %v9149 = vadd.f32 0.0, %v9148
    %9150 = vdwg.mxu0
    %s9151 = scalar_lea.vmem [#allocation13], 768
    %v9152 = vld [vmem:[%s9151] sm:$0xff]
    %v9153 = vld [vmem:[%s9151 + $0x8] sm:$0xff]
    %v9154 = vld [vmem:[%s9151 + $0x10] sm:$0xff]
    %v9155 = vld [vmem:[%s9151 + $0x18] sm:$0xff]
    %v9156 = vld [vmem:[%s9151 + $0x20] sm:$0xff]
    %v9157 = vld [vmem:[%s9151 + $0x28] sm:$0xff]
    %v9158 = vld [vmem:[%s9151 + $0x30] sm:$0xff]
    %v9159 = vld [vmem:[%s9151 + $0x38] sm:$0xff]
    %v9160 = vld [vmem:[%s9151 + $0x40] sm:$0xff]
    %v9161 = vld [vmem:[%s9151 + $0x48] sm:$0xff]
    %v9162 = vld [vmem:[%s9151 + $0x50] sm:$0xff]
    %v9163 = vld [vmem:[%s9151 + $0x58] sm:$0xff]
    %v9164 = vld [vmem:[%s9151 + $0x60] sm:$0xff]
    %v9165 = vld [vmem:[%s9151 + $0x68] sm:$0xff]
    %v9166 = vld [vmem:[%s9151 + $0x70] sm:$0xff]
    %v9167 = vld [vmem:[%s9151 + $0x78] sm:$0xff]
    %v9168 = vld [vmem:[%s9151 + $0x80] sm:$0xff]
    %v9169 = vld [vmem:[%s9151 + $0x88] sm:$0xff]
    %v9170 = vld [vmem:[%s9151 + $0x90] sm:$0xff]
    %v9171 = vld [vmem:[%s9151 + $0x98] sm:$0xff]
    %v9172 = vld [vmem:[%s9151 + $0xa0] sm:$0xff]
    %v9173 = vld [vmem:[%s9151 + $0xa8] sm:$0xff]
    %v9174 = vld [vmem:[%s9151 + $0xb0] sm:$0xff]
    %v9175 = vld [vmem:[%s9151 + $0xb8] sm:$0xff]
    %v9176 = vld [vmem:[%s9151 + $0xc0] sm:$0xff]
    %v9177 = vld [vmem:[%s9151 + $0xc8] sm:$0xff]
    %v9178 = vld [vmem:[%s9151 + $0xd0] sm:$0xff]
    %v9179 = vld [vmem:[%s9151 + $0xd8] sm:$0xff]
    %v9180 = vld [vmem:[%s9151 + $0xe0] sm:$0xff]
    %v9181 = vld [vmem:[%s9151 + $0xe8] sm:$0xff]
    %v9182 = vld [vmem:[%s9151 + $0xf0] sm:$0xff]
    %v9183 = vld [vmem:[%s9151 + $0xf8] sm:$0xff]
    %9184 = vmatprep.subr.mxu0 0.0
    %9185 = vmatpush1.msra.mxu0 %v9167
    %9186 = vmatprep.subr.mxu0 0.0
    %9187 = vmatpush1.msra.mxu0 %v9166
    %9188 = vmatprep.subr.mxu0 0.0
    %9189 = vmatpush1.msra.mxu0 %v9165
    %9190 = vmatprep.subr.mxu0 0.0
    %9191 = vmatpush1.msra.mxu0 %v9164
    %9192 = vmatprep.subr.mxu0 0.0
    %9193 = vmatpush1.msra.mxu0 %v9163
    %9194 = vmatprep.subr.mxu0 0.0
    %9195 = vmatpush1.msra.mxu0 %v9162
    %9196 = vmatprep.subr.mxu0 0.0
    %9197 = vmatpush1.msra.mxu0 %v9161
    %9198 = vmatprep.subr.mxu0 0.0
    %9199 = vmatpush1.msra.mxu0 %v9160
    %9200 = vmatprep.subr.mxu0 0.0
    %9201 = vmatpush1.msra.mxu0 %v9159
    %9202 = vmatprep.subr.mxu0 0.0
    %9203 = vmatpush1.msra.mxu0 %v9158
    %9204 = vmatprep.subr.mxu0 0.0
    %9205 = vmatpush1.msra.mxu0 %v9157
    %9206 = vmatprep.subr.mxu0 0.0
    %9207 = vmatpush1.msra.mxu0 %v9156
    %9208 = vmatprep.subr.mxu0 0.0
    %9209 = vmatpush1.msra.mxu0 %v9155
    %9210 = vmatprep.subr.mxu0 0.0
    %9211 = vmatpush1.msra.mxu0 %v9154
    %9212 = vmatprep.subr.mxu0 0.0
    %9213 = vmatpush1.msra.mxu0 %v9153
    %9214 = vmatprep.subr.mxu0 0.0
    %9215 = vmatpush1.msra.mxu0 %v9152
    %9216 = vmatprep.subr.mxu0 0.0
    %9217 = vmatpush2.msra.mxu0 %v9183
    %9218 = vmatprep.subr.mxu0 0.0
    %9219 = vmatpush2.msra.mxu0 %v9182
    %9220 = vmatprep.subr.mxu0 0.0
    %9221 = vmatpush2.msra.mxu0 %v9181
    %9222 = vmatprep.subr.mxu0 0.0
    %9223 = vmatpush2.msra.mxu0 %v9180
    %9224 = vmatprep.subr.mxu0 0.0
    %9225 = vmatpush2.msra.mxu0 %v9179
    %9226 = vmatprep.subr.mxu0 0.0
    %9227 = vmatpush2.msra.mxu0 %v9178
    %9228 = vmatprep.subr.mxu0 0.0
    %9229 = vmatpush2.msra.mxu0 %v9177
    %9230 = vmatprep.subr.mxu0 0.0
    %9231 = vmatpush2.msra.mxu0 %v9176
    %9232 = vmatprep.subr.mxu0 0.0
    %9233 = vmatpush2.msra.mxu0 %v9175
    %9234 = vmatprep.subr.mxu0 0.0
    %9235 = vmatpush2.msra.mxu0 %v9174
    %9236 = vmatprep.subr.mxu0 0.0
    %9237 = vmatpush2.msra.mxu0 %v9173
    %9238 = vmatprep.subr.mxu0 0.0
    %9239 = vmatpush2.msra.mxu0 %v9172
    %9240 = vmatprep.subr.mxu0 0.0
    %9241 = vmatpush2.msra.mxu0 %v9171
    %9242 = vmatprep.subr.mxu0 0.0
    %9243 = vmatpush2.msra.mxu0 %v9170
    %9244 = vmatprep.subr.mxu0 0.0
    %9245 = vmatpush2.msra.mxu0 %v9169
    %9246 = vmatprep.subr.mxu0 0.0
    %9247 = vmatpush2.msra.mxu0 %v9168
    %9248 = vmatprep.mubr.f32.mxu0 %v9149
    %9249 = vmatmul.mubr.f32.gmra.mxu0 %v9147
    %v9250 = vpop.f32.mrf.mxu0
    %v9251 = vadd.f32 0.0, %v9250
    %v9252 = vpop.f32.mrf.mxu0
    %9253 = vdwg.mxu0
    %v9254 = vadd.f32 %v9074, %v9251
    %s9255 = scalar_lea.vmem [#allocation12], 32
    %v9256 = vld [vmem:[%s9255] sm:$0xff]
    %v9258 = vsel %vm8539, %v9256, 0
    %9260 = vmatprep.subr.mxu0 0.0
    %9261 = vmatpush1.msra.mxu0 0.0
    %9262 = vmatprep.subr.mxu0 0.0
    %9263 = vmatpush1.msra.mxu0 0.0
    %9264 = vmatprep.subr.mxu0 0.0
    %9265 = vmatpush1.msra.mxu0 0.0
    %9266 = vmatprep.subr.mxu0 0.0
    %9267 = vmatpush1.msra.mxu0 0.0
    %9268 = vmatprep.subr.mxu0 0.0
    %9269 = vmatpush1.msra.mxu0 0.0
    %9270 = vmatprep.subr.mxu0 0.0
    %9271 = vmatpush1.msra.mxu0 0.0
    %9272 = vmatprep.subr.mxu0 0.0
    %9273 = vmatpush1.msra.mxu0 0.0
    %9274 = vmatprep.subr.mxu0 0.0
    %9275 = vmatpush1.msra.mxu0 0.0
    %9276 = vmatprep.subr.mxu0 0.0
    %9277 = vmatpush1.msra.mxu0 0.0
    %9278 = vmatprep.subr.mxu0 0.0
    %9279 = vmatpush1.msra.mxu0 0.0
    %9280 = vmatprep.subr.mxu0 0.0
    %9281 = vmatpush1.msra.mxu0 0.0
    %9282 = vmatprep.subr.mxu0 %v8537
    %9283 = vmatpush1.msra.mxu0 %v8536
    %9284 = vmatprep.subr.mxu0 %v8535
    %9285 = vmatpush1.msra.mxu0 %v8534
    %9286 = vmatprep.subr.mxu0 %v8533
    %9287 = vmatpush1.msra.mxu0 %v8532
    %9288 = vmatprep.subr.mxu0 %v8531
    %9289 = vmatpush1.msra.mxu0 %v8530
    %9290 = vmatprep.subr.mxu0 %v8529
    %9291 = vmatpush1.msra.mxu0 %v8528
    %9292 = vmatprep.subr.mxu0 0.0
    %9293 = vmatpush2.msra.mxu0 0.0
    %9294 = vmatprep.subr.mxu0 0.0
    %9295 = vmatpush2.msra.mxu0 0.0
    %9296 = vmatprep.subr.mxu0 0.0
    %9297 = vmatpush2.msra.mxu0 0.0
    %9298 = vmatprep.subr.mxu0 0.0
    %9299 = vmatpush2.msra.mxu0 0.0
    %9300 = vmatprep.subr.mxu0 0.0
    %9301 = vmatpush2.msra.mxu0 0.0
    %9302 = vmatprep.subr.mxu0 0.0
    %9303 = vmatpush2.msra.mxu0 0.0
    %9304 = vmatprep.subr.mxu0 0.0
    %9305 = vmatpush2.msra.mxu0 0.0
    %9306 = vmatprep.subr.mxu0 0.0
    %9307 = vmatpush2.msra.mxu0 0.0
    %9308 = vmatprep.subr.mxu0 0.0
    %9309 = vmatpush2.msra.mxu0 0.0
    %9310 = vmatprep.subr.mxu0 0.0
    %9311 = vmatpush2.msra.mxu0 0.0
    %9312 = vmatprep.subr.mxu0 0.0
    %9313 = vmatpush2.msra.mxu0 0.0
    %9314 = vmatprep.subr.mxu0 0.0
    %9315 = vmatpush2.msra.mxu0 0.0
    %9316 = vmatprep.subr.mxu0 0.0
    %9317 = vmatpush2.msra.mxu0 0.0
    %9318 = vmatprep.subr.mxu0 0.0
    %9319 = vmatpush2.msra.mxu0 0.0
    %9320 = vmatprep.subr.mxu0 0.0
    %9321 = vmatpush2.msra.mxu0 0.0
    %9322 = vmatprep.subr.mxu0 0.0
    %9323 = vmatpush2.msra.mxu0 0.0
    %9324 = vmatprep.mubr.f32.mxu0 0.0
    %9325 = vmatmul.mubr.f32.gmra.mxu0 %v9258
    %v9326 = vpop.f32.mrf.mxu0
    %v9327 = vadd.f32 0.0, %v9326
    %v9328 = vpop.f32.mrf.mxu0
    %v9329 = vadd.f32 0.0, %v9328
    %9330 = vdwg.mxu0
    %s9331 = scalar_lea.vmem [#allocation13], 1024
    %v9332 = vld [vmem:[%s9331] sm:$0xff]
    %v9333 = vld [vmem:[%s9331 + $0x8] sm:$0xff]
    %v9334 = vld [vmem:[%s9331 + $0x10] sm:$0xff]
    %v9335 = vld [vmem:[%s9331 + $0x18] sm:$0xff]
    %v9336 = vld [vmem:[%s9331 + $0x20] sm:$0xff]
    %v9337 = vld [vmem:[%s9331 + $0x28] sm:$0xff]
    %v9338 = vld [vmem:[%s9331 + $0x30] sm:$0xff]
    %v9339 = vld [vmem:[%s9331 + $0x38] sm:$0xff]
    %v9340 = vld [vmem:[%s9331 + $0x40] sm:$0xff]
    %v9341 = vld [vmem:[%s9331 + $0x48] sm:$0xff]
    %v9342 = vld [vmem:[%s9331 + $0x50] sm:$0xff]
    %v9343 = vld [vmem:[%s9331 + $0x58] sm:$0xff]
    %v9344 = vld [vmem:[%s9331 + $0x60] sm:$0xff]
    %v9345 = vld [vmem:[%s9331 + $0x68] sm:$0xff]
    %v9346 = vld [vmem:[%s9331 + $0x70] sm:$0xff]
    %v9347 = vld [vmem:[%s9331 + $0x78] sm:$0xff]
    %v9348 = vld [vmem:[%s9331 + $0x80] sm:$0xff]
    %v9349 = vld [vmem:[%s9331 + $0x88] sm:$0xff]
    %v9350 = vld [vmem:[%s9331 + $0x90] sm:$0xff]
    %v9351 = vld [vmem:[%s9331 + $0x98] sm:$0xff]
    %v9352 = vld [vmem:[%s9331 + $0xa0] sm:$0xff]
    %v9353 = vld [vmem:[%s9331 + $0xa8] sm:$0xff]
    %v9354 = vld [vmem:[%s9331 + $0xb0] sm:$0xff]
    %v9355 = vld [vmem:[%s9331 + $0xb8] sm:$0xff]
    %v9356 = vld [vmem:[%s9331 + $0xc0] sm:$0xff]
    %v9357 = vld [vmem:[%s9331 + $0xc8] sm:$0xff]
    %v9358 = vld [vmem:[%s9331 + $0xd0] sm:$0xff]
    %v9359 = vld [vmem:[%s9331 + $0xd8] sm:$0xff]
    %v9360 = vld [vmem:[%s9331 + $0xe0] sm:$0xff]
    %v9361 = vld [vmem:[%s9331 + $0xe8] sm:$0xff]
    %v9362 = vld [vmem:[%s9331 + $0xf0] sm:$0xff]
    %v9363 = vld [vmem:[%s9331 + $0xf8] sm:$0xff]
    %9364 = vmatprep.subr.mxu0 0.0
    %9365 = vmatpush1.msra.mxu0 %v9347
    %9366 = vmatprep.subr.mxu0 0.0
    %9367 = vmatpush1.msra.mxu0 %v9346
    %9368 = vmatprep.subr.mxu0 0.0
    %9369 = vmatpush1.msra.mxu0 %v9345
    %9370 = vmatprep.subr.mxu0 0.0
    %9371 = vmatpush1.msra.mxu0 %v9344
    %9372 = vmatprep.subr.mxu0 0.0
    %9373 = vmatpush1.msra.mxu0 %v9343
    %9374 = vmatprep.subr.mxu0 0.0
    %9375 = vmatpush1.msra.mxu0 %v9342
    %9376 = vmatprep.subr.mxu0 0.0
    %9377 = vmatpush1.msra.mxu0 %v9341
    %9378 = vmatprep.subr.mxu0 0.0
    %9379 = vmatpush1.msra.mxu0 %v9340
    %9380 = vmatprep.subr.mxu0 0.0
    %9381 = vmatpush1.msra.mxu0 %v9339
    %9382 = vmatprep.subr.mxu0 0.0
    %9383 = vmatpush1.msra.mxu0 %v9338
    %9384 = vmatprep.subr.mxu0 0.0
    %9385 = vmatpush1.msra.mxu0 %v9337
    %9386 = vmatprep.subr.mxu0 0.0
    %9387 = vmatpush1.msra.mxu0 %v9336
    %9388 = vmatprep.subr.mxu0 0.0
    %9389 = vmatpush1.msra.mxu0 %v9335
    %9390 = vmatprep.subr.mxu0 0.0
    %9391 = vmatpush1.msra.mxu0 %v9334
    %9392 = vmatprep.subr.mxu0 0.0
    %9393 = vmatpush1.msra.mxu0 %v9333
    %9394 = vmatprep.subr.mxu0 0.0
    %9395 = vmatpush1.msra.mxu0 %v9332
    %9396 = vmatprep.subr.mxu0 0.0
    %9397 = vmatpush2.msra.mxu0 %v9363
    %9398 = vmatprep.subr.mxu0 0.0
    %9399 = vmatpush2.msra.mxu0 %v9362
    %9400 = vmatprep.subr.mxu0 0.0
    %9401 = vmatpush2.msra.mxu0 %v9361
    %9402 = vmatprep.subr.mxu0 0.0
    %9403 = vmatpush2.msra.mxu0 %v9360
    %9404 = vmatprep.subr.mxu0 0.0
    %9405 = vmatpush2.msra.mxu0 %v9359
    %9406 = vmatprep.subr.mxu0 0.0
    %9407 = vmatpush2.msra.mxu0 %v9358
    %9408 = vmatprep.subr.mxu0 0.0
    %9409 = vmatpush2.msra.mxu0 %v9357
    %9410 = vmatprep.subr.mxu0 0.0
    %9411 = vmatpush2.msra.mxu0 %v9356
    %9412 = vmatprep.subr.mxu0 0.0
    %9413 = vmatpush2.msra.mxu0 %v9355
    %9414 = vmatprep.subr.mxu0 0.0
    %9415 = vmatpush2.msra.mxu0 %v9354
    %9416 = vmatprep.subr.mxu0 0.0
    %9417 = vmatpush2.msra.mxu0 %v9353
    %9418 = vmatprep.subr.mxu0 0.0
    %9419 = vmatpush2.msra.mxu0 %v9352
    %9420 = vmatprep.subr.mxu0 0.0
    %9421 = vmatpush2.msra.mxu0 %v9351
    %9422 = vmatprep.subr.mxu0 0.0
    %9423 = vmatpush2.msra.mxu0 %v9350
    %9424 = vmatprep.subr.mxu0 0.0
    %9425 = vmatpush2.msra.mxu0 %v9349
    %9426 = vmatprep.subr.mxu0 0.0
    %9427 = vmatpush2.msra.mxu0 %v9348
    %9428 = vmatprep.mubr.f32.mxu0 %v9329
    %9429 = vmatmul.mubr.f32.gmra.mxu0 %v9327
    %v9430 = vpop.f32.mrf.mxu0
    %v9431 = vadd.f32 0.0, %v9430
    %v9432 = vpop.f32.mrf.mxu0
    %9433 = vdwg.mxu0
    %v9434 = vadd.f32 %v9254, %v9431
    %v9435 = vld [vmem:[#allocation15] sm:$0x1]
    %v9437 = vlaneseq
    %v9438 = vshrl.u32 %v9437, 7
    %v9439 = vsub.s32 0, %v9438
    %v9440 = vrot.slane %v9435, %v9439
    %v9442 = vadd.f32 %v9434, %v9440
    %v9443 = vmul.f32 %v9442, 0.1
    %v9444 = vmax.f32 %v9442, %v9443
    %v9445 = vld [vmem:[#allocation16] sm:$0xff]
    %v9446 = vld [vmem:[#allocation16 + $0x8] sm:$0xff]
    %v9447 = vld [vmem:[#allocation16 + $0x10] sm:$0xff]
    %v9448 = vld [vmem:[#allocation16 + $0x18] sm:$0xff]
    %v9449 = vld [vmem:[#allocation16 + $0x20] sm:$0xff]
    %v9450 = vld [vmem:[#allocation16 + $0x28] sm:$0xff]
    %v9451 = vld [vmem:[#allocation16 + $0x30] sm:$0xff]
    %v9452 = vld [vmem:[#allocation16 + $0x38] sm:$0xff]
    %v9453 = vld [vmem:[#allocation16 + $0x40] sm:$0xff]
    %v9454 = vld [vmem:[#allocation16 + $0x48] sm:$0xff]
    %v9455 = vld [vmem:[#allocation16 + $0x50] sm:$0xff]
    %v9456 = vld [vmem:[#allocation16 + $0x58] sm:$0xff]
    %v9457 = vld [vmem:[#allocation16 + $0x60] sm:$0xff]
    %v9458 = vld [vmem:[#allocation16 + $0x68] sm:$0xff]
    %v9459 = vld [vmem:[#allocation16 + $0x70] sm:$0xff]
    %v9460 = vld [vmem:[#allocation16 + $0x78] sm:$0xff]
    %v9461 = vld [vmem:[#allocation18] sm:$0x1]
    %v9463 = vlaneseq
    %v9464 = vshrl.u32 %v9463, 7
    %v9465 = vsub.s32 0, %v9464
    %v9466 = vrot.slane %v9461, %v9465
    %9468 = vmatprep.subr.mxu0 0.0
    %9469 = vmatpush1.msra.mxu0 %v9460
    %9470 = vmatprep.subr.mxu0 0.0
    %9471 = vmatpush1.msra.mxu0 %v9459
    %9472 = vmatprep.subr.mxu0 0.0
    %9473 = vmatpush1.msra.mxu0 %v9458
    %9474 = vmatprep.subr.mxu0 0.0
    %9475 = vmatpush1.msra.mxu0 %v9457
    %9476 = vmatprep.subr.mxu0 0.0
    %9477 = vmatpush1.msra.mxu0 %v9456
    %9478 = vmatprep.subr.mxu0 0.0
    %9479 = vmatpush1.msra.mxu0 %v9455
    %9480 = vmatprep.subr.mxu0 0.0
    %9481 = vmatpush1.msra.mxu0 %v9454
    %9482 = vmatprep.subr.mxu0 0.0
    %9483 = vmatpush1.msra.mxu0 %v9453
    %9484 = vmatprep.subr.mxu0 0.0
    %9485 = vmatpush1.msra.mxu0 %v9452
    %9486 = vmatprep.subr.mxu0 0.0
    %9487 = vmatpush1.msra.mxu0 %v9451
    %9488 = vmatprep.subr.mxu0 0.0
    %9489 = vmatpush1.msra.mxu0 %v9450
    %9490 = vmatprep.subr.mxu0 0.0
    %9491 = vmatpush1.msra.mxu0 %v9449
    %9492 = vmatprep.subr.mxu0 0.0
    %9493 = vmatpush1.msra.mxu0 %v9448
    %9494 = vmatprep.subr.mxu0 0.0
    %9495 = vmatpush1.msra.mxu0 %v9447
    %9496 = vmatprep.subr.mxu0 0.0
    %9497 = vmatpush1.msra.mxu0 %v9446
    %9498 = vmatprep.subr.mxu0 0.0
    %9499 = vmatpush1.msra.mxu0 %v9445
    %9500 = vmatprep.subr.mxu0 0.0
    %9501 = vmatpush2.msra.mxu0 0.0
    %9502 = vmatprep.subr.mxu0 0.0
    %9503 = vmatpush2.msra.mxu0 0.0
    %9504 = vmatprep.subr.mxu0 0.0
    %9505 = vmatpush2.msra.mxu0 0.0
    %9506 = vmatprep.subr.mxu0 0.0
    %9507 = vmatpush2.msra.mxu0 0.0
    %9508 = vmatprep.subr.mxu0 0.0
    %9509 = vmatpush2.msra.mxu0 0.0
    %9510 = vmatprep.subr.mxu0 0.0
    %9511 = vmatpush2.msra.mxu0 0.0
    %9512 = vmatprep.subr.mxu0 0.0
    %9513 = vmatpush2.msra.mxu0 0.0
    %9514 = vmatprep.subr.mxu0 0.0
    %9515 = vmatpush2.msra.mxu0 0.0
    %9516 = vmatprep.subr.mxu0 0.0
    %9517 = vmatpush2.msra.mxu0 0.0
    %9518 = vmatprep.subr.mxu0 0.0
    %9519 = vmatpush2.msra.mxu0 0.0
    %9520 = vmatprep.subr.mxu0 0.0
    %9521 = vmatpush2.msra.mxu0 0.0
    %9522 = vmatprep.subr.mxu0 0.0
    %9523 = vmatpush2.msra.mxu0 0.0
    %9524 = vmatprep.subr.mxu0 0.0
    %9525 = vmatpush2.msra.mxu0 0.0
    %9526 = vmatprep.subr.mxu0 0.0
    %9527 = vmatpush2.msra.mxu0 0.0
    %9528 = vmatprep.subr.mxu0 0.0
    %9529 = vmatpush2.msra.mxu0 0.0
    %9530 = vmatprep.subr.mxu0 0.0
    %9531 = vmatpush2.msra.mxu0 0.0
    %9532 = vmatprep.mubr.f32.mxu0 0.0
    %9533 = vmatmul.mubr.f32.gmra.mxu0 %v9444
    %v9534 = vpop.f32.mrf.mxu0
    %v9535 = vadd.f32 %v9466, %v9534
    %v9536 = vpop.f32.mrf.mxu0
    %9537 = vdwg.mxu0
    %v9538 = vmul.f32 %v9535, 0.1
    %v9539 = vmax.f32 %v9535, %v9538
    %v9540 = vld [vmem:[#allocation19] sm:$0xff]
    %v9541 = vld [vmem:[#allocation19 + $0x8] sm:$0xff]
    %v9542 = vld [vmem:[#allocation19 + $0x10] sm:$0xff]
    %v9543 = vld [vmem:[#allocation19 + $0x18] sm:$0xff]
    %v9544 = vld [vmem:[#allocation19 + $0x20] sm:$0xff]
    %v9545 = vld [vmem:[#allocation19 + $0x28] sm:$0xff]
    %v9546 = vld [vmem:[#allocation19 + $0x30] sm:$0xff]
    %v9547 = vld [vmem:[#allocation19 + $0x38] sm:$0xff]
    %v9548 = vld [vmem:[#allocation19 + $0x40] sm:$0xff]
    %v9549 = vld [vmem:[#allocation19 + $0x48] sm:$0xff]
    %v9550 = vld [vmem:[#allocation19 + $0x50] sm:$0xff]
    %v9551 = vld [vmem:[#allocation19 + $0x58] sm:$0xff]
    %v9552 = vld [vmem:[#allocation19 + $0x60] sm:$0xff]
    %v9553 = vld [vmem:[#allocation19 + $0x68] sm:$0xff]
    %v9554 = vld [vmem:[#allocation19 + $0x70] sm:$0xff]
    %v9555 = vld [vmem:[#allocation19 + $0x78] sm:$0xff]
    %v9556 = vld [vmem:[#allocation21] sm:$0x1]
    %v9558 = vlaneseq
    %v9559 = vshrl.u32 %v9558, 7
    %v9560 = vsub.s32 0, %v9559
    %v9561 = vrot.slane %v9556, %v9560
    %9563 = vmatprep.subr.mxu0 0.0
    %9564 = vmatpush1.msra.mxu0 %v9555
    %9565 = vmatprep.subr.mxu0 0.0
    %9566 = vmatpush1.msra.mxu0 %v9554
    %9567 = vmatprep.subr.mxu0 0.0
    %9568 = vmatpush1.msra.mxu0 %v9553
    %9569 = vmatprep.subr.mxu0 0.0
    %9570 = vmatpush1.msra.mxu0 %v9552
    %9571 = vmatprep.subr.mxu0 0.0
    %9572 = vmatpush1.msra.mxu0 %v9551
    %9573 = vmatprep.subr.mxu0 0.0
    %9574 = vmatpush1.msra.mxu0 %v9550
    %9575 = vmatprep.subr.mxu0 0.0
    %9576 = vmatpush1.msra.mxu0 %v9549
    %9577 = vmatprep.subr.mxu0 0.0
    %9578 = vmatpush1.msra.mxu0 %v9548
    %9579 = vmatprep.subr.mxu0 0.0
    %9580 = vmatpush1.msra.mxu0 %v9547
    %9581 = vmatprep.subr.mxu0 0.0
    %9582 = vmatpush1.msra.mxu0 %v9546
    %9583 = vmatprep.subr.mxu0 0.0
    %9584 = vmatpush1.msra.mxu0 %v9545
    %9585 = vmatprep.subr.mxu0 0.0
    %9586 = vmatpush1.msra.mxu0 %v9544
    %9587 = vmatprep.subr.mxu0 0.0
    %9588 = vmatpush1.msra.mxu0 %v9543
    %9589 = vmatprep.subr.mxu0 0.0
    %9590 = vmatpush1.msra.mxu0 %v9542
    %9591 = vmatprep.subr.mxu0 0.0
    %9592 = vmatpush1.msra.mxu0 %v9541
    %9593 = vmatprep.subr.mxu0 0.0
    %9594 = vmatpush1.msra.mxu0 %v9540
    %9595 = vmatprep.subr.mxu0 0.0
    %9596 = vmatpush2.msra.mxu0 0.0
    %9597 = vmatprep.subr.mxu0 0.0
    %9598 = vmatpush2.msra.mxu0 0.0
    %9599 = vmatprep.subr.mxu0 0.0
    %9600 = vmatpush2.msra.mxu0 0.0
    %9601 = vmatprep.subr.mxu0 0.0
    %9602 = vmatpush2.msra.mxu0 0.0
    %9603 = vmatprep.subr.mxu0 0.0
    %9604 = vmatpush2.msra.mxu0 0.0
    %9605 = vmatprep.subr.mxu0 0.0
    %9606 = vmatpush2.msra.mxu0 0.0
    %9607 = vmatprep.subr.mxu0 0.0
    %9608 = vmatpush2.msra.mxu0 0.0
    %9609 = vmatprep.subr.mxu0 0.0
    %9610 = vmatpush2.msra.mxu0 0.0
    %9611 = vmatprep.subr.mxu0 0.0
    %9612 = vmatpush2.msra.mxu0 0.0
    %9613 = vmatprep.subr.mxu0 0.0
    %9614 = vmatpush2.msra.mxu0 0.0
    %9615 = vmatprep.subr.mxu0 0.0
    %9616 = vmatpush2.msra.mxu0 0.0
    %9617 = vmatprep.subr.mxu0 0.0
    %9618 = vmatpush2.msra.mxu0 0.0
    %9619 = vmatprep.subr.mxu0 0.0
    %9620 = vmatpush2.msra.mxu0 0.0
    %9621 = vmatprep.subr.mxu0 0.0
    %9622 = vmatpush2.msra.mxu0 0.0
    %9623 = vmatprep.subr.mxu0 0.0
    %9624 = vmatpush2.msra.mxu0 0.0
    %9625 = vmatprep.subr.mxu0 0.0
    %9626 = vmatpush2.msra.mxu0 0.0
    %9627 = vmatprep.mubr.f32.mxu0 0.0
    %9628 = vmatmul.mubr.f32.gmra.mxu0 %v9539
    %v9629 = vpop.f32.mrf.mxu0
    %v9630 = vadd.f32 %v9561, %v9629
    %v9631 = vpop.f32.mrf.mxu0
    %9632 = vdwg.mxu0
    %9633 = vst [vmem:[%s14] sm:$0xff] %v9630
    // Predicated region
    $region110: #{lenet5_forward.1} parent=1 // pred_check
      _
    $region111: #{lenet5_forward.1} parent=1 // pred_check_branch
      %9635 = sbr.rel (0) target = $region113
    $region112: #{lenet5_forward.1} parent=1 // pred_region
      _
    $region113: #{lenet5_forward.1} parent=1 // pred_fallthru
      _
    // Predicated region
    $region114: #{lenet5_forward.1} parent=1 // pred_check
      _
    $region115: #{lenet5_forward.1} parent=1 // pred_check_branch
      %9637 = sbr.rel (0) target = $region117
    $region116: #{lenet5_forward.1} parent=1 // pred_region
      _
    $region117: #{lenet5_forward.1} parent=1 // pred_fallthru
      _
    %9638 = vsyncpa [#allocation3], 1
    %9639 = vsyncpa [#allocation5], 1
    %9640 = vsyncpa [#allocation8], 1
    %9641 = vsyncpa [#allocation11], 1
    %9642 = vsyncpa [#allocation14], 1
    %9643 = vsyncpa [#allocation17], 1
    %9644 = vsyncpa [#allocation20], 1

</llo_original>
